<compile_context>
chip_gen: v5e
topology: v5e:2x2
jax: 0.10.0
libtpu: 0.0.40
codegen_flags: <defaults>
</compile_context>

<pallas_src>
import functools

import jax
import jax.numpy as jnp
from jax.experimental import pallas as pl
from jax.experimental.pallas import tpu as pltpu

CPAD = 128          # conv output channels padded to a full lane width
BN_EPS = 1e-5


def _round_up(x, m):
    return (x + m - 1) // m * m


# --------------------------------------------------------------------------- #
# Kernel 1: batch-flattened conv GEMM + per-tile BN partial sums               #
#   patches : (M_pad, K)          bf16  (M = B*OH*OW, zero-padded rows)        #
#   w       : (K, 128)            bf16  (Cout zero-padded to 128 lanes)        #
#   y out   : (M_pad, 128)        bf16  (pre-BN GEMM result)                   #
#   stats   : (num_tiles, 2, 128) f32   (row 0 = sum, row 1 = sum of squares)  #
# --------------------------------------------------------------------------- #
def _conv_gemm_kernel(x_ref, w_ref, y_ref, s_ref):
    y = jnp.dot(x_ref[...], w_ref[...], preferred_element_type=jnp.float32)
    y_ref[...] = y.astype(y_ref.dtype)
    ssum = jnp.sum(y, axis=0, keepdims=True)          # (1, 128)
    ssq = jnp.sum(y * y, axis=0, keepdims=True)       # (1, 128)
    s_ref[0] = jnp.concatenate([ssum, ssq], axis=0)   # (2, 128)


def conv_gemm(patches, w_pad, *, tm, num_tiles):
    m_pad, K = patches.shape
    Np = w_pad.shape[1]
    return pl.pallas_call(
        _conv_gemm_kernel,
        out_shape=(jax.ShapeDtypeStruct((m_pad, Np), jnp.bfloat16),
                   jax.ShapeDtypeStruct((num_tiles, 2, Np), jnp.float32)),
        grid=(num_tiles,),
        in_specs=[pl.BlockSpec((tm, K), lambda m: (m, 0)),
                  pl.BlockSpec((K, Np), lambda m: (0, 0))],   # resident weight
        out_specs=(pl.BlockSpec((tm, Np), lambda m: (m, 0)),
                   pl.BlockSpec((1, 2, Np), lambda m: (m, 0, 0))),
        compiler_params=pltpu.CompilerParams(
            dimension_semantics=("parallel",)),
    )(patches, w_pad)


# --------------------------------------------------------------------------- #
# Kernel 2: apply precomputed per-channel scale/shift + ReLU (pure FMA)        #
# --------------------------------------------------------------------------- #
def _bn_relu_kernel(y_ref, sc_ref, sh_ref, o_ref):
    y = y_ref[...].astype(jnp.float32)
    o_ref[...] = jnp.maximum(y * sc_ref[...] + sh_ref[...], 0.0).astype(o_ref.dtype)


def bn_relu(y, scale, shift, *, tm, num_tiles):
    # Merge consecutive GEMM tiles pairwise (fewer grid steps for a purely
    # elementwise kernel) but keep >= 2 tiles so v7x megacore feeds both cores,
    # and cap blocks at 2048 rows (<= 512 KiB bf16 per buffer).
    while num_tiles > 2 and num_tiles % 2 == 0 and tm * 2 <= 2048:
        tm, num_tiles = tm * 2, num_tiles // 2
    m_pad, Np = y.shape
    return pl.pallas_call(
        _bn_relu_kernel,
        out_shape=jax.ShapeDtypeStruct((m_pad, Np), jnp.bfloat16),
        grid=(num_tiles,),
        in_specs=[pl.BlockSpec((tm, Np), lambda m: (m, 0)),
                  pl.BlockSpec((1, Np), lambda m: (0, 0)),
                  pl.BlockSpec((1, Np), lambda m: (0, 0))],
        out_specs=pl.BlockSpec((tm, Np), lambda m: (m, 0)),
        compiler_params=pltpu.CompilerParams(
            dimension_semantics=("parallel",)),
    )(y, scale, shift)


def _bn_scale_shift(stats, gamma, beta, *, count, eps=BN_EPS):
    """Tiny XLA reduction: (num_tiles,2,128) partial sums -> scale/shift (1,128)."""
    s = jnp.sum(stats, axis=0)                        # (2, 128)
    inv_n = 1.0 / float(count)
    mean = s[0] * inv_n
    var = jnp.maximum(s[1] * inv_n - mean * mean, 0.0)
    scale = gamma[0] * jax.lax.rsqrt(var + eps)       # pad channels: gamma=0 -> 0
    shift = beta[0] - mean * scale
    return scale.reshape(1, -1), shift.reshape(1, -1)


def _choose_m_tiling(M):
    """Aligned M tiles: 256 rows when M is large, else two sublane-aligned tiles."""
    if M > 512:
        tm = 256
    else:
        tm = max(8, _round_up(-(-M // 2), 8))         # >= 2 tiles for megacore
    return tm, -(-M // tm)


def conv_block(x_img, w_pad, gamma_pad, beta_pad, *, kh, kw, stride, dn):
    """im2col (XLA) + Pallas GEMM(+stats) + Pallas BN/ReLU.  Returns (B*P, 128)."""
    # TODO(synk): for large batches, gather conv1's patches inside the GEMM
    # kernel (manual make_async_copy over row windows) to avoid the im2col
    # HBM round-trip; the XLA path is fine at small B.
    patches = jax.lax.conv_general_dilated_patches(
        x_img, (kh, kw), (stride, stride), 'VALID', dimension_numbers=dn)
    B, OH, OW, K = patches.shape                       # out_spec is NHWC
    M = B * OH * OW
    patches = patches.reshape(M, K)
    tm, num_tiles = _choose_m_tiling(M)
    m_pad = tm * num_tiles
    if m_pad != M:                                     # zero rows: no effect on sums
        patches = jnp.pad(patches, ((0, m_pad - M), (0, 0)))
    y, stats = conv_gemm(patches, w_pad, tm=tm, num_tiles=num_tiles)
    scale, shift = _bn_scale_shift(stats, gamma_pad, beta_pad, count=M)
    act = bn_relu(y, scale, shift, tm=tm, num_tiles=num_tiles)
    return act[:M], (B, OH, OW)


# --------------------------------------------------------------------------- #
# Kernel 3: fused MLP head (single invocation, no K tiling)                    #
#   fc1 -> BN -> ReLU ; fc2 split (h@top + action@bot, no concat) -> BN ->     #
#   ReLU ; fc3 (+ bias).  Small constants packed into gb4 (2,256) and          #
#   consts (4+A, 128): rows 0/1 = bn5 gamma/beta, 2 = fc3 w, 3 = fc3 b,        #
#   4.. = fc2 action rows.                                                     #
# --------------------------------------------------------------------------- #
def _head_kernel(x_ref, w1_ref, gb4_ref, a_ref, w2a_ref, c_ref, o_ref, *, eps):
    n2 = w2a_ref.shape[1]
    A = a_ref.shape[1]

    def bn_relu_rows(y, gamma, beta):
        mean = jnp.mean(y, axis=0, keepdims=True)
        diff = y - mean
        var = jnp.mean(diff * diff, axis=0, keepdims=True)
        return jnp.maximum(diff * jax.lax.rsqrt(var + eps) * gamma + beta, 0.0)

    # fc1: K = 4096 in one block -> the 2 MiB weight DMA is the floor; K tiling
    # would only add grid-step overhead at small B.
    h = jnp.dot(x_ref[...], w1_ref[...], preferred_element_type=jnp.float32)
    h = bn_relu_rows(h, gb4_ref[0:1, :], gb4_ref[1:2, :])             # (B, 256)

    # fc2: weight split at row 256 so the action is never concatenated.
    w2b = c_ref[4:4 + A, 0:n2].astype(jnp.bfloat16)                    # (A, 32)
    z = (jnp.dot(h.astype(jnp.bfloat16), w2a_ref[...],
                 preferred_element_type=jnp.float32)
         + jnp.dot(a_ref[...].astype(jnp.bfloat16), w2b,
                   preferred_element_type=jnp.float32))
    z = bn_relu_rows(z, c_ref[0:1, 0:n2], c_ref[1:2, 0:n2])            # (B, 32)

    # fc3 as a lane reduction (32 -> 1) + bias.
    q = jnp.sum(z * c_ref[2:3, 0:n2], axis=1, keepdims=True) + c_ref[3:4, 0:1]
    o_ref[...] = q.astype(o_ref.dtype)


def mlp_head(x, action, w1, gb4, w2a, consts, *, eps=BN_EPS):
    B, K = x.shape
    A = action.shape[1]
    n1 = w1.shape[1]
    n2 = w2a.shape[1]
    kern = functools.partial(_head_kernel, eps=eps)
    return pl.pallas_call(
        kern,
        out_shape=jax.ShapeDtypeStruct((B, 1), jnp.float32),
        grid=(1,),
        in_specs=[
            pl.BlockSpec((B, K), lambda i: (0, 0)),        # conv features
            pl.BlockSpec((K, n1), lambda i: (0, 0)),       # fc1 weight (2 MiB bf16)
            pl.BlockSpec((2, n1), lambda i: (0, 0)),       # bn4 gamma / beta
            pl.BlockSpec((B, A), lambda i: (0, 0)),        # action
            pl.BlockSpec((n1, n2), lambda i: (0, 0)),      # fc2 top rows
            pl.BlockSpec(consts.shape, lambda i: (0, 0)),  # packed small consts
        ],
        out_specs=pl.BlockSpec((B, 1), lambda i: (0, 0)),
        compiler_params=pltpu.CompilerParams(
            dimension_semantics=("arbitrary",)),
    )(x, w1, gb4, action, w2a, consts)


# --------------------------------------------------------------------------- #
# Full Critic forward                                                          #
# --------------------------------------------------------------------------- #
def critic_forward(params, state_nchw, action):
    p = params
    x = state_nchw.astype(jnp.bfloat16)                # keep NCHW; patches glue
    a1, (B, oh1, ow1) = conv_block(x, p['conv1_w'], p['bn1_g'], p['bn1_b'],
                                   kh=8, kw=8, stride=4,
                                   dn=('NCHW', 'OIHW', 'NHWC'))
    x2 = a1.reshape(B, oh1, ow1, CPAD)[..., :32]       # drop pad channels
    a2, (_, oh2, ow2) = conv_block(x2, p['conv2_w'], p['bn2_g'], p['bn2_b'],
                                   kh=4, kw=4, stride=3,
                                   dn=('NHWC', 'HWIO', 'NHWC'))
    x3 = a2.reshape(B, oh2, ow2, CPAD)[..., :64]
    a3, (_, oh3, ow3) = conv_block(x3, p['conv3_w'], p['bn3_g'], p['bn3_b'],
                                   kh=3, kw=3, stride=1,
                                   dn=('NHWC', 'HWIO', 'NHWC'))
    # Flatten in NHWC order (fc1_w rows were permuted at prep time to match),
    # so no runtime transpose of the activation is needed.
    feat = a3.reshape(B, oh3, ow3, CPAD)[..., :64].reshape(B, oh3 * ow3 * 64)
    return mlp_head(feat, action.astype(jnp.float32),
                    p['fc1_w'], p['bn4_gb'], p['fc2_w_top'], p['head_consts'])


# --------------------------------------------------------------------------- #
# Parameters: torch-layout init + one-time host-side prep (pad / permute /     #
# split / pack / cast) so the kernels never do layout work at runtime.         #
# --------------------------------------------------------------------------- #
def init_params(key, in_channels, num_actions):
    ks = jax.random.split(key, 12)

    def w(k, shape, fan_in):
        return jax.random.normal(k, shape, jnp.float32) / jnp.sqrt(fan_in)

    def bn(k, n):
        kg, kb = jax.random.split(k)
        return (1.0 + 0.1 * jax.random.normal(kg, (n,), jnp.float32),
                0.1 * jax.random.normal(kb, (n,), jnp.float32))

    p = {}
    p['conv1_w'] = w(ks[0], (32, in_channels, 8, 8), in_channels * 64)
    p['bn1_g'], p['bn1_b'] = bn(ks[1], 32)
    p['conv2_w'] = w(ks[2], (64, 32, 4, 4), 32 * 16)
    p['bn2_g'], p['bn2_b'] = bn(ks[3], 64)
    p['conv3_w'] = w(ks[4], (64, 64, 3, 3), 64 * 9)
    p['bn3_g'], p['bn3_b'] = bn(ks[5], 64)
    # Linear weights stored as (in, out); fc1 rows in torch (C,H,W) flatten order.
    p['fc1_w'] = w(ks[6], (64 * 8 * 8, 256), 64 * 8 * 8)
    p['bn4_g'], p['bn4_b'] = bn(ks[7], 256)
    p['fc2_w'] = w(ks[8], (256 + num_actions, 32), 256 + num_actions)
    p['bn5_g'], p['bn5_b'] = bn(ks[9], 32)
    p['fc3_w'] = w(ks[10], (32, 1), 32)
    p['fc3_b'] = 0.01 * jax.random.normal(ks[11], (1,), jnp.float32)
    # Conv / fc1 / fc2 biases intentionally not created: training-mode BatchNorm
    # mean subtraction cancels any per-channel bias exactly.
    return p


def prepare_params(tp):
    """One-time (outside jit) conversion to kernel-ready layout / dtypes."""
    def pad_cols(w2d):
        return jnp.pad(w2d, ((0, 0), (0, CPAD - w2d.shape[1])))

    def pad_vec(v):
        return jnp.pad(v, (0, CPAD - v.shape[0])).reshape(1, CPAD)

    p = {}
    for i, name in enumerate(['conv1', 'conv2', 'conv3'], start=1):
        w = tp[f'{name}_w']                            # (Cout, Cin, KH, KW)
        cout = w.shape[0]
        # conv_general_dilated_patches emits features in (Cin, KH, KW) order,
        # matching torch's weight.reshape(Cout, -1) (verified in __main__).
        wg = w.reshape(cout, -1).T                     # (K, Cout)
        p[f'{name}_w'] = pad_cols(wg).astype(jnp.bfloat16)
        p[f'bn{i}_g'] = pad_vec(tp[f'bn{i}_g']).astype(jnp.float32)
        p[f'bn{i}_b'] = pad_vec(tp[f'bn{i}_b']).astype(jnp.float32)

    # fc1: permute rows once from torch (C,H,W) flatten order to the NHWC
    # (H,W,C) order produced by the conv tower (bit-identical GEMM result).
    w1 = tp['fc1_w'].reshape(64, 8, 8, 256).transpose(1, 2, 0, 3)
    p['fc1_w'] = w1.reshape(64 * 8 * 8, 256).astype(jnp.bfloat16)
    p['bn4_gb'] = jnp.stack([tp['bn4_g'], tp['bn4_b']]).astype(jnp.float32)

    # fc2: split at row 256 (no runtime concat of the action).  Bottom (action)
    # rows + bn5 gamma/beta + fc3 w/b are packed into ONE lane-padded operand.
    p['fc2_w_top'] = tp['fc2_w'][:256].astype(jnp.bfloat16)
    w2b = tp['fc2_w'][256:]
    A, n2 = w2b.shape
    consts = jnp.zeros((4 + A, CPAD), jnp.float32)
    consts = consts.at[0, :n2].set(tp['bn5_g'])
    consts = consts.at[1, :n2].set(tp['bn5_b'])
    consts = consts.at[2, :n2].set(tp['fc3_w'].reshape(-1))
    consts = consts.at[3, 0].set(tp['fc3_b'][0])
    consts = consts.at[4:, :n2].set(w2b)
    p['head_consts'] = consts
    return p


def _verify_patch_order():
    """One-time f32 XLA-vs-XLA check that conv_general_dilated_patches emits
    (Cin, KH, KW)-ordered features for both dimension_number variants used,
    i.e. that torch weight.reshape(Cout,-1).T is the correct GEMM operand."""
    kx, kw_ = jax.random.split(jax.random.PRNGKey(7))
    x = jax.random.normal(kx, (2, 3, 13, 13), jnp.float32)        # NCHW
    w = jax.random.normal(kw_, (5, 3, 4, 4), jnp.float32)         # OIHW
    cases = (
        (('NCHW', 'OIHW', 'NHWC'), x, w),
        (('NHWC', 'HWIO', 'NHWC'),
         jnp.transpose(x, (0, 2, 3, 1)), jnp.transpose(w, (2, 3, 1, 0))),
    )
    for dn, xin, win in cases:
        ref = jax.lax.conv_general_dilated(xin, win, (2, 2), 'VALID',
                                           dimension_numbers=dn)
        pat = jax.lax.conv_general_dilated_patches(xin, (4, 4), (2, 2), 'VALID',
                                                   dimension_numbers=dn)
        got = pat.reshape(-1, 3 * 16) @ w.reshape(5, -1).T
        assert jnp.allclose(got.reshape(ref.shape), ref, rtol=1e-4, atol=1e-3), \
            "conv_general_dilated_patches feature ordering mismatch"


if __name__ == "__main__":
    batch, in_channels, num_actions = 2, 4, 6
    H = W = 128   # 128 -> conv1(8,s4) 31 -> conv2(4,s3) 10 -> conv3(3,s1) 8

    _verify_patch_order()

    key = jax.random.PRNGKey(0)
    k_state, k_action, k_params = jax.random.split(key, 3)
    state = jax.random.normal(k_state, (batch, in_channels, H, W), jnp.float32)
    action = jax.random.normal(k_action, (batch, num_actions), jnp.float32)

    params = prepare_params(init_params(k_params, in_channels, num_actions))

    out = jax.jit(critic_forward)(params, state, action)
    out = jax.block_until_ready(out)
    assert out.shape == (batch, 1), out.shape
    assert bool(jnp.all(jnp.isfinite(out)))
    print("KERNEL_OK")
</pallas_src>

<mosaic_0001>
module attributes {stable_mosaic.version = 11 : i64} {
  func.func @_conv_gemm_kernel(%arg0: i32, %arg1: memref<256x256xbf16, #tpu.memory_space<vmem>>, %arg2: memref<256x128xbf16, #tpu.memory_space<vmem>>, %arg3: memref<256x128xbf16, #tpu.memory_space<vmem>>, %arg4: memref<1x2x128xf32, #tpu.memory_space<vmem>>) attributes {dimension_semantics = [#tpu.dimension_semantics<parallel>], iteration_bounds = array<i64: 8>, scalar_prefetch = 0 : i64, scratch_operands = 0 : i64, tpu.core_type = #tpu.core_type<tc>, window_params = [{transform_indices = @transform_0, window_bounds = array<i64: 256, 256>}, {pipeline_mode = #tpu.pipeline_mode<synchronous>, transform_indices = @transform_1, window_bounds = array<i64: 256, 128>}, {transform_indices = @transform_2, window_bounds = array<i64: 256, 128>}, {transform_indices = @transform_3, window_bounds = array<i64: 1, 2, 128>}]} {
    %c0 = arith.constant 0 : index
    %c0_0 = arith.constant 0 : index
    %0 = vector.load %arg1[%c0, %c0_0] : memref<256x256xbf16, #tpu.memory_space<vmem>>, vector<256x256xbf16>
    %c0_1 = arith.constant 0 : index
    %c0_2 = arith.constant 0 : index
    %1 = vector.load %arg2[%c0_1, %c0_2] : memref<256x128xbf16, #tpu.memory_space<vmem>>, vector<256x128xbf16>
    %cst = arith.constant dense<0.000000e+00> : vector<256x128xf32>
    %2 = tpu.matmul %0, %1, %cst {dimension_numbers = #tpu.dot_dimension_numbers<[1], [0], [0], [1], [0, 0, 1, 1], [], []>} : vector<256x256xbf16>, vector<256x128xbf16>, vector<256x128xf32> -> vector<256x128xf32>
    %3 = arith.truncf %2 : vector<256x128xf32> to vector<256x128xbf16>
    %c0_3 = arith.constant 0 : index
    %c0_4 = arith.constant 0 : index
    %4 = vector.load %arg3[%c0_3, %c0_4] : memref<256x128xbf16, #tpu.memory_space<vmem>>, vector<256x128xbf16>
    tpu.vector_store %arg3[%c0_3, %c0_4], %3 {strides = array<i32>} : memref<256x128xbf16, #tpu.memory_space<vmem>>, vector<256x128xbf16>,
    %cst_5 = arith.constant dense<0.000000e+00> : vector<128xf32>
    %5 = vector.multi_reduction <add>, %2, %cst_5 [0] : vector<256x128xf32> to vector<128xf32>
    %6 = vector.shape_cast %5 : vector<128xf32> to vector<1x128xf32>
    %7 = arith.mulf %2, %2 : vector<256x128xf32>
    %cst_6 = arith.constant dense<0.000000e+00> : vector<128xf32>
    %8 = vector.multi_reduction <add>, %7, %cst_6 [0] : vector<256x128xf32> to vector<128xf32>
    %9 = vector.shape_cast %8 : vector<128xf32> to vector<1x128xf32>
    %10 = tpu.concatenate %6, %9 in 0 : vector<1x128xf32>, vector<1x128xf32> -> vector<2x128xf32>
    %c0_7 = arith.constant 0 : index
    %c0_8 = arith.constant 0 : index
    %c0_9 = arith.constant 0 : index
    %11 = vector.load %arg4[%c0_7, %c0_8, %c0_9] : memref<1x2x128xf32, #tpu.memory_space<vmem>>, vector<1x2x128xf32>
    %12 = vector.shape_cast %11 : vector<1x2x128xf32> to vector<2x128xf32>
    %13 = vector.shape_cast %10 : vector<2x128xf32> to vector<1x2x128xf32>
    tpu.vector_store %arg4[%c0_7, %c0_8, %c0_9], %13 {strides = array<i32>} : memref<1x2x128xf32, #tpu.memory_space<vmem>>, vector<1x2x128xf32>,
    return
  }
  func.func @transform_0(%arg0: i32) -> (i32, i32) {
    %c0_i32 = arith.constant 0 : i32
    %c0_i32_0 = arith.constant 0 : i32
    return %arg0, %c0_i32 : i32, i32
  }
  func.func @transform_1(%arg0: i32) -> (i32, i32) {
    %c0_i32 = arith.constant 0 : i32
    %c0_i32_0 = arith.constant 0 : i32
    %c0_i32_1 = arith.constant 0 : i32
    return %c0_i32, %c0_i32_0 : i32, i32
  }
  func.func @transform_2(%arg0: i32) -> (i32, i32) {
    %c0_i32 = arith.constant 0 : i32
    %c0_i32_0 = arith.constant 0 : i32
    return %arg0, %c0_i32 : i32, i32
  }
  func.func @transform_3(%arg0: i32) -> (i32, i32, i32) {
    %c0_i32 = arith.constant 0 : i32
    %c0_i32_0 = arith.constant 0 : i32
    %c0_i32_1 = arith.constant 0 : i32
    return %arg0, %c0_i32, %c0_i32_0 : i32, i32, i32
  }
}

module attributes {stable_mosaic.version = 11 : i64} {
  func.func @_bn_relu_kernel(%arg0: i32, %arg1: memref<1024x128xbf16, #tpu.memory_space<vmem>>, %arg2: memref<1x128xf32, #tpu.memory_space<vmem>>, %arg3: memref<1x128xf32, #tpu.memory_space<vmem>>, %arg4: memref<1024x128xbf16, #tpu.memory_space<vmem>>) attributes {dimension_semantics = [#tpu.dimension_semantics<parallel>], iteration_bounds = array<i64: 2>, scalar_prefetch = 0 : i64, scratch_operands = 0 : i64, tpu.core_type = #tpu.core_type<tc>, window_params = [{transform_indices = @transform_0, window_bounds = array<i64: 1024, 128>}, {pipeline_mode = #tpu.pipeline_mode<synchronous>, transform_indices = @transform_1, window_bounds = array<i64: 1, 128>}, {pipeline_mode = #tpu.pipeline_mode<synchronous>, transform_indices = @transform_2, window_bounds = array<i64: 1, 128>}, {transform_indices = @transform_3, window_bounds = array<i64: 1024, 128>}]} {
    %c0 = arith.constant 0 : index
    %c0_0 = arith.constant 0 : index
    %0 = vector.load %arg1[%c0, %c0_0] : memref<1024x128xbf16, #tpu.memory_space<vmem>>, vector<1024x128xbf16>
    %1 = arith.extf %0 : vector<1024x128xbf16> to vector<1024x128xf32>
    %c0_1 = arith.constant 0 : index
    %c0_2 = arith.constant 0 : index
    %2 = vector.load %arg2[%c0_1, %c0_2] : memref<1x128xf32, #tpu.memory_space<vmem>>, vector<1x128xf32>
    %3 = vector.broadcast %2 : vector<1x128xf32> to vector<1024x128xf32>
    %4 = arith.mulf %1, %3 : vector<1024x128xf32>
    %c0_3 = arith.constant 0 : index
    %c0_4 = arith.constant 0 : index
    %5 = vector.load %arg3[%c0_3, %c0_4] : memref<1x128xf32, #tpu.memory_space<vmem>>, vector<1x128xf32>
    %6 = vector.broadcast %5 : vector<1x128xf32> to vector<1024x128xf32>
    %7 = arith.addf %4, %6 : vector<1024x128xf32>
    %cst = arith.constant 0.000000e+00 : f32
    %8 = vector.broadcast %cst : f32 to vector<1024x128xf32>
    %9 = arith.maximumf %7, %8 : vector<1024x128xf32>
    %10 = arith.truncf %9 : vector<1024x128xf32> to vector<1024x128xbf16>
    %c0_5 = arith.constant 0 : index
    %c0_6 = arith.constant 0 : index
    %11 = vector.load %arg4[%c0_5, %c0_6] : memref<1024x128xbf16, #tpu.memory_space<vmem>>, vector<1024x128xbf16>
    tpu.vector_store %arg4[%c0_5, %c0_6], %10 {strides = array<i32>} : memref<1024x128xbf16, #tpu.memory_space<vmem>>, vector<1024x128xbf16>,
    return
  }
  func.func @transform_0(%arg0: i32) -> (i32, i32) {
    %c0_i32 = arith.constant 0 : i32
    %c0_i32_0 = arith.constant 0 : i32
    return %arg0, %c0_i32 : i32, i32
  }
  func.func @transform_1(%arg0: i32) -> (i32, i32) {
    %c0_i32 = arith.constant 0 : i32
    %c0_i32_0 = arith.constant 0 : i32
    %c0_i32_1 = arith.constant 0 : i32
    return %c0_i32, %c0_i32_0 : i32, i32
  }
  func.func @transform_2(%arg0: i32) -> (i32, i32) {
    %c0_i32 = arith.constant 0 : i32
    %c0_i32_0 = arith.constant 0 : i32
    %c0_i32_1 = arith.constant 0 : i32
    return %c0_i32, %c0_i32_0 : i32, i32
  }
  func.func @transform_3(%arg0: i32) -> (i32, i32) {
    %c0_i32 = arith.constant 0 : i32
    %c0_i32_0 = arith.constant 0 : i32
    return %arg0, %c0_i32 : i32, i32
  }
}

module attributes {stable_mosaic.version = 11 : i64} {
  func.func @_conv_gemm_kernel(%arg0: i32, %arg1: memref<104x512xbf16, #tpu.memory_space<vmem>>, %arg2: memref<512x128xbf16, #tpu.memory_space<vmem>>, %arg3: memref<104x128xbf16, #tpu.memory_space<vmem>>, %arg4: memref<1x2x128xf32, #tpu.memory_space<vmem>>) attributes {dimension_semantics = [#tpu.dimension_semantics<parallel>], iteration_bounds = array<i64: 2>, scalar_prefetch = 0 : i64, scratch_operands = 0 : i64, tpu.core_type = #tpu.core_type<tc>, window_params = [{transform_indices = @transform_0, window_bounds = array<i64: 104, 512>}, {pipeline_mode = #tpu.pipeline_mode<synchronous>, transform_indices = @transform_1, window_bounds = array<i64: 512, 128>}, {transform_indices = @transform_2, window_bounds = array<i64: 104, 128>}, {transform_indices = @transform_3, window_bounds = array<i64: 1, 2, 128>}]} {
    %c0 = arith.constant 0 : index
    %c0_0 = arith.constant 0 : index
    %0 = vector.load %arg1[%c0, %c0_0] : memref<104x512xbf16, #tpu.memory_space<vmem>>, vector<104x512xbf16>
    %c0_1 = arith.constant 0 : index
    %c0_2 = arith.constant 0 : index
    %1 = vector.load %arg2[%c0_1, %c0_2] : memref<512x128xbf16, #tpu.memory_space<vmem>>, vector<512x128xbf16>
    %cst = arith.constant dense<0.000000e+00> : vector<104x128xf32>
    %2 = tpu.matmul %0, %1, %cst {dimension_numbers = #tpu.dot_dimension_numbers<[1], [0], [0], [1], [0, 0, 1, 1], [], []>} : vector<104x512xbf16>, vector<512x128xbf16>, vector<104x128xf32> -> vector<104x128xf32>
    %3 = arith.truncf %2 : vector<104x128xf32> to vector<104x128xbf16>
    %c0_3 = arith.constant 0 : index
    %c0_4 = arith.constant 0 : index
    %4 = vector.load %arg3[%c0_3, %c0_4] : memref<104x128xbf16, #tpu.memory_space<vmem>>, vector<104x128xbf16>
    tpu.vector_store %arg3[%c0_3, %c0_4], %3 {strides = array<i32>} : memref<104x128xbf16, #tpu.memory_space<vmem>>, vector<104x128xbf16>,
    %cst_5 = arith.constant dense<0.000000e+00> : vector<128xf32>
    %5 = vector.multi_reduction <add>, %2, %cst_5 [0] : vector<104x128xf32> to vector<128xf32>
    %6 = vector.shape_cast %5 : vector<128xf32> to vector<1x128xf32>
    %7 = arith.mulf %2, %2 : vector<104x128xf32>
    %cst_6 = arith.constant dense<0.000000e+00> : vector<128xf32>
    %8 = vector.multi_reduction <add>, %7, %cst_6 [0] : vector<104x128xf32> to vector<128xf32>
    %9 = vector.shape_cast %8 : vector<128xf32> to vector<1x128xf32>
    %10 = tpu.concatenate %6, %9 in 0 : vector<1x128xf32>, vector<1x128xf32> -> vector<2x128xf32>
    %c0_7 = arith.constant 0 : index
    %c0_8 = arith.constant 0 : index
    %c0_9 = arith.constant 0 : index
    %11 = vector.load %arg4[%c0_7, %c0_8, %c0_9] : memref<1x2x128xf32, #tpu.memory_space<vmem>>, vector<1x2x128xf32>
    %12 = vector.shape_cast %11 : vector<1x2x128xf32> to vector<2x128xf32>
    %13 = vector.shape_cast %10 : vector<2x128xf32> to vector<1x2x128xf32>
    tpu.vector_store %arg4[%c0_7, %c0_8, %c0_9], %13 {strides = array<i32>} : memref<1x2x128xf32, #tpu.memory_space<vmem>>, vector<1x2x128xf32>,
    return
  }
  func.func @transform_0(%arg0: i32) -> (i32, i32) {
    %c0_i32 = arith.constant 0 : i32
    %c0_i32_0 = arith.constant 0 : i32
    return %arg0, %c0_i32 : i32, i32
  }
  func.func @transform_1(%arg0: i32) -> (i32, i32) {
    %c0_i32 = arith.constant 0 : i32
    %c0_i32_0 = arith.constant 0 : i32
    %c0_i32_1 = arith.constant 0 : i32
    return %c0_i32, %c0_i32_0 : i32, i32
  }
  func.func @transform_2(%arg0: i32) -> (i32, i32) {
    %c0_i32 = arith.constant 0 : i32
    %c0_i32_0 = arith.constant 0 : i32
    return %arg0, %c0_i32 : i32, i32
  }
  func.func @transform_3(%arg0: i32) -> (i32, i32, i32) {
    %c0_i32 = arith.constant 0 : i32
    %c0_i32_0 = arith.constant 0 : i32
    %c0_i32_1 = arith.constant 0 : i32
    return %arg0, %c0_i32, %c0_i32_0 : i32, i32, i32
  }
}

module attributes {stable_mosaic.version = 11 : i64} {
  func.func @_bn_relu_kernel(%arg0: i32, %arg1: memref<104x128xbf16, #tpu.memory_space<vmem>>, %arg2: memref<1x128xf32, #tpu.memory_space<vmem>>, %arg3: memref<1x128xf32, #tpu.memory_space<vmem>>, %arg4: memref<104x128xbf16, #tpu.memory_space<vmem>>) attributes {dimension_semantics = [#tpu.dimension_semantics<parallel>], iteration_bounds = array<i64: 2>, scalar_prefetch = 0 : i64, scratch_operands = 0 : i64, tpu.core_type = #tpu.core_type<tc>, window_params = [{transform_indices = @transform_0, window_bounds = array<i64: 104, 128>}, {pipeline_mode = #tpu.pipeline_mode<synchronous>, transform_indices = @transform_1, window_bounds = array<i64: 1, 128>}, {pipeline_mode = #tpu.pipeline_mode<synchronous>, transform_indices = @transform_2, window_bounds = array<i64: 1, 128>}, {transform_indices = @transform_3, window_bounds = array<i64: 104, 128>}]} {
    %c0 = arith.constant 0 : index
    %c0_0 = arith.constant 0 : index
    %0 = vector.load %arg1[%c0, %c0_0] : memref<104x128xbf16, #tpu.memory_space<vmem>>, vector<104x128xbf16>
    %1 = arith.extf %0 : vector<104x128xbf16> to vector<104x128xf32>
    %c0_1 = arith.constant 0 : index
    %c0_2 = arith.constant 0 : index
    %2 = vector.load %arg2[%c0_1, %c0_2] : memref<1x128xf32, #tpu.memory_space<vmem>>, vector<1x128xf32>
    %3 = vector.broadcast %2 : vector<1x128xf32> to vector<104x128xf32>
    %4 = arith.mulf %1, %3 : vector<104x128xf32>
    %c0_3 = arith.constant 0 : index
    %c0_4 = arith.constant 0 : index
    %5 = vector.load %arg3[%c0_3, %c0_4] : memref<1x128xf32, #tpu.memory_space<vmem>>, vector<1x128xf32>
    %6 = vector.broadcast %5 : vector<1x128xf32> to vector<104x128xf32>
    %7 = arith.addf %4, %6 : vector<104x128xf32>
    %cst = arith.constant 0.000000e+00 : f32
    %8 = vector.broadcast %cst : f32 to vector<104x128xf32>
    %9 = arith.maximumf %7, %8 : vector<104x128xf32>
    %10 = arith.truncf %9 : vector<104x128xf32> to vector<104x128xbf16>
    %c0_5 = arith.constant 0 : index
    %c0_6 = arith.constant 0 : index
    %11 = vector.load %arg4[%c0_5, %c0_6] : memref<104x128xbf16, #tpu.memory_space<vmem>>, vector<104x128xbf16>
    tpu.vector_store %arg4[%c0_5, %c0_6], %10 {strides = array<i32>} : memref<104x128xbf16, #tpu.memory_space<vmem>>, vector<104x128xbf16>,
    return
  }
  func.func @transform_0(%arg0: i32) -> (i32, i32) {
    %c0_i32 = arith.constant 0 : i32
    %c0_i32_0 = arith.constant 0 : i32
    return %arg0, %c0_i32 : i32, i32
  }
  func.func @transform_1(%arg0: i32) -> (i32, i32) {
    %c0_i32 = arith.constant 0 : i32
    %c0_i32_0 = arith.constant 0 : i32
    %c0_i32_1 = arith.constant 0 : i32
    return %c0_i32, %c0_i32_0 : i32, i32
  }
  func.func @transform_2(%arg0: i32) -> (i32, i32) {
    %c0_i32 = arith.constant 0 : i32
    %c0_i32_0 = arith.constant 0 : i32
    %c0_i32_1 = arith.constant 0 : i32
    return %c0_i32, %c0_i32_0 : i32, i32
  }
  func.func @transform_3(%arg0: i32) -> (i32, i32) {
    %c0_i32 = arith.constant 0 : i32
    %c0_i32_0 = arith.constant 0 : i32
    return %arg0, %c0_i32 : i32, i32
  }
}

module attributes {stable_mosaic.version = 11 : i64} {
  func.func @_conv_gemm_kernel(%arg0: i32, %arg1: memref<64x576xbf16, #tpu.memory_space<vmem>>, %arg2: memref<576x128xbf16, #tpu.memory_space<vmem>>, %arg3: memref<64x128xbf16, #tpu.memory_space<vmem>>, %arg4: memref<1x2x128xf32, #tpu.memory_space<vmem>>) attributes {dimension_semantics = [#tpu.dimension_semantics<parallel>], iteration_bounds = array<i64: 2>, scalar_prefetch = 0 : i64, scratch_operands = 0 : i64, tpu.core_type = #tpu.core_type<tc>, window_params = [{transform_indices = @transform_0, window_bounds = array<i64: 64, 576>}, {pipeline_mode = #tpu.pipeline_mode<synchronous>, transform_indices = @transform_1, window_bounds = array<i64: 576, 128>}, {transform_indices = @transform_2, window_bounds = array<i64: 64, 128>}, {transform_indices = @transform_3, window_bounds = array<i64: 1, 2, 128>}]} {
    %c0 = arith.constant 0 : index
    %c0_0 = arith.constant 0 : index
    %0 = vector.load %arg1[%c0, %c0_0] : memref<64x576xbf16, #tpu.memory_space<vmem>>, vector<64x576xbf16>
    %c0_1 = arith.constant 0 : index
    %c0_2 = arith.constant 0 : index
    %1 = vector.load %arg2[%c0_1, %c0_2] : memref<576x128xbf16, #tpu.memory_space<vmem>>, vector<576x128xbf16>
    %cst = arith.constant dense<0.000000e+00> : vector<64x128xf32>
    %2 = tpu.matmul %0, %1, %cst {dimension_numbers = #tpu.dot_dimension_numbers<[1], [0], [0], [1], [0, 0, 1, 1], [], []>} : vector<64x576xbf16>, vector<576x128xbf16>, vector<64x128xf32> -> vector<64x128xf32>
    %3 = arith.truncf %2 : vector<64x128xf32> to vector<64x128xbf16>
    %c0_3 = arith.constant 0 : index
    %c0_4 = arith.constant 0 : index
    %4 = vector.load %arg3[%c0_3, %c0_4] : memref<64x128xbf16, #tpu.memory_space<vmem>>, vector<64x128xbf16>
    tpu.vector_store %arg3[%c0_3, %c0_4], %3 {strides = array<i32>} : memref<64x128xbf16, #tpu.memory_space<vmem>>, vector<64x128xbf16>,
    %cst_5 = arith.constant dense<0.000000e+00> : vector<128xf32>
    %5 = vector.multi_reduction <add>, %2, %cst_5 [0] : vector<64x128xf32> to vector<128xf32>
    %6 = vector.shape_cast %5 : vector<128xf32> to vector<1x128xf32>
    %7 = arith.mulf %2, %2 : vector<64x128xf32>
    %cst_6 = arith.constant dense<0.000000e+00> : vector<128xf32>
    %8 = vector.multi_reduction <add>, %7, %cst_6 [0] : vector<64x128xf32> to vector<128xf32>
    %9 = vector.shape_cast %8 : vector<128xf32> to vector<1x128xf32>
    %10 = tpu.concatenate %6, %9 in 0 : vector<1x128xf32>, vector<1x128xf32> -> vector<2x128xf32>
    %c0_7 = arith.constant 0 : index
    %c0_8 = arith.constant 0 : index
    %c0_9 = arith.constant 0 : index
    %11 = vector.load %arg4[%c0_7, %c0_8, %c0_9] : memref<1x2x128xf32, #tpu.memory_space<vmem>>, vector<1x2x128xf32>
    %12 = vector.shape_cast %11 : vector<1x2x128xf32> to vector<2x128xf32>
    %13 = vector.shape_cast %10 : vector<2x128xf32> to vector<1x2x128xf32>
    tpu.vector_store %arg4[%c0_7, %c0_8, %c0_9], %13 {strides = array<i32>} : memref<1x2x128xf32, #tpu.memory_space<vmem>>, vector<1x2x128xf32>,
    return
  }
  func.func @transform_0(%arg0: i32) -> (i32, i32) {
    %c0_i32 = arith.constant 0 : i32
    %c0_i32_0 = arith.constant 0 : i32
    return %arg0, %c0_i32 : i32, i32
  }
  func.func @transform_1(%arg0: i32) -> (i32, i32) {
    %c0_i32 = arith.constant 0 : i32
    %c0_i32_0 = arith.constant 0 : i32
    %c0_i32_1 = arith.constant 0 : i32
    return %c0_i32, %c0_i32_0 : i32, i32
  }
  func.func @transform_2(%arg0: i32) -> (i32, i32) {
    %c0_i32 = arith.constant 0 : i32
    %c0_i32_0 = arith.constant 0 : i32
    return %arg0, %c0_i32 : i32, i32
  }
  func.func @transform_3(%arg0: i32) -> (i32, i32, i32) {
    %c0_i32 = arith.constant 0 : i32
    %c0_i32_0 = arith.constant 0 : i32
    %c0_i32_1 = arith.constant 0 : i32
    return %arg0, %c0_i32, %c0_i32_0 : i32, i32, i32
  }
}

module attributes {stable_mosaic.version = 11 : i64} {
  func.func @_bn_relu_kernel(%arg0: i32, %arg1: memref<64x128xbf16, #tpu.memory_space<vmem>>, %arg2: memref<1x128xf32, #tpu.memory_space<vmem>>, %arg3: memref<1x128xf32, #tpu.memory_space<vmem>>, %arg4: memref<64x128xbf16, #tpu.memory_space<vmem>>) attributes {dimension_semantics = [#tpu.dimension_semantics<parallel>], iteration_bounds = array<i64: 2>, scalar_prefetch = 0 : i64, scratch_operands = 0 : i64, tpu.core_type = #tpu.core_type<tc>, window_params = [{transform_indices = @transform_0, window_bounds = array<i64: 64, 128>}, {pipeline_mode = #tpu.pipeline_mode<synchronous>, transform_indices = @transform_1, window_bounds = array<i64: 1, 128>}, {pipeline_mode = #tpu.pipeline_mode<synchronous>, transform_indices = @transform_2, window_bounds = array<i64: 1, 128>}, {transform_indices = @transform_3, window_bounds = array<i64: 64, 128>}]} {
    %c0 = arith.constant 0 : index
    %c0_0 = arith.constant 0 : index
    %0 = vector.load %arg1[%c0, %c0_0] : memref<64x128xbf16, #tpu.memory_space<vmem>>, vector<64x128xbf16>
    %1 = arith.extf %0 : vector<64x128xbf16> to vector<64x128xf32>
    %c0_1 = arith.constant 0 : index
    %c0_2 = arith.constant 0 : index
    %2 = vector.load %arg2[%c0_1, %c0_2] : memref<1x128xf32, #tpu.memory_space<vmem>>, vector<1x128xf32>
    %3 = vector.broadcast %2 : vector<1x128xf32> to vector<64x128xf32>
    %4 = arith.mulf %1, %3 : vector<64x128xf32>
    %c0_3 = arith.constant 0 : index
    %c0_4 = arith.constant 0 : index
    %5 = vector.load %arg3[%c0_3, %c0_4] : memref<1x128xf32, #tpu.memory_space<vmem>>, vector<1x128xf32>
    %6 = vector.broadcast %5 : vector<1x128xf32> to vector<64x128xf32>
    %7 = arith.addf %4, %6 : vector<64x128xf32>
    %cst = arith.constant 0.000000e+00 : f32
    %8 = vector.broadcast %cst : f32 to vector<64x128xf32>
    %9 = arith.maximumf %7, %8 : vector<64x128xf32>
    %10 = arith.truncf %9 : vector<64x128xf32> to vector<64x128xbf16>
    %c0_5 = arith.constant 0 : index
    %c0_6 = arith.constant 0 : index
    %11 = vector.load %arg4[%c0_5, %c0_6] : memref<64x128xbf16, #tpu.memory_space<vmem>>, vector<64x128xbf16>
    tpu.vector_store %arg4[%c0_5, %c0_6], %10 {strides = array<i32>} : memref<64x128xbf16, #tpu.memory_space<vmem>>, vector<64x128xbf16>,
    return
  }
  func.func @transform_0(%arg0: i32) -> (i32, i32) {
    %c0_i32 = arith.constant 0 : i32
    %c0_i32_0 = arith.constant 0 : i32
    return %arg0, %c0_i32 : i32, i32
  }
  func.func @transform_1(%arg0: i32) -> (i32, i32) {
    %c0_i32 = arith.constant 0 : i32
    %c0_i32_0 = arith.constant 0 : i32
    %c0_i32_1 = arith.constant 0 : i32
    return %c0_i32, %c0_i32_0 : i32, i32
  }
  func.func @transform_2(%arg0: i32) -> (i32, i32) {
    %c0_i32 = arith.constant 0 : i32
    %c0_i32_0 = arith.constant 0 : i32
    %c0_i32_1 = arith.constant 0 : i32
    return %c0_i32, %c0_i32_0 : i32, i32
  }
  func.func @transform_3(%arg0: i32) -> (i32, i32) {
    %c0_i32 = arith.constant 0 : i32
    %c0_i32_0 = arith.constant 0 : i32
    return %arg0, %c0_i32 : i32, i32
  }
}

module attributes {stable_mosaic.version = 11 : i64} {
  func.func @_head_kernel(%arg0: i32, %arg1: memref<2x4096xbf16, #tpu.memory_space<vmem>>, %arg2: memref<4096x256xbf16, #tpu.memory_space<vmem>>, %arg3: memref<2x256xf32, #tpu.memory_space<vmem>>, %arg4: memref<2x6xf32, #tpu.memory_space<vmem>>, %arg5: memref<256x32xbf16, #tpu.memory_space<vmem>>, %arg6: memref<10x128xf32, #tpu.memory_space<vmem>>, %arg7: memref<2x1xf32, #tpu.memory_space<vmem>>) attributes {dimension_semantics = [#tpu.dimension_semantics<arbitrary>], iteration_bounds = array<i64: 1>, scalar_prefetch = 0 : i64, scratch_operands = 0 : i64, tpu.core_type = #tpu.core_type<tc>, window_params = [{pipeline_mode = #tpu.pipeline_mode<synchronous>, transform_indices = @transform_0, window_bounds = array<i64: 2, 4096>}, {pipeline_mode = #tpu.pipeline_mode<synchronous>, transform_indices = @transform_1, window_bounds = array<i64: 4096, 256>}, {pipeline_mode = #tpu.pipeline_mode<synchronous>, transform_indices = @transform_2, window_bounds = array<i64: 2, 256>}, {pipeline_mode = #tpu.pipeline_mode<synchronous>, transform_indices = @transform_3, window_bounds = array<i64: 2, 6>}, {pipeline_mode = #tpu.pipeline_mode<synchronous>, transform_indices = @transform_4, window_bounds = array<i64: 256, 32>}, {pipeline_mode = #tpu.pipeline_mode<synchronous>, transform_indices = @transform_5, window_bounds = array<i64: 10, 128>}, {pipeline_mode = #tpu.pipeline_mode<synchronous>, transform_indices = @transform_6, window_bounds = array<i64: 2, 1>}]} {
    %c0 = arith.constant 0 : index
    %c0_0 = arith.constant 0 : index
    %0 = vector.load %arg1[%c0, %c0_0] : memref<2x4096xbf16, #tpu.memory_space<vmem>>, vector<2x4096xbf16>
    %c0_1 = arith.constant 0 : index
    %c0_2 = arith.constant 0 : index
    %1 = vector.load %arg2[%c0_1, %c0_2] : memref<4096x256xbf16, #tpu.memory_space<vmem>>, vector<4096x256xbf16>
    %cst = arith.constant dense<0.000000e+00> : vector<2x256xf32>
    %2 = tpu.matmul %0, %1, %cst {dimension_numbers = #tpu.dot_dimension_numbers<[1], [0], [0], [1], [0, 0, 1, 1], [], []>} : vector<2x4096xbf16>, vector<4096x256xbf16>, vector<2x256xf32> -> vector<2x256xf32>
    %c0_3 = arith.constant 0 : index
    %c0_4 = arith.constant 0 : index
    %3 = vector.load %arg3[%c0_3, %c0_4] : memref<2x256xf32, #tpu.memory_space<vmem>>, vector<1x256xf32>
    %c1 = arith.constant 1 : index
    %c0_5 = arith.constant 0 : index
    %4 = vector.load %arg3[%c1, %c0_5] : memref<2x256xf32, #tpu.memory_space<vmem>>, vector<1x256xf32>
    %cst_6 = arith.constant dense<0.000000e+00> : vector<256xf32>
    %5 = vector.multi_reduction <add>, %2, %cst_6 [0] : vector<2x256xf32> to vector<256xf32>
    %6 = vector.shape_cast %5 : vector<256xf32> to vector<1x256xf32>
    %cst_7 = arith.constant 2.000000e+00 : f32
    %7 = vector.broadcast %cst_7 : f32 to vector<1x256xf32>
    %8 = arith.divf %6, %7 : vector<1x256xf32>
    %9 = vector.broadcast %8 : vector<1x256xf32> to vector<2x256xf32>
    %10 = arith.subf %2, %9 : vector<2x256xf32>
    %11 = arith.mulf %10, %10 : vector<2x256xf32>
    %cst_8 = arith.constant dense<0.000000e+00> : vector<256xf32>
    %12 = vector.multi_reduction <add>, %11, %cst_8 [0] : vector<2x256xf32> to vector<256xf32>
    %13 = vector.shape_cast %12 : vector<256xf32> to vector<1x256xf32>
    %cst_9 = arith.constant 2.000000e+00 : f32
    %14 = vector.broadcast %cst_9 : f32 to vector<1x256xf32>
    %15 = arith.divf %13, %14 : vector<1x256xf32>
    %cst_10 = arith.constant 9.99999974E-6 : f32
    %16 = vector.broadcast %cst_10 : f32 to vector<1x256xf32>
    %17 = arith.addf %15, %16 : vector<1x256xf32>
    %18 = math.rsqrt %17 : vector<1x256xf32>
    %19 = vector.broadcast %18 : vector<1x256xf32> to vector<2x256xf32>
    %20 = arith.mulf %10, %19 : vector<2x256xf32>
    %21 = vector.broadcast %3 : vector<1x256xf32> to vector<2x256xf32>
    %22 = arith.mulf %20, %21 : vector<2x256xf32>
    %23 = vector.broadcast %4 : vector<1x256xf32> to vector<2x256xf32>
    %24 = arith.addf %22, %23 : vector<2x256xf32>
    %cst_11 = arith.constant 0.000000e+00 : f32
    %25 = vector.broadcast %cst_11 : f32 to vector<2x256xf32>
    %26 = arith.maximumf %24, %25 : vector<2x256xf32>
    %c4 = arith.constant 4 : index
    %c0_12 = arith.constant 0 : index
    %27 = vector.load %arg6[%c4, %c0_12] : memref<10x128xf32, #tpu.memory_space<vmem>>, vector<6x32xf32>
    %28 = arith.truncf %27 : vector<6x32xf32> to vector<6x32xbf16>
    %29 = arith.truncf %26 : vector<2x256xf32> to vector<2x256xbf16>
    %c0_13 = arith.constant 0 : index
    %c0_14 = arith.constant 0 : index
    %30 = vector.load %arg5[%c0_13, %c0_14] : memref<256x32xbf16, #tpu.memory_space<vmem>>, vector<256x32xbf16>
    %cst_15 = arith.constant dense<0.000000e+00> : vector<2x32xf32>
    %31 = tpu.matmul %29, %30, %cst_15 {dimension_numbers = #tpu.dot_dimension_numbers<[1], [0], [0], [1], [0, 0, 1, 1], [], []>} : vector<2x256xbf16>, vector<256x32xbf16>, vector<2x32xf32> -> vector<2x32xf32>
    %c0_16 = arith.constant 0 : index
    %c0_17 = arith.constant 0 : index
    %32 = vector.load %arg4[%c0_16, %c0_17] : memref<2x6xf32, #tpu.memory_space<vmem>>, vector<2x6xf32>
    %33 = arith.truncf %32 : vector<2x6xf32> to vector<2x6xbf16>
    %cst_18 = arith.constant dense<0.000000e+00> : vector<2x32xf32>
    %34 = tpu.matmul %33, %28, %cst_18 {dimension_numbers = #tpu.dot_dimension_numbers<[1], [0], [0], [1], [0, 0, 1, 1], [], []>} : vector<2x6xbf16>, vector<6x32xbf16>, vector<2x32xf32> -> vector<2x32xf32>
    %35 = arith.addf %31, %34 : vector<2x32xf32>
    %c0_19 = arith.constant 0 : index
    %c0_20 = arith.constant 0 : index
    %36 = vector.load %arg6[%c0_19, %c0_20] : memref<10x128xf32, #tpu.memory_space<vmem>>, vector<1x32xf32>
    %c1_21 = arith.constant 1 : index
    %c0_22 = arith.constant 0 : index
    %37 = vector.load %arg6[%c1_21, %c0_22] : memref<10x128xf32, #tpu.memory_space<vmem>>, vector<1x32xf32>
    %cst_23 = arith.constant dense<0.000000e+00> : vector<32xf32>
    %38 = vector.multi_reduction <add>, %35, %cst_23 [0] : vector<2x32xf32> to vector<32xf32>
    %39 = vector.shape_cast %38 : vector<32xf32> to vector<1x32xf32>
    %cst_24 = arith.constant 2.000000e+00 : f32
    %40 = vector.broadcast %cst_24 : f32 to vector<1x32xf32>
    %41 = arith.divf %39, %40 : vector<1x32xf32>
    %42 = vector.broadcast %41 : vector<1x32xf32> to vector<2x32xf32>
    %43 = arith.subf %35, %42 : vector<2x32xf32>
    %44 = arith.mulf %43, %43 : vector<2x32xf32>
    %cst_25 = arith.constant dense<0.000000e+00> : vector<32xf32>
    %45 = vector.multi_reduction <add>, %44, %cst_25 [0] : vector<2x32xf32> to vector<32xf32>
    %46 = vector.shape_cast %45 : vector<32xf32> to vector<1x32xf32>
    %cst_26 = arith.constant 2.000000e+00 : f32
    %47 = vector.broadcast %cst_26 : f32 to vector<1x32xf32>
    %48 = arith.divf %46, %47 : vector<1x32xf32>
    %cst_27 = arith.constant 9.99999974E-6 : f32
    %49 = vector.broadcast %cst_27 : f32 to vector<1x32xf32>
    %50 = arith.addf %48, %49 : vector<1x32xf32>
    %51 = math.rsqrt %50 : vector<1x32xf32>
    %52 = vector.broadcast %51 : vector<1x32xf32> to vector<2x32xf32>
    %53 = arith.mulf %43, %52 : vector<2x32xf32>
    %54 = vector.broadcast %36 : vector<1x32xf32> to vector<2x32xf32>
    %55 = arith.mulf %53, %54 : vector<2x32xf32>
    %56 = vector.broadcast %37 : vector<1x32xf32> to vector<2x32xf32>
    %57 = arith.addf %55, %56 : vector<2x32xf32>
    %cst_28 = arith.constant 0.000000e+00 : f32
    %58 = vector.broadcast %cst_28 : f32 to vector<2x32xf32>
    %59 = arith.maximumf %57, %58 : vector<2x32xf32>
    %c2 = arith.constant 2 : index
    %c0_29 = arith.constant 0 : index
    %60 = vector.load %arg6[%c2, %c0_29] : memref<10x128xf32, #tpu.memory_space<vmem>>, vector<1x32xf32>
    %61 = vector.broadcast %60 : vector<1x32xf32> to vector<2x32xf32>
    %62 = arith.mulf %59, %61 : vector<2x32xf32>
    %cst_30 = arith.constant dense<0.000000e+00> : vector<2xf32>
    %63 = vector.multi_reduction <add>, %62, %cst_30 [1] : vector<2x32xf32> to vector<2xf32>
    %64 = vector.shape_cast %63 : vector<2xf32> to vector<2x1xf32>
    %c3 = arith.constant 3 : index
    %c0_31 = arith.constant 0 : index
    %65 = vector.load %arg6[%c3, %c0_31] : memref<10x128xf32, #tpu.memory_space<vmem>>, vector<1x1xf32>
    %66 = vector.broadcast %65 : vector<1x1xf32> to vector<2x1xf32>
    %67 = arith.addf %64, %66 : vector<2x1xf32>
    %c0_32 = arith.constant 0 : index
    %c0_33 = arith.constant 0 : index
    %68 = vector.load %arg7[%c0_32, %c0_33] : memref<2x1xf32, #tpu.memory_space<vmem>>, vector<2x1xf32>
    tpu.vector_store %arg7[%c0_32, %c0_33], %67 {strides = array<i32>} : memref<2x1xf32, #tpu.memory_space<vmem>>, vector<2x1xf32>,
    return
  }
  func.func @transform_0(%arg0: i32) -> (i32, i32) {
    %c0_i32 = arith.constant 0 : i32
    %c0_i32_0 = arith.constant 0 : i32
    %c0_i32_1 = arith.constant 0 : i32
    return %c0_i32, %c0_i32_0 : i32, i32
  }
  func.func @transform_1(%arg0: i32) -> (i32, i32) {
    %c0_i32 = arith.constant 0 : i32
    %c0_i32_0 = arith.constant 0 : i32
    %c0_i32_1 = arith.constant 0 : i32
    return %c0_i32, %c0_i32_0 : i32, i32
  }
  func.func @transform_2(%arg0: i32) -> (i32, i32) {
    %c0_i32 = arith.constant 0 : i32
    %c0_i32_0 = arith.constant 0 : i32
    %c0_i32_1 = arith.constant 0 : i32
    return %c0_i32, %c0_i32_0 : i32, i32
  }
  func.func @transform_3(%arg0: i32) -> (i32, i32) {
    %c0_i32 = arith.constant 0 : i32
    %c0_i32_0 = arith.constant 0 : i32
    %c0_i32_1 = arith.constant 0 : i32
    return %c0_i32, %c0_i32_0 : i32, i32
  }
  func.func @transform_4(%arg0: i32) -> (i32, i32) {
    %c0_i32 = arith.constant 0 : i32
    %c0_i32_0 = arith.constant 0 : i32
    %c0_i32_1 = arith.constant 0 : i32
    return %c0_i32, %c0_i32_0 : i32, i32
  }
  func.func @transform_5(%arg0: i32) -> (i32, i32) {
    %c0_i32 = arith.constant 0 : i32
    %c0_i32_0 = arith.constant 0 : i32
    %c0_i32_1 = arith.constant 0 : i32
    return %c0_i32, %c0_i32_0 : i32, i32
  }
  func.func @transform_6(%arg0: i32) -> (i32, i32) {
    %c0_i32 = arith.constant 0 : i32
    %c0_i32_0 = arith.constant 0 : i32
    %c0_i32_1 = arith.constant 0 : i32
    return %c0_i32, %c0_i32_0 : i32, i32
  }
}

</mosaic_0001>

<llo_original>
// kernel: critic_forward.7
$region0: #{critic_forward.7}
  #allocation0 [shape = 'u32[]', space=smem, size = 0x4, offset = 0x4, fixed_abs, tag = 'smem constant byte address 0x4 - core index']
  #allocation1 [shape = 'u32[72,128]{1,0:T(1,128)}', space=vmem, size = 0x9000, scoped, tag = 'internal scratch']
  %s0 = inlined_call_operand.vmem [shape: bf16[2048,256], index: 0, kind: input, shape index: {}]
  %s1 = inlined_call_operand.vmem [shape: bf16[256,128], index: 1, kind: input, shape index: {}]
  %s2 = inlined_call_operand.vmem [shape: bf16[2048,128], index: 2, kind: output, shape index: {0}]
  %s3 = inlined_call_operand.vmem [shape: f32[8,2,128], index: 3, kind: output, shape index: {1}]
  %4 = xla_tuple %s2, %s3
  %s5 = sld [smem:[#allocation0]]
  $region49: #{critic_forward.7} parent=0
    _
  %s7 = ssub.s32 1, %s5
  %s8 = scalar_select 0, %s7, %s5
  loop: start=0, step=1, limit=10
  $region2: #{critic_forward.7} parent=0 // loop_pre_header
    _
  $region3: #{critic_forward.7} parent=0 // loop_header
    %s10 = sphi 0, %s14
    %p11 = scmp.ge.s32.totalorder %s10, 10
    %s20 = sphi 0, %s22
    %s23 = sphi 0, %s20
    %s24 = sphi 0, %s23
    %s40 = sphi 0, %s24
    %s44 = sphi 0, %s44
    %s46 = sphi 0, %s44
    %s47 = sphi 0, %s46
    %s61 = sphi 0, %s47
    %s67 = sphi 0, %s69
    %s70 = sphi 0, %s67
    %s71 = sphi 0, %s70
    %s87 = sphi 0, %s71
    %s93 = sphi 0, %s95
    %s96 = sphi 0, %s93
    %s97 = sphi 0, %s96
    %s113 = sphi 0, %s97
  $region4: #{critic_forward.7} parent=0 // loop_header_branch
    %13 = sbr.rel (%p11) target = $region8
  $region5: #{critic_forward.7} parent=0 // loop_body
    %s15 = ssub.s32 %s10, 1
    %s16 = ssub.s32 %s10, 2
    %s17 = sadd.s32 %s10, 1
    %s18 = ssub.s32 %s10, %s17
    %p19 = scmp.eq.s32.totalorder %s18, 0
    %s21 = sadd.s32 %s20, 1
    %s22 = scalar_select %p19, %s20, %s21
    %p25 = pneg %p19
    %p26 = scmp.eq.s32.totalorder %s10, 7
    %p27 = por %p25, %p26
    %p28 = scmp.ne.s32.totalorder %s20, %s23
    %p29 = scmp.eq.s32.totalorder %s10, 0
    %p30 = por %p28, %p29
    %p31 = scmp.ne.s32.totalorder %s20, %s23
    %p32 = scmp.eq.s32.totalorder %s15, 7
    %p33 = por %p31, %p32
    %p34 = scmp.ne.s32.totalorder %s23, %s24
    %p35 = scmp.eq.s32.totalorder %s15, 0
    %p36 = por %p34, %p35
    %p37 = scmp.ne.s32.totalorder %s23, %s24
    %p38 = scmp.eq.s32.totalorder %s16, 7
    %p39 = por %p37, %p38
    %p41 = scmp.ne.s32.totalorder %s24, %s40
    %p42 = scmp.eq.s32.totalorder %s16, 0
    %p43 = por %p41, %p42
    %s45 = sadd.s32 %s44, 1
    %p48 = scmp.eq.s32.totalorder %s10, 7
    %p49 = scmp.ne.s32.totalorder %s44, %s46
    %p50 = scmp.eq.s32.totalorder %s10, 0
    %p51 = por %p49, %p50
    %p52 = scmp.ne.s32.totalorder %s44, %s46
    %p53 = scmp.eq.s32.totalorder %s15, 7
    %p54 = por %p52, %p53
    %p55 = scmp.ne.s32.totalorder %s46, %s47
    %p56 = scmp.eq.s32.totalorder %s15, 0
    %p57 = por %p55, %p56
    %p58 = scmp.ne.s32.totalorder %s46, %s47
    %p59 = scmp.eq.s32.totalorder %s16, 7
    %p60 = por %p58, %p59
    %p62 = scmp.ne.s32.totalorder %s47, %s61
    %p63 = scmp.eq.s32.totalorder %s16, 0
    %p64 = por %p62, %p63
    %s65 = ssub.s32 %s10, %s17
    %p66 = scmp.eq.s32.totalorder %s65, 0
    %s68 = sadd.s32 %s67, 1
    %s69 = scalar_select %p66, %s67, %s68
    %p72 = pneg %p66
    %p73 = scmp.eq.s32.totalorder %s10, 7
    %p74 = por %p72, %p73
    %p75 = scmp.ne.s32.totalorder %s67, %s70
    %p76 = scmp.eq.s32.totalorder %s10, 0
    %p77 = por %p75, %p76
    %p78 = scmp.ne.s32.totalorder %s67, %s70
    %p79 = scmp.eq.s32.totalorder %s15, 7
    %p80 = por %p78, %p79
    %p81 = scmp.ne.s32.totalorder %s70, %s71
    %p82 = scmp.eq.s32.totalorder %s15, 0
    %p83 = por %p81, %p82
    %p84 = scmp.ne.s32.totalorder %s70, %s71
    %p85 = scmp.eq.s32.totalorder %s16, 7
    %p86 = por %p84, %p85
    %p88 = scmp.ne.s32.totalorder %s71, %s87
    %p89 = scmp.eq.s32.totalorder %s16, 0
    %p90 = por %p88, %p89
    %s91 = ssub.s32 %s10, %s17
    %p92 = scmp.eq.s32.totalorder %s91, 0
    %s94 = sadd.s32 %s93, 1
    %s95 = scalar_select %p92, %s93, %s94
    %p98 = pneg %p92
    %p99 = scmp.eq.s32.totalorder %s10, 7
    %p100 = por %p98, %p99
    %p101 = scmp.ne.s32.totalorder %s93, %s96
    %p102 = scmp.eq.s32.totalorder %s10, 0
    %p103 = por %p101, %p102
    %p104 = scmp.ne.s32.totalorder %s93, %s96
    %p105 = scmp.eq.s32.totalorder %s15, 7
    %p106 = por %p104, %p105
    %p107 = scmp.ne.s32.totalorder %s96, %s97
    %p108 = scmp.eq.s32.totalorder %s15, 0
    %p109 = por %p107, %p108
    %p110 = scmp.ne.s32.totalorder %s96, %s97
    %p111 = scmp.eq.s32.totalorder %s16, 7
    %p112 = por %p110, %p111
    %p114 = scmp.ne.s32.totalorder %s97, %s113
    %p115 = scmp.eq.s32.totalorder %s16, 0
    %p116 = por %p114, %p115
    %p117 = scmp.le.s32.totalorder 1, %s10
    %p118 = scmp.lt.s32.totalorder %s10, 9
    %p119 = pnand %p117, %p118
    %p120 = pneg %p119
    // Predicated region
    $region9: #{critic_forward.7} parent=5 // pred_check
      _
    $region10: #{critic_forward.7} parent=5 // pred_check_branch
      %122 = sbr.rel (%p119) target = $region12
    $region11: #{critic_forward.7} parent=5 // pred_region
      %s123 = ssub.s32 %s10, 1
      // Predicated region
      $region13: #{critic_forward.7} parent=11 // pred_check
        %p124 = pneg %p57
      $region14: #{critic_forward.7} parent=11 // pred_check_branch
        %126 = sbr.rel (%p124) target = $region16
      $region15: #{critic_forward.7} parent=11 // pred_region
        _
      $region16: #{critic_forward.7} parent=11 // pred_fallthru
        _
    $region12: #{critic_forward.7} parent=5 // pred_fallthru
      _
    %p127 = scmp.lt.s32.totalorder %s10, 8
    // Predicated region
    $region17: #{critic_forward.7} parent=5 // pred_check
      %p128 = pneg %p127
    $region18: #{critic_forward.7} parent=5 // pred_check_branch
      %130 = sbr.rel (%p128) target = $region20
    $region19: #{critic_forward.7} parent=5 // pred_region
      // Predicated region
      $region21: #{critic_forward.7} parent=19 // pred_check
        %p131 = pneg %p30
      $region22: #{critic_forward.7} parent=19 // pred_check_branch
        %133 = sbr.rel (%p131) target = $region24
      $region23: #{critic_forward.7} parent=19 // pred_region
        %s134 = smul.u32 32, %s10
        %p135 = scmp.lt.s32.totalorder %s134, 255
        %s136 = scalar_select %p135, %s134, 255
        %s137 = smul.addr %s136, 2
        %s138 = smul.addr %s137, 4
        %s139 = scalar_lea.vmem %s0, %s138
        %s140 = smul.u32 32, %s10
      $region24: #{critic_forward.7} parent=19 // pred_fallthru
        _
    $region20: #{critic_forward.7} parent=5 // pred_fallthru
      _
    %p141 = scmp.le.s32.totalorder 1, %s10
    %p142 = scmp.lt.s32.totalorder %s10, 9
    %p143 = pnand %p141, %p142
    %p144 = pneg %p143
    // Predicated region
    $region25: #{critic_forward.7} parent=5 // pred_check
      _
    $region26: #{critic_forward.7} parent=5 // pred_check_branch
      %146 = sbr.rel (%p143) target = $region28
    $region27: #{critic_forward.7} parent=5 // pred_region
      %s147 = ssub.s32 %s10, 1
      %s148 = smul.u32 32, %s15
      %p149 = scmp.lt.s32.totalorder %s148, 255
      %s150 = scalar_select %p149, %s148, 255
      %s151 = smul.addr %s150, 2
      %s152 = smul.addr %s151, 4
      %s153 = scalar_lea.vmem %s0, %s152
      %p154 = pneg %p36
      %p155 = pneg %p33
      %p156 = pneg %p57
      %p157 = pneg %p54
      %p158 = pneg %p83
      %p159 = pneg %p80
      %s160 = smul.u32 32, %s15
      %p161 = scmp.lt.s32.totalorder %s160, 255
      %s162 = scalar_select %p161, %s160, 255
      %s163 = smul.addr %s162, 4
      %s164 = scalar_lea.vmem %s2, %s163
      %p165 = pneg %p109
      %p166 = pneg %p106
      %p167 = scmp.lt.s32.totalorder %s15, 7
      %s168 = scalar_select %p167, %s15, 7
      %s169 = smul.addr %s168, 2
      %s170 = scalar_lea.vmem %s3, %s169
      %s171 = smul.u32 32, %s15
      %p172 = scmp.lt.s32.totalorder %s171, 255
      %s173 = scalar_select %p172, %s171, 255
      %s174 = smul.addr %s173, 2
      %s175 = smul.addr %s174, 4
      %s176 = scalar_lea.vmem %s0, %s175
      %s177 = smul.u32 32, %s15
      %s178 = smul.u32 32, %s15
      %p179 = scmp.lt.s32.totalorder %s178, 255
      %s180 = scalar_select %p179, %s178, 255
      %s181 = smul.addr %s180, 4
      %s182 = scalar_lea.vmem %s2, %s181
      %s183 = smul.u32 32, %s15
      %p184 = scmp.lt.s32.totalorder %s15, 7
      %s185 = scalar_select %p184, %s15, 7
      %s186 = smul.addr %s185, 2
      %s187 = scalar_lea.vmem %s3, %s186
      %v188 = vld [vmem:[%s176] sm:$0xff]
      %v189 = vld [vmem:[%s176 + $0x8] sm:$0xff]
      %v190 = vld [vmem:[%s176 + $0x10] sm:$0xff]
      %v191 = vld [vmem:[%s176 + $0x18] sm:$0xff]
      %v192 = vld [vmem:[%s176 + $0x20] sm:$0xff]
      %v193 = vld [vmem:[%s176 + $0x28] sm:$0xff]
      %v194 = vld [vmem:[%s176 + $0x30] sm:$0xff]
      %v195 = vld [vmem:[%s176 + $0x38] sm:$0xff]
      %v196 = vld [vmem:[%s176 + $0x40] sm:$0xff]
      %v197 = vld [vmem:[%s176 + $0x48] sm:$0xff]
      %v198 = vld [vmem:[%s176 + $0x50] sm:$0xff]
      %v199 = vld [vmem:[%s176 + $0x58] sm:$0xff]
      %v200 = vld [vmem:[%s176 + $0x60] sm:$0xff]
      %v201 = vld [vmem:[%s176 + $0x68] sm:$0xff]
      %v202 = vld [vmem:[%s176 + $0x70] sm:$0xff]
      %v203 = vld [vmem:[%s176 + $0x78] sm:$0xff]
      %v204 = vld [vmem:[%s176 + $0x80] sm:$0xff]
      %v205 = vld [vmem:[%s176 + $0x88] sm:$0xff]
      %v206 = vld [vmem:[%s176 + $0x90] sm:$0xff]
      %v207 = vld [vmem:[%s176 + $0x98] sm:$0xff]
      %v208 = vld [vmem:[%s176 + $0xa0] sm:$0xff]
      %v209 = vld [vmem:[%s176 + $0xa8] sm:$0xff]
      %v210 = vld [vmem:[%s176 + $0xb0] sm:$0xff]
      %v211 = vld [vmem:[%s176 + $0xb8] sm:$0xff]
      %v212 = vld [vmem:[%s176 + $0xc0] sm:$0xff]
      %v213 = vld [vmem:[%s176 + $0xc8] sm:$0xff]
      %v214 = vld [vmem:[%s176 + $0xd0] sm:$0xff]
      %v215 = vld [vmem:[%s176 + $0xd8] sm:$0xff]
      %v216 = vld [vmem:[%s176 + $0xe0] sm:$0xff]
      %v217 = vld [vmem:[%s176 + $0xe8] sm:$0xff]
      %v218 = vld [vmem:[%s176 + $0xf0] sm:$0xff]
      %v219 = vld [vmem:[%s176 + $0xf8] sm:$0xff]
      %v220 = vld [vmem:[%s1] sm:$0xf]
      %v221 = vld [vmem:[%s1 + $0x4] sm:$0xf]
      %v222 = vld [vmem:[%s1 + $0x8] sm:$0xf]
      %v223 = vld [vmem:[%s1 + $0xc] sm:$0xf]
      %v224 = vld [vmem:[%s1 + $0x10] sm:$0xf]
      %v225 = vld [vmem:[%s1 + $0x14] sm:$0xf]
      %v226 = vld [vmem:[%s1 + $0x18] sm:$0xf]
      %v227 = vld [vmem:[%s1 + $0x1c] sm:$0xf]
      %v228 = vld [vmem:[%s1 + $0x20] sm:$0xf]
      %v229 = vld [vmem:[%s1 + $0x24] sm:$0xf]
      %v230 = vld [vmem:[%s1 + $0x28] sm:$0xf]
      %v231 = vld [vmem:[%s1 + $0x2c] sm:$0xf]
      %v232 = vld [vmem:[%s1 + $0x30] sm:$0xf]
      %v233 = vld [vmem:[%s1 + $0x34] sm:$0xf]
      %v234 = vld [vmem:[%s1 + $0x38] sm:$0xf]
      %v235 = vld [vmem:[%s1 + $0x3c] sm:$0xf]
      %v236 = vld [vmem:[%s1 + $0x40] sm:$0xf]
      %v237 = vld [vmem:[%s1 + $0x44] sm:$0xf]
      %v238 = vld [vmem:[%s1 + $0x48] sm:$0xf]
      %v239 = vld [vmem:[%s1 + $0x4c] sm:$0xf]
      %v240 = vld [vmem:[%s1 + $0x50] sm:$0xf]
      %v241 = vld [vmem:[%s1 + $0x54] sm:$0xf]
      %v242 = vld [vmem:[%s1 + $0x58] sm:$0xf]
      %v243 = vld [vmem:[%s1 + $0x5c] sm:$0xf]
      %v244 = vld [vmem:[%s1 + $0x60] sm:$0xf]
      %v245 = vld [vmem:[%s1 + $0x64] sm:$0xf]
      %v246 = vld [vmem:[%s1 + $0x68] sm:$0xf]
      %v247 = vld [vmem:[%s1 + $0x6c] sm:$0xf]
      %v248 = vld [vmem:[%s1 + $0x70] sm:$0xf]
      %v249 = vld [vmem:[%s1 + $0x74] sm:$0xf]
      %v250 = vld [vmem:[%s1 + $0x78] sm:$0xf]
      %v251 = vld [vmem:[%s1 + $0x7c] sm:$0xf]
      %v284 = vunpack.c.l.b16 %v188
      %v285 = vunpack.c.h.b16 %v188
      %v286 = vunpack.c.l.b16 %v189
      %v287 = vunpack.c.h.b16 %v189
      %v288 = vunpack.c.l.b16 %v190
      %v289 = vunpack.c.h.b16 %v190
      %v290 = vunpack.c.l.b16 %v191
      %v291 = vunpack.c.h.b16 %v191
      %v292 = vunpack.c.l.b16 %v192
      %v293 = vunpack.c.h.b16 %v192
      %v294 = vunpack.c.l.b16 %v193
      %v295 = vunpack.c.h.b16 %v193
      %v296 = vunpack.c.l.b16 %v194
      %v297 = vunpack.c.h.b16 %v194
      %v298 = vunpack.c.l.b16 %v195
      %v299 = vunpack.c.h.b16 %v195
      %v300 = vunpack.c.l.b16 %v196
      %v301 = vunpack.c.h.b16 %v196
      %v302 = vunpack.c.l.b16 %v197
      %v303 = vunpack.c.h.b16 %v197
      %v304 = vunpack.c.l.b16 %v198
      %v305 = vunpack.c.h.b16 %v198
      %v306 = vunpack.c.l.b16 %v199
      %v307 = vunpack.c.h.b16 %v199
      %v308 = vunpack.c.l.b16 %v200
      %v309 = vunpack.c.h.b16 %v200
      %v310 = vunpack.c.l.b16 %v201
      %v311 = vunpack.c.h.b16 %v201
      %v312 = vunpack.c.l.b16 %v202
      %v313 = vunpack.c.h.b16 %v202
      %v314 = vunpack.c.l.b16 %v203
      %v315 = vunpack.c.h.b16 %v203
      %v316 = vunpack.c.l.b16 %v204
      %v317 = vunpack.c.h.b16 %v204
      %v318 = vunpack.c.l.b16 %v205
      %v319 = vunpack.c.h.b16 %v205
      %v320 = vunpack.c.l.b16 %v206
      %v321 = vunpack.c.h.b16 %v206
      %v322 = vunpack.c.l.b16 %v207
      %v323 = vunpack.c.h.b16 %v207
      %v324 = vunpack.c.l.b16 %v208
      %v325 = vunpack.c.h.b16 %v208
      %v326 = vunpack.c.l.b16 %v209
      %v327 = vunpack.c.h.b16 %v209
      %v328 = vunpack.c.l.b16 %v210
      %v329 = vunpack.c.h.b16 %v210
      %v330 = vunpack.c.l.b16 %v211
      %v331 = vunpack.c.h.b16 %v211
      %v332 = vunpack.c.l.b16 %v212
      %v333 = vunpack.c.h.b16 %v212
      %v334 = vunpack.c.l.b16 %v213
      %v335 = vunpack.c.h.b16 %v213
      %v336 = vunpack.c.l.b16 %v214
      %v337 = vunpack.c.h.b16 %v214
      %v338 = vunpack.c.l.b16 %v215
      %v339 = vunpack.c.h.b16 %v215
      %v340 = vunpack.c.l.b16 %v216
      %v341 = vunpack.c.h.b16 %v216
      %v342 = vunpack.c.l.b16 %v217
      %v343 = vunpack.c.h.b16 %v217
      %v344 = vunpack.c.l.b16 %v218
      %v345 = vunpack.c.h.b16 %v218
      %v346 = vunpack.c.l.b16 %v219
      %v347 = vunpack.c.h.b16 %v219
      %v348 = vpack.c.b16 %v286, %v284
      %v349 = vpack.c.b16 %v287, %v285
      %v350 = vpack.c.b16 %v290, %v288
      %v351 = vpack.c.b16 %v291, %v289
      %v352 = vpack.c.b16 %v294, %v292
      %v353 = vpack.c.b16 %v295, %v293
      %v354 = vpack.c.b16 %v298, %v296
      %v355 = vpack.c.b16 %v299, %v297
      %v356 = vpack.c.b16 %v302, %v300
      %v357 = vpack.c.b16 %v303, %v301
      %v358 = vpack.c.b16 %v306, %v304
      %v359 = vpack.c.b16 %v307, %v305
      %v360 = vpack.c.b16 %v310, %v308
      %v361 = vpack.c.b16 %v311, %v309
      %v362 = vpack.c.b16 %v314, %v312
      %v363 = vpack.c.b16 %v315, %v313
      %v364 = vpack.c.b16 %v318, %v316
      %v365 = vpack.c.b16 %v319, %v317
      %v366 = vpack.c.b16 %v322, %v320
      %v367 = vpack.c.b16 %v323, %v321
      %v368 = vpack.c.b16 %v326, %v324
      %v369 = vpack.c.b16 %v327, %v325
      %v370 = vpack.c.b16 %v330, %v328
      %v371 = vpack.c.b16 %v331, %v329
      %v372 = vpack.c.b16 %v334, %v332
      %v373 = vpack.c.b16 %v335, %v333
      %v374 = vpack.c.b16 %v338, %v336
      %v375 = vpack.c.b16 %v339, %v337
      %v376 = vpack.c.b16 %v342, %v340
      %v377 = vpack.c.b16 %v343, %v341
      %v378 = vpack.c.b16 %v346, %v344
      %v379 = vpack.c.b16 %v347, %v345
      %v444 = vunpack.c.l.b16 %v220
      %v445 = vunpack.c.l.b16 %v221
      %v446 = vunpack.c.l.b16 %v222
      %v447 = vunpack.c.l.b16 %v223
      %v448 = vunpack.c.l.b16 %v224
      %v449 = vunpack.c.l.b16 %v225
      %v450 = vunpack.c.l.b16 %v226
      %v451 = vunpack.c.l.b16 %v227
      %v452 = vunpack.c.l.b16 %v228
      %v453 = vunpack.c.l.b16 %v229
      %v454 = vunpack.c.l.b16 %v230
      %v455 = vunpack.c.l.b16 %v231
      %v456 = vunpack.c.l.b16 %v232
      %v457 = vunpack.c.l.b16 %v233
      %v458 = vunpack.c.l.b16 %v234
      %v459 = vunpack.c.l.b16 %v235
      %v460 = vunpack.c.l.b16 %v236
      %v461 = vunpack.c.l.b16 %v237
      %v462 = vunpack.c.l.b16 %v238
      %v463 = vunpack.c.l.b16 %v239
      %v464 = vunpack.c.l.b16 %v240
      %v465 = vunpack.c.l.b16 %v241
      %v466 = vunpack.c.l.b16 %v242
      %v467 = vunpack.c.l.b16 %v243
      %v468 = vunpack.c.l.b16 %v244
      %v469 = vunpack.c.l.b16 %v245
      %v470 = vunpack.c.l.b16 %v246
      %v471 = vunpack.c.l.b16 %v247
      %v472 = vunpack.c.l.b16 %v248
      %v473 = vunpack.c.l.b16 %v249
      %v474 = vunpack.c.l.b16 %v250
      %v475 = vunpack.c.l.b16 %v251
      %v476 = vpack.c.b16 %v445, %v444
      %v477 = vpack.c.b16 %v447, %v446
      %v478 = vpack.c.b16 %v449, %v448
      %v479 = vpack.c.b16 %v451, %v450
      %v480 = vpack.c.b16 %v453, %v452
      %v481 = vpack.c.b16 %v455, %v454
      %v482 = vpack.c.b16 %v457, %v456
      %v483 = vpack.c.b16 %v459, %v458
      %v484 = vpack.c.b16 %v461, %v460
      %v485 = vpack.c.b16 %v463, %v462
      %v486 = vpack.c.b16 %v465, %v464
      %v487 = vpack.c.b16 %v467, %v466
      %v488 = vpack.c.b16 %v469, %v468
      %v489 = vpack.c.b16 %v471, %v470
      %v490 = vpack.c.b16 %v473, %v472
      %v491 = vpack.c.b16 %v475, %v474
      %508 = vmatpush.bf16.msra.mxu0 %v483
      %509 = vmatpush.bf16.msra.mxu0 %v482
      %510 = vmatpush.bf16.msra.mxu0 %v481
      %511 = vmatpush.bf16.msra.mxu0 %v480
      %512 = vmatpush.bf16.msra.mxu0 %v479
      %513 = vmatpush.bf16.msra.mxu0 %v478
      %514 = vmatpush.bf16.msra.mxu0 %v477
      %515 = vmatpush.bf16.msra.mxu0 %v476
      %516 = vmatmul.bf16.gmra.mxu0 %v348
      %v517 = vpop.f32.mrf.mxu0
      %v518 = vadd.f32 0.0, %v517
      %v519 = vpop.f32.mrf.mxu0
      %v520 = vadd.f32 0.0, %v519
      %521 = vmatmul.bf16.gmra.mxu0 %v350
      %v522 = vpop.f32.mrf.mxu0
      %v523 = vadd.f32 0.0, %v522
      %v524 = vpop.f32.mrf.mxu0
      %v525 = vadd.f32 0.0, %v524
      %526 = vmatmul.bf16.gmra.mxu0 %v352
      %v527 = vpop.f32.mrf.mxu0
      %v528 = vadd.f32 0.0, %v527
      %v529 = vpop.f32.mrf.mxu0
      %v530 = vadd.f32 0.0, %v529
      %531 = vmatmul.bf16.gmra.mxu0 %v354
      %v532 = vpop.f32.mrf.mxu0
      %v533 = vadd.f32 0.0, %v532
      %v534 = vpop.f32.mrf.mxu0
      %v535 = vadd.f32 0.0, %v534
      %536 = vmatmul.bf16.gmra.mxu0 %v356
      %v537 = vpop.f32.mrf.mxu0
      %v538 = vadd.f32 0.0, %v537
      %v539 = vpop.f32.mrf.mxu0
      %v540 = vadd.f32 0.0, %v539
      %541 = vmatmul.bf16.gmra.mxu0 %v358
      %v542 = vpop.f32.mrf.mxu0
      %v543 = vadd.f32 0.0, %v542
      %v544 = vpop.f32.mrf.mxu0
      %v545 = vadd.f32 0.0, %v544
      %546 = vmatmul.bf16.gmra.mxu0 %v360
      %v547 = vpop.f32.mrf.mxu0
      %v548 = vadd.f32 0.0, %v547
      %v549 = vpop.f32.mrf.mxu0
      %v550 = vadd.f32 0.0, %v549
      %551 = vmatmul.bf16.gmra.mxu0 %v362
      %v552 = vpop.f32.mrf.mxu0
      %v553 = vadd.f32 0.0, %v552
      %v554 = vpop.f32.mrf.mxu0
      %v555 = vadd.f32 0.0, %v554
      %556 = vmatmul.bf16.gmra.mxu0 %v364
      %v557 = vpop.f32.mrf.mxu0
      %v558 = vadd.f32 0.0, %v557
      %v559 = vpop.f32.mrf.mxu0
      %v560 = vadd.f32 0.0, %v559
      %561 = vmatmul.bf16.gmra.mxu0 %v366
      %v562 = vpop.f32.mrf.mxu0
      %v563 = vadd.f32 0.0, %v562
      %v564 = vpop.f32.mrf.mxu0
      %v565 = vadd.f32 0.0, %v564
      %566 = vmatmul.bf16.gmra.mxu0 %v368
      %v567 = vpop.f32.mrf.mxu0
      %v568 = vadd.f32 0.0, %v567
      %v569 = vpop.f32.mrf.mxu0
      %v570 = vadd.f32 0.0, %v569
      %571 = vmatmul.bf16.gmra.mxu0 %v370
      %v572 = vpop.f32.mrf.mxu0
      %v573 = vadd.f32 0.0, %v572
      %v574 = vpop.f32.mrf.mxu0
      %v575 = vadd.f32 0.0, %v574
      %576 = vmatmul.bf16.gmra.mxu0 %v372
      %v577 = vpop.f32.mrf.mxu0
      %v578 = vadd.f32 0.0, %v577
      %v579 = vpop.f32.mrf.mxu0
      %v580 = vadd.f32 0.0, %v579
      %581 = vmatmul.bf16.gmra.mxu0 %v374
      %v582 = vpop.f32.mrf.mxu0
      %v583 = vadd.f32 0.0, %v582
      %v584 = vpop.f32.mrf.mxu0
      %v585 = vadd.f32 0.0, %v584
      %586 = vmatmul.bf16.gmra.mxu0 %v376
      %v587 = vpop.f32.mrf.mxu0
      %v588 = vadd.f32 0.0, %v587
      %v589 = vpop.f32.mrf.mxu0
      %v590 = vadd.f32 0.0, %v589
      %591 = vmatmul.bf16.gmra.mxu0 %v378
      %v592 = vpop.f32.mrf.mxu0
      %v593 = vadd.f32 0.0, %v592
      %v594 = vpop.f32.mrf.mxu0
      %v595 = vadd.f32 0.0, %v594
      %596 = vdwg.mxu0
      %597 = vmatpush.bf16.msra.mxu0 %v491
      %598 = vmatpush.bf16.msra.mxu0 %v490
      %599 = vmatpush.bf16.msra.mxu0 %v489
      %600 = vmatpush.bf16.msra.mxu0 %v488
      %601 = vmatpush.bf16.msra.mxu0 %v487
      %602 = vmatpush.bf16.msra.mxu0 %v486
      %603 = vmatpush.bf16.msra.mxu0 %v485
      %604 = vmatpush.bf16.msra.mxu0 %v484
      %605 = vmatmul.bf16.gmra.mxu0 %v349
      %v606 = vpop.f32.mrf.mxu0
      %v607 = vadd.f32 %v518, %v606
      %v608 = vpop.f32.mrf.mxu0
      %v609 = vadd.f32 %v520, %v608
      %610 = vmatmul.bf16.gmra.mxu0 %v351
      %v611 = vpop.f32.mrf.mxu0
      %v612 = vadd.f32 %v523, %v611
      %v613 = vpop.f32.mrf.mxu0
      %v614 = vadd.f32 %v525, %v613
      %615 = vmatmul.bf16.gmra.mxu0 %v353
      %v616 = vpop.f32.mrf.mxu0
      %v617 = vadd.f32 %v528, %v616
      %v618 = vpop.f32.mrf.mxu0
      %v619 = vadd.f32 %v530, %v618
      %620 = vmatmul.bf16.gmra.mxu0 %v355
      %v621 = vpop.f32.mrf.mxu0
      %v622 = vadd.f32 %v533, %v621
      %v623 = vpop.f32.mrf.mxu0
      %v624 = vadd.f32 %v535, %v623
      %625 = vmatmul.bf16.gmra.mxu0 %v357
      %v626 = vpop.f32.mrf.mxu0
      %v627 = vadd.f32 %v538, %v626
      %v628 = vpop.f32.mrf.mxu0
      %v629 = vadd.f32 %v540, %v628
      %630 = vmatmul.bf16.gmra.mxu0 %v359
      %v631 = vpop.f32.mrf.mxu0
      %v632 = vadd.f32 %v543, %v631
      %v633 = vpop.f32.mrf.mxu0
      %v634 = vadd.f32 %v545, %v633
      %635 = vmatmul.bf16.gmra.mxu0 %v361
      %v636 = vpop.f32.mrf.mxu0
      %v637 = vadd.f32 %v548, %v636
      %v638 = vpop.f32.mrf.mxu0
      %v639 = vadd.f32 %v550, %v638
      %640 = vmatmul.bf16.gmra.mxu0 %v363
      %v641 = vpop.f32.mrf.mxu0
      %v642 = vadd.f32 %v553, %v641
      %v643 = vpop.f32.mrf.mxu0
      %v644 = vadd.f32 %v555, %v643
      %645 = vmatmul.bf16.gmra.mxu0 %v365
      %v646 = vpop.f32.mrf.mxu0
      %v647 = vadd.f32 %v558, %v646
      %v648 = vpop.f32.mrf.mxu0
      %v649 = vadd.f32 %v560, %v648
      %650 = vmatmul.bf16.gmra.mxu0 %v367
      %v651 = vpop.f32.mrf.mxu0
      %v652 = vadd.f32 %v563, %v651
      %v653 = vpop.f32.mrf.mxu0
      %v654 = vadd.f32 %v565, %v653
      %655 = vmatmul.bf16.gmra.mxu0 %v369
      %v656 = vpop.f32.mrf.mxu0
      %v657 = vadd.f32 %v568, %v656
      %v658 = vpop.f32.mrf.mxu0
      %v659 = vadd.f32 %v570, %v658
      %660 = vmatmul.bf16.gmra.mxu0 %v371
      %v661 = vpop.f32.mrf.mxu0
      %v662 = vadd.f32 %v573, %v661
      %v663 = vpop.f32.mrf.mxu0
      %v664 = vadd.f32 %v575, %v663
      %665 = vmatmul.bf16.gmra.mxu0 %v373
      %v666 = vpop.f32.mrf.mxu0
      %v667 = vadd.f32 %v578, %v666
      %v668 = vpop.f32.mrf.mxu0
      %v669 = vadd.f32 %v580, %v668
      %670 = vmatmul.bf16.gmra.mxu0 %v375
      %v671 = vpop.f32.mrf.mxu0
      %v672 = vadd.f32 %v583, %v671
      %v673 = vpop.f32.mrf.mxu0
      %v674 = vadd.f32 %v585, %v673
      %675 = vmatmul.bf16.gmra.mxu0 %v377
      %v676 = vpop.f32.mrf.mxu0
      %v677 = vadd.f32 %v588, %v676
      %v678 = vpop.f32.mrf.mxu0
      %v679 = vadd.f32 %v590, %v678
      %680 = vmatmul.bf16.gmra.mxu0 %v379
      %v681 = vpop.f32.mrf.mxu0
      %v682 = vadd.f32 %v593, %v681
      %v683 = vpop.f32.mrf.mxu0
      %v684 = vadd.f32 %v595, %v683
      %685 = vdwg.mxu0
      %v686 = vpack.c.bf16 %v607, %v607
      %v687 = vpack.c.bf16 %v609, %v609
      %v688 = vpack.c.bf16 %v612, %v612
      %v689 = vpack.c.bf16 %v614, %v614
      %v690 = vpack.c.bf16 %v617, %v617
      %v691 = vpack.c.bf16 %v619, %v619
      %v692 = vpack.c.bf16 %v622, %v622
      %v693 = vpack.c.bf16 %v624, %v624
      %v694 = vpack.c.bf16 %v627, %v627
      %v695 = vpack.c.bf16 %v629, %v629
      %v696 = vpack.c.bf16 %v632, %v632
      %v697 = vpack.c.bf16 %v634, %v634
      %v698 = vpack.c.bf16 %v637, %v637
      %v699 = vpack.c.bf16 %v639, %v639
      %v700 = vpack.c.bf16 %v642, %v642
      %v701 = vpack.c.bf16 %v644, %v644
      %v702 = vpack.c.bf16 %v647, %v647
      %v703 = vpack.c.bf16 %v649, %v649
      %v704 = vpack.c.bf16 %v652, %v652
      %v705 = vpack.c.bf16 %v654, %v654
      %v706 = vpack.c.bf16 %v657, %v657
      %v707 = vpack.c.bf16 %v659, %v659
      %v708 = vpack.c.bf16 %v662, %v662
      %v709 = vpack.c.bf16 %v664, %v664
      %v710 = vpack.c.bf16 %v667, %v667
      %v711 = vpack.c.bf16 %v669, %v669
      %v712 = vpack.c.bf16 %v672, %v672
      %v713 = vpack.c.bf16 %v674, %v674
      %v714 = vpack.c.bf16 %v677, %v677
      %v715 = vpack.c.bf16 %v679, %v679
      %v716 = vpack.c.bf16 %v682, %v682
      %v717 = vpack.c.bf16 %v684, %v684
      %718 = vst [vmem:[%s182] sm:$0xf] %v686
      %719 = vst [vmem:[%s182 + $0x4] sm:$0xf] %v687
      %720 = vst [vmem:[%s182 + $0x8] sm:$0xf] %v688
      %721 = vst [vmem:[%s182 + $0xc] sm:$0xf] %v689
      %722 = vst [vmem:[%s182 + $0x10] sm:$0xf] %v690
      %723 = vst [vmem:[%s182 + $0x14] sm:$0xf] %v691
      %724 = vst [vmem:[%s182 + $0x18] sm:$0xf] %v692
      %725 = vst [vmem:[%s182 + $0x1c] sm:$0xf] %v693
      %726 = vst [vmem:[%s182 + $0x20] sm:$0xf] %v694
      %727 = vst [vmem:[%s182 + $0x24] sm:$0xf] %v695
      %728 = vst [vmem:[%s182 + $0x28] sm:$0xf] %v696
      %729 = vst [vmem:[%s182 + $0x2c] sm:$0xf] %v697
      %730 = vst [vmem:[%s182 + $0x30] sm:$0xf] %v698
      %731 = vst [vmem:[%s182 + $0x34] sm:$0xf] %v699
      %732 = vst [vmem:[%s182 + $0x38] sm:$0xf] %v700
      %733 = vst [vmem:[%s182 + $0x3c] sm:$0xf] %v701
      %734 = vst [vmem:[%s182 + $0x40] sm:$0xf] %v702
      %735 = vst [vmem:[%s182 + $0x44] sm:$0xf] %v703
      %736 = vst [vmem:[%s182 + $0x48] sm:$0xf] %v704
      %737 = vst [vmem:[%s182 + $0x4c] sm:$0xf] %v705
      %738 = vst [vmem:[%s182 + $0x50] sm:$0xf] %v706
      %739 = vst [vmem:[%s182 + $0x54] sm:$0xf] %v707
      %740 = vst [vmem:[%s182 + $0x58] sm:$0xf] %v708
      %741 = vst [vmem:[%s182 + $0x5c] sm:$0xf] %v709
      %742 = vst [vmem:[%s182 + $0x60] sm:$0xf] %v710
      %743 = vst [vmem:[%s182 + $0x64] sm:$0xf] %v711
      %744 = vst [vmem:[%s182 + $0x68] sm:$0xf] %v712
      %745 = vst [vmem:[%s182 + $0x6c] sm:$0xf] %v713
      %746 = vst [vmem:[%s182 + $0x70] sm:$0xf] %v714
      %747 = vst [vmem:[%s182 + $0x74] sm:$0xf] %v715
      %748 = vst [vmem:[%s182 + $0x78] sm:$0xf] %v716
      %749 = vst [vmem:[%s182 + $0x7c] sm:$0xf] %v717
      %v750 = vadd.f32 %v607, %v609
      %v751 = vadd.f32 %v750, %v612
      %v752 = vadd.f32 %v751, %v614
      %v753 = vadd.f32 %v752, %v617
      %v754 = vadd.f32 %v753, %v619
      %v755 = vadd.f32 %v754, %v622
      %v756 = vadd.f32 %v755, %v624
      %v757 = vadd.f32 %v756, %v627
      %v758 = vadd.f32 %v757, %v629
      %v759 = vadd.f32 %v758, %v632
      %v760 = vadd.f32 %v759, %v634
      %v761 = vadd.f32 %v760, %v637
      %v762 = vadd.f32 %v761, %v639
      %v763 = vadd.f32 %v762, %v642
      %v764 = vadd.f32 %v763, %v644
      %v765 = vadd.f32 %v764, %v647
      %v766 = vadd.f32 %v765, %v649
      %v767 = vadd.f32 %v766, %v652
      %v768 = vadd.f32 %v767, %v654
      %v769 = vadd.f32 %v768, %v657
      %v770 = vadd.f32 %v769, %v659
      %v771 = vadd.f32 %v770, %v662
      %v772 = vadd.f32 %v771, %v664
      %v773 = vadd.f32 %v772, %v667
      %v774 = vadd.f32 %v773, %v669
      %v775 = vadd.f32 %v774, %v672
      %v776 = vadd.f32 %v775, %v674
      %v777 = vadd.f32 %v776, %v677
      %v778 = vadd.f32 %v777, %v679
      %v779 = vadd.f32 %v778, %v682
      %v780 = vadd.f32 %v779, %v684
      %v781 = vrot.slane %v780, 4
      %v782 = vadd.f32 %v780, %v781
      %v783 = vrot.slane %v782, 2
      %v784 = vadd.f32 %v782, %v783
      %v785 = vrot.slane %v784, 1
      %v786 = vadd.f32 %v784, %v785
      %v787 = vmul.f32 %v607, %v607
      %v788 = vmul.f32 %v609, %v609
      %v789 = vmul.f32 %v612, %v612
      %v790 = vmul.f32 %v614, %v614
      %v791 = vmul.f32 %v617, %v617
      %v792 = vmul.f32 %v619, %v619
      %v793 = vmul.f32 %v622, %v622
      %v794 = vmul.f32 %v624, %v624
      %v795 = vmul.f32 %v627, %v627
      %v796 = vmul.f32 %v629, %v629
      %v797 = vmul.f32 %v632, %v632
      %v798 = vmul.f32 %v634, %v634
      %v799 = vmul.f32 %v637, %v637
      %v800 = vmul.f32 %v639, %v639
      %v801 = vmul.f32 %v642, %v642
      %v802 = vmul.f32 %v644, %v644
      %v803 = vmul.f32 %v647, %v647
      %v804 = vmul.f32 %v649, %v649
      %v805 = vmul.f32 %v652, %v652
      %v806 = vmul.f32 %v654, %v654
      %v807 = vmul.f32 %v657, %v657
      %v808 = vmul.f32 %v659, %v659
      %v809 = vmul.f32 %v662, %v662
      %v810 = vmul.f32 %v664, %v664
      %v811 = vmul.f32 %v667, %v667
      %v812 = vmul.f32 %v669, %v669
      %v813 = vmul.f32 %v672, %v672
      %v814 = vmul.f32 %v674, %v674
      %v815 = vmul.f32 %v677, %v677
      %v816 = vmul.f32 %v679, %v679
      %v817 = vmul.f32 %v682, %v682
      %v818 = vmul.f32 %v684, %v684
      %v819 = vadd.f32 %v787, %v788
      %v820 = vadd.f32 %v819, %v789
      %v821 = vadd.f32 %v820, %v790
      %v822 = vadd.f32 %v821, %v791
      %v823 = vadd.f32 %v822, %v792
      %v824 = vadd.f32 %v823, %v793
      %v825 = vadd.f32 %v824, %v794
      %v826 = vadd.f32 %v825, %v795
      %v827 = vadd.f32 %v826, %v796
      %v828 = vadd.f32 %v827, %v797
      %v829 = vadd.f32 %v828, %v798
      %v830 = vadd.f32 %v829, %v799
      %v831 = vadd.f32 %v830, %v800
      %v832 = vadd.f32 %v831, %v801
      %v833 = vadd.f32 %v832, %v802
      %v834 = vadd.f32 %v833, %v803
      %v835 = vadd.f32 %v834, %v804
      %v836 = vadd.f32 %v835, %v805
      %v837 = vadd.f32 %v836, %v806
      %v838 = vadd.f32 %v837, %v807
      %v839 = vadd.f32 %v838, %v808
      %v840 = vadd.f32 %v839, %v809
      %v841 = vadd.f32 %v840, %v810
      %v842 = vadd.f32 %v841, %v811
      %v843 = vadd.f32 %v842, %v812
      %v844 = vadd.f32 %v843, %v813
      %v845 = vadd.f32 %v844, %v814
      %v846 = vadd.f32 %v845, %v815
      %v847 = vadd.f32 %v846, %v816
      %v848 = vadd.f32 %v847, %v817
      %v849 = vadd.f32 %v848, %v818
      %v850 = vrot.slane %v849, 4
      %v851 = vadd.f32 %v849, %v850
      %v852 = vrot.slane %v851, 2
      %v853 = vadd.f32 %v851, %v852
      %v854 = vrot.slane %v853, 1
      %v855 = vadd.f32 %v853, %v854
      %vm856 = vcmask 1040384
      %v857 = vsel %vm856, %v786, %v855
      %858 = vst [vmem:[%s187] sm:$0x3] %v857
      %s859 = smul.u32 32, %s15
      %p860 = scmp.lt.s32.totalorder %s859, 255
      %s861 = scalar_select %p860, %s859, 255
      %s862 = smul.addr %s861, 4
      %s863 = scalar_lea.vmem %s2, %s862
      %p864 = scmp.lt.s32.totalorder %s15, 7
      %s865 = scalar_select %p864, %s15, 7
      %s866 = smul.addr %s865, 2
      %s867 = scalar_lea.vmem %s3, %s866
      // Predicated region
      $region29: #{critic_forward.7} parent=27 // pred_check
        %p868 = pneg %p80
      $region30: #{critic_forward.7} parent=27 // pred_check_branch
        %870 = sbr.rel (%p868) target = $region32
      $region31: #{critic_forward.7} parent=27 // pred_region
        %s871 = smul.u32 32, %s15
      $region32: #{critic_forward.7} parent=27 // pred_fallthru
        _
      // Predicated region
      $region33: #{critic_forward.7} parent=27 // pred_check
        %p872 = pneg %p106
      $region34: #{critic_forward.7} parent=27 // pred_check_branch
        %874 = sbr.rel (%p872) target = $region36
      $region35: #{critic_forward.7} parent=27 // pred_region
        _
      $region36: #{critic_forward.7} parent=27 // pred_fallthru
        _
    $region28: #{critic_forward.7} parent=5 // pred_fallthru
      _
    %p875 = scmp.le.s32.totalorder 2, %s10
    // Predicated region
    $region37: #{critic_forward.7} parent=5 // pred_check
      %p876 = pneg %p875
    $region38: #{critic_forward.7} parent=5 // pred_check_branch
      %878 = sbr.rel (%p876) target = $region40
    $region39: #{critic_forward.7} parent=5 // pred_region
      %s879 = ssub.s32 %s10, 2
      // Predicated region
      $region41: #{critic_forward.7} parent=39 // pred_check
        %p880 = pneg %p86
      $region42: #{critic_forward.7} parent=39 // pred_check_branch
        %882 = sbr.rel (%p880) target = $region44
      $region43: #{critic_forward.7} parent=39 // pred_region
        %s883 = smul.u32 32, %s16
        %p884 = scmp.lt.s32.totalorder %s883, 255
        %s885 = scalar_select %p884, %s883, 255
        %s886 = smul.addr %s885, 4
        %s887 = scalar_lea.vmem %s2, %s886
      $region44: #{critic_forward.7} parent=39 // pred_fallthru
        _
      // Predicated region
      $region45: #{critic_forward.7} parent=39 // pred_check
        %p888 = pneg %p112
      $region46: #{critic_forward.7} parent=39 // pred_check_branch
        %890 = sbr.rel (%p888) target = $region48
      $region47: #{critic_forward.7} parent=39 // pred_region
        %p891 = scmp.lt.s32.totalorder %s16, 7
        %s892 = scalar_select %p891, %s16, 7
        %s893 = smul.addr %s892, 2
        %s894 = scalar_lea.vmem %s3, %s893
      $region48: #{critic_forward.7} parent=39 // pred_fallthru
        _
    $region40: #{critic_forward.7} parent=5 // pred_fallthru
      _
  $region6: #{critic_forward.7} parent=0 // loop_footer
    %s14 = sadd.s32 1, %s10
  $region7: #{critic_forward.7} parent=0 // loop_footer_branch
    %9 = sbr.rel target = $region3
  $region8: #{critic_forward.7} parent=0 // loop_exit
    _

// kernel: critic_forward.8
$region0: #{critic_forward.8}
  #allocation0 [shape = 'u32[]', space=smem, size = 0x4, offset = 0x4, fixed_abs, tag = 'smem constant byte address 0x4 - core index']
  #allocation1 [shape = 'u32[72,128]{1,0:T(1,128)}', space=vmem, size = 0x9000, scoped, tag = 'internal scratch']
  %s0 = inlined_call_operand.vmem [shape: bf16[2048,128], index: 0, kind: input, shape index: {}]
  %s1 = inlined_call_operand.vmem [shape: f32[1,128], index: 1, kind: input, shape index: {}]
  %s2 = inlined_call_operand.vmem [shape: f32[1,128], index: 2, kind: input, shape index: {}]
  %s3 = inlined_call_operand.vmem [shape: bf16[2048,128], index: 3, kind: output, shape index: {}]
  %s4 = sld [smem:[#allocation0]]
  $region45: #{critic_forward.8} parent=0
    _
  %s6 = ssub.s32 1, %s4
  %s7 = scalar_select 0, %s6, %s4
  loop: start=0, step=1, limit=4
  $region2: #{critic_forward.8} parent=0 // loop_pre_header
    _
  $region3: #{critic_forward.8} parent=0 // loop_header
    %s9 = sphi 0, %s13
    %p10 = scmp.ge.s32.totalorder %s9, 4
    %s19 = sphi 0, %s21
    %s22 = sphi 0, %s19
    %s23 = sphi 0, %s22
    %s39 = sphi 0, %s23
    %s43 = sphi 0, %s43
    %s45 = sphi 0, %s43
    %s46 = sphi 0, %s45
    %s60 = sphi 0, %s46
    %s64 = sphi 0, %s64
    %s66 = sphi 0, %s64
    %s67 = sphi 0, %s66
    %s81 = sphi 0, %s67
    %s87 = sphi 0, %s89
    %s90 = sphi 0, %s87
    %s91 = sphi 0, %s90
    %s107 = sphi 0, %s91
  $region4: #{critic_forward.8} parent=0 // loop_header_branch
    %12 = sbr.rel (%p10) target = $region8
  $region5: #{critic_forward.8} parent=0 // loop_body
    %s14 = ssub.s32 %s9, 1
    %s15 = ssub.s32 %s9, 2
    %s16 = sadd.s32 %s9, 1
    %s17 = ssub.s32 %s9, %s16
    %p18 = scmp.eq.s32.totalorder %s17, 0
    %s20 = sadd.s32 %s19, 1
    %s21 = scalar_select %p18, %s19, %s20
    %p24 = pneg %p18
    %p25 = scmp.eq.s32.totalorder %s9, 1
    %p26 = por %p24, %p25
    %p27 = scmp.ne.s32.totalorder %s19, %s22
    %p28 = scmp.eq.s32.totalorder %s9, 0
    %p29 = por %p27, %p28
    %p30 = scmp.ne.s32.totalorder %s19, %s22
    %p31 = scmp.eq.s32.totalorder %s14, 1
    %p32 = por %p30, %p31
    %p33 = scmp.ne.s32.totalorder %s22, %s23
    %p34 = scmp.eq.s32.totalorder %s14, 0
    %p35 = por %p33, %p34
    %p36 = scmp.ne.s32.totalorder %s22, %s23
    %p37 = scmp.eq.s32.totalorder %s15, 1
    %p38 = por %p36, %p37
    %p40 = scmp.ne.s32.totalorder %s23, %s39
    %p41 = scmp.eq.s32.totalorder %s15, 0
    %p42 = por %p40, %p41
    %s44 = sadd.s32 %s43, 1
    %p47 = scmp.eq.s32.totalorder %s9, 1
    %p48 = scmp.ne.s32.totalorder %s43, %s45
    %p49 = scmp.eq.s32.totalorder %s9, 0
    %p50 = por %p48, %p49
    %p51 = scmp.ne.s32.totalorder %s43, %s45
    %p52 = scmp.eq.s32.totalorder %s14, 1
    %p53 = por %p51, %p52
    %p54 = scmp.ne.s32.totalorder %s45, %s46
    %p55 = scmp.eq.s32.totalorder %s14, 0
    %p56 = por %p54, %p55
    %p57 = scmp.ne.s32.totalorder %s45, %s46
    %p58 = scmp.eq.s32.totalorder %s15, 1
    %p59 = por %p57, %p58
    %p61 = scmp.ne.s32.totalorder %s46, %s60
    %p62 = scmp.eq.s32.totalorder %s15, 0
    %p63 = por %p61, %p62
    %s65 = sadd.s32 %s64, 1
    %p68 = scmp.eq.s32.totalorder %s9, 1
    %p69 = scmp.ne.s32.totalorder %s64, %s66
    %p70 = scmp.eq.s32.totalorder %s9, 0
    %p71 = por %p69, %p70
    %p72 = scmp.ne.s32.totalorder %s64, %s66
    %p73 = scmp.eq.s32.totalorder %s14, 1
    %p74 = por %p72, %p73
    %p75 = scmp.ne.s32.totalorder %s66, %s67
    %p76 = scmp.eq.s32.totalorder %s14, 0
    %p77 = por %p75, %p76
    %p78 = scmp.ne.s32.totalorder %s66, %s67
    %p79 = scmp.eq.s32.totalorder %s15, 1
    %p80 = por %p78, %p79
    %p82 = scmp.ne.s32.totalorder %s67, %s81
    %p83 = scmp.eq.s32.totalorder %s15, 0
    %p84 = por %p82, %p83
    %s85 = ssub.s32 %s9, %s16
    %p86 = scmp.eq.s32.totalorder %s85, 0
    %s88 = sadd.s32 %s87, 1
    %s89 = scalar_select %p86, %s87, %s88
    %p92 = pneg %p86
    %p93 = scmp.eq.s32.totalorder %s9, 1
    %p94 = por %p92, %p93
    %p95 = scmp.ne.s32.totalorder %s87, %s90
    %p96 = scmp.eq.s32.totalorder %s9, 0
    %p97 = por %p95, %p96
    %p98 = scmp.ne.s32.totalorder %s87, %s90
    %p99 = scmp.eq.s32.totalorder %s14, 1
    %p100 = por %p98, %p99
    %p101 = scmp.ne.s32.totalorder %s90, %s91
    %p102 = scmp.eq.s32.totalorder %s14, 0
    %p103 = por %p101, %p102
    %p104 = scmp.ne.s32.totalorder %s90, %s91
    %p105 = scmp.eq.s32.totalorder %s15, 1
    %p106 = por %p104, %p105
    %p108 = scmp.ne.s32.totalorder %s91, %s107
    %p109 = scmp.eq.s32.totalorder %s15, 0
    %p110 = por %p108, %p109
    %p111 = scmp.le.s32.totalorder 1, %s9
    %p112 = scmp.lt.s32.totalorder %s9, 3
    %p113 = pnand %p111, %p112
    %p114 = pneg %p113
    // Predicated region
    $region9: #{critic_forward.8} parent=5 // pred_check
      _
    $region10: #{critic_forward.8} parent=5 // pred_check_branch
      %116 = sbr.rel (%p113) target = $region12
    $region11: #{critic_forward.8} parent=5 // pred_region
      %s117 = ssub.s32 %s9, 1
      // Predicated region
      $region13: #{critic_forward.8} parent=11 // pred_check
        %p118 = pneg %p56
      $region14: #{critic_forward.8} parent=11 // pred_check_branch
        %120 = sbr.rel (%p118) target = $region16
      $region15: #{critic_forward.8} parent=11 // pred_region
        _
      $region16: #{critic_forward.8} parent=11 // pred_fallthru
        _
      // Predicated region
      $region17: #{critic_forward.8} parent=11 // pred_check
        %p121 = pneg %p77
      $region18: #{critic_forward.8} parent=11 // pred_check_branch
        %123 = sbr.rel (%p121) target = $region20
      $region19: #{critic_forward.8} parent=11 // pred_region
        _
      $region20: #{critic_forward.8} parent=11 // pred_fallthru
        _
    $region12: #{critic_forward.8} parent=5 // pred_fallthru
      _
    %p124 = scmp.lt.s32.totalorder %s9, 2
    // Predicated region
    $region21: #{critic_forward.8} parent=5 // pred_check
      %p125 = pneg %p124
    $region22: #{critic_forward.8} parent=5 // pred_check_branch
      %127 = sbr.rel (%p125) target = $region24
    $region23: #{critic_forward.8} parent=5 // pred_region
      // Predicated region
      $region25: #{critic_forward.8} parent=23 // pred_check
        %p128 = pneg %p29
      $region26: #{critic_forward.8} parent=23 // pred_check_branch
        %130 = sbr.rel (%p128) target = $region28
      $region27: #{critic_forward.8} parent=23 // pred_region
        %s131 = smul.u32 128, %s9
        %p132 = scmp.lt.s32.totalorder %s131, 255
        %s133 = scalar_select %p132, %s131, 255
        %s134 = smul.addr %s133, 4
        %s135 = scalar_lea.vmem %s0, %s134
        %s136 = smul.u32 128, %s9
      $region28: #{critic_forward.8} parent=23 // pred_fallthru
        _
    $region24: #{critic_forward.8} parent=5 // pred_fallthru
      _
    %p137 = scmp.le.s32.totalorder 1, %s9
    %p138 = scmp.lt.s32.totalorder %s9, 3
    %p139 = pnand %p137, %p138
    %p140 = pneg %p139
    // Predicated region
    $region29: #{critic_forward.8} parent=5 // pred_check
      _
    $region30: #{critic_forward.8} parent=5 // pred_check_branch
      %142 = sbr.rel (%p139) target = $region32
    $region31: #{critic_forward.8} parent=5 // pred_region
      %s143 = ssub.s32 %s9, 1
      %s144 = smul.u32 128, %s14
      %p145 = scmp.lt.s32.totalorder %s144, 255
      %s146 = scalar_select %p145, %s144, 255
      %s147 = smul.addr %s146, 4
      %s148 = scalar_lea.vmem %s0, %s147
      %p149 = pneg %p35
      %p150 = pneg %p32
      %p151 = pneg %p56
      %p152 = pneg %p53
      %p153 = pneg %p77
      %p154 = pneg %p74
      %p155 = pneg %p103
      %p156 = pneg %p100
      %s157 = smul.u32 128, %s14
      %p158 = scmp.lt.s32.totalorder %s157, 255
      %s159 = scalar_select %p158, %s157, 255
      %s160 = smul.addr %s159, 4
      %s161 = scalar_lea.vmem %s3, %s160
      %s162 = smul.u32 128, %s14
      %p163 = scmp.lt.s32.totalorder %s162, 255
      %s164 = scalar_select %p163, %s162, 255
      %s165 = smul.addr %s164, 4
      %s166 = scalar_lea.vmem %s0, %s165
      %s167 = smul.u32 128, %s14
      %s168 = smul.u32 128, %s14
      %p169 = scmp.lt.s32.totalorder %s168, 255
      %s170 = scalar_select %p169, %s168, 255
      %s171 = smul.addr %s170, 4
      %s172 = scalar_lea.vmem %s3, %s171
      %s173 = smul.u32 128, %s14
      %v174 = vld [vmem:[%s166] sm:$0xf]
      %v175 = vld [vmem:[%s166 + $0x4] sm:$0xf]
      %v176 = vld [vmem:[%s166 + $0x8] sm:$0xf]
      %v177 = vld [vmem:[%s166 + $0xc] sm:$0xf]
      %v178 = vld [vmem:[%s166 + $0x10] sm:$0xf]
      %v179 = vld [vmem:[%s166 + $0x14] sm:$0xf]
      %v180 = vld [vmem:[%s166 + $0x18] sm:$0xf]
      %v181 = vld [vmem:[%s166 + $0x1c] sm:$0xf]
      %v182 = vld [vmem:[%s166 + $0x20] sm:$0xf]
      %v183 = vld [vmem:[%s166 + $0x24] sm:$0xf]
      %v184 = vld [vmem:[%s166 + $0x28] sm:$0xf]
      %v185 = vld [vmem:[%s166 + $0x2c] sm:$0xf]
      %v186 = vld [vmem:[%s166 + $0x30] sm:$0xf]
      %v187 = vld [vmem:[%s166 + $0x34] sm:$0xf]
      %v188 = vld [vmem:[%s166 + $0x38] sm:$0xf]
      %v189 = vld [vmem:[%s166 + $0x3c] sm:$0xf]
      %v190 = vld [vmem:[%s166 + $0x40] sm:$0xf]
      %v191 = vld [vmem:[%s166 + $0x44] sm:$0xf]
      %v192 = vld [vmem:[%s166 + $0x48] sm:$0xf]
      %v193 = vld [vmem:[%s166 + $0x4c] sm:$0xf]
      %v194 = vld [vmem:[%s166 + $0x50] sm:$0xf]
      %v195 = vld [vmem:[%s166 + $0x54] sm:$0xf]
      %v196 = vld [vmem:[%s166 + $0x58] sm:$0xf]
      %v197 = vld [vmem:[%s166 + $0x5c] sm:$0xf]
      %v198 = vld [vmem:[%s166 + $0x60] sm:$0xf]
      %v199 = vld [vmem:[%s166 + $0x64] sm:$0xf]
      %v200 = vld [vmem:[%s166 + $0x68] sm:$0xf]
      %v201 = vld [vmem:[%s166 + $0x6c] sm:$0xf]
      %v202 = vld [vmem:[%s166 + $0x70] sm:$0xf]
      %v203 = vld [vmem:[%s166 + $0x74] sm:$0xf]
      %v204 = vld [vmem:[%s166 + $0x78] sm:$0xf]
      %v205 = vld [vmem:[%s166 + $0x7c] sm:$0xf]
      %v206 = vld [vmem:[%s166 + $0x80] sm:$0xf]
      %v207 = vld [vmem:[%s166 + $0x84] sm:$0xf]
      %v208 = vld [vmem:[%s166 + $0x88] sm:$0xf]
      %v209 = vld [vmem:[%s166 + $0x8c] sm:$0xf]
      %v210 = vld [vmem:[%s166 + $0x90] sm:$0xf]
      %v211 = vld [vmem:[%s166 + $0x94] sm:$0xf]
      %v212 = vld [vmem:[%s166 + $0x98] sm:$0xf]
      %v213 = vld [vmem:[%s166 + $0x9c] sm:$0xf]
      %v214 = vld [vmem:[%s166 + $0xa0] sm:$0xf]
      %v215 = vld [vmem:[%s166 + $0xa4] sm:$0xf]
      %v216 = vld [vmem:[%s166 + $0xa8] sm:$0xf]
      %v217 = vld [vmem:[%s166 + $0xac] sm:$0xf]
      %v218 = vld [vmem:[%s166 + $0xb0] sm:$0xf]
      %v219 = vld [vmem:[%s166 + $0xb4] sm:$0xf]
      %v220 = vld [vmem:[%s166 + $0xb8] sm:$0xf]
      %v221 = vld [vmem:[%s166 + $0xbc] sm:$0xf]
      %v222 = vld [vmem:[%s166 + $0xc0] sm:$0xf]
      %v223 = vld [vmem:[%s166 + $0xc4] sm:$0xf]
      %v224 = vld [vmem:[%s166 + $0xc8] sm:$0xf]
      %v225 = vld [vmem:[%s166 + $0xcc] sm:$0xf]
      %v226 = vld [vmem:[%s166 + $0xd0] sm:$0xf]
      %v227 = vld [vmem:[%s166 + $0xd4] sm:$0xf]
      %v228 = vld [vmem:[%s166 + $0xd8] sm:$0xf]
      %v229 = vld [vmem:[%s166 + $0xdc] sm:$0xf]
      %v230 = vld [vmem:[%s166 + $0xe0] sm:$0xf]
      %v231 = vld [vmem:[%s166 + $0xe4] sm:$0xf]
      %v232 = vld [vmem:[%s166 + $0xe8] sm:$0xf]
      %v233 = vld [vmem:[%s166 + $0xec] sm:$0xf]
      %v234 = vld [vmem:[%s166 + $0xf0] sm:$0xf]
      %v235 = vld [vmem:[%s166 + $0xf4] sm:$0xf]
      %v236 = vld [vmem:[%s166 + $0xf8] sm:$0xf]
      %v237 = vld [vmem:[%s166 + $0xfc] sm:$0xf]
      %v238 = vld [vmem:[%s166 + $0x100] sm:$0xf]
      %v239 = vld [vmem:[%s166 + $0x104] sm:$0xf]
      %v240 = vld [vmem:[%s166 + $0x108] sm:$0xf]
      %v241 = vld [vmem:[%s166 + $0x10c] sm:$0xf]
      %v242 = vld [vmem:[%s166 + $0x110] sm:$0xf]
      %v243 = vld [vmem:[%s166 + $0x114] sm:$0xf]
      %v244 = vld [vmem:[%s166 + $0x118] sm:$0xf]
      %v245 = vld [vmem:[%s166 + $0x11c] sm:$0xf]
      %v246 = vld [vmem:[%s166 + $0x120] sm:$0xf]
      %v247 = vld [vmem:[%s166 + $0x124] sm:$0xf]
      %v248 = vld [vmem:[%s166 + $0x128] sm:$0xf]
      %v249 = vld [vmem:[%s166 + $0x12c] sm:$0xf]
      %v250 = vld [vmem:[%s166 + $0x130] sm:$0xf]
      %v251 = vld [vmem:[%s166 + $0x134] sm:$0xf]
      %v252 = vld [vmem:[%s166 + $0x138] sm:$0xf]
      %v253 = vld [vmem:[%s166 + $0x13c] sm:$0xf]
      %v254 = vld [vmem:[%s166 + $0x140] sm:$0xf]
      %v255 = vld [vmem:[%s166 + $0x144] sm:$0xf]
      %v256 = vld [vmem:[%s166 + $0x148] sm:$0xf]
      %v257 = vld [vmem:[%s166 + $0x14c] sm:$0xf]
      %v258 = vld [vmem:[%s166 + $0x150] sm:$0xf]
      %v259 = vld [vmem:[%s166 + $0x154] sm:$0xf]
      %v260 = vld [vmem:[%s166 + $0x158] sm:$0xf]
      %v261 = vld [vmem:[%s166 + $0x15c] sm:$0xf]
      %v262 = vld [vmem:[%s166 + $0x160] sm:$0xf]
      %v263 = vld [vmem:[%s166 + $0x164] sm:$0xf]
      %v264 = vld [vmem:[%s166 + $0x168] sm:$0xf]
      %v265 = vld [vmem:[%s166 + $0x16c] sm:$0xf]
      %v266 = vld [vmem:[%s166 + $0x170] sm:$0xf]
      %v267 = vld [vmem:[%s166 + $0x174] sm:$0xf]
      %v268 = vld [vmem:[%s166 + $0x178] sm:$0xf]
      %v269 = vld [vmem:[%s166 + $0x17c] sm:$0xf]
      %v270 = vld [vmem:[%s166 + $0x180] sm:$0xf]
      %v271 = vld [vmem:[%s166 + $0x184] sm:$0xf]
      %v272 = vld [vmem:[%s166 + $0x188] sm:$0xf]
      %v273 = vld [vmem:[%s166 + $0x18c] sm:$0xf]
      %v274 = vld [vmem:[%s166 + $0x190] sm:$0xf]
      %v275 = vld [vmem:[%s166 + $0x194] sm:$0xf]
      %v276 = vld [vmem:[%s166 + $0x198] sm:$0xf]
      %v277 = vld [vmem:[%s166 + $0x19c] sm:$0xf]
      %v278 = vld [vmem:[%s166 + $0x1a0] sm:$0xf]
      %v279 = vld [vmem:[%s166 + $0x1a4] sm:$0xf]
      %v280 = vld [vmem:[%s166 + $0x1a8] sm:$0xf]
      %v281 = vld [vmem:[%s166 + $0x1ac] sm:$0xf]
      %v282 = vld [vmem:[%s166 + $0x1b0] sm:$0xf]
      %v283 = vld [vmem:[%s166 + $0x1b4] sm:$0xf]
      %v284 = vld [vmem:[%s166 + $0x1b8] sm:$0xf]
      %v285 = vld [vmem:[%s166 + $0x1bc] sm:$0xf]
      %v286 = vld [vmem:[%s166 + $0x1c0] sm:$0xf]
      %v287 = vld [vmem:[%s166 + $0x1c4] sm:$0xf]
      %v288 = vld [vmem:[%s166 + $0x1c8] sm:$0xf]
      %v289 = vld [vmem:[%s166 + $0x1cc] sm:$0xf]
      %v290 = vld [vmem:[%s166 + $0x1d0] sm:$0xf]
      %v291 = vld [vmem:[%s166 + $0x1d4] sm:$0xf]
      %v292 = vld [vmem:[%s166 + $0x1d8] sm:$0xf]
      %v293 = vld [vmem:[%s166 + $0x1dc] sm:$0xf]
      %v294 = vld [vmem:[%s166 + $0x1e0] sm:$0xf]
      %v295 = vld [vmem:[%s166 + $0x1e4] sm:$0xf]
      %v296 = vld [vmem:[%s166 + $0x1e8] sm:$0xf]
      %v297 = vld [vmem:[%s166 + $0x1ec] sm:$0xf]
      %v298 = vld [vmem:[%s166 + $0x1f0] sm:$0xf]
      %v299 = vld [vmem:[%s166 + $0x1f4] sm:$0xf]
      %v300 = vld [vmem:[%s166 + $0x1f8] sm:$0xf]
      %v301 = vld [vmem:[%s166 + $0x1fc] sm:$0xf]
      %v302 = vunpack.c.l.bf16 %v174
      %v303 = vunpack.c.l.bf16 %v175
      %v304 = vunpack.c.l.bf16 %v176
      %v305 = vunpack.c.l.bf16 %v177
      %v306 = vunpack.c.l.bf16 %v178
      %v307 = vunpack.c.l.bf16 %v179
      %v308 = vunpack.c.l.bf16 %v180
      %v309 = vunpack.c.l.bf16 %v181
      %v310 = vunpack.c.l.bf16 %v182
      %v311 = vunpack.c.l.bf16 %v183
      %v312 = vunpack.c.l.bf16 %v184
      %v313 = vunpack.c.l.bf16 %v185
      %v314 = vunpack.c.l.bf16 %v186
      %v315 = vunpack.c.l.bf16 %v187
      %v316 = vunpack.c.l.bf16 %v188
      %v317 = vunpack.c.l.bf16 %v189
      %v318 = vunpack.c.l.bf16 %v190
      %v319 = vunpack.c.l.bf16 %v191
      %v320 = vunpack.c.l.bf16 %v192
      %v321 = vunpack.c.l.bf16 %v193
      %v322 = vunpack.c.l.bf16 %v194
      %v323 = vunpack.c.l.bf16 %v195
      %v324 = vunpack.c.l.bf16 %v196
      %v325 = vunpack.c.l.bf16 %v197
      %v326 = vunpack.c.l.bf16 %v198
      %v327 = vunpack.c.l.bf16 %v199
      %v328 = vunpack.c.l.bf16 %v200
      %v329 = vunpack.c.l.bf16 %v201
      %v330 = vunpack.c.l.bf16 %v202
      %v331 = vunpack.c.l.bf16 %v203
      %v332 = vunpack.c.l.bf16 %v204
      %v333 = vunpack.c.l.bf16 %v205
      %v334 = vunpack.c.l.bf16 %v206
      %v335 = vunpack.c.l.bf16 %v207
      %v336 = vunpack.c.l.bf16 %v208
      %v337 = vunpack.c.l.bf16 %v209
      %v338 = vunpack.c.l.bf16 %v210
      %v339 = vunpack.c.l.bf16 %v211
      %v340 = vunpack.c.l.bf16 %v212
      %v341 = vunpack.c.l.bf16 %v213
      %v342 = vunpack.c.l.bf16 %v214
      %v343 = vunpack.c.l.bf16 %v215
      %v344 = vunpack.c.l.bf16 %v216
      %v345 = vunpack.c.l.bf16 %v217
      %v346 = vunpack.c.l.bf16 %v218
      %v347 = vunpack.c.l.bf16 %v219
      %v348 = vunpack.c.l.bf16 %v220
      %v349 = vunpack.c.l.bf16 %v221
      %v350 = vunpack.c.l.bf16 %v222
      %v351 = vunpack.c.l.bf16 %v223
      %v352 = vunpack.c.l.bf16 %v224
      %v353 = vunpack.c.l.bf16 %v225
      %v354 = vunpack.c.l.bf16 %v226
      %v355 = vunpack.c.l.bf16 %v227
      %v356 = vunpack.c.l.bf16 %v228
      %v357 = vunpack.c.l.bf16 %v229
      %v358 = vunpack.c.l.bf16 %v230
      %v359 = vunpack.c.l.bf16 %v231
      %v360 = vunpack.c.l.bf16 %v232
      %v361 = vunpack.c.l.bf16 %v233
      %v362 = vunpack.c.l.bf16 %v234
      %v363 = vunpack.c.l.bf16 %v235
      %v364 = vunpack.c.l.bf16 %v236
      %v365 = vunpack.c.l.bf16 %v237
      %v366 = vunpack.c.l.bf16 %v238
      %v367 = vunpack.c.l.bf16 %v239
      %v368 = vunpack.c.l.bf16 %v240
      %v369 = vunpack.c.l.bf16 %v241
      %v370 = vunpack.c.l.bf16 %v242
      %v371 = vunpack.c.l.bf16 %v243
      %v372 = vunpack.c.l.bf16 %v244
      %v373 = vunpack.c.l.bf16 %v245
      %v374 = vunpack.c.l.bf16 %v246
      %v375 = vunpack.c.l.bf16 %v247
      %v376 = vunpack.c.l.bf16 %v248
      %v377 = vunpack.c.l.bf16 %v249
      %v378 = vunpack.c.l.bf16 %v250
      %v379 = vunpack.c.l.bf16 %v251
      %v380 = vunpack.c.l.bf16 %v252
      %v381 = vunpack.c.l.bf16 %v253
      %v382 = vunpack.c.l.bf16 %v254
      %v383 = vunpack.c.l.bf16 %v255
      %v384 = vunpack.c.l.bf16 %v256
      %v385 = vunpack.c.l.bf16 %v257
      %v386 = vunpack.c.l.bf16 %v258
      %v387 = vunpack.c.l.bf16 %v259
      %v388 = vunpack.c.l.bf16 %v260
      %v389 = vunpack.c.l.bf16 %v261
      %v390 = vunpack.c.l.bf16 %v262
      %v391 = vunpack.c.l.bf16 %v263
      %v392 = vunpack.c.l.bf16 %v264
      %v393 = vunpack.c.l.bf16 %v265
      %v394 = vunpack.c.l.bf16 %v266
      %v395 = vunpack.c.l.bf16 %v267
      %v396 = vunpack.c.l.bf16 %v268
      %v397 = vunpack.c.l.bf16 %v269
      %v398 = vunpack.c.l.bf16 %v270
      %v399 = vunpack.c.l.bf16 %v271
      %v400 = vunpack.c.l.bf16 %v272
      %v401 = vunpack.c.l.bf16 %v273
      %v402 = vunpack.c.l.bf16 %v274
      %v403 = vunpack.c.l.bf16 %v275
      %v404 = vunpack.c.l.bf16 %v276
      %v405 = vunpack.c.l.bf16 %v277
      %v406 = vunpack.c.l.bf16 %v278
      %v407 = vunpack.c.l.bf16 %v279
      %v408 = vunpack.c.l.bf16 %v280
      %v409 = vunpack.c.l.bf16 %v281
      %v410 = vunpack.c.l.bf16 %v282
      %v411 = vunpack.c.l.bf16 %v283
      %v412 = vunpack.c.l.bf16 %v284
      %v413 = vunpack.c.l.bf16 %v285
      %v414 = vunpack.c.l.bf16 %v286
      %v415 = vunpack.c.l.bf16 %v287
      %v416 = vunpack.c.l.bf16 %v288
      %v417 = vunpack.c.l.bf16 %v289
      %v418 = vunpack.c.l.bf16 %v290
      %v419 = vunpack.c.l.bf16 %v291
      %v420 = vunpack.c.l.bf16 %v292
      %v421 = vunpack.c.l.bf16 %v293
      %v422 = vunpack.c.l.bf16 %v294
      %v423 = vunpack.c.l.bf16 %v295
      %v424 = vunpack.c.l.bf16 %v296
      %v425 = vunpack.c.l.bf16 %v297
      %v426 = vunpack.c.l.bf16 %v298
      %v427 = vunpack.c.l.bf16 %v299
      %v428 = vunpack.c.l.bf16 %v300
      %v429 = vunpack.c.l.bf16 %v301
      %v430 = vld [vmem:[%s1] sm:$0x1]
      %v432 = vperm.slane %v430, 0
      %v434 = vmul.f32 %v302, %v432
      %v435 = vmul.f32 %v303, %v432
      %v436 = vmul.f32 %v304, %v432
      %v437 = vmul.f32 %v305, %v432
      %v438 = vmul.f32 %v306, %v432
      %v439 = vmul.f32 %v307, %v432
      %v440 = vmul.f32 %v308, %v432
      %v441 = vmul.f32 %v309, %v432
      %v442 = vmul.f32 %v310, %v432
      %v443 = vmul.f32 %v311, %v432
      %v444 = vmul.f32 %v312, %v432
      %v445 = vmul.f32 %v313, %v432
      %v446 = vmul.f32 %v314, %v432
      %v447 = vmul.f32 %v315, %v432
      %v448 = vmul.f32 %v316, %v432
      %v449 = vmul.f32 %v317, %v432
      %v450 = vmul.f32 %v318, %v432
      %v451 = vmul.f32 %v319, %v432
      %v452 = vmul.f32 %v320, %v432
      %v453 = vmul.f32 %v321, %v432
      %v454 = vmul.f32 %v322, %v432
      %v455 = vmul.f32 %v323, %v432
      %v456 = vmul.f32 %v324, %v432
      %v457 = vmul.f32 %v325, %v432
      %v458 = vmul.f32 %v326, %v432
      %v459 = vmul.f32 %v327, %v432
      %v460 = vmul.f32 %v328, %v432
      %v461 = vmul.f32 %v329, %v432
      %v462 = vmul.f32 %v330, %v432
      %v463 = vmul.f32 %v331, %v432
      %v464 = vmul.f32 %v332, %v432
      %v465 = vmul.f32 %v333, %v432
      %v466 = vmul.f32 %v334, %v432
      %v467 = vmul.f32 %v335, %v432
      %v468 = vmul.f32 %v336, %v432
      %v469 = vmul.f32 %v337, %v432
      %v470 = vmul.f32 %v338, %v432
      %v471 = vmul.f32 %v339, %v432
      %v472 = vmul.f32 %v340, %v432
      %v473 = vmul.f32 %v341, %v432
      %v474 = vmul.f32 %v342, %v432
      %v475 = vmul.f32 %v343, %v432
      %v476 = vmul.f32 %v344, %v432
      %v477 = vmul.f32 %v345, %v432
      %v478 = vmul.f32 %v346, %v432
      %v479 = vmul.f32 %v347, %v432
      %v480 = vmul.f32 %v348, %v432
      %v481 = vmul.f32 %v349, %v432
      %v482 = vmul.f32 %v350, %v432
      %v483 = vmul.f32 %v351, %v432
      %v484 = vmul.f32 %v352, %v432
      %v485 = vmul.f32 %v353, %v432
      %v486 = vmul.f32 %v354, %v432
      %v487 = vmul.f32 %v355, %v432
      %v488 = vmul.f32 %v356, %v432
      %v489 = vmul.f32 %v357, %v432
      %v490 = vmul.f32 %v358, %v432
      %v491 = vmul.f32 %v359, %v432
      %v492 = vmul.f32 %v360, %v432
      %v493 = vmul.f32 %v361, %v432
      %v494 = vmul.f32 %v362, %v432
      %v495 = vmul.f32 %v363, %v432
      %v496 = vmul.f32 %v364, %v432
      %v497 = vmul.f32 %v365, %v432
      %v498 = vmul.f32 %v366, %v432
      %v499 = vmul.f32 %v367, %v432
      %v500 = vmul.f32 %v368, %v432
      %v501 = vmul.f32 %v369, %v432
      %v502 = vmul.f32 %v370, %v432
      %v503 = vmul.f32 %v371, %v432
      %v504 = vmul.f32 %v372, %v432
      %v505 = vmul.f32 %v373, %v432
      %v506 = vmul.f32 %v374, %v432
      %v507 = vmul.f32 %v375, %v432
      %v508 = vmul.f32 %v376, %v432
      %v509 = vmul.f32 %v377, %v432
      %v510 = vmul.f32 %v378, %v432
      %v511 = vmul.f32 %v379, %v432
      %v512 = vmul.f32 %v380, %v432
      %v513 = vmul.f32 %v381, %v432
      %v514 = vmul.f32 %v382, %v432
      %v515 = vmul.f32 %v383, %v432
      %v516 = vmul.f32 %v384, %v432
      %v517 = vmul.f32 %v385, %v432
      %v518 = vmul.f32 %v386, %v432
      %v519 = vmul.f32 %v387, %v432
      %v520 = vmul.f32 %v388, %v432
      %v521 = vmul.f32 %v389, %v432
      %v522 = vmul.f32 %v390, %v432
      %v523 = vmul.f32 %v391, %v432
      %v524 = vmul.f32 %v392, %v432
      %v525 = vmul.f32 %v393, %v432
      %v526 = vmul.f32 %v394, %v432
      %v527 = vmul.f32 %v395, %v432
      %v528 = vmul.f32 %v396, %v432
      %v529 = vmul.f32 %v397, %v432
      %v530 = vmul.f32 %v398, %v432
      %v531 = vmul.f32 %v399, %v432
      %v532 = vmul.f32 %v400, %v432
      %v533 = vmul.f32 %v401, %v432
      %v534 = vmul.f32 %v402, %v432
      %v535 = vmul.f32 %v403, %v432
      %v536 = vmul.f32 %v404, %v432
      %v537 = vmul.f32 %v405, %v432
      %v538 = vmul.f32 %v406, %v432
      %v539 = vmul.f32 %v407, %v432
      %v540 = vmul.f32 %v408, %v432
      %v541 = vmul.f32 %v409, %v432
      %v542 = vmul.f32 %v410, %v432
      %v543 = vmul.f32 %v411, %v432
      %v544 = vmul.f32 %v412, %v432
      %v545 = vmul.f32 %v413, %v432
      %v546 = vmul.f32 %v414, %v432
      %v547 = vmul.f32 %v415, %v432
      %v548 = vmul.f32 %v416, %v432
      %v549 = vmul.f32 %v417, %v432
      %v550 = vmul.f32 %v418, %v432
      %v551 = vmul.f32 %v419, %v432
      %v552 = vmul.f32 %v420, %v432
      %v553 = vmul.f32 %v421, %v432
      %v554 = vmul.f32 %v422, %v432
      %v555 = vmul.f32 %v423, %v432
      %v556 = vmul.f32 %v424, %v432
      %v557 = vmul.f32 %v425, %v432
      %v558 = vmul.f32 %v426, %v432
      %v559 = vmul.f32 %v427, %v432
      %v560 = vmul.f32 %v428, %v432
      %v561 = vmul.f32 %v429, %v432
      %v562 = vld [vmem:[%s2] sm:$0x1]
      %v564 = vperm.slane %v562, 0
      %v566 = vadd.f32 %v434, %v564
      %v567 = vadd.f32 %v435, %v564
      %v568 = vadd.f32 %v436, %v564
      %v569 = vadd.f32 %v437, %v564
      %v570 = vadd.f32 %v438, %v564
      %v571 = vadd.f32 %v439, %v564
      %v572 = vadd.f32 %v440, %v564
      %v573 = vadd.f32 %v441, %v564
      %v574 = vadd.f32 %v442, %v564
      %v575 = vadd.f32 %v443, %v564
      %v576 = vadd.f32 %v444, %v564
      %v577 = vadd.f32 %v445, %v564
      %v578 = vadd.f32 %v446, %v564
      %v579 = vadd.f32 %v447, %v564
      %v580 = vadd.f32 %v448, %v564
      %v581 = vadd.f32 %v449, %v564
      %v582 = vadd.f32 %v450, %v564
      %v583 = vadd.f32 %v451, %v564
      %v584 = vadd.f32 %v452, %v564
      %v585 = vadd.f32 %v453, %v564
      %v586 = vadd.f32 %v454, %v564
      %v587 = vadd.f32 %v455, %v564
      %v588 = vadd.f32 %v456, %v564
      %v589 = vadd.f32 %v457, %v564
      %v590 = vadd.f32 %v458, %v564
      %v591 = vadd.f32 %v459, %v564
      %v592 = vadd.f32 %v460, %v564
      %v593 = vadd.f32 %v461, %v564
      %v594 = vadd.f32 %v462, %v564
      %v595 = vadd.f32 %v463, %v564
      %v596 = vadd.f32 %v464, %v564
      %v597 = vadd.f32 %v465, %v564
      %v598 = vadd.f32 %v466, %v564
      %v599 = vadd.f32 %v467, %v564
      %v600 = vadd.f32 %v468, %v564
      %v601 = vadd.f32 %v469, %v564
      %v602 = vadd.f32 %v470, %v564
      %v603 = vadd.f32 %v471, %v564
      %v604 = vadd.f32 %v472, %v564
      %v605 = vadd.f32 %v473, %v564
      %v606 = vadd.f32 %v474, %v564
      %v607 = vadd.f32 %v475, %v564
      %v608 = vadd.f32 %v476, %v564
      %v609 = vadd.f32 %v477, %v564
      %v610 = vadd.f32 %v478, %v564
      %v611 = vadd.f32 %v479, %v564
      %v612 = vadd.f32 %v480, %v564
      %v613 = vadd.f32 %v481, %v564
      %v614 = vadd.f32 %v482, %v564
      %v615 = vadd.f32 %v483, %v564
      %v616 = vadd.f32 %v484, %v564
      %v617 = vadd.f32 %v485, %v564
      %v618 = vadd.f32 %v486, %v564
      %v619 = vadd.f32 %v487, %v564
      %v620 = vadd.f32 %v488, %v564
      %v621 = vadd.f32 %v489, %v564
      %v622 = vadd.f32 %v490, %v564
      %v623 = vadd.f32 %v491, %v564
      %v624 = vadd.f32 %v492, %v564
      %v625 = vadd.f32 %v493, %v564
      %v626 = vadd.f32 %v494, %v564
      %v627 = vadd.f32 %v495, %v564
      %v628 = vadd.f32 %v496, %v564
      %v629 = vadd.f32 %v497, %v564
      %v630 = vadd.f32 %v498, %v564
      %v631 = vadd.f32 %v499, %v564
      %v632 = vadd.f32 %v500, %v564
      %v633 = vadd.f32 %v501, %v564
      %v634 = vadd.f32 %v502, %v564
      %v635 = vadd.f32 %v503, %v564
      %v636 = vadd.f32 %v504, %v564
      %v637 = vadd.f32 %v505, %v564
      %v638 = vadd.f32 %v506, %v564
      %v639 = vadd.f32 %v507, %v564
      %v640 = vadd.f32 %v508, %v564
      %v641 = vadd.f32 %v509, %v564
      %v642 = vadd.f32 %v510, %v564
      %v643 = vadd.f32 %v511, %v564
      %v644 = vadd.f32 %v512, %v564
      %v645 = vadd.f32 %v513, %v564
      %v646 = vadd.f32 %v514, %v564
      %v647 = vadd.f32 %v515, %v564
      %v648 = vadd.f32 %v516, %v564
      %v649 = vadd.f32 %v517, %v564
      %v650 = vadd.f32 %v518, %v564
      %v651 = vadd.f32 %v519, %v564
      %v652 = vadd.f32 %v520, %v564
      %v653 = vadd.f32 %v521, %v564
      %v654 = vadd.f32 %v522, %v564
      %v655 = vadd.f32 %v523, %v564
      %v656 = vadd.f32 %v524, %v564
      %v657 = vadd.f32 %v525, %v564
      %v658 = vadd.f32 %v526, %v564
      %v659 = vadd.f32 %v527, %v564
      %v660 = vadd.f32 %v528, %v564
      %v661 = vadd.f32 %v529, %v564
      %v662 = vadd.f32 %v530, %v564
      %v663 = vadd.f32 %v531, %v564
      %v664 = vadd.f32 %v532, %v564
      %v665 = vadd.f32 %v533, %v564
      %v666 = vadd.f32 %v534, %v564
      %v667 = vadd.f32 %v535, %v564
      %v668 = vadd.f32 %v536, %v564
      %v669 = vadd.f32 %v537, %v564
      %v670 = vadd.f32 %v538, %v564
      %v671 = vadd.f32 %v539, %v564
      %v672 = vadd.f32 %v540, %v564
      %v673 = vadd.f32 %v541, %v564
      %v674 = vadd.f32 %v542, %v564
      %v675 = vadd.f32 %v543, %v564
      %v676 = vadd.f32 %v544, %v564
      %v677 = vadd.f32 %v545, %v564
      %v678 = vadd.f32 %v546, %v564
      %v679 = vadd.f32 %v547, %v564
      %v680 = vadd.f32 %v548, %v564
      %v681 = vadd.f32 %v549, %v564
      %v682 = vadd.f32 %v550, %v564
      %v683 = vadd.f32 %v551, %v564
      %v684 = vadd.f32 %v552, %v564
      %v685 = vadd.f32 %v553, %v564
      %v686 = vadd.f32 %v554, %v564
      %v687 = vadd.f32 %v555, %v564
      %v688 = vadd.f32 %v556, %v564
      %v689 = vadd.f32 %v557, %v564
      %v690 = vadd.f32 %v558, %v564
      %v691 = vadd.f32 %v559, %v564
      %v692 = vadd.f32 %v560, %v564
      %v693 = vadd.f32 %v561, %v564
      %v694 = vmax.f32 %v566, 0.0
      %v695 = vmax.f32 %v567, 0.0
      %v696 = vmax.f32 %v568, 0.0
      %v697 = vmax.f32 %v569, 0.0
      %v698 = vmax.f32 %v570, 0.0
      %v699 = vmax.f32 %v571, 0.0
      %v700 = vmax.f32 %v572, 0.0
      %v701 = vmax.f32 %v573, 0.0
      %v702 = vmax.f32 %v574, 0.0
      %v703 = vmax.f32 %v575, 0.0
      %v704 = vmax.f32 %v576, 0.0
      %v705 = vmax.f32 %v577, 0.0
      %v706 = vmax.f32 %v578, 0.0
      %v707 = vmax.f32 %v579, 0.0
      %v708 = vmax.f32 %v580, 0.0
      %v709 = vmax.f32 %v581, 0.0
      %v710 = vmax.f32 %v582, 0.0
      %v711 = vmax.f32 %v583, 0.0
      %v712 = vmax.f32 %v584, 0.0
      %v713 = vmax.f32 %v585, 0.0
      %v714 = vmax.f32 %v586, 0.0
      %v715 = vmax.f32 %v587, 0.0
      %v716 = vmax.f32 %v588, 0.0
      %v717 = vmax.f32 %v589, 0.0
      %v718 = vmax.f32 %v590, 0.0
      %v719 = vmax.f32 %v591, 0.0
      %v720 = vmax.f32 %v592, 0.0
      %v721 = vmax.f32 %v593, 0.0
      %v722 = vmax.f32 %v594, 0.0
      %v723 = vmax.f32 %v595, 0.0
      %v724 = vmax.f32 %v596, 0.0
      %v725 = vmax.f32 %v597, 0.0
      %v726 = vmax.f32 %v598, 0.0
      %v727 = vmax.f32 %v599, 0.0
      %v728 = vmax.f32 %v600, 0.0
      %v729 = vmax.f32 %v601, 0.0
      %v730 = vmax.f32 %v602, 0.0
      %v731 = vmax.f32 %v603, 0.0
      %v732 = vmax.f32 %v604, 0.0
      %v733 = vmax.f32 %v605, 0.0
      %v734 = vmax.f32 %v606, 0.0
      %v735 = vmax.f32 %v607, 0.0
      %v736 = vmax.f32 %v608, 0.0
      %v737 = vmax.f32 %v609, 0.0
      %v738 = vmax.f32 %v610, 0.0
      %v739 = vmax.f32 %v611, 0.0
      %v740 = vmax.f32 %v612, 0.0
      %v741 = vmax.f32 %v613, 0.0
      %v742 = vmax.f32 %v614, 0.0
      %v743 = vmax.f32 %v615, 0.0
      %v744 = vmax.f32 %v616, 0.0
      %v745 = vmax.f32 %v617, 0.0
      %v746 = vmax.f32 %v618, 0.0
      %v747 = vmax.f32 %v619, 0.0
      %v748 = vmax.f32 %v620, 0.0
      %v749 = vmax.f32 %v621, 0.0
      %v750 = vmax.f32 %v622, 0.0
      %v751 = vmax.f32 %v623, 0.0
      %v752 = vmax.f32 %v624, 0.0
      %v753 = vmax.f32 %v625, 0.0
      %v754 = vmax.f32 %v626, 0.0
      %v755 = vmax.f32 %v627, 0.0
      %v756 = vmax.f32 %v628, 0.0
      %v757 = vmax.f32 %v629, 0.0
      %v758 = vmax.f32 %v630, 0.0
      %v759 = vmax.f32 %v631, 0.0
      %v760 = vmax.f32 %v632, 0.0
      %v761 = vmax.f32 %v633, 0.0
      %v762 = vmax.f32 %v634, 0.0
      %v763 = vmax.f32 %v635, 0.0
      %v764 = vmax.f32 %v636, 0.0
      %v765 = vmax.f32 %v637, 0.0
      %v766 = vmax.f32 %v638, 0.0
      %v767 = vmax.f32 %v639, 0.0
      %v768 = vmax.f32 %v640, 0.0
      %v769 = vmax.f32 %v641, 0.0
      %v770 = vmax.f32 %v642, 0.0
      %v771 = vmax.f32 %v643, 0.0
      %v772 = vmax.f32 %v644, 0.0
      %v773 = vmax.f32 %v645, 0.0
      %v774 = vmax.f32 %v646, 0.0
      %v775 = vmax.f32 %v647, 0.0
      %v776 = vmax.f32 %v648, 0.0
      %v777 = vmax.f32 %v649, 0.0
      %v778 = vmax.f32 %v650, 0.0
      %v779 = vmax.f32 %v651, 0.0
      %v780 = vmax.f32 %v652, 0.0
      %v781 = vmax.f32 %v653, 0.0
      %v782 = vmax.f32 %v654, 0.0
      %v783 = vmax.f32 %v655, 0.0
      %v784 = vmax.f32 %v656, 0.0
      %v785 = vmax.f32 %v657, 0.0
      %v786 = vmax.f32 %v658, 0.0
      %v787 = vmax.f32 %v659, 0.0
      %v788 = vmax.f32 %v660, 0.0
      %v789 = vmax.f32 %v661, 0.0
      %v790 = vmax.f32 %v662, 0.0
      %v791 = vmax.f32 %v663, 0.0
      %v792 = vmax.f32 %v664, 0.0
      %v793 = vmax.f32 %v665, 0.0
      %v794 = vmax.f32 %v666, 0.0
      %v795 = vmax.f32 %v667, 0.0
      %v796 = vmax.f32 %v668, 0.0
      %v797 = vmax.f32 %v669, 0.0
      %v798 = vmax.f32 %v670, 0.0
      %v799 = vmax.f32 %v671, 0.0
      %v800 = vmax.f32 %v672, 0.0
      %v801 = vmax.f32 %v673, 0.0
      %v802 = vmax.f32 %v674, 0.0
      %v803 = vmax.f32 %v675, 0.0
      %v804 = vmax.f32 %v676, 0.0
      %v805 = vmax.f32 %v677, 0.0
      %v806 = vmax.f32 %v678, 0.0
      %v807 = vmax.f32 %v679, 0.0
      %v808 = vmax.f32 %v680, 0.0
      %v809 = vmax.f32 %v681, 0.0
      %v810 = vmax.f32 %v682, 0.0
      %v811 = vmax.f32 %v683, 0.0
      %v812 = vmax.f32 %v684, 0.0
      %v813 = vmax.f32 %v685, 0.0
      %v814 = vmax.f32 %v686, 0.0
      %v815 = vmax.f32 %v687, 0.0
      %v816 = vmax.f32 %v688, 0.0
      %v817 = vmax.f32 %v689, 0.0
      %v818 = vmax.f32 %v690, 0.0
      %v819 = vmax.f32 %v691, 0.0
      %v820 = vmax.f32 %v692, 0.0
      %v821 = vmax.f32 %v693, 0.0
      %v822 = vpack.c.bf16 %v694, %v694
      %v823 = vpack.c.bf16 %v695, %v695
      %v824 = vpack.c.bf16 %v696, %v696
      %v825 = vpack.c.bf16 %v697, %v697
      %v826 = vpack.c.bf16 %v698, %v698
      %v827 = vpack.c.bf16 %v699, %v699
      %v828 = vpack.c.bf16 %v700, %v700
      %v829 = vpack.c.bf16 %v701, %v701
      %v830 = vpack.c.bf16 %v702, %v702
      %v831 = vpack.c.bf16 %v703, %v703
      %v832 = vpack.c.bf16 %v704, %v704
      %v833 = vpack.c.bf16 %v705, %v705
      %v834 = vpack.c.bf16 %v706, %v706
      %v835 = vpack.c.bf16 %v707, %v707
      %v836 = vpack.c.bf16 %v708, %v708
      %v837 = vpack.c.bf16 %v709, %v709
      %v838 = vpack.c.bf16 %v710, %v710
      %v839 = vpack.c.bf16 %v711, %v711
      %v840 = vpack.c.bf16 %v712, %v712
      %v841 = vpack.c.bf16 %v713, %v713
      %v842 = vpack.c.bf16 %v714, %v714
      %v843 = vpack.c.bf16 %v715, %v715
      %v844 = vpack.c.bf16 %v716, %v716
      %v845 = vpack.c.bf16 %v717, %v717
      %v846 = vpack.c.bf16 %v718, %v718
      %v847 = vpack.c.bf16 %v719, %v719
      %v848 = vpack.c.bf16 %v720, %v720
      %v849 = vpack.c.bf16 %v721, %v721
      %v850 = vpack.c.bf16 %v722, %v722
      %v851 = vpack.c.bf16 %v723, %v723
      %v852 = vpack.c.bf16 %v724, %v724
      %v853 = vpack.c.bf16 %v725, %v725
      %v854 = vpack.c.bf16 %v726, %v726
      %v855 = vpack.c.bf16 %v727, %v727
      %v856 = vpack.c.bf16 %v728, %v728
      %v857 = vpack.c.bf16 %v729, %v729
      %v858 = vpack.c.bf16 %v730, %v730
      %v859 = vpack.c.bf16 %v731, %v731
      %v860 = vpack.c.bf16 %v732, %v732
      %v861 = vpack.c.bf16 %v733, %v733
      %v862 = vpack.c.bf16 %v734, %v734
      %v863 = vpack.c.bf16 %v735, %v735
      %v864 = vpack.c.bf16 %v736, %v736
      %v865 = vpack.c.bf16 %v737, %v737
      %v866 = vpack.c.bf16 %v738, %v738
      %v867 = vpack.c.bf16 %v739, %v739
      %v868 = vpack.c.bf16 %v740, %v740
      %v869 = vpack.c.bf16 %v741, %v741
      %v870 = vpack.c.bf16 %v742, %v742
      %v871 = vpack.c.bf16 %v743, %v743
      %v872 = vpack.c.bf16 %v744, %v744
      %v873 = vpack.c.bf16 %v745, %v745
      %v874 = vpack.c.bf16 %v746, %v746
      %v875 = vpack.c.bf16 %v747, %v747
      %v876 = vpack.c.bf16 %v748, %v748
      %v877 = vpack.c.bf16 %v749, %v749
      %v878 = vpack.c.bf16 %v750, %v750
      %v879 = vpack.c.bf16 %v751, %v751
      %v880 = vpack.c.bf16 %v752, %v752
      %v881 = vpack.c.bf16 %v753, %v753
      %v882 = vpack.c.bf16 %v754, %v754
      %v883 = vpack.c.bf16 %v755, %v755
      %v884 = vpack.c.bf16 %v756, %v756
      %v885 = vpack.c.bf16 %v757, %v757
      %v886 = vpack.c.bf16 %v758, %v758
      %v887 = vpack.c.bf16 %v759, %v759
      %v888 = vpack.c.bf16 %v760, %v760
      %v889 = vpack.c.bf16 %v761, %v761
      %v890 = vpack.c.bf16 %v762, %v762
      %v891 = vpack.c.bf16 %v763, %v763
      %v892 = vpack.c.bf16 %v764, %v764
      %v893 = vpack.c.bf16 %v765, %v765
      %v894 = vpack.c.bf16 %v766, %v766
      %v895 = vpack.c.bf16 %v767, %v767
      %v896 = vpack.c.bf16 %v768, %v768
      %v897 = vpack.c.bf16 %v769, %v769
      %v898 = vpack.c.bf16 %v770, %v770
      %v899 = vpack.c.bf16 %v771, %v771
      %v900 = vpack.c.bf16 %v772, %v772
      %v901 = vpack.c.bf16 %v773, %v773
      %v902 = vpack.c.bf16 %v774, %v774
      %v903 = vpack.c.bf16 %v775, %v775
      %v904 = vpack.c.bf16 %v776, %v776
      %v905 = vpack.c.bf16 %v777, %v777
      %v906 = vpack.c.bf16 %v778, %v778
      %v907 = vpack.c.bf16 %v779, %v779
      %v908 = vpack.c.bf16 %v780, %v780
      %v909 = vpack.c.bf16 %v781, %v781
      %v910 = vpack.c.bf16 %v782, %v782
      %v911 = vpack.c.bf16 %v783, %v783
      %v912 = vpack.c.bf16 %v784, %v784
      %v913 = vpack.c.bf16 %v785, %v785
      %v914 = vpack.c.bf16 %v786, %v786
      %v915 = vpack.c.bf16 %v787, %v787
      %v916 = vpack.c.bf16 %v788, %v788
      %v917 = vpack.c.bf16 %v789, %v789
      %v918 = vpack.c.bf16 %v790, %v790
      %v919 = vpack.c.bf16 %v791, %v791
      %v920 = vpack.c.bf16 %v792, %v792
      %v921 = vpack.c.bf16 %v793, %v793
      %v922 = vpack.c.bf16 %v794, %v794
      %v923 = vpack.c.bf16 %v795, %v795
      %v924 = vpack.c.bf16 %v796, %v796
      %v925 = vpack.c.bf16 %v797, %v797
      %v926 = vpack.c.bf16 %v798, %v798
      %v927 = vpack.c.bf16 %v799, %v799
      %v928 = vpack.c.bf16 %v800, %v800
      %v929 = vpack.c.bf16 %v801, %v801
      %v930 = vpack.c.bf16 %v802, %v802
      %v931 = vpack.c.bf16 %v803, %v803
      %v932 = vpack.c.bf16 %v804, %v804
      %v933 = vpack.c.bf16 %v805, %v805
      %v934 = vpack.c.bf16 %v806, %v806
      %v935 = vpack.c.bf16 %v807, %v807
      %v936 = vpack.c.bf16 %v808, %v808
      %v937 = vpack.c.bf16 %v809, %v809
      %v938 = vpack.c.bf16 %v810, %v810
      %v939 = vpack.c.bf16 %v811, %v811
      %v940 = vpack.c.bf16 %v812, %v812
      %v941 = vpack.c.bf16 %v813, %v813
      %v942 = vpack.c.bf16 %v814, %v814
      %v943 = vpack.c.bf16 %v815, %v815
      %v944 = vpack.c.bf16 %v816, %v816
      %v945 = vpack.c.bf16 %v817, %v817
      %v946 = vpack.c.bf16 %v818, %v818
      %v947 = vpack.c.bf16 %v819, %v819
      %v948 = vpack.c.bf16 %v820, %v820
      %v949 = vpack.c.bf16 %v821, %v821
      %950 = vst [vmem:[%s172] sm:$0xf] %v822
      %951 = vst [vmem:[%s172 + $0x4] sm:$0xf] %v823
      %952 = vst [vmem:[%s172 + $0x8] sm:$0xf] %v824
      %953 = vst [vmem:[%s172 + $0xc] sm:$0xf] %v825
      %954 = vst [vmem:[%s172 + $0x10] sm:$0xf] %v826
      %955 = vst [vmem:[%s172 + $0x14] sm:$0xf] %v827
      %956 = vst [vmem:[%s172 + $0x18] sm:$0xf] %v828
      %957 = vst [vmem:[%s172 + $0x1c] sm:$0xf] %v829
      %958 = vst [vmem:[%s172 + $0x20] sm:$0xf] %v830
      %959 = vst [vmem:[%s172 + $0x24] sm:$0xf] %v831
      %960 = vst [vmem:[%s172 + $0x28] sm:$0xf] %v832
      %961 = vst [vmem:[%s172 + $0x2c] sm:$0xf] %v833
      %962 = vst [vmem:[%s172 + $0x30] sm:$0xf] %v834
      %963 = vst [vmem:[%s172 + $0x34] sm:$0xf] %v835
      %964 = vst [vmem:[%s172 + $0x38] sm:$0xf] %v836
      %965 = vst [vmem:[%s172 + $0x3c] sm:$0xf] %v837
      %966 = vst [vmem:[%s172 + $0x40] sm:$0xf] %v838
      %967 = vst [vmem:[%s172 + $0x44] sm:$0xf] %v839
      %968 = vst [vmem:[%s172 + $0x48] sm:$0xf] %v840
      %969 = vst [vmem:[%s172 + $0x4c] sm:$0xf] %v841
      %970 = vst [vmem:[%s172 + $0x50] sm:$0xf] %v842
      %971 = vst [vmem:[%s172 + $0x54] sm:$0xf] %v843
      %972 = vst [vmem:[%s172 + $0x58] sm:$0xf] %v844
      %973 = vst [vmem:[%s172 + $0x5c] sm:$0xf] %v845
      %974 = vst [vmem:[%s172 + $0x60] sm:$0xf] %v846
      %975 = vst [vmem:[%s172 + $0x64] sm:$0xf] %v847
      %976 = vst [vmem:[%s172 + $0x68] sm:$0xf] %v848
      %977 = vst [vmem:[%s172 + $0x6c] sm:$0xf] %v849
      %978 = vst [vmem:[%s172 + $0x70] sm:$0xf] %v850
      %979 = vst [vmem:[%s172 + $0x74] sm:$0xf] %v851
      %980 = vst [vmem:[%s172 + $0x78] sm:$0xf] %v852
      %981 = vst [vmem:[%s172 + $0x7c] sm:$0xf] %v853
      %982 = vst [vmem:[%s172 + $0x80] sm:$0xf] %v854
      %983 = vst [vmem:[%s172 + $0x84] sm:$0xf] %v855
      %984 = vst [vmem:[%s172 + $0x88] sm:$0xf] %v856
      %985 = vst [vmem:[%s172 + $0x8c] sm:$0xf] %v857
      %986 = vst [vmem:[%s172 + $0x90] sm:$0xf] %v858
      %987 = vst [vmem:[%s172 + $0x94] sm:$0xf] %v859
      %988 = vst [vmem:[%s172 + $0x98] sm:$0xf] %v860
      %989 = vst [vmem:[%s172 + $0x9c] sm:$0xf] %v861
      %990 = vst [vmem:[%s172 + $0xa0] sm:$0xf] %v862
      %991 = vst [vmem:[%s172 + $0xa4] sm:$0xf] %v863
      %992 = vst [vmem:[%s172 + $0xa8] sm:$0xf] %v864
      %993 = vst [vmem:[%s172 + $0xac] sm:$0xf] %v865
      %994 = vst [vmem:[%s172 + $0xb0] sm:$0xf] %v866
      %995 = vst [vmem:[%s172 + $0xb4] sm:$0xf] %v867
      %996 = vst [vmem:[%s172 + $0xb8] sm:$0xf] %v868
      %997 = vst [vmem:[%s172 + $0xbc] sm:$0xf] %v869
      %998 = vst [vmem:[%s172 + $0xc0] sm:$0xf] %v870
      %999 = vst [vmem:[%s172 + $0xc4] sm:$0xf] %v871
      %1000 = vst [vmem:[%s172 + $0xc8] sm:$0xf] %v872
      %1001 = vst [vmem:[%s172 + $0xcc] sm:$0xf] %v873
      %1002 = vst [vmem:[%s172 + $0xd0] sm:$0xf] %v874
      %1003 = vst [vmem:[%s172 + $0xd4] sm:$0xf] %v875
      %1004 = vst [vmem:[%s172 + $0xd8] sm:$0xf] %v876
      %1005 = vst [vmem:[%s172 + $0xdc] sm:$0xf] %v877
      %1006 = vst [vmem:[%s172 + $0xe0] sm:$0xf] %v878
      %1007 = vst [vmem:[%s172 + $0xe4] sm:$0xf] %v879
      %1008 = vst [vmem:[%s172 + $0xe8] sm:$0xf] %v880
      %1009 = vst [vmem:[%s172 + $0xec] sm:$0xf] %v881
      %1010 = vst [vmem:[%s172 + $0xf0] sm:$0xf] %v882
      %1011 = vst [vmem:[%s172 + $0xf4] sm:$0xf] %v883
      %1012 = vst [vmem:[%s172 + $0xf8] sm:$0xf] %v884
      %1013 = vst [vmem:[%s172 + $0xfc] sm:$0xf] %v885
      %1014 = vst [vmem:[%s172 + $0x100] sm:$0xf] %v886
      %1015 = vst [vmem:[%s172 + $0x104] sm:$0xf] %v887
      %1016 = vst [vmem:[%s172 + $0x108] sm:$0xf] %v888
      %1017 = vst [vmem:[%s172 + $0x10c] sm:$0xf] %v889
      %1018 = vst [vmem:[%s172 + $0x110] sm:$0xf] %v890
      %1019 = vst [vmem:[%s172 + $0x114] sm:$0xf] %v891
      %1020 = vst [vmem:[%s172 + $0x118] sm:$0xf] %v892
      %1021 = vst [vmem:[%s172 + $0x11c] sm:$0xf] %v893
      %1022 = vst [vmem:[%s172 + $0x120] sm:$0xf] %v894
      %1023 = vst [vmem:[%s172 + $0x124] sm:$0xf] %v895
      %1024 = vst [vmem:[%s172 + $0x128] sm:$0xf] %v896
      %1025 = vst [vmem:[%s172 + $0x12c] sm:$0xf] %v897
      %1026 = vst [vmem:[%s172 + $0x130] sm:$0xf] %v898
      %1027 = vst [vmem:[%s172 + $0x134] sm:$0xf] %v899
      %1028 = vst [vmem:[%s172 + $0x138] sm:$0xf] %v900
      %1029 = vst [vmem:[%s172 + $0x13c] sm:$0xf] %v901
      %1030 = vst [vmem:[%s172 + $0x140] sm:$0xf] %v902
      %1031 = vst [vmem:[%s172 + $0x144] sm:$0xf] %v903
      %1032 = vst [vmem:[%s172 + $0x148] sm:$0xf] %v904
      %1033 = vst [vmem:[%s172 + $0x14c] sm:$0xf] %v905
      %1034 = vst [vmem:[%s172 + $0x150] sm:$0xf] %v906
      %1035 = vst [vmem:[%s172 + $0x154] sm:$0xf] %v907
      %1036 = vst [vmem:[%s172 + $0x158] sm:$0xf] %v908
      %1037 = vst [vmem:[%s172 + $0x15c] sm:$0xf] %v909
      %1038 = vst [vmem:[%s172 + $0x160] sm:$0xf] %v910
      %1039 = vst [vmem:[%s172 + $0x164] sm:$0xf] %v911
      %1040 = vst [vmem:[%s172 + $0x168] sm:$0xf] %v912
      %1041 = vst [vmem:[%s172 + $0x16c] sm:$0xf] %v913
      %1042 = vst [vmem:[%s172 + $0x170] sm:$0xf] %v914
      %1043 = vst [vmem:[%s172 + $0x174] sm:$0xf] %v915
      %1044 = vst [vmem:[%s172 + $0x178] sm:$0xf] %v916
      %1045 = vst [vmem:[%s172 + $0x17c] sm:$0xf] %v917
      %1046 = vst [vmem:[%s172 + $0x180] sm:$0xf] %v918
      %1047 = vst [vmem:[%s172 + $0x184] sm:$0xf] %v919
      %1048 = vst [vmem:[%s172 + $0x188] sm:$0xf] %v920
      %1049 = vst [vmem:[%s172 + $0x18c] sm:$0xf] %v921
      %1050 = vst [vmem:[%s172 + $0x190] sm:$0xf] %v922
      %1051 = vst [vmem:[%s172 + $0x194] sm:$0xf] %v923
      %1052 = vst [vmem:[%s172 + $0x198] sm:$0xf] %v924
      %1053 = vst [vmem:[%s172 + $0x19c] sm:$0xf] %v925
      %1054 = vst [vmem:[%s172 + $0x1a0] sm:$0xf] %v926
      %1055 = vst [vmem:[%s172 + $0x1a4] sm:$0xf] %v927
      %1056 = vst [vmem:[%s172 + $0x1a8] sm:$0xf] %v928
      %1057 = vst [vmem:[%s172 + $0x1ac] sm:$0xf] %v929
      %1058 = vst [vmem:[%s172 + $0x1b0] sm:$0xf] %v930
      %1059 = vst [vmem:[%s172 + $0x1b4] sm:$0xf] %v931
      %1060 = vst [vmem:[%s172 + $0x1b8] sm:$0xf] %v932
      %1061 = vst [vmem:[%s172 + $0x1bc] sm:$0xf] %v933
      %1062 = vst [vmem:[%s172 + $0x1c0] sm:$0xf] %v934
      %1063 = vst [vmem:[%s172 + $0x1c4] sm:$0xf] %v935
      %1064 = vst [vmem:[%s172 + $0x1c8] sm:$0xf] %v936
      %1065 = vst [vmem:[%s172 + $0x1cc] sm:$0xf] %v937
      %1066 = vst [vmem:[%s172 + $0x1d0] sm:$0xf] %v938
      %1067 = vst [vmem:[%s172 + $0x1d4] sm:$0xf] %v939
      %1068 = vst [vmem:[%s172 + $0x1d8] sm:$0xf] %v940
      %1069 = vst [vmem:[%s172 + $0x1dc] sm:$0xf] %v941
      %1070 = vst [vmem:[%s172 + $0x1e0] sm:$0xf] %v942
      %1071 = vst [vmem:[%s172 + $0x1e4] sm:$0xf] %v943
      %1072 = vst [vmem:[%s172 + $0x1e8] sm:$0xf] %v944
      %1073 = vst [vmem:[%s172 + $0x1ec] sm:$0xf] %v945
      %1074 = vst [vmem:[%s172 + $0x1f0] sm:$0xf] %v946
      %1075 = vst [vmem:[%s172 + $0x1f4] sm:$0xf] %v947
      %1076 = vst [vmem:[%s172 + $0x1f8] sm:$0xf] %v948
      %1077 = vst [vmem:[%s172 + $0x1fc] sm:$0xf] %v949
      %s1078 = smul.u32 128, %s14
      %p1079 = scmp.lt.s32.totalorder %s1078, 255
      %s1080 = scalar_select %p1079, %s1078, 255
      %s1081 = smul.addr %s1080, 4
      %s1082 = scalar_lea.vmem %s3, %s1081
      // Predicated region
      $region33: #{critic_forward.8} parent=31 // pred_check
        %p1083 = pneg %p100
      $region34: #{critic_forward.8} parent=31 // pred_check_branch
        %1085 = sbr.rel (%p1083) target = $region36
      $region35: #{critic_forward.8} parent=31 // pred_region
        %s1086 = smul.u32 128, %s14
      $region36: #{critic_forward.8} parent=31 // pred_fallthru
        _
    $region32: #{critic_forward.8} parent=5 // pred_fallthru
      _
    %p1087 = scmp.le.s32.totalorder 2, %s9
    // Predicated region
    $region37: #{critic_forward.8} parent=5 // pred_check
      %p1088 = pneg %p1087
    $region38: #{critic_forward.8} parent=5 // pred_check_branch
      %1090 = sbr.rel (%p1088) target = $region40
    $region39: #{critic_forward.8} parent=5 // pred_region
      %s1091 = ssub.s32 %s9, 2
      // Predicated region
      $region41: #{critic_forward.8} parent=39 // pred_check
        %p1092 = pneg %p106
      $region42: #{critic_forward.8} parent=39 // pred_check_branch
        %1094 = sbr.rel (%p1092) target = $region44
      $region43: #{critic_forward.8} parent=39 // pred_region
        %s1095 = smul.u32 128, %s15
        %p1096 = scmp.lt.s32.totalorder %s1095, 255
        %s1097 = scalar_select %p1096, %s1095, 255
        %s1098 = smul.addr %s1097, 4
        %s1099 = scalar_lea.vmem %s3, %s1098
      $region44: #{critic_forward.8} parent=39 // pred_fallthru
        _
    $region40: #{critic_forward.8} parent=5 // pred_fallthru
      _
  $region6: #{critic_forward.8} parent=0 // loop_footer
    %s13 = sadd.s32 1, %s9
  $region7: #{critic_forward.8} parent=0 // loop_footer_branch
    %8 = sbr.rel target = $region3
  $region8: #{critic_forward.8} parent=0 // loop_exit
    _

// kernel: critic_forward.9
$region0: #{critic_forward.9}
  #allocation0 [shape = 'u32[]', space=smem, size = 0x4, offset = 0x4, fixed_abs, tag = 'smem constant byte address 0x4 - core index']
  #allocation1 [shape = 'u32[72,128]{1,0:T(1,128)}', space=vmem, size = 0x9000, scoped, tag = 'internal scratch']
  %s0 = inlined_call_operand.vmem [shape: bf16[208,512], index: 0, kind: input, shape index: {}]
  %s1 = inlined_call_operand.vmem [shape: bf16[512,128], index: 1, kind: input, shape index: {}]
  %s2 = inlined_call_operand.vmem [shape: bf16[208,128], index: 2, kind: output, shape index: {0}]
  %s3 = inlined_call_operand.vmem [shape: f32[2,2,128], index: 3, kind: output, shape index: {1}]
  %4 = xla_tuple %s2, %s3
  %s5 = sld [smem:[#allocation0]]
  $region49: #{critic_forward.9} parent=0
    _
  %s7 = ssub.s32 1, %s5
  %s8 = scalar_select 0, %s7, %s5
  loop: start=0, step=1, limit=4
  $region2: #{critic_forward.9} parent=0 // loop_pre_header
    _
  $region3: #{critic_forward.9} parent=0 // loop_header
    %s10 = sphi 0, %s14
    %p11 = scmp.ge.s32.totalorder %s10, 4
    %s20 = sphi 0, %s22
    %s23 = sphi 0, %s20
    %s24 = sphi 0, %s23
    %s40 = sphi 0, %s24
    %s44 = sphi 0, %s44
    %s46 = sphi 0, %s44
    %s47 = sphi 0, %s46
    %s61 = sphi 0, %s47
    %s67 = sphi 0, %s69
    %s70 = sphi 0, %s67
    %s71 = sphi 0, %s70
    %s87 = sphi 0, %s71
    %s93 = sphi 0, %s95
    %s96 = sphi 0, %s93
    %s97 = sphi 0, %s96
    %s113 = sphi 0, %s97
  $region4: #{critic_forward.9} parent=0 // loop_header_branch
    %13 = sbr.rel (%p11) target = $region8
  $region5: #{critic_forward.9} parent=0 // loop_body
    %s15 = ssub.s32 %s10, 1
    %s16 = ssub.s32 %s10, 2
    %s17 = sadd.s32 %s10, 1
    %s18 = ssub.s32 %s10, %s17
    %p19 = scmp.eq.s32.totalorder %s18, 0
    %s21 = sadd.s32 %s20, 1
    %s22 = scalar_select %p19, %s20, %s21
    %p25 = pneg %p19
    %p26 = scmp.eq.s32.totalorder %s10, 1
    %p27 = por %p25, %p26
    %p28 = scmp.ne.s32.totalorder %s20, %s23
    %p29 = scmp.eq.s32.totalorder %s10, 0
    %p30 = por %p28, %p29
    %p31 = scmp.ne.s32.totalorder %s20, %s23
    %p32 = scmp.eq.s32.totalorder %s15, 1
    %p33 = por %p31, %p32
    %p34 = scmp.ne.s32.totalorder %s23, %s24
    %p35 = scmp.eq.s32.totalorder %s15, 0
    %p36 = por %p34, %p35
    %p37 = scmp.ne.s32.totalorder %s23, %s24
    %p38 = scmp.eq.s32.totalorder %s16, 1
    %p39 = por %p37, %p38
    %p41 = scmp.ne.s32.totalorder %s24, %s40
    %p42 = scmp.eq.s32.totalorder %s16, 0
    %p43 = por %p41, %p42
    %s45 = sadd.s32 %s44, 1
    %p48 = scmp.eq.s32.totalorder %s10, 1
    %p49 = scmp.ne.s32.totalorder %s44, %s46
    %p50 = scmp.eq.s32.totalorder %s10, 0
    %p51 = por %p49, %p50
    %p52 = scmp.ne.s32.totalorder %s44, %s46
    %p53 = scmp.eq.s32.totalorder %s15, 1
    %p54 = por %p52, %p53
    %p55 = scmp.ne.s32.totalorder %s46, %s47
    %p56 = scmp.eq.s32.totalorder %s15, 0
    %p57 = por %p55, %p56
    %p58 = scmp.ne.s32.totalorder %s46, %s47
    %p59 = scmp.eq.s32.totalorder %s16, 1
    %p60 = por %p58, %p59
    %p62 = scmp.ne.s32.totalorder %s47, %s61
    %p63 = scmp.eq.s32.totalorder %s16, 0
    %p64 = por %p62, %p63
    %s65 = ssub.s32 %s10, %s17
    %p66 = scmp.eq.s32.totalorder %s65, 0
    %s68 = sadd.s32 %s67, 1
    %s69 = scalar_select %p66, %s67, %s68
    %p72 = pneg %p66
    %p73 = scmp.eq.s32.totalorder %s10, 1
    %p74 = por %p72, %p73
    %p75 = scmp.ne.s32.totalorder %s67, %s70
    %p76 = scmp.eq.s32.totalorder %s10, 0
    %p77 = por %p75, %p76
    %p78 = scmp.ne.s32.totalorder %s67, %s70
    %p79 = scmp.eq.s32.totalorder %s15, 1
    %p80 = por %p78, %p79
    %p81 = scmp.ne.s32.totalorder %s70, %s71
    %p82 = scmp.eq.s32.totalorder %s15, 0
    %p83 = por %p81, %p82
    %p84 = scmp.ne.s32.totalorder %s70, %s71
    %p85 = scmp.eq.s32.totalorder %s16, 1
    %p86 = por %p84, %p85
    %p88 = scmp.ne.s32.totalorder %s71, %s87
    %p89 = scmp.eq.s32.totalorder %s16, 0
    %p90 = por %p88, %p89
    %s91 = ssub.s32 %s10, %s17
    %p92 = scmp.eq.s32.totalorder %s91, 0
    %s94 = sadd.s32 %s93, 1
    %s95 = scalar_select %p92, %s93, %s94
    %p98 = pneg %p92
    %p99 = scmp.eq.s32.totalorder %s10, 1
    %p100 = por %p98, %p99
    %p101 = scmp.ne.s32.totalorder %s93, %s96
    %p102 = scmp.eq.s32.totalorder %s10, 0
    %p103 = por %p101, %p102
    %p104 = scmp.ne.s32.totalorder %s93, %s96
    %p105 = scmp.eq.s32.totalorder %s15, 1
    %p106 = por %p104, %p105
    %p107 = scmp.ne.s32.totalorder %s96, %s97
    %p108 = scmp.eq.s32.totalorder %s15, 0
    %p109 = por %p107, %p108
    %p110 = scmp.ne.s32.totalorder %s96, %s97
    %p111 = scmp.eq.s32.totalorder %s16, 1
    %p112 = por %p110, %p111
    %p114 = scmp.ne.s32.totalorder %s97, %s113
    %p115 = scmp.eq.s32.totalorder %s16, 0
    %p116 = por %p114, %p115
    %p117 = scmp.le.s32.totalorder 1, %s10
    %p118 = scmp.lt.s32.totalorder %s10, 3
    %p119 = pnand %p117, %p118
    %p120 = pneg %p119
    // Predicated region
    $region9: #{critic_forward.9} parent=5 // pred_check
      _
    $region10: #{critic_forward.9} parent=5 // pred_check_branch
      %122 = sbr.rel (%p119) target = $region12
    $region11: #{critic_forward.9} parent=5 // pred_region
      %s123 = ssub.s32 %s10, 1
      // Predicated region
      $region13: #{critic_forward.9} parent=11 // pred_check
        %p124 = pneg %p57
      $region14: #{critic_forward.9} parent=11 // pred_check_branch
        %126 = sbr.rel (%p124) target = $region16
      $region15: #{critic_forward.9} parent=11 // pred_region
        _
      $region16: #{critic_forward.9} parent=11 // pred_fallthru
        _
    $region12: #{critic_forward.9} parent=5 // pred_fallthru
      _
    %p127 = scmp.lt.s32.totalorder %s10, 2
    // Predicated region
    $region17: #{critic_forward.9} parent=5 // pred_check
      %p128 = pneg %p127
    $region18: #{critic_forward.9} parent=5 // pred_check_branch
      %130 = sbr.rel (%p128) target = $region20
    $region19: #{critic_forward.9} parent=5 // pred_region
      // Predicated region
      $region21: #{critic_forward.9} parent=19 // pred_check
        %p131 = pneg %p30
      $region22: #{critic_forward.9} parent=19 // pred_check_branch
        %133 = sbr.rel (%p131) target = $region24
      $region23: #{critic_forward.9} parent=19 // pred_region
        %s134 = smul.u32 13, %s10
        %p135 = scmp.lt.s32.totalorder %s134, 25
        %s136 = scalar_select %p135, %s134, 25
        %s137 = smul.addr %s136, 4
        %s138 = smul.addr %s137, 4
        %s139 = scalar_lea.vmem %s0, %s138
        %s140 = smul.u32 13, %s10
      $region24: #{critic_forward.9} parent=19 // pred_fallthru
        _
    $region20: #{critic_forward.9} parent=5 // pred_fallthru
      _
    %p141 = scmp.le.s32.totalorder 1, %s10
    %p142 = scmp.lt.s32.totalorder %s10, 3
    %p143 = pnand %p141, %p142
    %p144 = pneg %p143
    // Predicated region
    $region25: #{critic_forward.9} parent=5 // pred_check
      _
    $region26: #{critic_forward.9} parent=5 // pred_check_branch
      %146 = sbr.rel (%p143) target = $region28
    $region27: #{critic_forward.9} parent=5 // pred_region
      %s147 = ssub.s32 %s10, 1
      %s148 = smul.u32 13, %s15
      %p149 = scmp.lt.s32.totalorder %s148, 25
      %s150 = scalar_select %p149, %s148, 25
      %s151 = smul.addr %s150, 4
      %s152 = smul.addr %s151, 4
      %s153 = scalar_lea.vmem %s0, %s152
      %p154 = pneg %p36
      %p155 = pneg %p33
      %p156 = pneg %p57
      %p157 = pneg %p54
      %p158 = pneg %p83
      %p159 = pneg %p80
      %s160 = smul.u32 13, %s15
      %p161 = scmp.lt.s32.totalorder %s160, 25
      %s162 = scalar_select %p161, %s160, 25
      %s163 = smul.addr %s162, 4
      %s164 = scalar_lea.vmem %s2, %s163
      %p165 = pneg %p109
      %p166 = pneg %p106
      %p167 = scmp.lt.s32.totalorder %s15, 1
      %s168 = scalar_select %p167, %s15, 1
      %s169 = smul.addr %s168, 2
      %s170 = scalar_lea.vmem %s3, %s169
      %s171 = smul.u32 13, %s15
      %p172 = scmp.lt.s32.totalorder %s171, 25
      %s173 = scalar_select %p172, %s171, 25
      %s174 = smul.addr %s173, 4
      %s175 = smul.addr %s174, 4
      %s176 = scalar_lea.vmem %s0, %s175
      %s177 = smul.u32 13, %s15
      %s178 = smul.u32 13, %s15
      %p179 = scmp.lt.s32.totalorder %s178, 25
      %s180 = scalar_select %p179, %s178, 25
      %s181 = smul.addr %s180, 4
      %s182 = scalar_lea.vmem %s2, %s181
      %s183 = smul.u32 13, %s15
      %p184 = scmp.lt.s32.totalorder %s15, 1
      %s185 = scalar_select %p184, %s15, 1
      %s186 = smul.addr %s185, 2
      %s187 = scalar_lea.vmem %s3, %s186
      %v188 = vld [vmem:[%s176] sm:$0xff]
      %v189 = vld [vmem:[%s176 + $0x8] sm:$0xff]
      %v190 = vld [vmem:[%s176 + $0x10] sm:$0xff]
      %v191 = vld [vmem:[%s176 + $0x18] sm:$0xff]
      %v192 = vld [vmem:[%s176 + $0x20] sm:$0xff]
      %v193 = vld [vmem:[%s176 + $0x28] sm:$0xff]
      %v194 = vld [vmem:[%s176 + $0x30] sm:$0xff]
      %v195 = vld [vmem:[%s176 + $0x38] sm:$0xff]
      %v196 = vld [vmem:[%s176 + $0x40] sm:$0xff]
      %v197 = vld [vmem:[%s176 + $0x48] sm:$0xff]
      %v198 = vld [vmem:[%s176 + $0x50] sm:$0xff]
      %v199 = vld [vmem:[%s176 + $0x58] sm:$0xff]
      %v200 = vld [vmem:[%s176 + $0x60] sm:$0xff]
      %v201 = vld [vmem:[%s176 + $0x68] sm:$0xff]
      %v202 = vld [vmem:[%s176 + $0x70] sm:$0xff]
      %v203 = vld [vmem:[%s176 + $0x78] sm:$0xff]
      %v204 = vld [vmem:[%s176 + $0x80] sm:$0xff]
      %v205 = vld [vmem:[%s176 + $0x88] sm:$0xff]
      %v206 = vld [vmem:[%s176 + $0x90] sm:$0xff]
      %v207 = vld [vmem:[%s176 + $0x98] sm:$0xff]
      %v208 = vld [vmem:[%s176 + $0xa0] sm:$0xff]
      %v209 = vld [vmem:[%s176 + $0xa8] sm:$0xff]
      %v210 = vld [vmem:[%s176 + $0xb0] sm:$0xff]
      %v211 = vld [vmem:[%s176 + $0xb8] sm:$0xff]
      %v212 = vld [vmem:[%s176 + $0xc0] sm:$0xff]
      %v213 = vld [vmem:[%s176 + $0xc8] sm:$0xff]
      %v214 = vld [vmem:[%s1] sm:$0xf]
      %v215 = vld [vmem:[%s1 + $0x4] sm:$0xf]
      %v216 = vld [vmem:[%s1 + $0x8] sm:$0xf]
      %v217 = vld [vmem:[%s1 + $0xc] sm:$0xf]
      %v218 = vld [vmem:[%s1 + $0x10] sm:$0xf]
      %v219 = vld [vmem:[%s1 + $0x14] sm:$0xf]
      %v220 = vld [vmem:[%s1 + $0x18] sm:$0xf]
      %v221 = vld [vmem:[%s1 + $0x1c] sm:$0xf]
      %v222 = vld [vmem:[%s1 + $0x20] sm:$0xf]
      %v223 = vld [vmem:[%s1 + $0x24] sm:$0xf]
      %v224 = vld [vmem:[%s1 + $0x28] sm:$0xf]
      %v225 = vld [vmem:[%s1 + $0x2c] sm:$0xf]
      %v226 = vld [vmem:[%s1 + $0x30] sm:$0xf]
      %v227 = vld [vmem:[%s1 + $0x34] sm:$0xf]
      %v228 = vld [vmem:[%s1 + $0x38] sm:$0xf]
      %v229 = vld [vmem:[%s1 + $0x3c] sm:$0xf]
      %v230 = vld [vmem:[%s1 + $0x40] sm:$0xf]
      %v231 = vld [vmem:[%s1 + $0x44] sm:$0xf]
      %v232 = vld [vmem:[%s1 + $0x48] sm:$0xf]
      %v233 = vld [vmem:[%s1 + $0x4c] sm:$0xf]
      %v234 = vld [vmem:[%s1 + $0x50] sm:$0xf]
      %v235 = vld [vmem:[%s1 + $0x54] sm:$0xf]
      %v236 = vld [vmem:[%s1 + $0x58] sm:$0xf]
      %v237 = vld [vmem:[%s1 + $0x5c] sm:$0xf]
      %v238 = vld [vmem:[%s1 + $0x60] sm:$0xf]
      %v239 = vld [vmem:[%s1 + $0x64] sm:$0xf]
      %v240 = vld [vmem:[%s1 + $0x68] sm:$0xf]
      %v241 = vld [vmem:[%s1 + $0x6c] sm:$0xf]
      %v242 = vld [vmem:[%s1 + $0x70] sm:$0xf]
      %v243 = vld [vmem:[%s1 + $0x74] sm:$0xf]
      %v244 = vld [vmem:[%s1 + $0x78] sm:$0xf]
      %v245 = vld [vmem:[%s1 + $0x7c] sm:$0xf]
      %v246 = vld [vmem:[%s1 + $0x80] sm:$0xf]
      %v247 = vld [vmem:[%s1 + $0x84] sm:$0xf]
      %v248 = vld [vmem:[%s1 + $0x88] sm:$0xf]
      %v249 = vld [vmem:[%s1 + $0x8c] sm:$0xf]
      %v250 = vld [vmem:[%s1 + $0x90] sm:$0xf]
      %v251 = vld [vmem:[%s1 + $0x94] sm:$0xf]
      %v252 = vld [vmem:[%s1 + $0x98] sm:$0xf]
      %v253 = vld [vmem:[%s1 + $0x9c] sm:$0xf]
      %v254 = vld [vmem:[%s1 + $0xa0] sm:$0xf]
      %v255 = vld [vmem:[%s1 + $0xa4] sm:$0xf]
      %v256 = vld [vmem:[%s1 + $0xa8] sm:$0xf]
      %v257 = vld [vmem:[%s1 + $0xac] sm:$0xf]
      %v258 = vld [vmem:[%s1 + $0xb0] sm:$0xf]
      %v259 = vld [vmem:[%s1 + $0xb4] sm:$0xf]
      %v260 = vld [vmem:[%s1 + $0xb8] sm:$0xf]
      %v261 = vld [vmem:[%s1 + $0xbc] sm:$0xf]
      %v262 = vld [vmem:[%s1 + $0xc0] sm:$0xf]
      %v263 = vld [vmem:[%s1 + $0xc4] sm:$0xf]
      %v264 = vld [vmem:[%s1 + $0xc8] sm:$0xf]
      %v265 = vld [vmem:[%s1 + $0xcc] sm:$0xf]
      %v266 = vld [vmem:[%s1 + $0xd0] sm:$0xf]
      %v267 = vld [vmem:[%s1 + $0xd4] sm:$0xf]
      %v268 = vld [vmem:[%s1 + $0xd8] sm:$0xf]
      %v269 = vld [vmem:[%s1 + $0xdc] sm:$0xf]
      %v270 = vld [vmem:[%s1 + $0xe0] sm:$0xf]
      %v271 = vld [vmem:[%s1 + $0xe4] sm:$0xf]
      %v272 = vld [vmem:[%s1 + $0xe8] sm:$0xf]
      %v273 = vld [vmem:[%s1 + $0xec] sm:$0xf]
      %v274 = vld [vmem:[%s1 + $0xf0] sm:$0xf]
      %v275 = vld [vmem:[%s1 + $0xf4] sm:$0xf]
      %v276 = vld [vmem:[%s1 + $0xf8] sm:$0xf]
      %v277 = vld [vmem:[%s1 + $0xfc] sm:$0xf]
      %v304 = vunpack.c.l.b16 %v188
      %v305 = vunpack.c.h.b16 %v188
      %v306 = vunpack.c.l.b16 %v189
      %v307 = vunpack.c.h.b16 %v189
      %v308 = vunpack.c.l.b16 %v190
      %v309 = vunpack.c.h.b16 %v190
      %v310 = vunpack.c.l.b16 %v191
      %v311 = vunpack.c.h.b16 %v191
      %v312 = vunpack.c.l.b16 %v192
      %v313 = vunpack.c.h.b16 %v192
      %v314 = vunpack.c.l.b16 %v193
      %v315 = vunpack.c.h.b16 %v193
      %v316 = vunpack.c.l.b16 %v194
      %v317 = vunpack.c.h.b16 %v194
      %v318 = vunpack.c.l.b16 %v195
      %v319 = vunpack.c.h.b16 %v195
      %v320 = vunpack.c.l.b16 %v196
      %v321 = vunpack.c.h.b16 %v196
      %v322 = vunpack.c.l.b16 %v197
      %v323 = vunpack.c.h.b16 %v197
      %v324 = vunpack.c.l.b16 %v198
      %v325 = vunpack.c.h.b16 %v198
      %v326 = vunpack.c.l.b16 %v199
      %v327 = vunpack.c.h.b16 %v199
      %v328 = vunpack.c.l.b16 %v200
      %v329 = vunpack.c.h.b16 %v200
      %v330 = vunpack.c.l.b16 %v201
      %v331 = vunpack.c.h.b16 %v201
      %v332 = vunpack.c.l.b16 %v202
      %v333 = vunpack.c.h.b16 %v202
      %v334 = vunpack.c.l.b16 %v203
      %v335 = vunpack.c.h.b16 %v203
      %v336 = vunpack.c.l.b16 %v204
      %v337 = vunpack.c.h.b16 %v204
      %v338 = vunpack.c.l.b16 %v205
      %v339 = vunpack.c.h.b16 %v205
      %v340 = vunpack.c.l.b16 %v206
      %v341 = vunpack.c.h.b16 %v206
      %v342 = vunpack.c.l.b16 %v207
      %v343 = vunpack.c.h.b16 %v207
      %v344 = vunpack.c.l.b16 %v208
      %v345 = vunpack.c.h.b16 %v208
      %v346 = vunpack.c.l.b16 %v209
      %v347 = vunpack.c.h.b16 %v209
      %v348 = vunpack.c.l.b16 %v210
      %v349 = vunpack.c.h.b16 %v210
      %v350 = vunpack.c.l.b16 %v211
      %v351 = vunpack.c.h.b16 %v211
      %v352 = vunpack.c.l.b16 %v212
      %v353 = vunpack.c.h.b16 %v212
      %v354 = vunpack.c.l.b16 %v213
      %v355 = vunpack.c.h.b16 %v213
      %v356 = vpack.c.b16 %v308, %v304
      %v357 = vpack.c.b16 %v309, %v305
      %v358 = vpack.c.b16 %v310, %v306
      %v359 = vpack.c.b16 %v311, %v307
      %v360 = vpack.c.b16 %v316, %v312
      %v361 = vpack.c.b16 %v317, %v313
      %v362 = vpack.c.b16 %v318, %v314
      %v363 = vpack.c.b16 %v319, %v315
      %v364 = vpack.c.b16 %v324, %v320
      %v365 = vpack.c.b16 %v325, %v321
      %v366 = vpack.c.b16 %v326, %v322
      %v367 = vpack.c.b16 %v327, %v323
      %v368 = vpack.c.b16 %v332, %v328
      %v369 = vpack.c.b16 %v333, %v329
      %v370 = vpack.c.b16 %v334, %v330
      %v371 = vpack.c.b16 %v335, %v331
      %v372 = vpack.c.b16 %v340, %v336
      %v373 = vpack.c.b16 %v341, %v337
      %v374 = vpack.c.b16 %v342, %v338
      %v375 = vpack.c.b16 %v343, %v339
      %v376 = vpack.c.b16 %v348, %v344
      %v377 = vpack.c.b16 %v349, %v345
      %v378 = vpack.c.b16 %v350, %v346
      %v379 = vpack.c.b16 %v351, %v347
      %v380 = vpack.c.b16 %v352, %v352
      %v381 = vpack.c.b16 %v353, %v353
      %v382 = vpack.c.b16 %v354, %v354
      %v383 = vpack.c.b16 %v355, %v355
      %v476 = vunpack.c.l.b16 %v214
      %v477 = vunpack.c.l.b16 %v215
      %v478 = vunpack.c.l.b16 %v216
      %v479 = vunpack.c.l.b16 %v217
      %v480 = vunpack.c.l.b16 %v218
      %v481 = vunpack.c.l.b16 %v219
      %v482 = vunpack.c.l.b16 %v220
      %v483 = vunpack.c.l.b16 %v221
      %v484 = vunpack.c.l.b16 %v222
      %v485 = vunpack.c.l.b16 %v223
      %v486 = vunpack.c.l.b16 %v224
      %v487 = vunpack.c.l.b16 %v225
      %v488 = vunpack.c.l.b16 %v226
      %v489 = vunpack.c.l.b16 %v227
      %v490 = vunpack.c.l.b16 %v228
      %v491 = vunpack.c.l.b16 %v229
      %v492 = vunpack.c.l.b16 %v230
      %v493 = vunpack.c.l.b16 %v231
      %v494 = vunpack.c.l.b16 %v232
      %v495 = vunpack.c.l.b16 %v233
      %v496 = vunpack.c.l.b16 %v234
      %v497 = vunpack.c.l.b16 %v235
      %v498 = vunpack.c.l.b16 %v236
      %v499 = vunpack.c.l.b16 %v237
      %v500 = vunpack.c.l.b16 %v238
      %v501 = vunpack.c.l.b16 %v239
      %v502 = vunpack.c.l.b16 %v240
      %v503 = vunpack.c.l.b16 %v241
      %v504 = vunpack.c.l.b16 %v242
      %v505 = vunpack.c.l.b16 %v243
      %v506 = vunpack.c.l.b16 %v244
      %v507 = vunpack.c.l.b16 %v245
      %v508 = vunpack.c.l.b16 %v246
      %v509 = vunpack.c.l.b16 %v247
      %v510 = vunpack.c.l.b16 %v248
      %v511 = vunpack.c.l.b16 %v249
      %v512 = vunpack.c.l.b16 %v250
      %v513 = vunpack.c.l.b16 %v251
      %v514 = vunpack.c.l.b16 %v252
      %v515 = vunpack.c.l.b16 %v253
      %v516 = vunpack.c.l.b16 %v254
      %v517 = vunpack.c.l.b16 %v255
      %v518 = vunpack.c.l.b16 %v256
      %v519 = vunpack.c.l.b16 %v257
      %v520 = vunpack.c.l.b16 %v258
      %v521 = vunpack.c.l.b16 %v259
      %v522 = vunpack.c.l.b16 %v260
      %v523 = vunpack.c.l.b16 %v261
      %v524 = vunpack.c.l.b16 %v262
      %v525 = vunpack.c.l.b16 %v263
      %v526 = vunpack.c.l.b16 %v264
      %v527 = vunpack.c.l.b16 %v265
      %v528 = vunpack.c.l.b16 %v266
      %v529 = vunpack.c.l.b16 %v267
      %v530 = vunpack.c.l.b16 %v268
      %v531 = vunpack.c.l.b16 %v269
      %v532 = vunpack.c.l.b16 %v270
      %v533 = vunpack.c.l.b16 %v271
      %v534 = vunpack.c.l.b16 %v272
      %v535 = vunpack.c.l.b16 %v273
      %v536 = vunpack.c.l.b16 %v274
      %v537 = vunpack.c.l.b16 %v275
      %v538 = vunpack.c.l.b16 %v276
      %v539 = vunpack.c.l.b16 %v277
      %v540 = vpack.c.b16 %v477, %v476
      %v541 = vpack.c.b16 %v479, %v478
      %v542 = vpack.c.b16 %v481, %v480
      %v543 = vpack.c.b16 %v483, %v482
      %v544 = vpack.c.b16 %v485, %v484
      %v545 = vpack.c.b16 %v487, %v486
      %v546 = vpack.c.b16 %v489, %v488
      %v547 = vpack.c.b16 %v491, %v490
      %v548 = vpack.c.b16 %v493, %v492
      %v549 = vpack.c.b16 %v495, %v494
      %v550 = vpack.c.b16 %v497, %v496
      %v551 = vpack.c.b16 %v499, %v498
      %v552 = vpack.c.b16 %v501, %v500
      %v553 = vpack.c.b16 %v503, %v502
      %v554 = vpack.c.b16 %v505, %v504
      %v555 = vpack.c.b16 %v507, %v506
      %v556 = vpack.c.b16 %v509, %v508
      %v557 = vpack.c.b16 %v511, %v510
      %v558 = vpack.c.b16 %v513, %v512
      %v559 = vpack.c.b16 %v515, %v514
      %v560 = vpack.c.b16 %v517, %v516
      %v561 = vpack.c.b16 %v519, %v518
      %v562 = vpack.c.b16 %v521, %v520
      %v563 = vpack.c.b16 %v523, %v522
      %v564 = vpack.c.b16 %v525, %v524
      %v565 = vpack.c.b16 %v527, %v526
      %v566 = vpack.c.b16 %v529, %v528
      %v567 = vpack.c.b16 %v531, %v530
      %v568 = vpack.c.b16 %v533, %v532
      %v569 = vpack.c.b16 %v535, %v534
      %v570 = vpack.c.b16 %v537, %v536
      %v571 = vpack.c.b16 %v539, %v538
      %604 = vmatpush.bf16.msra.mxu0 %v547
      %605 = vmatpush.bf16.msra.mxu0 %v546
      %606 = vmatpush.bf16.msra.mxu0 %v545
      %607 = vmatpush.bf16.msra.mxu0 %v544
      %608 = vmatpush.bf16.msra.mxu0 %v543
      %609 = vmatpush.bf16.msra.mxu0 %v542
      %610 = vmatpush.bf16.msra.mxu0 %v541
      %611 = vmatpush.bf16.msra.mxu0 %v540
      %612 = vmatmul.bf16.gmra.mxu0 %v356
      %v613 = vpop.f32.mrf.mxu0
      %v614 = vadd.f32 0.0, %v613
      %v615 = vpop.f32.mrf.mxu0
      %v616 = vadd.f32 0.0, %v615
      %617 = vmatmul.bf16.gmra.mxu0 %v360
      %v618 = vpop.f32.mrf.mxu0
      %v619 = vadd.f32 0.0, %v618
      %v620 = vpop.f32.mrf.mxu0
      %v621 = vadd.f32 0.0, %v620
      %622 = vmatmul.bf16.gmra.mxu0 %v364
      %v623 = vpop.f32.mrf.mxu0
      %v624 = vadd.f32 0.0, %v623
      %v625 = vpop.f32.mrf.mxu0
      %v626 = vadd.f32 0.0, %v625
      %627 = vmatmul.bf16.gmra.mxu0 %v368
      %v628 = vpop.f32.mrf.mxu0
      %v629 = vadd.f32 0.0, %v628
      %v630 = vpop.f32.mrf.mxu0
      %v631 = vadd.f32 0.0, %v630
      %632 = vmatmul.bf16.gmra.mxu0 %v372
      %v633 = vpop.f32.mrf.mxu0
      %v634 = vadd.f32 0.0, %v633
      %v635 = vpop.f32.mrf.mxu0
      %v636 = vadd.f32 0.0, %v635
      %637 = vmatmul.bf16.gmra.mxu0 %v376
      %v638 = vpop.f32.mrf.mxu0
      %v639 = vadd.f32 0.0, %v638
      %v640 = vpop.f32.mrf.mxu0
      %v641 = vadd.f32 0.0, %v640
      %642 = vmatmul.bf16.gmra.mxu0 %v380
      %v643 = vpop.f32.mrf.mxu0
      %v644 = vadd.f32 0.0, %v643
      %v645 = vpop.f32.mrf.mxu0
      %646 = vdwg.mxu0
      %647 = vmatpush.bf16.msra.mxu0 %v555
      %648 = vmatpush.bf16.msra.mxu0 %v554
      %649 = vmatpush.bf16.msra.mxu0 %v553
      %650 = vmatpush.bf16.msra.mxu0 %v552
      %651 = vmatpush.bf16.msra.mxu0 %v551
      %652 = vmatpush.bf16.msra.mxu0 %v550
      %653 = vmatpush.bf16.msra.mxu0 %v549
      %654 = vmatpush.bf16.msra.mxu0 %v548
      %655 = vmatmul.bf16.gmra.mxu0 %v357
      %v656 = vpop.f32.mrf.mxu0
      %v657 = vadd.f32 %v614, %v656
      %v658 = vpop.f32.mrf.mxu0
      %v659 = vadd.f32 %v616, %v658
      %660 = vmatmul.bf16.gmra.mxu0 %v361
      %v661 = vpop.f32.mrf.mxu0
      %v662 = vadd.f32 %v619, %v661
      %v663 = vpop.f32.mrf.mxu0
      %v664 = vadd.f32 %v621, %v663
      %665 = vmatmul.bf16.gmra.mxu0 %v365
      %v666 = vpop.f32.mrf.mxu0
      %v667 = vadd.f32 %v624, %v666
      %v668 = vpop.f32.mrf.mxu0
      %v669 = vadd.f32 %v626, %v668
      %670 = vmatmul.bf16.gmra.mxu0 %v369
      %v671 = vpop.f32.mrf.mxu0
      %v672 = vadd.f32 %v629, %v671
      %v673 = vpop.f32.mrf.mxu0
      %v674 = vadd.f32 %v631, %v673
      %675 = vmatmul.bf16.gmra.mxu0 %v373
      %v676 = vpop.f32.mrf.mxu0
      %v677 = vadd.f32 %v634, %v676
      %v678 = vpop.f32.mrf.mxu0
      %v679 = vadd.f32 %v636, %v678
      %680 = vmatmul.bf16.gmra.mxu0 %v377
      %v681 = vpop.f32.mrf.mxu0
      %v682 = vadd.f32 %v639, %v681
      %v683 = vpop.f32.mrf.mxu0
      %v684 = vadd.f32 %v641, %v683
      %685 = vmatmul.bf16.gmra.mxu0 %v381
      %v686 = vpop.f32.mrf.mxu0
      %v687 = vadd.f32 %v644, %v686
      %v688 = vpop.f32.mrf.mxu0
      %689 = vdwg.mxu0
      %690 = vmatpush.bf16.msra.mxu0 %v563
      %691 = vmatpush.bf16.msra.mxu0 %v562
      %692 = vmatpush.bf16.msra.mxu0 %v561
      %693 = vmatpush.bf16.msra.mxu0 %v560
      %694 = vmatpush.bf16.msra.mxu0 %v559
      %695 = vmatpush.bf16.msra.mxu0 %v558
      %696 = vmatpush.bf16.msra.mxu0 %v557
      %697 = vmatpush.bf16.msra.mxu0 %v556
      %698 = vmatmul.bf16.gmra.mxu0 %v358
      %v699 = vpop.f32.mrf.mxu0
      %v700 = vadd.f32 %v657, %v699
      %v701 = vpop.f32.mrf.mxu0
      %v702 = vadd.f32 %v659, %v701
      %703 = vmatmul.bf16.gmra.mxu0 %v362
      %v704 = vpop.f32.mrf.mxu0
      %v705 = vadd.f32 %v662, %v704
      %v706 = vpop.f32.mrf.mxu0
      %v707 = vadd.f32 %v664, %v706
      %708 = vmatmul.bf16.gmra.mxu0 %v366
      %v709 = vpop.f32.mrf.mxu0
      %v710 = vadd.f32 %v667, %v709
      %v711 = vpop.f32.mrf.mxu0
      %v712 = vadd.f32 %v669, %v711
      %713 = vmatmul.bf16.gmra.mxu0 %v370
      %v714 = vpop.f32.mrf.mxu0
      %v715 = vadd.f32 %v672, %v714
      %v716 = vpop.f32.mrf.mxu0
      %v717 = vadd.f32 %v674, %v716
      %718 = vmatmul.bf16.gmra.mxu0 %v374
      %v719 = vpop.f32.mrf.mxu0
      %v720 = vadd.f32 %v677, %v719
      %v721 = vpop.f32.mrf.mxu0
      %v722 = vadd.f32 %v679, %v721
      %723 = vmatmul.bf16.gmra.mxu0 %v378
      %v724 = vpop.f32.mrf.mxu0
      %v725 = vadd.f32 %v682, %v724
      %v726 = vpop.f32.mrf.mxu0
      %v727 = vadd.f32 %v684, %v726
      %728 = vmatmul.bf16.gmra.mxu0 %v382
      %v729 = vpop.f32.mrf.mxu0
      %v730 = vadd.f32 %v687, %v729
      %v731 = vpop.f32.mrf.mxu0
      %732 = vdwg.mxu0
      %733 = vmatpush.bf16.msra.mxu0 %v571
      %734 = vmatpush.bf16.msra.mxu0 %v570
      %735 = vmatpush.bf16.msra.mxu0 %v569
      %736 = vmatpush.bf16.msra.mxu0 %v568
      %737 = vmatpush.bf16.msra.mxu0 %v567
      %738 = vmatpush.bf16.msra.mxu0 %v566
      %739 = vmatpush.bf16.msra.mxu0 %v565
      %740 = vmatpush.bf16.msra.mxu0 %v564
      %741 = vmatmul.bf16.gmra.mxu0 %v359
      %v742 = vpop.f32.mrf.mxu0
      %v743 = vadd.f32 %v700, %v742
      %v744 = vpop.f32.mrf.mxu0
      %v745 = vadd.f32 %v702, %v744
      %746 = vmatmul.bf16.gmra.mxu0 %v363
      %v747 = vpop.f32.mrf.mxu0
      %v748 = vadd.f32 %v705, %v747
      %v749 = vpop.f32.mrf.mxu0
      %v750 = vadd.f32 %v707, %v749
      %751 = vmatmul.bf16.gmra.mxu0 %v367
      %v752 = vpop.f32.mrf.mxu0
      %v753 = vadd.f32 %v710, %v752
      %v754 = vpop.f32.mrf.mxu0
      %v755 = vadd.f32 %v712, %v754
      %756 = vmatmul.bf16.gmra.mxu0 %v371
      %v757 = vpop.f32.mrf.mxu0
      %v758 = vadd.f32 %v715, %v757
      %v759 = vpop.f32.mrf.mxu0
      %v760 = vadd.f32 %v717, %v759
      %761 = vmatmul.bf16.gmra.mxu0 %v375
      %v762 = vpop.f32.mrf.mxu0
      %v763 = vadd.f32 %v720, %v762
      %v764 = vpop.f32.mrf.mxu0
      %v765 = vadd.f32 %v722, %v764
      %766 = vmatmul.bf16.gmra.mxu0 %v379
      %v767 = vpop.f32.mrf.mxu0
      %v768 = vadd.f32 %v725, %v767
      %v769 = vpop.f32.mrf.mxu0
      %v770 = vadd.f32 %v727, %v769
      %771 = vmatmul.bf16.gmra.mxu0 %v383
      %v772 = vpop.f32.mrf.mxu0
      %v773 = vadd.f32 %v730, %v772
      %v774 = vpop.f32.mrf.mxu0
      %775 = vdwg.mxu0
      %v776 = vpack.c.bf16 %v743, %v743
      %v777 = vpack.c.bf16 %v745, %v745
      %v778 = vpack.c.bf16 %v748, %v748
      %v779 = vpack.c.bf16 %v750, %v750
      %v780 = vpack.c.bf16 %v753, %v753
      %v781 = vpack.c.bf16 %v755, %v755
      %v782 = vpack.c.bf16 %v758, %v758
      %v783 = vpack.c.bf16 %v760, %v760
      %v784 = vpack.c.bf16 %v763, %v763
      %v785 = vpack.c.bf16 %v765, %v765
      %v786 = vpack.c.bf16 %v768, %v768
      %v787 = vpack.c.bf16 %v770, %v770
      %v788 = vpack.c.bf16 %v773, %v773
      %789 = vst [vmem:[%s182] sm:$0xf] %v776
      %790 = vst [vmem:[%s182 + $0x4] sm:$0xf] %v777
      %791 = vst [vmem:[%s182 + $0x8] sm:$0xf] %v778
      %792 = vst [vmem:[%s182 + $0xc] sm:$0xf] %v779
      %793 = vst [vmem:[%s182 + $0x10] sm:$0xf] %v780
      %794 = vst [vmem:[%s182 + $0x14] sm:$0xf] %v781
      %795 = vst [vmem:[%s182 + $0x18] sm:$0xf] %v782
      %796 = vst [vmem:[%s182 + $0x1c] sm:$0xf] %v783
      %797 = vst [vmem:[%s182 + $0x20] sm:$0xf] %v784
      %798 = vst [vmem:[%s182 + $0x24] sm:$0xf] %v785
      %799 = vst [vmem:[%s182 + $0x28] sm:$0xf] %v786
      %800 = vst [vmem:[%s182 + $0x2c] sm:$0xf] %v787
      %801 = vst [vmem:[%s182 + $0x30] sm:$0xf] %v788
      %v802 = vadd.f32 %v743, %v745
      %v803 = vadd.f32 %v802, %v748
      %v804 = vadd.f32 %v803, %v750
      %v805 = vadd.f32 %v804, %v753
      %v806 = vadd.f32 %v805, %v755
      %v807 = vadd.f32 %v806, %v758
      %v808 = vadd.f32 %v807, %v760
      %v809 = vadd.f32 %v808, %v763
      %v810 = vadd.f32 %v809, %v765
      %v811 = vadd.f32 %v810, %v768
      %v812 = vadd.f32 %v811, %v770
      %v813 = vadd.f32 %v812, %v773
      %v814 = vrot.slane %v813, 4
      %v815 = vadd.f32 %v813, %v814
      %v816 = vrot.slane %v815, 2
      %v817 = vadd.f32 %v815, %v816
      %v818 = vrot.slane %v817, 1
      %v819 = vadd.f32 %v817, %v818
      %v820 = vmul.f32 %v743, %v743
      %v821 = vmul.f32 %v745, %v745
      %v822 = vmul.f32 %v748, %v748
      %v823 = vmul.f32 %v750, %v750
      %v824 = vmul.f32 %v753, %v753
      %v825 = vmul.f32 %v755, %v755
      %v826 = vmul.f32 %v758, %v758
      %v827 = vmul.f32 %v760, %v760
      %v828 = vmul.f32 %v763, %v763
      %v829 = vmul.f32 %v765, %v765
      %v830 = vmul.f32 %v768, %v768
      %v831 = vmul.f32 %v770, %v770
      %v832 = vmul.f32 %v773, %v773
      %v833 = vadd.f32 %v820, %v821
      %v834 = vadd.f32 %v833, %v822
      %v835 = vadd.f32 %v834, %v823
      %v836 = vadd.f32 %v835, %v824
      %v837 = vadd.f32 %v836, %v825
      %v838 = vadd.f32 %v837, %v826
      %v839 = vadd.f32 %v838, %v827
      %v840 = vadd.f32 %v839, %v828
      %v841 = vadd.f32 %v840, %v829
      %v842 = vadd.f32 %v841, %v830
      %v843 = vadd.f32 %v842, %v831
      %v844 = vadd.f32 %v843, %v832
      %v845 = vrot.slane %v844, 4
      %v846 = vadd.f32 %v844, %v845
      %v847 = vrot.slane %v846, 2
      %v848 = vadd.f32 %v846, %v847
      %v849 = vrot.slane %v848, 1
      %v850 = vadd.f32 %v848, %v849
      %vm851 = vcmask 1040384
      %v852 = vsel %vm851, %v819, %v850
      %853 = vst [vmem:[%s187] sm:$0x3] %v852
      %s854 = smul.u32 13, %s15
      %p855 = scmp.lt.s32.totalorder %s854, 25
      %s856 = scalar_select %p855, %s854, 25
      %s857 = smul.addr %s856, 4
      %s858 = scalar_lea.vmem %s2, %s857
      %p859 = scmp.lt.s32.totalorder %s15, 1
      %s860 = scalar_select %p859, %s15, 1
      %s861 = smul.addr %s860, 2
      %s862 = scalar_lea.vmem %s3, %s861
      // Predicated region
      $region29: #{critic_forward.9} parent=27 // pred_check
        %p863 = pneg %p80
      $region30: #{critic_forward.9} parent=27 // pred_check_branch
        %865 = sbr.rel (%p863) target = $region32
      $region31: #{critic_forward.9} parent=27 // pred_region
        %s866 = smul.u32 13, %s15
      $region32: #{critic_forward.9} parent=27 // pred_fallthru
        _
      // Predicated region
      $region33: #{critic_forward.9} parent=27 // pred_check
        %p867 = pneg %p106
      $region34: #{critic_forward.9} parent=27 // pred_check_branch
        %869 = sbr.rel (%p867) target = $region36
      $region35: #{critic_forward.9} parent=27 // pred_region
        _
      $region36: #{critic_forward.9} parent=27 // pred_fallthru
        _
    $region28: #{critic_forward.9} parent=5 // pred_fallthru
      _
    %p870 = scmp.le.s32.totalorder 2, %s10
    // Predicated region
    $region37: #{critic_forward.9} parent=5 // pred_check
      %p871 = pneg %p870
    $region38: #{critic_forward.9} parent=5 // pred_check_branch
      %873 = sbr.rel (%p871) target = $region40
    $region39: #{critic_forward.9} parent=5 // pred_region
      %s874 = ssub.s32 %s10, 2
      // Predicated region
      $region41: #{critic_forward.9} parent=39 // pred_check
        %p875 = pneg %p86
      $region42: #{critic_forward.9} parent=39 // pred_check_branch
        %877 = sbr.rel (%p875) target = $region44
      $region43: #{critic_forward.9} parent=39 // pred_region
        %s878 = smul.u32 13, %s16
        %p879 = scmp.lt.s32.totalorder %s878, 25
        %s880 = scalar_select %p879, %s878, 25
        %s881 = smul.addr %s880, 4
        %s882 = scalar_lea.vmem %s2, %s881
      $region44: #{critic_forward.9} parent=39 // pred_fallthru
        _
      // Predicated region
      $region45: #{critic_forward.9} parent=39 // pred_check
        %p883 = pneg %p112
      $region46: #{critic_forward.9} parent=39 // pred_check_branch
        %885 = sbr.rel (%p883) target = $region48
      $region47: #{critic_forward.9} parent=39 // pred_region
        %p886 = scmp.lt.s32.totalorder %s16, 1
        %s887 = scalar_select %p886, %s16, 1
        %s888 = smul.addr %s887, 2
        %s889 = scalar_lea.vmem %s3, %s888
      $region48: #{critic_forward.9} parent=39 // pred_fallthru
        _
    $region40: #{critic_forward.9} parent=5 // pred_fallthru
      _
  $region6: #{critic_forward.9} parent=0 // loop_footer
    %s14 = sadd.s32 1, %s10
  $region7: #{critic_forward.9} parent=0 // loop_footer_branch
    %9 = sbr.rel target = $region3
  $region8: #{critic_forward.9} parent=0 // loop_exit
    _

// kernel: critic_forward.10
$region0: #{critic_forward.10}
  #allocation0 [shape = 'u32[]', space=smem, size = 0x4, offset = 0x4, fixed_abs, tag = 'smem constant byte address 0x4 - core index']
  #allocation1 [shape = 'u32[72,128]{1,0:T(1,128)}', space=vmem, size = 0x9000, scoped, tag = 'internal scratch']
  %s0 = inlined_call_operand.vmem [shape: bf16[208,128], index: 0, kind: input, shape index: {}]
  %s1 = inlined_call_operand.vmem [shape: f32[1,128], index: 1, kind: input, shape index: {}]
  %s2 = inlined_call_operand.vmem [shape: f32[1,128], index: 2, kind: input, shape index: {}]
  %s3 = inlined_call_operand.vmem [shape: bf16[208,128], index: 3, kind: output, shape index: {}]
  %s4 = sld [smem:[#allocation0]]
  $region45: #{critic_forward.10} parent=0
    _
  %s6 = ssub.s32 1, %s4
  %s7 = scalar_select 0, %s6, %s4
  loop: start=0, step=1, limit=4
  $region2: #{critic_forward.10} parent=0 // loop_pre_header
    _
  $region3: #{critic_forward.10} parent=0 // loop_header
    %s9 = sphi 0, %s13
    %p10 = scmp.ge.s32.totalorder %s9, 4
    %s19 = sphi 0, %s21
    %s22 = sphi 0, %s19
    %s23 = sphi 0, %s22
    %s39 = sphi 0, %s23
    %s43 = sphi 0, %s43
    %s45 = sphi 0, %s43
    %s46 = sphi 0, %s45
    %s60 = sphi 0, %s46
    %s64 = sphi 0, %s64
    %s66 = sphi 0, %s64
    %s67 = sphi 0, %s66
    %s81 = sphi 0, %s67
    %s87 = sphi 0, %s89
    %s90 = sphi 0, %s87
    %s91 = sphi 0, %s90
    %s107 = sphi 0, %s91
  $region4: #{critic_forward.10} parent=0 // loop_header_branch
    %12 = sbr.rel (%p10) target = $region8
  $region5: #{critic_forward.10} parent=0 // loop_body
    %s14 = ssub.s32 %s9, 1
    %s15 = ssub.s32 %s9, 2
    %s16 = sadd.s32 %s9, 1
    %s17 = ssub.s32 %s9, %s16
    %p18 = scmp.eq.s32.totalorder %s17, 0
    %s20 = sadd.s32 %s19, 1
    %s21 = scalar_select %p18, %s19, %s20
    %p24 = pneg %p18
    %p25 = scmp.eq.s32.totalorder %s9, 1
    %p26 = por %p24, %p25
    %p27 = scmp.ne.s32.totalorder %s19, %s22
    %p28 = scmp.eq.s32.totalorder %s9, 0
    %p29 = por %p27, %p28
    %p30 = scmp.ne.s32.totalorder %s19, %s22
    %p31 = scmp.eq.s32.totalorder %s14, 1
    %p32 = por %p30, %p31
    %p33 = scmp.ne.s32.totalorder %s22, %s23
    %p34 = scmp.eq.s32.totalorder %s14, 0
    %p35 = por %p33, %p34
    %p36 = scmp.ne.s32.totalorder %s22, %s23
    %p37 = scmp.eq.s32.totalorder %s15, 1
    %p38 = por %p36, %p37
    %p40 = scmp.ne.s32.totalorder %s23, %s39
    %p41 = scmp.eq.s32.totalorder %s15, 0
    %p42 = por %p40, %p41
    %s44 = sadd.s32 %s43, 1
    %p47 = scmp.eq.s32.totalorder %s9, 1
    %p48 = scmp.ne.s32.totalorder %s43, %s45
    %p49 = scmp.eq.s32.totalorder %s9, 0
    %p50 = por %p48, %p49
    %p51 = scmp.ne.s32.totalorder %s43, %s45
    %p52 = scmp.eq.s32.totalorder %s14, 1
    %p53 = por %p51, %p52
    %p54 = scmp.ne.s32.totalorder %s45, %s46
    %p55 = scmp.eq.s32.totalorder %s14, 0
    %p56 = por %p54, %p55
    %p57 = scmp.ne.s32.totalorder %s45, %s46
    %p58 = scmp.eq.s32.totalorder %s15, 1
    %p59 = por %p57, %p58
    %p61 = scmp.ne.s32.totalorder %s46, %s60
    %p62 = scmp.eq.s32.totalorder %s15, 0
    %p63 = por %p61, %p62
    %s65 = sadd.s32 %s64, 1
    %p68 = scmp.eq.s32.totalorder %s9, 1
    %p69 = scmp.ne.s32.totalorder %s64, %s66
    %p70 = scmp.eq.s32.totalorder %s9, 0
    %p71 = por %p69, %p70
    %p72 = scmp.ne.s32.totalorder %s64, %s66
    %p73 = scmp.eq.s32.totalorder %s14, 1
    %p74 = por %p72, %p73
    %p75 = scmp.ne.s32.totalorder %s66, %s67
    %p76 = scmp.eq.s32.totalorder %s14, 0
    %p77 = por %p75, %p76
    %p78 = scmp.ne.s32.totalorder %s66, %s67
    %p79 = scmp.eq.s32.totalorder %s15, 1
    %p80 = por %p78, %p79
    %p82 = scmp.ne.s32.totalorder %s67, %s81
    %p83 = scmp.eq.s32.totalorder %s15, 0
    %p84 = por %p82, %p83
    %s85 = ssub.s32 %s9, %s16
    %p86 = scmp.eq.s32.totalorder %s85, 0
    %s88 = sadd.s32 %s87, 1
    %s89 = scalar_select %p86, %s87, %s88
    %p92 = pneg %p86
    %p93 = scmp.eq.s32.totalorder %s9, 1
    %p94 = por %p92, %p93
    %p95 = scmp.ne.s32.totalorder %s87, %s90
    %p96 = scmp.eq.s32.totalorder %s9, 0
    %p97 = por %p95, %p96
    %p98 = scmp.ne.s32.totalorder %s87, %s90
    %p99 = scmp.eq.s32.totalorder %s14, 1
    %p100 = por %p98, %p99
    %p101 = scmp.ne.s32.totalorder %s90, %s91
    %p102 = scmp.eq.s32.totalorder %s14, 0
    %p103 = por %p101, %p102
    %p104 = scmp.ne.s32.totalorder %s90, %s91
    %p105 = scmp.eq.s32.totalorder %s15, 1
    %p106 = por %p104, %p105
    %p108 = scmp.ne.s32.totalorder %s91, %s107
    %p109 = scmp.eq.s32.totalorder %s15, 0
    %p110 = por %p108, %p109
    %p111 = scmp.le.s32.totalorder 1, %s9
    %p112 = scmp.lt.s32.totalorder %s9, 3
    %p113 = pnand %p111, %p112
    %p114 = pneg %p113
    // Predicated region
    $region9: #{critic_forward.10} parent=5 // pred_check
      _
    $region10: #{critic_forward.10} parent=5 // pred_check_branch
      %116 = sbr.rel (%p113) target = $region12
    $region11: #{critic_forward.10} parent=5 // pred_region
      %s117 = ssub.s32 %s9, 1
      // Predicated region
      $region13: #{critic_forward.10} parent=11 // pred_check
        %p118 = pneg %p56
      $region14: #{critic_forward.10} parent=11 // pred_check_branch
        %120 = sbr.rel (%p118) target = $region16
      $region15: #{critic_forward.10} parent=11 // pred_region
        _
      $region16: #{critic_forward.10} parent=11 // pred_fallthru
        _
      // Predicated region
      $region17: #{critic_forward.10} parent=11 // pred_check
        %p121 = pneg %p77
      $region18: #{critic_forward.10} parent=11 // pred_check_branch
        %123 = sbr.rel (%p121) target = $region20
      $region19: #{critic_forward.10} parent=11 // pred_region
        _
      $region20: #{critic_forward.10} parent=11 // pred_fallthru
        _
    $region12: #{critic_forward.10} parent=5 // pred_fallthru
      _
    %p124 = scmp.lt.s32.totalorder %s9, 2
    // Predicated region
    $region21: #{critic_forward.10} parent=5 // pred_check
      %p125 = pneg %p124
    $region22: #{critic_forward.10} parent=5 // pred_check_branch
      %127 = sbr.rel (%p125) target = $region24
    $region23: #{critic_forward.10} parent=5 // pred_region
      // Predicated region
      $region25: #{critic_forward.10} parent=23 // pred_check
        %p128 = pneg %p29
      $region26: #{critic_forward.10} parent=23 // pred_check_branch
        %130 = sbr.rel (%p128) target = $region28
      $region27: #{critic_forward.10} parent=23 // pred_region
        %s131 = smul.u32 13, %s9
        %p132 = scmp.lt.s32.totalorder %s131, 25
        %s133 = scalar_select %p132, %s131, 25
        %s134 = smul.addr %s133, 4
        %s135 = scalar_lea.vmem %s0, %s134
        %s136 = smul.u32 13, %s9
      $region28: #{critic_forward.10} parent=23 // pred_fallthru
        _
    $region24: #{critic_forward.10} parent=5 // pred_fallthru
      _
    %p137 = scmp.le.s32.totalorder 1, %s9
    %p138 = scmp.lt.s32.totalorder %s9, 3
    %p139 = pnand %p137, %p138
    %p140 = pneg %p139
    // Predicated region
    $region29: #{critic_forward.10} parent=5 // pred_check
      _
    $region30: #{critic_forward.10} parent=5 // pred_check_branch
      %142 = sbr.rel (%p139) target = $region32
    $region31: #{critic_forward.10} parent=5 // pred_region
      %s143 = ssub.s32 %s9, 1
      %s144 = smul.u32 13, %s14
      %p145 = scmp.lt.s32.totalorder %s144, 25
      %s146 = scalar_select %p145, %s144, 25
      %s147 = smul.addr %s146, 4
      %s148 = scalar_lea.vmem %s0, %s147
      %p149 = pneg %p35
      %p150 = pneg %p32
      %p151 = pneg %p56
      %p152 = pneg %p53
      %p153 = pneg %p77
      %p154 = pneg %p74
      %p155 = pneg %p103
      %p156 = pneg %p100
      %s157 = smul.u32 13, %s14
      %p158 = scmp.lt.s32.totalorder %s157, 25
      %s159 = scalar_select %p158, %s157, 25
      %s160 = smul.addr %s159, 4
      %s161 = scalar_lea.vmem %s3, %s160
      %s162 = smul.u32 13, %s14
      %p163 = scmp.lt.s32.totalorder %s162, 25
      %s164 = scalar_select %p163, %s162, 25
      %s165 = smul.addr %s164, 4
      %s166 = scalar_lea.vmem %s0, %s165
      %s167 = smul.u32 13, %s14
      %s168 = smul.u32 13, %s14
      %p169 = scmp.lt.s32.totalorder %s168, 25
      %s170 = scalar_select %p169, %s168, 25
      %s171 = smul.addr %s170, 4
      %s172 = scalar_lea.vmem %s3, %s171
      %s173 = smul.u32 13, %s14
      %v174 = vld [vmem:[%s166] sm:$0xf]
      %v175 = vld [vmem:[%s166 + $0x4] sm:$0xf]
      %v176 = vld [vmem:[%s166 + $0x8] sm:$0xf]
      %v177 = vld [vmem:[%s166 + $0xc] sm:$0xf]
      %v178 = vld [vmem:[%s166 + $0x10] sm:$0xf]
      %v179 = vld [vmem:[%s166 + $0x14] sm:$0xf]
      %v180 = vld [vmem:[%s166 + $0x18] sm:$0xf]
      %v181 = vld [vmem:[%s166 + $0x1c] sm:$0xf]
      %v182 = vld [vmem:[%s166 + $0x20] sm:$0xf]
      %v183 = vld [vmem:[%s166 + $0x24] sm:$0xf]
      %v184 = vld [vmem:[%s166 + $0x28] sm:$0xf]
      %v185 = vld [vmem:[%s166 + $0x2c] sm:$0xf]
      %v186 = vld [vmem:[%s166 + $0x30] sm:$0xf]
      %v187 = vunpack.c.l.bf16 %v174
      %v188 = vunpack.c.l.bf16 %v175
      %v189 = vunpack.c.l.bf16 %v176
      %v190 = vunpack.c.l.bf16 %v177
      %v191 = vunpack.c.l.bf16 %v178
      %v192 = vunpack.c.l.bf16 %v179
      %v193 = vunpack.c.l.bf16 %v180
      %v194 = vunpack.c.l.bf16 %v181
      %v195 = vunpack.c.l.bf16 %v182
      %v196 = vunpack.c.l.bf16 %v183
      %v197 = vunpack.c.l.bf16 %v184
      %v198 = vunpack.c.l.bf16 %v185
      %v199 = vunpack.c.l.bf16 %v186
      %v200 = vld [vmem:[%s1] sm:$0x1]
      %v202 = vperm.slane %v200, 0
      %v204 = vmul.f32 %v187, %v202
      %v205 = vmul.f32 %v188, %v202
      %v206 = vmul.f32 %v189, %v202
      %v207 = vmul.f32 %v190, %v202
      %v208 = vmul.f32 %v191, %v202
      %v209 = vmul.f32 %v192, %v202
      %v210 = vmul.f32 %v193, %v202
      %v211 = vmul.f32 %v194, %v202
      %v212 = vmul.f32 %v195, %v202
      %v213 = vmul.f32 %v196, %v202
      %v214 = vmul.f32 %v197, %v202
      %v215 = vmul.f32 %v198, %v202
      %v216 = vmul.f32 %v199, %v202
      %v217 = vld [vmem:[%s2] sm:$0x1]
      %v219 = vperm.slane %v217, 0
      %v221 = vadd.f32 %v204, %v219
      %v222 = vadd.f32 %v205, %v219
      %v223 = vadd.f32 %v206, %v219
      %v224 = vadd.f32 %v207, %v219
      %v225 = vadd.f32 %v208, %v219
      %v226 = vadd.f32 %v209, %v219
      %v227 = vadd.f32 %v210, %v219
      %v228 = vadd.f32 %v211, %v219
      %v229 = vadd.f32 %v212, %v219
      %v230 = vadd.f32 %v213, %v219
      %v231 = vadd.f32 %v214, %v219
      %v232 = vadd.f32 %v215, %v219
      %v233 = vadd.f32 %v216, %v219
      %v234 = vmax.f32 %v221, 0.0
      %v235 = vmax.f32 %v222, 0.0
      %v236 = vmax.f32 %v223, 0.0
      %v237 = vmax.f32 %v224, 0.0
      %v238 = vmax.f32 %v225, 0.0
      %v239 = vmax.f32 %v226, 0.0
      %v240 = vmax.f32 %v227, 0.0
      %v241 = vmax.f32 %v228, 0.0
      %v242 = vmax.f32 %v229, 0.0
      %v243 = vmax.f32 %v230, 0.0
      %v244 = vmax.f32 %v231, 0.0
      %v245 = vmax.f32 %v232, 0.0
      %v246 = vmax.f32 %v233, 0.0
      %v247 = vpack.c.bf16 %v234, %v234
      %v248 = vpack.c.bf16 %v235, %v235
      %v249 = vpack.c.bf16 %v236, %v236
      %v250 = vpack.c.bf16 %v237, %v237
      %v251 = vpack.c.bf16 %v238, %v238
      %v252 = vpack.c.bf16 %v239, %v239
      %v253 = vpack.c.bf16 %v240, %v240
      %v254 = vpack.c.bf16 %v241, %v241
      %v255 = vpack.c.bf16 %v242, %v242
      %v256 = vpack.c.bf16 %v243, %v243
      %v257 = vpack.c.bf16 %v244, %v244
      %v258 = vpack.c.bf16 %v245, %v245
      %v259 = vpack.c.bf16 %v246, %v246
      %260 = vst [vmem:[%s172] sm:$0xf] %v247
      %261 = vst [vmem:[%s172 + $0x4] sm:$0xf] %v248
      %262 = vst [vmem:[%s172 + $0x8] sm:$0xf] %v249
      %263 = vst [vmem:[%s172 + $0xc] sm:$0xf] %v250
      %264 = vst [vmem:[%s172 + $0x10] sm:$0xf] %v251
      %265 = vst [vmem:[%s172 + $0x14] sm:$0xf] %v252
      %266 = vst [vmem:[%s172 + $0x18] sm:$0xf] %v253
      %267 = vst [vmem:[%s172 + $0x1c] sm:$0xf] %v254
      %268 = vst [vmem:[%s172 + $0x20] sm:$0xf] %v255
      %269 = vst [vmem:[%s172 + $0x24] sm:$0xf] %v256
      %270 = vst [vmem:[%s172 + $0x28] sm:$0xf] %v257
      %271 = vst [vmem:[%s172 + $0x2c] sm:$0xf] %v258
      %272 = vst [vmem:[%s172 + $0x30] sm:$0xf] %v259
      %s273 = smul.u32 13, %s14
      %p274 = scmp.lt.s32.totalorder %s273, 25
      %s275 = scalar_select %p274, %s273, 25
      %s276 = smul.addr %s275, 4
      %s277 = scalar_lea.vmem %s3, %s276
      // Predicated region
      $region33: #{critic_forward.10} parent=31 // pred_check
        %p278 = pneg %p100
      $region34: #{critic_forward.10} parent=31 // pred_check_branch
        %280 = sbr.rel (%p278) target = $region36
      $region35: #{critic_forward.10} parent=31 // pred_region
        %s281 = smul.u32 13, %s14
      $region36: #{critic_forward.10} parent=31 // pred_fallthru
        _
    $region32: #{critic_forward.10} parent=5 // pred_fallthru
      _
    %p282 = scmp.le.s32.totalorder 2, %s9
    // Predicated region
    $region37: #{critic_forward.10} parent=5 // pred_check
      %p283 = pneg %p282
    $region38: #{critic_forward.10} parent=5 // pred_check_branch
      %285 = sbr.rel (%p283) target = $region40
    $region39: #{critic_forward.10} parent=5 // pred_region
      %s286 = ssub.s32 %s9, 2
      // Predicated region
      $region41: #{critic_forward.10} parent=39 // pred_check
        %p287 = pneg %p106
      $region42: #{critic_forward.10} parent=39 // pred_check_branch
        %289 = sbr.rel (%p287) target = $region44
      $region43: #{critic_forward.10} parent=39 // pred_region
        %s290 = smul.u32 13, %s15
        %p291 = scmp.lt.s32.totalorder %s290, 25
        %s292 = scalar_select %p291, %s290, 25
        %s293 = smul.addr %s292, 4
        %s294 = scalar_lea.vmem %s3, %s293
      $region44: #{critic_forward.10} parent=39 // pred_fallthru
        _
    $region40: #{critic_forward.10} parent=5 // pred_fallthru
      _
  $region6: #{critic_forward.10} parent=0 // loop_footer
    %s13 = sadd.s32 1, %s9
  $region7: #{critic_forward.10} parent=0 // loop_footer_branch
    %8 = sbr.rel target = $region3
  $region8: #{critic_forward.10} parent=0 // loop_exit
    _

// kernel: critic_forward.11
$region0: #{critic_forward.11}
  #allocation0 [shape = 'u32[]', space=smem, size = 0x4, offset = 0x4, fixed_abs, tag = 'smem constant byte address 0x4 - core index']
  #allocation1 [shape = 'u32[72,128]{1,0:T(1,128)}', space=vmem, size = 0x9000, scoped, tag = 'internal scratch']
  %s0 = inlined_call_operand.vmem [shape: bf16[128,576], index: 0, kind: input, shape index: {}]
  %s1 = inlined_call_operand.vmem [shape: bf16[576,128], index: 1, kind: input, shape index: {}]
  %s2 = inlined_call_operand.vmem [shape: bf16[128,128], index: 2, kind: output, shape index: {0}]
  %s3 = inlined_call_operand.vmem [shape: f32[2,2,128], index: 3, kind: output, shape index: {1}]
  %4 = xla_tuple %s2, %s3
  %s5 = sld [smem:[#allocation0]]
  $region49: #{critic_forward.11} parent=0
    _
  %s7 = ssub.s32 1, %s5
  %s8 = scalar_select 0, %s7, %s5
  loop: start=0, step=1, limit=4
  $region2: #{critic_forward.11} parent=0 // loop_pre_header
    _
  $region3: #{critic_forward.11} parent=0 // loop_header
    %s10 = sphi 0, %s14
    %p11 = scmp.ge.s32.totalorder %s10, 4
    %s20 = sphi 0, %s22
    %s23 = sphi 0, %s20
    %s24 = sphi 0, %s23
    %s40 = sphi 0, %s24
    %s44 = sphi 0, %s44
    %s46 = sphi 0, %s44
    %s47 = sphi 0, %s46
    %s61 = sphi 0, %s47
    %s67 = sphi 0, %s69
    %s70 = sphi 0, %s67
    %s71 = sphi 0, %s70
    %s87 = sphi 0, %s71
    %s93 = sphi 0, %s95
    %s96 = sphi 0, %s93
    %s97 = sphi 0, %s96
    %s113 = sphi 0, %s97
  $region4: #{critic_forward.11} parent=0 // loop_header_branch
    %13 = sbr.rel (%p11) target = $region8
  $region5: #{critic_forward.11} parent=0 // loop_body
    %s15 = ssub.s32 %s10, 1
    %s16 = ssub.s32 %s10, 2
    %s17 = sadd.s32 %s10, 1
    %s18 = ssub.s32 %s10, %s17
    %p19 = scmp.eq.s32.totalorder %s18, 0
    %s21 = sadd.s32 %s20, 1
    %s22 = scalar_select %p19, %s20, %s21
    %p25 = pneg %p19
    %p26 = scmp.eq.s32.totalorder %s10, 1
    %p27 = por %p25, %p26
    %p28 = scmp.ne.s32.totalorder %s20, %s23
    %p29 = scmp.eq.s32.totalorder %s10, 0
    %p30 = por %p28, %p29
    %p31 = scmp.ne.s32.totalorder %s20, %s23
    %p32 = scmp.eq.s32.totalorder %s15, 1
    %p33 = por %p31, %p32
    %p34 = scmp.ne.s32.totalorder %s23, %s24
    %p35 = scmp.eq.s32.totalorder %s15, 0
    %p36 = por %p34, %p35
    %p37 = scmp.ne.s32.totalorder %s23, %s24
    %p38 = scmp.eq.s32.totalorder %s16, 1
    %p39 = por %p37, %p38
    %p41 = scmp.ne.s32.totalorder %s24, %s40
    %p42 = scmp.eq.s32.totalorder %s16, 0
    %p43 = por %p41, %p42
    %s45 = sadd.s32 %s44, 1
    %p48 = scmp.eq.s32.totalorder %s10, 1
    %p49 = scmp.ne.s32.totalorder %s44, %s46
    %p50 = scmp.eq.s32.totalorder %s10, 0
    %p51 = por %p49, %p50
    %p52 = scmp.ne.s32.totalorder %s44, %s46
    %p53 = scmp.eq.s32.totalorder %s15, 1
    %p54 = por %p52, %p53
    %p55 = scmp.ne.s32.totalorder %s46, %s47
    %p56 = scmp.eq.s32.totalorder %s15, 0
    %p57 = por %p55, %p56
    %p58 = scmp.ne.s32.totalorder %s46, %s47
    %p59 = scmp.eq.s32.totalorder %s16, 1
    %p60 = por %p58, %p59
    %p62 = scmp.ne.s32.totalorder %s47, %s61
    %p63 = scmp.eq.s32.totalorder %s16, 0
    %p64 = por %p62, %p63
    %s65 = ssub.s32 %s10, %s17
    %p66 = scmp.eq.s32.totalorder %s65, 0
    %s68 = sadd.s32 %s67, 1
    %s69 = scalar_select %p66, %s67, %s68
    %p72 = pneg %p66
    %p73 = scmp.eq.s32.totalorder %s10, 1
    %p74 = por %p72, %p73
    %p75 = scmp.ne.s32.totalorder %s67, %s70
    %p76 = scmp.eq.s32.totalorder %s10, 0
    %p77 = por %p75, %p76
    %p78 = scmp.ne.s32.totalorder %s67, %s70
    %p79 = scmp.eq.s32.totalorder %s15, 1
    %p80 = por %p78, %p79
    %p81 = scmp.ne.s32.totalorder %s70, %s71
    %p82 = scmp.eq.s32.totalorder %s15, 0
    %p83 = por %p81, %p82
    %p84 = scmp.ne.s32.totalorder %s70, %s71
    %p85 = scmp.eq.s32.totalorder %s16, 1
    %p86 = por %p84, %p85
    %p88 = scmp.ne.s32.totalorder %s71, %s87
    %p89 = scmp.eq.s32.totalorder %s16, 0
    %p90 = por %p88, %p89
    %s91 = ssub.s32 %s10, %s17
    %p92 = scmp.eq.s32.totalorder %s91, 0
    %s94 = sadd.s32 %s93, 1
    %s95 = scalar_select %p92, %s93, %s94
    %p98 = pneg %p92
    %p99 = scmp.eq.s32.totalorder %s10, 1
    %p100 = por %p98, %p99
    %p101 = scmp.ne.s32.totalorder %s93, %s96
    %p102 = scmp.eq.s32.totalorder %s10, 0
    %p103 = por %p101, %p102
    %p104 = scmp.ne.s32.totalorder %s93, %s96
    %p105 = scmp.eq.s32.totalorder %s15, 1
    %p106 = por %p104, %p105
    %p107 = scmp.ne.s32.totalorder %s96, %s97
    %p108 = scmp.eq.s32.totalorder %s15, 0
    %p109 = por %p107, %p108
    %p110 = scmp.ne.s32.totalorder %s96, %s97
    %p111 = scmp.eq.s32.totalorder %s16, 1
    %p112 = por %p110, %p111
    %p114 = scmp.ne.s32.totalorder %s97, %s113
    %p115 = scmp.eq.s32.totalorder %s16, 0
    %p116 = por %p114, %p115
    %p117 = scmp.le.s32.totalorder 1, %s10
    %p118 = scmp.lt.s32.totalorder %s10, 3
    %p119 = pnand %p117, %p118
    %p120 = pneg %p119
    // Predicated region
    $region9: #{critic_forward.11} parent=5 // pred_check
      _
    $region10: #{critic_forward.11} parent=5 // pred_check_branch
      %122 = sbr.rel (%p119) target = $region12
    $region11: #{critic_forward.11} parent=5 // pred_region
      %s123 = ssub.s32 %s10, 1
      // Predicated region
      $region13: #{critic_forward.11} parent=11 // pred_check
        %p124 = pneg %p57
      $region14: #{critic_forward.11} parent=11 // pred_check_branch
        %126 = sbr.rel (%p124) target = $region16
      $region15: #{critic_forward.11} parent=11 // pred_region
        _
      $region16: #{critic_forward.11} parent=11 // pred_fallthru
        _
    $region12: #{critic_forward.11} parent=5 // pred_fallthru
      _
    %p127 = scmp.lt.s32.totalorder %s10, 2
    // Predicated region
    $region17: #{critic_forward.11} parent=5 // pred_check
      %p128 = pneg %p127
    $region18: #{critic_forward.11} parent=5 // pred_check_branch
      %130 = sbr.rel (%p128) target = $region20
    $region19: #{critic_forward.11} parent=5 // pred_region
      // Predicated region
      $region21: #{critic_forward.11} parent=19 // pred_check
        %p131 = pneg %p30
      $region22: #{critic_forward.11} parent=19 // pred_check_branch
        %133 = sbr.rel (%p131) target = $region24
      $region23: #{critic_forward.11} parent=19 // pred_region
        %s134 = smul.u32 8, %s10
        %p135 = scmp.lt.s32.totalorder %s134, 15
        %s136 = scalar_select %p135, %s134, 15
        %s137 = smul.addr %s136, 5
        %s138 = smul.addr %s137, 4
        %s139 = scalar_lea.vmem %s0, %s138
        %s140 = smul.u32 8, %s10
      $region24: #{critic_forward.11} parent=19 // pred_fallthru
        _
    $region20: #{critic_forward.11} parent=5 // pred_fallthru
      _
    %p141 = scmp.le.s32.totalorder 1, %s10
    %p142 = scmp.lt.s32.totalorder %s10, 3
    %p143 = pnand %p141, %p142
    %p144 = pneg %p143
    // Predicated region
    $region25: #{critic_forward.11} parent=5 // pred_check
      _
    $region26: #{critic_forward.11} parent=5 // pred_check_branch
      %146 = sbr.rel (%p143) target = $region28
    $region27: #{critic_forward.11} parent=5 // pred_region
      %s147 = ssub.s32 %s10, 1
      %s148 = smul.u32 8, %s15
      %p149 = scmp.lt.s32.totalorder %s148, 15
      %s150 = scalar_select %p149, %s148, 15
      %s151 = smul.addr %s150, 5
      %s152 = smul.addr %s151, 4
      %s153 = scalar_lea.vmem %s0, %s152
      %p154 = pneg %p36
      %p155 = pneg %p33
      %p156 = pneg %p57
      %p157 = pneg %p54
      %p158 = pneg %p83
      %p159 = pneg %p80
      %s160 = smul.u32 8, %s15
      %p161 = scmp.lt.s32.totalorder %s160, 15
      %s162 = scalar_select %p161, %s160, 15
      %s163 = smul.addr %s162, 4
      %s164 = scalar_lea.vmem %s2, %s163
      %p165 = pneg %p109
      %p166 = pneg %p106
      %p167 = scmp.lt.s32.totalorder %s15, 1
      %s168 = scalar_select %p167, %s15, 1
      %s169 = smul.addr %s168, 2
      %s170 = scalar_lea.vmem %s3, %s169
      %s171 = smul.u32 8, %s15
      %p172 = scmp.lt.s32.totalorder %s171, 15
      %s173 = scalar_select %p172, %s171, 15
      %s174 = smul.addr %s173, 5
      %s175 = smul.addr %s174, 4
      %s176 = scalar_lea.vmem %s0, %s175
      %s177 = smul.u32 8, %s15
      %s178 = smul.u32 8, %s15
      %p179 = scmp.lt.s32.totalorder %s178, 15
      %s180 = scalar_select %p179, %s178, 15
      %s181 = smul.addr %s180, 4
      %s182 = scalar_lea.vmem %s2, %s181
      %s183 = smul.u32 8, %s15
      %p184 = scmp.lt.s32.totalorder %s15, 1
      %s185 = scalar_select %p184, %s15, 1
      %s186 = smul.addr %s185, 2
      %s187 = scalar_lea.vmem %s3, %s186
      %v189 = vld [vmem:[%s176] sm:$0xff]
      %v190 = vld [vmem:[%s176 + $0x8] sm:$0xff]
      %v191 = vld [vmem:[%s176 + $0x10] sm:$0xf]
      %v192 = vld [vmem:[%s176 + $0x14] sm:$0xff]
      %v193 = vld [vmem:[%s176 + $0x1c] sm:$0xff]
      %v194 = vld [vmem:[%s176 + $0x24] sm:$0xf]
      %v195 = vld [vmem:[%s176 + $0x28] sm:$0xff]
      %v196 = vld [vmem:[%s176 + $0x30] sm:$0xff]
      %v197 = vld [vmem:[%s176 + $0x38] sm:$0xf]
      %v198 = vld [vmem:[%s176 + $0x3c] sm:$0xff]
      %v199 = vld [vmem:[%s176 + $0x44] sm:$0xff]
      %v200 = vld [vmem:[%s176 + $0x4c] sm:$0xf]
      %v201 = vld [vmem:[%s176 + $0x50] sm:$0xff]
      %v202 = vld [vmem:[%s176 + $0x58] sm:$0xff]
      %v203 = vld [vmem:[%s176 + $0x60] sm:$0xf]
      %v204 = vld [vmem:[%s176 + $0x64] sm:$0xff]
      %v205 = vld [vmem:[%s176 + $0x6c] sm:$0xff]
      %v206 = vld [vmem:[%s176 + $0x74] sm:$0xf]
      %v207 = vld [vmem:[%s176 + $0x78] sm:$0xff]
      %v208 = vld [vmem:[%s176 + $0x80] sm:$0xff]
      %v209 = vld [vmem:[%s176 + $0x88] sm:$0xf]
      %v210 = vld [vmem:[%s176 + $0x8c] sm:$0xff]
      %v211 = vld [vmem:[%s176 + $0x94] sm:$0xff]
      %v212 = vld [vmem:[%s176 + $0x9c] sm:$0xf]
      %v213 = vld [vmem:[%s1] sm:$0xf]
      %v214 = vld [vmem:[%s1 + $0x4] sm:$0xf]
      %v215 = vld [vmem:[%s1 + $0x8] sm:$0xf]
      %v216 = vld [vmem:[%s1 + $0xc] sm:$0xf]
      %v217 = vld [vmem:[%s1 + $0x10] sm:$0xf]
      %v218 = vld [vmem:[%s1 + $0x14] sm:$0xf]
      %v219 = vld [vmem:[%s1 + $0x18] sm:$0xf]
      %v220 = vld [vmem:[%s1 + $0x1c] sm:$0xf]
      %v221 = vld [vmem:[%s1 + $0x20] sm:$0xf]
      %v222 = vld [vmem:[%s1 + $0x24] sm:$0xf]
      %v223 = vld [vmem:[%s1 + $0x28] sm:$0xf]
      %v224 = vld [vmem:[%s1 + $0x2c] sm:$0xf]
      %v225 = vld [vmem:[%s1 + $0x30] sm:$0xf]
      %v226 = vld [vmem:[%s1 + $0x34] sm:$0xf]
      %v227 = vld [vmem:[%s1 + $0x38] sm:$0xf]
      %v228 = vld [vmem:[%s1 + $0x3c] sm:$0xf]
      %v229 = vld [vmem:[%s1 + $0x40] sm:$0xf]
      %v230 = vld [vmem:[%s1 + $0x44] sm:$0xf]
      %v231 = vld [vmem:[%s1 + $0x48] sm:$0xf]
      %v232 = vld [vmem:[%s1 + $0x4c] sm:$0xf]
      %v233 = vld [vmem:[%s1 + $0x50] sm:$0xf]
      %v234 = vld [vmem:[%s1 + $0x54] sm:$0xf]
      %v235 = vld [vmem:[%s1 + $0x58] sm:$0xf]
      %v236 = vld [vmem:[%s1 + $0x5c] sm:$0xf]
      %v237 = vld [vmem:[%s1 + $0x60] sm:$0xf]
      %v238 = vld [vmem:[%s1 + $0x64] sm:$0xf]
      %v239 = vld [vmem:[%s1 + $0x68] sm:$0xf]
      %v240 = vld [vmem:[%s1 + $0x6c] sm:$0xf]
      %v241 = vld [vmem:[%s1 + $0x70] sm:$0xf]
      %v242 = vld [vmem:[%s1 + $0x74] sm:$0xf]
      %v243 = vld [vmem:[%s1 + $0x78] sm:$0xf]
      %v244 = vld [vmem:[%s1 + $0x7c] sm:$0xf]
      %v245 = vld [vmem:[%s1 + $0x80] sm:$0xf]
      %v246 = vld [vmem:[%s1 + $0x84] sm:$0xf]
      %v247 = vld [vmem:[%s1 + $0x88] sm:$0xf]
      %v248 = vld [vmem:[%s1 + $0x8c] sm:$0xf]
      %v249 = vld [vmem:[%s1 + $0x90] sm:$0xf]
      %v250 = vld [vmem:[%s1 + $0x94] sm:$0xf]
      %v251 = vld [vmem:[%s1 + $0x98] sm:$0xf]
      %v252 = vld [vmem:[%s1 + $0x9c] sm:$0xf]
      %v253 = vld [vmem:[%s1 + $0xa0] sm:$0xf]
      %v254 = vld [vmem:[%s1 + $0xa4] sm:$0xf]
      %v255 = vld [vmem:[%s1 + $0xa8] sm:$0xf]
      %v256 = vld [vmem:[%s1 + $0xac] sm:$0xf]
      %v257 = vld [vmem:[%s1 + $0xb0] sm:$0xf]
      %v258 = vld [vmem:[%s1 + $0xb4] sm:$0xf]
      %v259 = vld [vmem:[%s1 + $0xb8] sm:$0xf]
      %v260 = vld [vmem:[%s1 + $0xbc] sm:$0xf]
      %v261 = vld [vmem:[%s1 + $0xc0] sm:$0xf]
      %v262 = vld [vmem:[%s1 + $0xc4] sm:$0xf]
      %v263 = vld [vmem:[%s1 + $0xc8] sm:$0xf]
      %v264 = vld [vmem:[%s1 + $0xcc] sm:$0xf]
      %v265 = vld [vmem:[%s1 + $0xd0] sm:$0xf]
      %v266 = vld [vmem:[%s1 + $0xd4] sm:$0xf]
      %v267 = vld [vmem:[%s1 + $0xd8] sm:$0xf]
      %v268 = vld [vmem:[%s1 + $0xdc] sm:$0xf]
      %v269 = vld [vmem:[%s1 + $0xe0] sm:$0xf]
      %v270 = vld [vmem:[%s1 + $0xe4] sm:$0xf]
      %v271 = vld [vmem:[%s1 + $0xe8] sm:$0xf]
      %v272 = vld [vmem:[%s1 + $0xec] sm:$0xf]
      %v273 = vld [vmem:[%s1 + $0xf0] sm:$0xf]
      %v274 = vld [vmem:[%s1 + $0xf4] sm:$0xf]
      %v275 = vld [vmem:[%s1 + $0xf8] sm:$0xf]
      %v276 = vld [vmem:[%s1 + $0xfc] sm:$0xf]
      %v277 = vld [vmem:[%s1 + $0x100] sm:$0xf]
      %v278 = vld [vmem:[%s1 + $0x104] sm:$0xf]
      %v279 = vld [vmem:[%s1 + $0x108] sm:$0xf]
      %v280 = vld [vmem:[%s1 + $0x10c] sm:$0xf]
      %v281 = vld [vmem:[%s1 + $0x110] sm:$0xf]
      %v282 = vld [vmem:[%s1 + $0x114] sm:$0xf]
      %v283 = vld [vmem:[%s1 + $0x118] sm:$0xf]
      %v284 = vld [vmem:[%s1 + $0x11c] sm:$0xf]
      %v309 = vunpack.c.l.b16 %v189
      %v310 = vunpack.c.h.b16 %v189
      %v311 = vunpack.c.l.b16 %v190
      %v312 = vunpack.c.h.b16 %v190
      %v313 = vunpack.c.l.b16 %v191
      %v314 = vunpack.c.l.b16 %v192
      %v315 = vunpack.c.h.b16 %v192
      %v316 = vunpack.c.l.b16 %v193
      %v317 = vunpack.c.h.b16 %v193
      %v318 = vunpack.c.l.b16 %v194
      %v319 = vunpack.c.l.b16 %v195
      %v320 = vunpack.c.h.b16 %v195
      %v321 = vunpack.c.l.b16 %v196
      %v322 = vunpack.c.h.b16 %v196
      %v323 = vunpack.c.l.b16 %v197
      %v324 = vunpack.c.l.b16 %v198
      %v325 = vunpack.c.h.b16 %v198
      %v326 = vunpack.c.l.b16 %v199
      %v327 = vunpack.c.h.b16 %v199
      %v328 = vunpack.c.l.b16 %v200
      %v329 = vunpack.c.l.b16 %v201
      %v330 = vunpack.c.h.b16 %v201
      %v331 = vunpack.c.l.b16 %v202
      %v332 = vunpack.c.h.b16 %v202
      %v333 = vunpack.c.l.b16 %v203
      %v334 = vunpack.c.l.b16 %v204
      %v335 = vunpack.c.h.b16 %v204
      %v336 = vunpack.c.l.b16 %v205
      %v337 = vunpack.c.h.b16 %v205
      %v338 = vunpack.c.l.b16 %v206
      %v339 = vunpack.c.l.b16 %v207
      %v340 = vunpack.c.h.b16 %v207
      %v341 = vunpack.c.l.b16 %v208
      %v342 = vunpack.c.h.b16 %v208
      %v343 = vunpack.c.l.b16 %v209
      %v344 = vunpack.c.l.b16 %v210
      %v345 = vunpack.c.h.b16 %v210
      %v346 = vunpack.c.l.b16 %v211
      %v347 = vunpack.c.h.b16 %v211
      %v348 = vunpack.c.l.b16 %v212
      %v349 = vpack.c.b16 %v314, %v309
      %v350 = vpack.c.b16 %v315, %v310
      %v351 = vpack.c.b16 %v316, %v311
      %v352 = vpack.c.b16 %v317, %v312
      %v353 = vpack.c.b16 %v318, %v313
      %v354 = vpack.c.b16 %v324, %v319
      %v355 = vpack.c.b16 %v325, %v320
      %v356 = vpack.c.b16 %v326, %v321
      %v357 = vpack.c.b16 %v327, %v322
      %v358 = vpack.c.b16 %v328, %v323
      %v359 = vpack.c.b16 %v334, %v329
      %v360 = vpack.c.b16 %v335, %v330
      %v361 = vpack.c.b16 %v336, %v331
      %v362 = vpack.c.b16 %v337, %v332
      %v363 = vpack.c.b16 %v338, %v333
      %v364 = vpack.c.b16 %v344, %v339
      %v365 = vpack.c.b16 %v345, %v340
      %v366 = vpack.c.b16 %v346, %v341
      %v367 = vpack.c.b16 %v347, %v342
      %v368 = vpack.c.b16 %v348, %v343
      %v457 = vunpack.c.l.b16 %v213
      %v458 = vunpack.c.l.b16 %v214
      %v459 = vunpack.c.l.b16 %v215
      %v460 = vunpack.c.l.b16 %v216
      %v461 = vunpack.c.l.b16 %v217
      %v462 = vunpack.c.l.b16 %v218
      %v463 = vunpack.c.l.b16 %v219
      %v464 = vunpack.c.l.b16 %v220
      %v465 = vunpack.c.l.b16 %v221
      %v466 = vunpack.c.l.b16 %v222
      %v467 = vunpack.c.l.b16 %v223
      %v468 = vunpack.c.l.b16 %v224
      %v469 = vunpack.c.l.b16 %v225
      %v470 = vunpack.c.l.b16 %v226
      %v471 = vunpack.c.l.b16 %v227
      %v472 = vunpack.c.l.b16 %v228
      %v473 = vunpack.c.l.b16 %v229
      %v474 = vunpack.c.l.b16 %v230
      %v475 = vunpack.c.l.b16 %v231
      %v476 = vunpack.c.l.b16 %v232
      %v477 = vunpack.c.l.b16 %v233
      %v478 = vunpack.c.l.b16 %v234
      %v479 = vunpack.c.l.b16 %v235
      %v480 = vunpack.c.l.b16 %v236
      %v481 = vunpack.c.l.b16 %v237
      %v482 = vunpack.c.l.b16 %v238
      %v483 = vunpack.c.l.b16 %v239
      %v484 = vunpack.c.l.b16 %v240
      %v485 = vunpack.c.l.b16 %v241
      %v486 = vunpack.c.l.b16 %v242
      %v487 = vunpack.c.l.b16 %v243
      %v488 = vunpack.c.l.b16 %v244
      %v489 = vunpack.c.l.b16 %v245
      %v490 = vunpack.c.l.b16 %v246
      %v491 = vunpack.c.l.b16 %v247
      %v492 = vunpack.c.l.b16 %v248
      %v493 = vunpack.c.l.b16 %v249
      %v494 = vunpack.c.l.b16 %v250
      %v495 = vunpack.c.l.b16 %v251
      %v496 = vunpack.c.l.b16 %v252
      %v497 = vunpack.c.l.b16 %v253
      %v498 = vunpack.c.l.b16 %v254
      %v499 = vunpack.c.l.b16 %v255
      %v500 = vunpack.c.l.b16 %v256
      %v501 = vunpack.c.l.b16 %v257
      %v502 = vunpack.c.l.b16 %v258
      %v503 = vunpack.c.l.b16 %v259
      %v504 = vunpack.c.l.b16 %v260
      %v505 = vunpack.c.l.b16 %v261
      %v506 = vunpack.c.l.b16 %v262
      %v507 = vunpack.c.l.b16 %v263
      %v508 = vunpack.c.l.b16 %v264
      %v509 = vunpack.c.l.b16 %v265
      %v510 = vunpack.c.l.b16 %v266
      %v511 = vunpack.c.l.b16 %v267
      %v512 = vunpack.c.l.b16 %v268
      %v513 = vunpack.c.l.b16 %v269
      %v514 = vunpack.c.l.b16 %v270
      %v515 = vunpack.c.l.b16 %v271
      %v516 = vunpack.c.l.b16 %v272
      %v517 = vunpack.c.l.b16 %v273
      %v518 = vunpack.c.l.b16 %v274
      %v519 = vunpack.c.l.b16 %v275
      %v520 = vunpack.c.l.b16 %v276
      %v521 = vunpack.c.l.b16 %v277
      %v522 = vunpack.c.l.b16 %v278
      %v523 = vunpack.c.l.b16 %v279
      %v524 = vunpack.c.l.b16 %v280
      %v525 = vunpack.c.l.b16 %v281
      %v526 = vunpack.c.l.b16 %v282
      %v527 = vunpack.c.l.b16 %v283
      %v528 = vunpack.c.l.b16 %v284
      %v529 = vpack.c.b16 %v458, %v457
      %v530 = vpack.c.b16 %v460, %v459
      %v531 = vpack.c.b16 %v462, %v461
      %v532 = vpack.c.b16 %v464, %v463
      %v533 = vpack.c.b16 %v466, %v465
      %v534 = vpack.c.b16 %v468, %v467
      %v535 = vpack.c.b16 %v470, %v469
      %v536 = vpack.c.b16 %v472, %v471
      %v537 = vpack.c.b16 %v474, %v473
      %v538 = vpack.c.b16 %v476, %v475
      %v539 = vpack.c.b16 %v478, %v477
      %v540 = vpack.c.b16 %v480, %v479
      %v541 = vpack.c.b16 %v482, %v481
      %v542 = vpack.c.b16 %v484, %v483
      %v543 = vpack.c.b16 %v486, %v485
      %v544 = vpack.c.b16 %v488, %v487
      %v545 = vpack.c.b16 %v490, %v489
      %v546 = vpack.c.b16 %v492, %v491
      %v547 = vpack.c.b16 %v494, %v493
      %v548 = vpack.c.b16 %v496, %v495
      %v549 = vpack.c.b16 %v498, %v497
      %v550 = vpack.c.b16 %v500, %v499
      %v551 = vpack.c.b16 %v502, %v501
      %v552 = vpack.c.b16 %v504, %v503
      %v553 = vpack.c.b16 %v506, %v505
      %v554 = vpack.c.b16 %v508, %v507
      %v555 = vpack.c.b16 %v510, %v509
      %v556 = vpack.c.b16 %v512, %v511
      %v557 = vpack.c.b16 %v514, %v513
      %v558 = vpack.c.b16 %v516, %v515
      %v559 = vpack.c.b16 %v518, %v517
      %v560 = vpack.c.b16 %v520, %v519
      %v561 = vpack.c.b16 %v522, %v521
      %v562 = vpack.c.b16 %v524, %v523
      %v563 = vpack.c.b16 %v526, %v525
      %v564 = vpack.c.b16 %v528, %v527
      %vm601 = vcmask 523264
      %v603 = vsel %vm601, %v353, 0
      %v606 = vsel %vm601, %v358, 0
      %v609 = vsel %vm601, %v363, 0
      %v612 = vsel %vm601, %v368, 0
      %614 = vmatpush.bf16.msra.mxu0 %v536
      %615 = vmatpush.bf16.msra.mxu0 %v535
      %616 = vmatpush.bf16.msra.mxu0 %v534
      %617 = vmatpush.bf16.msra.mxu0 %v533
      %618 = vmatpush.bf16.msra.mxu0 %v532
      %619 = vmatpush.bf16.msra.mxu0 %v531
      %620 = vmatpush.bf16.msra.mxu0 %v530
      %621 = vmatpush.bf16.msra.mxu0 %v529
      %622 = vmatmul.bf16.gmra.mxu0 %v349
      %v623 = vpop.f32.mrf.mxu0
      %v624 = vadd.f32 0.0, %v623
      %v625 = vpop.f32.mrf.mxu0
      %v626 = vadd.f32 0.0, %v625
      %627 = vmatmul.bf16.gmra.mxu0 %v354
      %v628 = vpop.f32.mrf.mxu0
      %v629 = vadd.f32 0.0, %v628
      %v630 = vpop.f32.mrf.mxu0
      %v631 = vadd.f32 0.0, %v630
      %632 = vmatmul.bf16.gmra.mxu0 %v359
      %v633 = vpop.f32.mrf.mxu0
      %v634 = vadd.f32 0.0, %v633
      %v635 = vpop.f32.mrf.mxu0
      %v636 = vadd.f32 0.0, %v635
      %637 = vmatmul.bf16.gmra.mxu0 %v364
      %v638 = vpop.f32.mrf.mxu0
      %v639 = vadd.f32 0.0, %v638
      %v640 = vpop.f32.mrf.mxu0
      %v641 = vadd.f32 0.0, %v640
      %642 = vdwg.mxu0
      %643 = vmatpush.bf16.msra.mxu0 %v544
      %644 = vmatpush.bf16.msra.mxu0 %v543
      %645 = vmatpush.bf16.msra.mxu0 %v542
      %646 = vmatpush.bf16.msra.mxu0 %v541
      %647 = vmatpush.bf16.msra.mxu0 %v540
      %648 = vmatpush.bf16.msra.mxu0 %v539
      %649 = vmatpush.bf16.msra.mxu0 %v538
      %650 = vmatpush.bf16.msra.mxu0 %v537
      %651 = vmatmul.bf16.gmra.mxu0 %v350
      %v652 = vpop.f32.mrf.mxu0
      %v653 = vadd.f32 %v624, %v652
      %v654 = vpop.f32.mrf.mxu0
      %v655 = vadd.f32 %v626, %v654
      %656 = vmatmul.bf16.gmra.mxu0 %v355
      %v657 = vpop.f32.mrf.mxu0
      %v658 = vadd.f32 %v629, %v657
      %v659 = vpop.f32.mrf.mxu0
      %v660 = vadd.f32 %v631, %v659
      %661 = vmatmul.bf16.gmra.mxu0 %v360
      %v662 = vpop.f32.mrf.mxu0
      %v663 = vadd.f32 %v634, %v662
      %v664 = vpop.f32.mrf.mxu0
      %v665 = vadd.f32 %v636, %v664
      %666 = vmatmul.bf16.gmra.mxu0 %v365
      %v667 = vpop.f32.mrf.mxu0
      %v668 = vadd.f32 %v639, %v667
      %v669 = vpop.f32.mrf.mxu0
      %v670 = vadd.f32 %v641, %v669
      %671 = vdwg.mxu0
      %672 = vmatpush.bf16.msra.mxu0 %v552
      %673 = vmatpush.bf16.msra.mxu0 %v551
      %674 = vmatpush.bf16.msra.mxu0 %v550
      %675 = vmatpush.bf16.msra.mxu0 %v549
      %676 = vmatpush.bf16.msra.mxu0 %v548
      %677 = vmatpush.bf16.msra.mxu0 %v547
      %678 = vmatpush.bf16.msra.mxu0 %v546
      %679 = vmatpush.bf16.msra.mxu0 %v545
      %680 = vmatmul.bf16.gmra.mxu0 %v351
      %v681 = vpop.f32.mrf.mxu0
      %v682 = vadd.f32 %v653, %v681
      %v683 = vpop.f32.mrf.mxu0
      %v684 = vadd.f32 %v655, %v683
      %685 = vmatmul.bf16.gmra.mxu0 %v356
      %v686 = vpop.f32.mrf.mxu0
      %v687 = vadd.f32 %v658, %v686
      %v688 = vpop.f32.mrf.mxu0
      %v689 = vadd.f32 %v660, %v688
      %690 = vmatmul.bf16.gmra.mxu0 %v361
      %v691 = vpop.f32.mrf.mxu0
      %v692 = vadd.f32 %v663, %v691
      %v693 = vpop.f32.mrf.mxu0
      %v694 = vadd.f32 %v665, %v693
      %695 = vmatmul.bf16.gmra.mxu0 %v366
      %v696 = vpop.f32.mrf.mxu0
      %v697 = vadd.f32 %v668, %v696
      %v698 = vpop.f32.mrf.mxu0
      %v699 = vadd.f32 %v670, %v698
      %700 = vdwg.mxu0
      %701 = vmatpush.bf16.msra.mxu0 %v560
      %702 = vmatpush.bf16.msra.mxu0 %v559
      %703 = vmatpush.bf16.msra.mxu0 %v558
      %704 = vmatpush.bf16.msra.mxu0 %v557
      %705 = vmatpush.bf16.msra.mxu0 %v556
      %706 = vmatpush.bf16.msra.mxu0 %v555
      %707 = vmatpush.bf16.msra.mxu0 %v554
      %708 = vmatpush.bf16.msra.mxu0 %v553
      %709 = vmatmul.bf16.gmra.mxu0 %v352
      %v710 = vpop.f32.mrf.mxu0
      %v711 = vadd.f32 %v682, %v710
      %v712 = vpop.f32.mrf.mxu0
      %v713 = vadd.f32 %v684, %v712
      %714 = vmatmul.bf16.gmra.mxu0 %v357
      %v715 = vpop.f32.mrf.mxu0
      %v716 = vadd.f32 %v687, %v715
      %v717 = vpop.f32.mrf.mxu0
      %v718 = vadd.f32 %v689, %v717
      %719 = vmatmul.bf16.gmra.mxu0 %v362
      %v720 = vpop.f32.mrf.mxu0
      %v721 = vadd.f32 %v692, %v720
      %v722 = vpop.f32.mrf.mxu0
      %v723 = vadd.f32 %v694, %v722
      %724 = vmatmul.bf16.gmra.mxu0 %v367
      %v725 = vpop.f32.mrf.mxu0
      %v726 = vadd.f32 %v697, %v725
      %v727 = vpop.f32.mrf.mxu0
      %v728 = vadd.f32 %v699, %v727
      %729 = vdwg.mxu0
      %730 = vmatpush.bf16.msra.mxu0 0
      %731 = vmatpush.bf16.msra.mxu0 0
      %732 = vmatpush.bf16.msra.mxu0 0
      %733 = vmatpush.bf16.msra.mxu0 0
      %734 = vmatpush.bf16.msra.mxu0 %v564
      %735 = vmatpush.bf16.msra.mxu0 %v563
      %736 = vmatpush.bf16.msra.mxu0 %v562
      %737 = vmatpush.bf16.msra.mxu0 %v561
      %738 = vmatmul.bf16.gmra.mxu0 %v603
      %v739 = vpop.f32.mrf.mxu0
      %v740 = vadd.f32 %v711, %v739
      %v741 = vpop.f32.mrf.mxu0
      %v742 = vadd.f32 %v713, %v741
      %743 = vmatmul.bf16.gmra.mxu0 %v606
      %v744 = vpop.f32.mrf.mxu0
      %v745 = vadd.f32 %v716, %v744
      %v746 = vpop.f32.mrf.mxu0
      %v747 = vadd.f32 %v718, %v746
      %748 = vmatmul.bf16.gmra.mxu0 %v609
      %v749 = vpop.f32.mrf.mxu0
      %v750 = vadd.f32 %v721, %v749
      %v751 = vpop.f32.mrf.mxu0
      %v752 = vadd.f32 %v723, %v751
      %753 = vmatmul.bf16.gmra.mxu0 %v612
      %v754 = vpop.f32.mrf.mxu0
      %v755 = vadd.f32 %v726, %v754
      %v756 = vpop.f32.mrf.mxu0
      %v757 = vadd.f32 %v728, %v756
      %758 = vdwg.mxu0
      %v759 = vpack.c.bf16 %v740, %v740
      %v760 = vpack.c.bf16 %v742, %v742
      %v761 = vpack.c.bf16 %v745, %v745
      %v762 = vpack.c.bf16 %v747, %v747
      %v763 = vpack.c.bf16 %v750, %v750
      %v764 = vpack.c.bf16 %v752, %v752
      %v765 = vpack.c.bf16 %v755, %v755
      %v766 = vpack.c.bf16 %v757, %v757
      %767 = vst [vmem:[%s182] sm:$0xf] %v759
      %768 = vst [vmem:[%s182 + $0x4] sm:$0xf] %v760
      %769 = vst [vmem:[%s182 + $0x8] sm:$0xf] %v761
      %770 = vst [vmem:[%s182 + $0xc] sm:$0xf] %v762
      %771 = vst [vmem:[%s182 + $0x10] sm:$0xf] %v763
      %772 = vst [vmem:[%s182 + $0x14] sm:$0xf] %v764
      %773 = vst [vmem:[%s182 + $0x18] sm:$0xf] %v765
      %774 = vst [vmem:[%s182 + $0x1c] sm:$0xf] %v766
      %v775 = vadd.f32 %v740, %v742
      %v776 = vadd.f32 %v775, %v745
      %v777 = vadd.f32 %v776, %v747
      %v778 = vadd.f32 %v777, %v750
      %v779 = vadd.f32 %v778, %v752
      %v780 = vadd.f32 %v779, %v755
      %v781 = vadd.f32 %v780, %v757
      %v782 = vrot.slane %v781, 4
      %v783 = vadd.f32 %v781, %v782
      %v784 = vrot.slane %v783, 2
      %v785 = vadd.f32 %v783, %v784
      %v786 = vrot.slane %v785, 1
      %v787 = vadd.f32 %v785, %v786
      %v788 = vmul.f32 %v740, %v740
      %v789 = vmul.f32 %v742, %v742
      %v790 = vmul.f32 %v745, %v745
      %v791 = vmul.f32 %v747, %v747
      %v792 = vmul.f32 %v750, %v750
      %v793 = vmul.f32 %v752, %v752
      %v794 = vmul.f32 %v755, %v755
      %v795 = vmul.f32 %v757, %v757
      %v796 = vadd.f32 %v788, %v789
      %v797 = vadd.f32 %v796, %v790
      %v798 = vadd.f32 %v797, %v791
      %v799 = vadd.f32 %v798, %v792
      %v800 = vadd.f32 %v799, %v793
      %v801 = vadd.f32 %v800, %v794
      %v802 = vadd.f32 %v801, %v795
      %v803 = vrot.slane %v802, 4
      %v804 = vadd.f32 %v802, %v803
      %v805 = vrot.slane %v804, 2
      %v806 = vadd.f32 %v804, %v805
      %v807 = vrot.slane %v806, 1
      %v808 = vadd.f32 %v806, %v807
      %vm809 = vcmask 1040384
      %v810 = vsel %vm809, %v787, %v808
      %811 = vst [vmem:[%s187] sm:$0x3] %v810
      %s812 = smul.u32 8, %s15
      %p813 = scmp.lt.s32.totalorder %s812, 15
      %s814 = scalar_select %p813, %s812, 15
      %s815 = smul.addr %s814, 4
      %s816 = scalar_lea.vmem %s2, %s815
      %p817 = scmp.lt.s32.totalorder %s15, 1
      %s818 = scalar_select %p817, %s15, 1
      %s819 = smul.addr %s818, 2
      %s820 = scalar_lea.vmem %s3, %s819
      // Predicated region
      $region29: #{critic_forward.11} parent=27 // pred_check
        %p821 = pneg %p80
      $region30: #{critic_forward.11} parent=27 // pred_check_branch
        %823 = sbr.rel (%p821) target = $region32
      $region31: #{critic_forward.11} parent=27 // pred_region
        %s824 = smul.u32 8, %s15
      $region32: #{critic_forward.11} parent=27 // pred_fallthru
        _
      // Predicated region
      $region33: #{critic_forward.11} parent=27 // pred_check
        %p825 = pneg %p106
      $region34: #{critic_forward.11} parent=27 // pred_check_branch
        %827 = sbr.rel (%p825) target = $region36
      $region35: #{critic_forward.11} parent=27 // pred_region
        _
      $region36: #{critic_forward.11} parent=27 // pred_fallthru
        _
    $region28: #{critic_forward.11} parent=5 // pred_fallthru
      _
    %p828 = scmp.le.s32.totalorder 2, %s10
    // Predicated region
    $region37: #{critic_forward.11} parent=5 // pred_check
      %p829 = pneg %p828
    $region38: #{critic_forward.11} parent=5 // pred_check_branch
      %831 = sbr.rel (%p829) target = $region40
    $region39: #{critic_forward.11} parent=5 // pred_region
      %s832 = ssub.s32 %s10, 2
      // Predicated region
      $region41: #{critic_forward.11} parent=39 // pred_check
        %p833 = pneg %p86
      $region42: #{critic_forward.11} parent=39 // pred_check_branch
        %835 = sbr.rel (%p833) target = $region44
      $region43: #{critic_forward.11} parent=39 // pred_region
        %s836 = smul.u32 8, %s16
        %p837 = scmp.lt.s32.totalorder %s836, 15
        %s838 = scalar_select %p837, %s836, 15
        %s839 = smul.addr %s838, 4
        %s840 = scalar_lea.vmem %s2, %s839
      $region44: #{critic_forward.11} parent=39 // pred_fallthru
        _
      // Predicated region
      $region45: #{critic_forward.11} parent=39 // pred_check
        %p841 = pneg %p112
      $region46: #{critic_forward.11} parent=39 // pred_check_branch
        %843 = sbr.rel (%p841) target = $region48
      $region47: #{critic_forward.11} parent=39 // pred_region
        %p844 = scmp.lt.s32.totalorder %s16, 1
        %s845 = scalar_select %p844, %s16, 1
        %s846 = smul.addr %s845, 2
        %s847 = scalar_lea.vmem %s3, %s846
      $region48: #{critic_forward.11} parent=39 // pred_fallthru
        _
    $region40: #{critic_forward.11} parent=5 // pred_fallthru
      _
  $region6: #{critic_forward.11} parent=0 // loop_footer
    %s14 = sadd.s32 1, %s10
  $region7: #{critic_forward.11} parent=0 // loop_footer_branch
    %9 = sbr.rel target = $region3
  $region8: #{critic_forward.11} parent=0 // loop_exit
    _

// kernel: critic_forward.12
$region0: #{critic_forward.12}
  #allocation0 [shape = 'u32[]', space=smem, size = 0x4, offset = 0x4, fixed_abs, tag = 'smem constant byte address 0x4 - core index']
  #allocation1 [shape = 'u32[72,128]{1,0:T(1,128)}', space=vmem, size = 0x9000, scoped, tag = 'internal scratch']
  %s0 = inlined_call_operand.vmem [shape: bf16[128,128], index: 0, kind: input, shape index: {}]
  %s1 = inlined_call_operand.vmem [shape: f32[1,128], index: 1, kind: input, shape index: {}]
  %s2 = inlined_call_operand.vmem [shape: f32[1,128], index: 2, kind: input, shape index: {}]
  %s3 = inlined_call_operand.vmem [shape: bf16[128,128], index: 3, kind: output, shape index: {}]
  %s4 = sld [smem:[#allocation0]]
  $region45: #{critic_forward.12} parent=0
    _
  %s6 = ssub.s32 1, %s4
  %s7 = scalar_select 0, %s6, %s4
  loop: start=0, step=1, limit=4
  $region2: #{critic_forward.12} parent=0 // loop_pre_header
    _
  $region3: #{critic_forward.12} parent=0 // loop_header
    %s9 = sphi 0, %s13
    %p10 = scmp.ge.s32.totalorder %s9, 4
    %s19 = sphi 0, %s21
    %s22 = sphi 0, %s19
    %s23 = sphi 0, %s22
    %s39 = sphi 0, %s23
    %s43 = sphi 0, %s43
    %s45 = sphi 0, %s43
    %s46 = sphi 0, %s45
    %s60 = sphi 0, %s46
    %s64 = sphi 0, %s64
    %s66 = sphi 0, %s64
    %s67 = sphi 0, %s66
    %s81 = sphi 0, %s67
    %s87 = sphi 0, %s89
    %s90 = sphi 0, %s87
    %s91 = sphi 0, %s90
    %s107 = sphi 0, %s91
  $region4: #{critic_forward.12} parent=0 // loop_header_branch
    %12 = sbr.rel (%p10) target = $region8
  $region5: #{critic_forward.12} parent=0 // loop_body
    %s14 = ssub.s32 %s9, 1
    %s15 = ssub.s32 %s9, 2
    %s16 = sadd.s32 %s9, 1
    %s17 = ssub.s32 %s9, %s16
    %p18 = scmp.eq.s32.totalorder %s17, 0
    %s20 = sadd.s32 %s19, 1
    %s21 = scalar_select %p18, %s19, %s20
    %p24 = pneg %p18
    %p25 = scmp.eq.s32.totalorder %s9, 1
    %p26 = por %p24, %p25
    %p27 = scmp.ne.s32.totalorder %s19, %s22
    %p28 = scmp.eq.s32.totalorder %s9, 0
    %p29 = por %p27, %p28
    %p30 = scmp.ne.s32.totalorder %s19, %s22
    %p31 = scmp.eq.s32.totalorder %s14, 1
    %p32 = por %p30, %p31
    %p33 = scmp.ne.s32.totalorder %s22, %s23
    %p34 = scmp.eq.s32.totalorder %s14, 0
    %p35 = por %p33, %p34
    %p36 = scmp.ne.s32.totalorder %s22, %s23
    %p37 = scmp.eq.s32.totalorder %s15, 1
    %p38 = por %p36, %p37
    %p40 = scmp.ne.s32.totalorder %s23, %s39
    %p41 = scmp.eq.s32.totalorder %s15, 0
    %p42 = por %p40, %p41
    %s44 = sadd.s32 %s43, 1
    %p47 = scmp.eq.s32.totalorder %s9, 1
    %p48 = scmp.ne.s32.totalorder %s43, %s45
    %p49 = scmp.eq.s32.totalorder %s9, 0
    %p50 = por %p48, %p49
    %p51 = scmp.ne.s32.totalorder %s43, %s45
    %p52 = scmp.eq.s32.totalorder %s14, 1
    %p53 = por %p51, %p52
    %p54 = scmp.ne.s32.totalorder %s45, %s46
    %p55 = scmp.eq.s32.totalorder %s14, 0
    %p56 = por %p54, %p55
    %p57 = scmp.ne.s32.totalorder %s45, %s46
    %p58 = scmp.eq.s32.totalorder %s15, 1
    %p59 = por %p57, %p58
    %p61 = scmp.ne.s32.totalorder %s46, %s60
    %p62 = scmp.eq.s32.totalorder %s15, 0
    %p63 = por %p61, %p62
    %s65 = sadd.s32 %s64, 1
    %p68 = scmp.eq.s32.totalorder %s9, 1
    %p69 = scmp.ne.s32.totalorder %s64, %s66
    %p70 = scmp.eq.s32.totalorder %s9, 0
    %p71 = por %p69, %p70
    %p72 = scmp.ne.s32.totalorder %s64, %s66
    %p73 = scmp.eq.s32.totalorder %s14, 1
    %p74 = por %p72, %p73
    %p75 = scmp.ne.s32.totalorder %s66, %s67
    %p76 = scmp.eq.s32.totalorder %s14, 0
    %p77 = por %p75, %p76
    %p78 = scmp.ne.s32.totalorder %s66, %s67
    %p79 = scmp.eq.s32.totalorder %s15, 1
    %p80 = por %p78, %p79
    %p82 = scmp.ne.s32.totalorder %s67, %s81
    %p83 = scmp.eq.s32.totalorder %s15, 0
    %p84 = por %p82, %p83
    %s85 = ssub.s32 %s9, %s16
    %p86 = scmp.eq.s32.totalorder %s85, 0
    %s88 = sadd.s32 %s87, 1
    %s89 = scalar_select %p86, %s87, %s88
    %p92 = pneg %p86
    %p93 = scmp.eq.s32.totalorder %s9, 1
    %p94 = por %p92, %p93
    %p95 = scmp.ne.s32.totalorder %s87, %s90
    %p96 = scmp.eq.s32.totalorder %s9, 0
    %p97 = por %p95, %p96
    %p98 = scmp.ne.s32.totalorder %s87, %s90
    %p99 = scmp.eq.s32.totalorder %s14, 1
    %p100 = por %p98, %p99
    %p101 = scmp.ne.s32.totalorder %s90, %s91
    %p102 = scmp.eq.s32.totalorder %s14, 0
    %p103 = por %p101, %p102
    %p104 = scmp.ne.s32.totalorder %s90, %s91
    %p105 = scmp.eq.s32.totalorder %s15, 1
    %p106 = por %p104, %p105
    %p108 = scmp.ne.s32.totalorder %s91, %s107
    %p109 = scmp.eq.s32.totalorder %s15, 0
    %p110 = por %p108, %p109
    %p111 = scmp.le.s32.totalorder 1, %s9
    %p112 = scmp.lt.s32.totalorder %s9, 3
    %p113 = pnand %p111, %p112
    %p114 = pneg %p113
    // Predicated region
    $region9: #{critic_forward.12} parent=5 // pred_check
      _
    $region10: #{critic_forward.12} parent=5 // pred_check_branch
      %116 = sbr.rel (%p113) target = $region12
    $region11: #{critic_forward.12} parent=5 // pred_region
      %s117 = ssub.s32 %s9, 1
      // Predicated region
      $region13: #{critic_forward.12} parent=11 // pred_check
        %p118 = pneg %p56
      $region14: #{critic_forward.12} parent=11 // pred_check_branch
        %120 = sbr.rel (%p118) target = $region16
      $region15: #{critic_forward.12} parent=11 // pred_region
        _
      $region16: #{critic_forward.12} parent=11 // pred_fallthru
        _
      // Predicated region
      $region17: #{critic_forward.12} parent=11 // pred_check
        %p121 = pneg %p77
      $region18: #{critic_forward.12} parent=11 // pred_check_branch
        %123 = sbr.rel (%p121) target = $region20
      $region19: #{critic_forward.12} parent=11 // pred_region
        _
      $region20: #{critic_forward.12} parent=11 // pred_fallthru
        _
    $region12: #{critic_forward.12} parent=5 // pred_fallthru
      _
    %p124 = scmp.lt.s32.totalorder %s9, 2
    // Predicated region
    $region21: #{critic_forward.12} parent=5 // pred_check
      %p125 = pneg %p124
    $region22: #{critic_forward.12} parent=5 // pred_check_branch
      %127 = sbr.rel (%p125) target = $region24
    $region23: #{critic_forward.12} parent=5 // pred_region
      // Predicated region
      $region25: #{critic_forward.12} parent=23 // pred_check
        %p128 = pneg %p29
      $region26: #{critic_forward.12} parent=23 // pred_check_branch
        %130 = sbr.rel (%p128) target = $region28
      $region27: #{critic_forward.12} parent=23 // pred_region
        %s131 = smul.u32 8, %s9
        %p132 = scmp.lt.s32.totalorder %s131, 15
        %s133 = scalar_select %p132, %s131, 15
        %s134 = smul.addr %s133, 4
        %s135 = scalar_lea.vmem %s0, %s134
        %s136 = smul.u32 8, %s9
      $region28: #{critic_forward.12} parent=23 // pred_fallthru
        _
    $region24: #{critic_forward.12} parent=5 // pred_fallthru
      _
    %p137 = scmp.le.s32.totalorder 1, %s9
    %p138 = scmp.lt.s32.totalorder %s9, 3
    %p139 = pnand %p137, %p138
    %p140 = pneg %p139
    // Predicated region
    $region29: #{critic_forward.12} parent=5 // pred_check
      _
    $region30: #{critic_forward.12} parent=5 // pred_check_branch
      %142 = sbr.rel (%p139) target = $region32
    $region31: #{critic_forward.12} parent=5 // pred_region
      %s143 = ssub.s32 %s9, 1
      %s144 = smul.u32 8, %s14
      %p145 = scmp.lt.s32.totalorder %s144, 15
      %s146 = scalar_select %p145, %s144, 15
      %s147 = smul.addr %s146, 4
      %s148 = scalar_lea.vmem %s0, %s147
      %p149 = pneg %p35
      %p150 = pneg %p32
      %p151 = pneg %p56
      %p152 = pneg %p53
      %p153 = pneg %p77
      %p154 = pneg %p74
      %p155 = pneg %p103
      %p156 = pneg %p100
      %s157 = smul.u32 8, %s14
      %p158 = scmp.lt.s32.totalorder %s157, 15
      %s159 = scalar_select %p158, %s157, 15
      %s160 = smul.addr %s159, 4
      %s161 = scalar_lea.vmem %s3, %s160
      %s162 = smul.u32 8, %s14
      %p163 = scmp.lt.s32.totalorder %s162, 15
      %s164 = scalar_select %p163, %s162, 15
      %s165 = smul.addr %s164, 4
      %s166 = scalar_lea.vmem %s0, %s165
      %s167 = smul.u32 8, %s14
      %s168 = smul.u32 8, %s14
      %p169 = scmp.lt.s32.totalorder %s168, 15
      %s170 = scalar_select %p169, %s168, 15
      %s171 = smul.addr %s170, 4
      %s172 = scalar_lea.vmem %s3, %s171
      %s173 = smul.u32 8, %s14
      %v174 = vld [vmem:[%s166] sm:$0xf]
      %v175 = vld [vmem:[%s166 + $0x4] sm:$0xf]
      %v176 = vld [vmem:[%s166 + $0x8] sm:$0xf]
      %v177 = vld [vmem:[%s166 + $0xc] sm:$0xf]
      %v178 = vld [vmem:[%s166 + $0x10] sm:$0xf]
      %v179 = vld [vmem:[%s166 + $0x14] sm:$0xf]
      %v180 = vld [vmem:[%s166 + $0x18] sm:$0xf]
      %v181 = vld [vmem:[%s166 + $0x1c] sm:$0xf]
      %v182 = vunpack.c.l.bf16 %v174
      %v183 = vunpack.c.l.bf16 %v175
      %v184 = vunpack.c.l.bf16 %v176
      %v185 = vunpack.c.l.bf16 %v177
      %v186 = vunpack.c.l.bf16 %v178
      %v187 = vunpack.c.l.bf16 %v179
      %v188 = vunpack.c.l.bf16 %v180
      %v189 = vunpack.c.l.bf16 %v181
      %v190 = vld [vmem:[%s1] sm:$0x1]
      %v192 = vperm.slane %v190, 0
      %v194 = vmul.f32 %v182, %v192
      %v195 = vmul.f32 %v183, %v192
      %v196 = vmul.f32 %v184, %v192
      %v197 = vmul.f32 %v185, %v192
      %v198 = vmul.f32 %v186, %v192
      %v199 = vmul.f32 %v187, %v192
      %v200 = vmul.f32 %v188, %v192
      %v201 = vmul.f32 %v189, %v192
      %v202 = vld [vmem:[%s2] sm:$0x1]
      %v204 = vperm.slane %v202, 0
      %v206 = vadd.f32 %v194, %v204
      %v207 = vadd.f32 %v195, %v204
      %v208 = vadd.f32 %v196, %v204
      %v209 = vadd.f32 %v197, %v204
      %v210 = vadd.f32 %v198, %v204
      %v211 = vadd.f32 %v199, %v204
      %v212 = vadd.f32 %v200, %v204
      %v213 = vadd.f32 %v201, %v204
      %v214 = vmax.f32 %v206, 0.0
      %v215 = vmax.f32 %v207, 0.0
      %v216 = vmax.f32 %v208, 0.0
      %v217 = vmax.f32 %v209, 0.0
      %v218 = vmax.f32 %v210, 0.0
      %v219 = vmax.f32 %v211, 0.0
      %v220 = vmax.f32 %v212, 0.0
      %v221 = vmax.f32 %v213, 0.0
      %v222 = vpack.c.bf16 %v214, %v214
      %v223 = vpack.c.bf16 %v215, %v215
      %v224 = vpack.c.bf16 %v216, %v216
      %v225 = vpack.c.bf16 %v217, %v217
      %v226 = vpack.c.bf16 %v218, %v218
      %v227 = vpack.c.bf16 %v219, %v219
      %v228 = vpack.c.bf16 %v220, %v220
      %v229 = vpack.c.bf16 %v221, %v221
      %230 = vst [vmem:[%s172] sm:$0xf] %v222
      %231 = vst [vmem:[%s172 + $0x4] sm:$0xf] %v223
      %232 = vst [vmem:[%s172 + $0x8] sm:$0xf] %v224
      %233 = vst [vmem:[%s172 + $0xc] sm:$0xf] %v225
      %234 = vst [vmem:[%s172 + $0x10] sm:$0xf] %v226
      %235 = vst [vmem:[%s172 + $0x14] sm:$0xf] %v227
      %236 = vst [vmem:[%s172 + $0x18] sm:$0xf] %v228
      %237 = vst [vmem:[%s172 + $0x1c] sm:$0xf] %v229
      %s238 = smul.u32 8, %s14
      %p239 = scmp.lt.s32.totalorder %s238, 15
      %s240 = scalar_select %p239, %s238, 15
      %s241 = smul.addr %s240, 4
      %s242 = scalar_lea.vmem %s3, %s241
      // Predicated region
      $region33: #{critic_forward.12} parent=31 // pred_check
        %p243 = pneg %p100
      $region34: #{critic_forward.12} parent=31 // pred_check_branch
        %245 = sbr.rel (%p243) target = $region36
      $region35: #{critic_forward.12} parent=31 // pred_region
        %s246 = smul.u32 8, %s14
      $region36: #{critic_forward.12} parent=31 // pred_fallthru
        _
    $region32: #{critic_forward.12} parent=5 // pred_fallthru
      _
    %p247 = scmp.le.s32.totalorder 2, %s9
    // Predicated region
    $region37: #{critic_forward.12} parent=5 // pred_check
      %p248 = pneg %p247
    $region38: #{critic_forward.12} parent=5 // pred_check_branch
      %250 = sbr.rel (%p248) target = $region40
    $region39: #{critic_forward.12} parent=5 // pred_region
      %s251 = ssub.s32 %s9, 2
      // Predicated region
      $region41: #{critic_forward.12} parent=39 // pred_check
        %p252 = pneg %p106
      $region42: #{critic_forward.12} parent=39 // pred_check_branch
        %254 = sbr.rel (%p252) target = $region44
      $region43: #{critic_forward.12} parent=39 // pred_region
        %s255 = smul.u32 8, %s15
        %p256 = scmp.lt.s32.totalorder %s255, 15
        %s257 = scalar_select %p256, %s255, 15
        %s258 = smul.addr %s257, 4
        %s259 = scalar_lea.vmem %s3, %s258
      $region44: #{critic_forward.12} parent=39 // pred_fallthru
        _
    $region40: #{critic_forward.12} parent=5 // pred_fallthru
      _
  $region6: #{critic_forward.12} parent=0 // loop_footer
    %s13 = sadd.s32 1, %s9
  $region7: #{critic_forward.12} parent=0 // loop_footer_branch
    %8 = sbr.rel target = $region3
  $region8: #{critic_forward.12} parent=0 // loop_exit
    _

// kernel: critic_forward.13
$region0: #{critic_forward.13}
  #allocation0 [shape = 'u32[]', space=smem, size = 0x4, offset = 0x4, fixed_abs, tag = 'smem constant byte address 0x4 - core index']
  #allocation1 [shape = 'u32[72,128]{1,0:T(1,128)}', space=vmem, size = 0x9000, scoped, tag = 'internal scratch']
  %s0 = inlined_call_operand.vmem [shape: bf16[2,4096], index: 0, kind: input, shape index: {}]
  %s1 = inlined_call_operand.vmem [shape: bf16[4096,256], index: 1, kind: input, shape index: {}]
  %s2 = inlined_call_operand.vmem [shape: f32[2,256], index: 2, kind: input, shape index: {}]
  %s3 = inlined_call_operand.vmem [shape: f32[2,6], index: 3, kind: input, shape index: {}]
  %s4 = inlined_call_operand.vmem [shape: bf16[256,32], index: 4, kind: input, shape index: {}]
  %s5 = inlined_call_operand.vmem [shape: f32[10,128], index: 5, kind: input, shape index: {}]
  %s6 = inlined_call_operand.vmem [shape: f32[2,1], index: 6, kind: output, shape index: {}]
  %s7 = sld [smem:[#allocation0]]
  $region34: #{critic_forward.13} parent=0
    _
  %s9 = ssub.s32 1, %s7
  %s10 = scalar_select 0, %s9, %s7
  // Predicated region
  $region2: #{critic_forward.13} parent=0 // pred_check
    _
  $region3: #{critic_forward.13} parent=0 // pred_check_branch
    %12 = sbr.rel (0) target = $region5
  $region4: #{critic_forward.13} parent=0 // pred_region
    _
  $region5: #{critic_forward.13} parent=0 // pred_fallthru
    _
  // Predicated region
  $region6: #{critic_forward.13} parent=0 // pred_check
    _
  $region7: #{critic_forward.13} parent=0 // pred_check_branch
    %14 = sbr.rel (0) target = $region9
  $region8: #{critic_forward.13} parent=0 // pred_region
    _
  $region9: #{critic_forward.13} parent=0 // pred_fallthru
    _
  // Predicated region
  $region10: #{critic_forward.13} parent=0 // pred_check
    _
  $region11: #{critic_forward.13} parent=0 // pred_check_branch
    %16 = sbr.rel (0) target = $region13
  $region12: #{critic_forward.13} parent=0 // pred_region
    _
  $region13: #{critic_forward.13} parent=0 // pred_fallthru
    _
  // Predicated region
  $region14: #{critic_forward.13} parent=0 // pred_check
    _
  $region15: #{critic_forward.13} parent=0 // pred_check_branch
    %18 = sbr.rel (0) target = $region17
  $region16: #{critic_forward.13} parent=0 // pred_region
    _
  $region17: #{critic_forward.13} parent=0 // pred_fallthru
    _
  // Predicated region
  $region18: #{critic_forward.13} parent=0 // pred_check
    _
  $region19: #{critic_forward.13} parent=0 // pred_check_branch
    %20 = sbr.rel (0) target = $region21
  $region20: #{critic_forward.13} parent=0 // pred_region
    _
  $region21: #{critic_forward.13} parent=0 // pred_fallthru
    _
  // Predicated region
  $region22: #{critic_forward.13} parent=0 // pred_check
    _
  $region23: #{critic_forward.13} parent=0 // pred_check_branch
    %22 = sbr.rel (0) target = $region25
  $region24: #{critic_forward.13} parent=0 // pred_region
    _
  $region25: #{critic_forward.13} parent=0 // pred_fallthru
    _
  %v24 = vld [vmem:[%s0] sm:$0xff]
  %v25 = vld [vmem:[%s0 + $0x8] sm:$0xff]
  %v26 = vld [vmem:[%s0 + $0x10] sm:$0xff]
  %v27 = vld [vmem:[%s0 + $0x18] sm:$0xff]
  %v28 = vld [vmem:[%s1] sm:$0xff]
  %v29 = vld [vmem:[%s1 + $0x8] sm:$0xff]
  %v30 = vld [vmem:[%s1 + $0x10] sm:$0xff]
  %v31 = vld [vmem:[%s1 + $0x18] sm:$0xff]
  %v32 = vld [vmem:[%s1 + $0x20] sm:$0xff]
  %v33 = vld [vmem:[%s1 + $0x28] sm:$0xff]
  %v34 = vld [vmem:[%s1 + $0x30] sm:$0xff]
  %v35 = vld [vmem:[%s1 + $0x38] sm:$0xff]
  %v36 = vld [vmem:[%s1 + $0x40] sm:$0xff]
  %v37 = vld [vmem:[%s1 + $0x48] sm:$0xff]
  %v38 = vld [vmem:[%s1 + $0x50] sm:$0xff]
  %v39 = vld [vmem:[%s1 + $0x58] sm:$0xff]
  %v40 = vld [vmem:[%s1 + $0x60] sm:$0xff]
  %v41 = vld [vmem:[%s1 + $0x68] sm:$0xff]
  %v42 = vld [vmem:[%s1 + $0x70] sm:$0xff]
  %v43 = vld [vmem:[%s1 + $0x78] sm:$0xff]
  %v44 = vld [vmem:[%s1 + $0x80] sm:$0xff]
  %v45 = vld [vmem:[%s1 + $0x88] sm:$0xff]
  %v46 = vld [vmem:[%s1 + $0x90] sm:$0xff]
  %v47 = vld [vmem:[%s1 + $0x98] sm:$0xff]
  %v48 = vld [vmem:[%s1 + $0xa0] sm:$0xff]
  %v49 = vld [vmem:[%s1 + $0xa8] sm:$0xff]
  %v50 = vld [vmem:[%s1 + $0xb0] sm:$0xff]
  %v51 = vld [vmem:[%s1 + $0xb8] sm:$0xff]
  %v52 = vld [vmem:[%s1 + $0xc0] sm:$0xff]
  %v53 = vld [vmem:[%s1 + $0xc8] sm:$0xff]
  %v54 = vld [vmem:[%s1 + $0xd0] sm:$0xff]
  %v55 = vld [vmem:[%s1 + $0xd8] sm:$0xff]
  %v56 = vld [vmem:[%s1 + $0xe0] sm:$0xff]
  %v57 = vld [vmem:[%s1 + $0xe8] sm:$0xff]
  %v58 = vld [vmem:[%s1 + $0xf0] sm:$0xff]
  %v59 = vld [vmem:[%s1 + $0xf8] sm:$0xff]
  %v60 = vld [vmem:[%s1 + $0x100] sm:$0xff]
  %v61 = vld [vmem:[%s1 + $0x108] sm:$0xff]
  %v62 = vld [vmem:[%s1 + $0x110] sm:$0xff]
  %v63 = vld [vmem:[%s1 + $0x118] sm:$0xff]
  %v64 = vld [vmem:[%s1 + $0x120] sm:$0xff]
  %v65 = vld [vmem:[%s1 + $0x128] sm:$0xff]
  %v66 = vld [vmem:[%s1 + $0x130] sm:$0xff]
  %v67 = vld [vmem:[%s1 + $0x138] sm:$0xff]
  %v68 = vld [vmem:[%s1 + $0x140] sm:$0xff]
  %v69 = vld [vmem:[%s1 + $0x148] sm:$0xff]
  %v70 = vld [vmem:[%s1 + $0x150] sm:$0xff]
  %v71 = vld [vmem:[%s1 + $0x158] sm:$0xff]
  %v72 = vld [vmem:[%s1 + $0x160] sm:$0xff]
  %v73 = vld [vmem:[%s1 + $0x168] sm:$0xff]
  %v74 = vld [vmem:[%s1 + $0x170] sm:$0xff]
  %v75 = vld [vmem:[%s1 + $0x178] sm:$0xff]
  %v76 = vld [vmem:[%s1 + $0x180] sm:$0xff]
  %v77 = vld [vmem:[%s1 + $0x188] sm:$0xff]
  %v78 = vld [vmem:[%s1 + $0x190] sm:$0xff]
  %v79 = vld [vmem:[%s1 + $0x198] sm:$0xff]
  %v80 = vld [vmem:[%s1 + $0x1a0] sm:$0xff]
  %v81 = vld [vmem:[%s1 + $0x1a8] sm:$0xff]
  %v82 = vld [vmem:[%s1 + $0x1b0] sm:$0xff]
  %v83 = vld [vmem:[%s1 + $0x1b8] sm:$0xff]
  %v84 = vld [vmem:[%s1 + $0x1c0] sm:$0xff]
  %v85 = vld [vmem:[%s1 + $0x1c8] sm:$0xff]
  %v86 = vld [vmem:[%s1 + $0x1d0] sm:$0xff]
  %v87 = vld [vmem:[%s1 + $0x1d8] sm:$0xff]
  %v88 = vld [vmem:[%s1 + $0x1e0] sm:$0xff]
  %v89 = vld [vmem:[%s1 + $0x1e8] sm:$0xff]
  %v90 = vld [vmem:[%s1 + $0x1f0] sm:$0xff]
  %v91 = vld [vmem:[%s1 + $0x1f8] sm:$0xff]
  %v92 = vld [vmem:[%s1 + $0x200] sm:$0xff]
  %v93 = vld [vmem:[%s1 + $0x208] sm:$0xff]
  %v94 = vld [vmem:[%s1 + $0x210] sm:$0xff]
  %v95 = vld [vmem:[%s1 + $0x218] sm:$0xff]
  %v96 = vld [vmem:[%s1 + $0x220] sm:$0xff]
  %v97 = vld [vmem:[%s1 + $0x228] sm:$0xff]
  %v98 = vld [vmem:[%s1 + $0x230] sm:$0xff]
  %v99 = vld [vmem:[%s1 + $0x238] sm:$0xff]
  %v100 = vld [vmem:[%s1 + $0x240] sm:$0xff]
  %v101 = vld [vmem:[%s1 + $0x248] sm:$0xff]
  %v102 = vld [vmem:[%s1 + $0x250] sm:$0xff]
  %v103 = vld [vmem:[%s1 + $0x258] sm:$0xff]
  %v104 = vld [vmem:[%s1 + $0x260] sm:$0xff]
  %v105 = vld [vmem:[%s1 + $0x268] sm:$0xff]
  %v106 = vld [vmem:[%s1 + $0x270] sm:$0xff]
  %v107 = vld [vmem:[%s1 + $0x278] sm:$0xff]
  %v108 = vld [vmem:[%s1 + $0x280] sm:$0xff]
  %v109 = vld [vmem:[%s1 + $0x288] sm:$0xff]
  %v110 = vld [vmem:[%s1 + $0x290] sm:$0xff]
  %v111 = vld [vmem:[%s1 + $0x298] sm:$0xff]
  %v112 = vld [vmem:[%s1 + $0x2a0] sm:$0xff]
  %v113 = vld [vmem:[%s1 + $0x2a8] sm:$0xff]
  %v114 = vld [vmem:[%s1 + $0x2b0] sm:$0xff]
  %v115 = vld [vmem:[%s1 + $0x2b8] sm:$0xff]
  %v116 = vld [vmem:[%s1 + $0x2c0] sm:$0xff]
  %v117 = vld [vmem:[%s1 + $0x2c8] sm:$0xff]
  %v118 = vld [vmem:[%s1 + $0x2d0] sm:$0xff]
  %v119 = vld [vmem:[%s1 + $0x2d8] sm:$0xff]
  %v120 = vld [vmem:[%s1 + $0x2e0] sm:$0xff]
  %v121 = vld [vmem:[%s1 + $0x2e8] sm:$0xff]
  %v122 = vld [vmem:[%s1 + $0x2f0] sm:$0xff]
  %v123 = vld [vmem:[%s1 + $0x2f8] sm:$0xff]
  %v124 = vld [vmem:[%s1 + $0x300] sm:$0xff]
  %v125 = vld [vmem:[%s1 + $0x308] sm:$0xff]
  %v126 = vld [vmem:[%s1 + $0x310] sm:$0xff]
  %v127 = vld [vmem:[%s1 + $0x318] sm:$0xff]
  %v128 = vld [vmem:[%s1 + $0x320] sm:$0xff]
  %v129 = vld [vmem:[%s1 + $0x328] sm:$0xff]
  %v130 = vld [vmem:[%s1 + $0x330] sm:$0xff]
  %v131 = vld [vmem:[%s1 + $0x338] sm:$0xff]
  %v132 = vld [vmem:[%s1 + $0x340] sm:$0xff]
  %v133 = vld [vmem:[%s1 + $0x348] sm:$0xff]
  %v134 = vld [vmem:[%s1 + $0x350] sm:$0xff]
  %v135 = vld [vmem:[%s1 + $0x358] sm:$0xff]
  %v136 = vld [vmem:[%s1 + $0x360] sm:$0xff]
  %v137 = vld [vmem:[%s1 + $0x368] sm:$0xff]
  %v138 = vld [vmem:[%s1 + $0x370] sm:$0xff]
  %v139 = vld [vmem:[%s1 + $0x378] sm:$0xff]
  %v140 = vld [vmem:[%s1 + $0x380] sm:$0xff]
  %v141 = vld [vmem:[%s1 + $0x388] sm:$0xff]
  %v142 = vld [vmem:[%s1 + $0x390] sm:$0xff]
  %v143 = vld [vmem:[%s1 + $0x398] sm:$0xff]
  %v144 = vld [vmem:[%s1 + $0x3a0] sm:$0xff]
  %v145 = vld [vmem:[%s1 + $0x3a8] sm:$0xff]
  %v146 = vld [vmem:[%s1 + $0x3b0] sm:$0xff]
  %v147 = vld [vmem:[%s1 + $0x3b8] sm:$0xff]
  %v148 = vld [vmem:[%s1 + $0x3c0] sm:$0xff]
  %v149 = vld [vmem:[%s1 + $0x3c8] sm:$0xff]
  %v150 = vld [vmem:[%s1 + $0x3d0] sm:$0xff]
  %v151 = vld [vmem:[%s1 + $0x3d8] sm:$0xff]
  %v152 = vld [vmem:[%s1 + $0x3e0] sm:$0xff]
  %v153 = vld [vmem:[%s1 + $0x3e8] sm:$0xff]
  %v154 = vld [vmem:[%s1 + $0x3f0] sm:$0xff]
  %v155 = vld [vmem:[%s1 + $0x3f8] sm:$0xff]
  %v156 = vld [vmem:[%s1 + $0x400] sm:$0xff]
  %v157 = vld [vmem:[%s1 + $0x408] sm:$0xff]
  %v158 = vld [vmem:[%s1 + $0x410] sm:$0xff]
  %v159 = vld [vmem:[%s1 + $0x418] sm:$0xff]
  %v160 = vld [vmem:[%s1 + $0x420] sm:$0xff]
  %v161 = vld [vmem:[%s1 + $0x428] sm:$0xff]
  %v162 = vld [vmem:[%s1 + $0x430] sm:$0xff]
  %v163 = vld [vmem:[%s1 + $0x438] sm:$0xff]
  %v164 = vld [vmem:[%s1 + $0x440] sm:$0xff]
  %v165 = vld [vmem:[%s1 + $0x448] sm:$0xff]
  %v166 = vld [vmem:[%s1 + $0x450] sm:$0xff]
  %v167 = vld [vmem:[%s1 + $0x458] sm:$0xff]
  %v168 = vld [vmem:[%s1 + $0x460] sm:$0xff]
  %v169 = vld [vmem:[%s1 + $0x468] sm:$0xff]
  %v170 = vld [vmem:[%s1 + $0x470] sm:$0xff]
  %v171 = vld [vmem:[%s1 + $0x478] sm:$0xff]
  %v172 = vld [vmem:[%s1 + $0x480] sm:$0xff]
  %v173 = vld [vmem:[%s1 + $0x488] sm:$0xff]
  %v174 = vld [vmem:[%s1 + $0x490] sm:$0xff]
  %v175 = vld [vmem:[%s1 + $0x498] sm:$0xff]
  %v176 = vld [vmem:[%s1 + $0x4a0] sm:$0xff]
  %v177 = vld [vmem:[%s1 + $0x4a8] sm:$0xff]
  %v178 = vld [vmem:[%s1 + $0x4b0] sm:$0xff]
  %v179 = vld [vmem:[%s1 + $0x4b8] sm:$0xff]
  %v180 = vld [vmem:[%s1 + $0x4c0] sm:$0xff]
  %v181 = vld [vmem:[%s1 + $0x4c8] sm:$0xff]
  %v182 = vld [vmem:[%s1 + $0x4d0] sm:$0xff]
  %v183 = vld [vmem:[%s1 + $0x4d8] sm:$0xff]
  %v184 = vld [vmem:[%s1 + $0x4e0] sm:$0xff]
  %v185 = vld [vmem:[%s1 + $0x4e8] sm:$0xff]
  %v186 = vld [vmem:[%s1 + $0x4f0] sm:$0xff]
  %v187 = vld [vmem:[%s1 + $0x4f8] sm:$0xff]
  %v188 = vld [vmem:[%s1 + $0x500] sm:$0xff]
  %v189 = vld [vmem:[%s1 + $0x508] sm:$0xff]
  %v190 = vld [vmem:[%s1 + $0x510] sm:$0xff]
  %v191 = vld [vmem:[%s1 + $0x518] sm:$0xff]
  %v192 = vld [vmem:[%s1 + $0x520] sm:$0xff]
  %v193 = vld [vmem:[%s1 + $0x528] sm:$0xff]
  %v194 = vld [vmem:[%s1 + $0x530] sm:$0xff]
  %v195 = vld [vmem:[%s1 + $0x538] sm:$0xff]
  %v196 = vld [vmem:[%s1 + $0x540] sm:$0xff]
  %v197 = vld [vmem:[%s1 + $0x548] sm:$0xff]
  %v198 = vld [vmem:[%s1 + $0x550] sm:$0xff]
  %v199 = vld [vmem:[%s1 + $0x558] sm:$0xff]
  %v200 = vld [vmem:[%s1 + $0x560] sm:$0xff]
  %v201 = vld [vmem:[%s1 + $0x568] sm:$0xff]
  %v202 = vld [vmem:[%s1 + $0x570] sm:$0xff]
  %v203 = vld [vmem:[%s1 + $0x578] sm:$0xff]
  %v204 = vld [vmem:[%s1 + $0x580] sm:$0xff]
  %v205 = vld [vmem:[%s1 + $0x588] sm:$0xff]
  %v206 = vld [vmem:[%s1 + $0x590] sm:$0xff]
  %v207 = vld [vmem:[%s1 + $0x598] sm:$0xff]
  %v208 = vld [vmem:[%s1 + $0x5a0] sm:$0xff]
  %v209 = vld [vmem:[%s1 + $0x5a8] sm:$0xff]
  %v210 = vld [vmem:[%s1 + $0x5b0] sm:$0xff]
  %v211 = vld [vmem:[%s1 + $0x5b8] sm:$0xff]
  %v212 = vld [vmem:[%s1 + $0x5c0] sm:$0xff]
  %v213 = vld [vmem:[%s1 + $0x5c8] sm:$0xff]
  %v214 = vld [vmem:[%s1 + $0x5d0] sm:$0xff]
  %v215 = vld [vmem:[%s1 + $0x5d8] sm:$0xff]
  %v216 = vld [vmem:[%s1 + $0x5e0] sm:$0xff]
  %v217 = vld [vmem:[%s1 + $0x5e8] sm:$0xff]
  %v218 = vld [vmem:[%s1 + $0x5f0] sm:$0xff]
  %v219 = vld [vmem:[%s1 + $0x5f8] sm:$0xff]
  %v220 = vld [vmem:[%s1 + $0x600] sm:$0xff]
  %v221 = vld [vmem:[%s1 + $0x608] sm:$0xff]
  %v222 = vld [vmem:[%s1 + $0x610] sm:$0xff]
  %v223 = vld [vmem:[%s1 + $0x618] sm:$0xff]
  %v224 = vld [vmem:[%s1 + $0x620] sm:$0xff]
  %v225 = vld [vmem:[%s1 + $0x628] sm:$0xff]
  %v226 = vld [vmem:[%s1 + $0x630] sm:$0xff]
  %v227 = vld [vmem:[%s1 + $0x638] sm:$0xff]
  %v228 = vld [vmem:[%s1 + $0x640] sm:$0xff]
  %v229 = vld [vmem:[%s1 + $0x648] sm:$0xff]
  %v230 = vld [vmem:[%s1 + $0x650] sm:$0xff]
  %v231 = vld [vmem:[%s1 + $0x658] sm:$0xff]
  %v232 = vld [vmem:[%s1 + $0x660] sm:$0xff]
  %v233 = vld [vmem:[%s1 + $0x668] sm:$0xff]
  %v234 = vld [vmem:[%s1 + $0x670] sm:$0xff]
  %v235 = vld [vmem:[%s1 + $0x678] sm:$0xff]
  %v236 = vld [vmem:[%s1 + $0x680] sm:$0xff]
  %v237 = vld [vmem:[%s1 + $0x688] sm:$0xff]
  %v238 = vld [vmem:[%s1 + $0x690] sm:$0xff]
  %v239 = vld [vmem:[%s1 + $0x698] sm:$0xff]
  %v240 = vld [vmem:[%s1 + $0x6a0] sm:$0xff]
  %v241 = vld [vmem:[%s1 + $0x6a8] sm:$0xff]
  %v242 = vld [vmem:[%s1 + $0x6b0] sm:$0xff]
  %v243 = vld [vmem:[%s1 + $0x6b8] sm:$0xff]
  %v244 = vld [vmem:[%s1 + $0x6c0] sm:$0xff]
  %v245 = vld [vmem:[%s1 + $0x6c8] sm:$0xff]
  %v246 = vld [vmem:[%s1 + $0x6d0] sm:$0xff]
  %v247 = vld [vmem:[%s1 + $0x6d8] sm:$0xff]
  %v248 = vld [vmem:[%s1 + $0x6e0] sm:$0xff]
  %v249 = vld [vmem:[%s1 + $0x6e8] sm:$0xff]
  %v250 = vld [vmem:[%s1 + $0x6f0] sm:$0xff]
  %v251 = vld [vmem:[%s1 + $0x6f8] sm:$0xff]
  %v252 = vld [vmem:[%s1 + $0x700] sm:$0xff]
  %v253 = vld [vmem:[%s1 + $0x708] sm:$0xff]
  %v254 = vld [vmem:[%s1 + $0x710] sm:$0xff]
  %v255 = vld [vmem:[%s1 + $0x718] sm:$0xff]
  %v256 = vld [vmem:[%s1 + $0x720] sm:$0xff]
  %v257 = vld [vmem:[%s1 + $0x728] sm:$0xff]
  %v258 = vld [vmem:[%s1 + $0x730] sm:$0xff]
  %v259 = vld [vmem:[%s1 + $0x738] sm:$0xff]
  %v260 = vld [vmem:[%s1 + $0x740] sm:$0xff]
  %v261 = vld [vmem:[%s1 + $0x748] sm:$0xff]
  %v262 = vld [vmem:[%s1 + $0x750] sm:$0xff]
  %v263 = vld [vmem:[%s1 + $0x758] sm:$0xff]
  %v264 = vld [vmem:[%s1 + $0x760] sm:$0xff]
  %v265 = vld [vmem:[%s1 + $0x768] sm:$0xff]
  %v266 = vld [vmem:[%s1 + $0x770] sm:$0xff]
  %v267 = vld [vmem:[%s1 + $0x778] sm:$0xff]
  %v268 = vld [vmem:[%s1 + $0x780] sm:$0xff]
  %v269 = vld [vmem:[%s1 + $0x788] sm:$0xff]
  %v270 = vld [vmem:[%s1 + $0x790] sm:$0xff]
  %v271 = vld [vmem:[%s1 + $0x798] sm:$0xff]
  %v272 = vld [vmem:[%s1 + $0x7a0] sm:$0xff]
  %v273 = vld [vmem:[%s1 + $0x7a8] sm:$0xff]
  %v274 = vld [vmem:[%s1 + $0x7b0] sm:$0xff]
  %v275 = vld [vmem:[%s1 + $0x7b8] sm:$0xff]
  %v276 = vld [vmem:[%s1 + $0x7c0] sm:$0xff]
  %v277 = vld [vmem:[%s1 + $0x7c8] sm:$0xff]
  %v278 = vld [vmem:[%s1 + $0x7d0] sm:$0xff]
  %v279 = vld [vmem:[%s1 + $0x7d8] sm:$0xff]
  %v280 = vld [vmem:[%s1 + $0x7e0] sm:$0xff]
  %v281 = vld [vmem:[%s1 + $0x7e8] sm:$0xff]
  %v282 = vld [vmem:[%s1 + $0x7f0] sm:$0xff]
  %v283 = vld [vmem:[%s1 + $0x7f8] sm:$0xff]
  %v284 = vld [vmem:[%s1 + $0x800] sm:$0xff]
  %v285 = vld [vmem:[%s1 + $0x808] sm:$0xff]
  %v286 = vld [vmem:[%s1 + $0x810] sm:$0xff]
  %v287 = vld [vmem:[%s1 + $0x818] sm:$0xff]
  %v288 = vld [vmem:[%s1 + $0x820] sm:$0xff]
  %v289 = vld [vmem:[%s1 + $0x828] sm:$0xff]
  %v290 = vld [vmem:[%s1 + $0x830] sm:$0xff]
  %v291 = vld [vmem:[%s1 + $0x838] sm:$0xff]
  %v292 = vld [vmem:[%s1 + $0x840] sm:$0xff]
  %v293 = vld [vmem:[%s1 + $0x848] sm:$0xff]
  %v294 = vld [vmem:[%s1 + $0x850] sm:$0xff]
  %v295 = vld [vmem:[%s1 + $0x858] sm:$0xff]
  %v296 = vld [vmem:[%s1 + $0x860] sm:$0xff]
  %v297 = vld [vmem:[%s1 + $0x868] sm:$0xff]
  %v298 = vld [vmem:[%s1 + $0x870] sm:$0xff]
  %v299 = vld [vmem:[%s1 + $0x878] sm:$0xff]
  %v300 = vld [vmem:[%s1 + $0x880] sm:$0xff]
  %v301 = vld [vmem:[%s1 + $0x888] sm:$0xff]
  %v302 = vld [vmem:[%s1 + $0x890] sm:$0xff]
  %v303 = vld [vmem:[%s1 + $0x898] sm:$0xff]
  %v304 = vld [vmem:[%s1 + $0x8a0] sm:$0xff]
  %v305 = vld [vmem:[%s1 + $0x8a8] sm:$0xff]
  %v306 = vld [vmem:[%s1 + $0x8b0] sm:$0xff]
  %v307 = vld [vmem:[%s1 + $0x8b8] sm:$0xff]
  %v308 = vld [vmem:[%s1 + $0x8c0] sm:$0xff]
  %v309 = vld [vmem:[%s1 + $0x8c8] sm:$0xff]
  %v310 = vld [vmem:[%s1 + $0x8d0] sm:$0xff]
  %v311 = vld [vmem:[%s1 + $0x8d8] sm:$0xff]
  %v312 = vld [vmem:[%s1 + $0x8e0] sm:$0xff]
  %v313 = vld [vmem:[%s1 + $0x8e8] sm:$0xff]
  %v314 = vld [vmem:[%s1 + $0x8f0] sm:$0xff]
  %v315 = vld [vmem:[%s1 + $0x8f8] sm:$0xff]
  %v316 = vld [vmem:[%s1 + $0x900] sm:$0xff]
  %v317 = vld [vmem:[%s1 + $0x908] sm:$0xff]
  %v318 = vld [vmem:[%s1 + $0x910] sm:$0xff]
  %v319 = vld [vmem:[%s1 + $0x918] sm:$0xff]
  %v320 = vld [vmem:[%s1 + $0x920] sm:$0xff]
  %v321 = vld [vmem:[%s1 + $0x928] sm:$0xff]
  %v322 = vld [vmem:[%s1 + $0x930] sm:$0xff]
  %v323 = vld [vmem:[%s1 + $0x938] sm:$0xff]
  %v324 = vld [vmem:[%s1 + $0x940] sm:$0xff]
  %v325 = vld [vmem:[%s1 + $0x948] sm:$0xff]
  %v326 = vld [vmem:[%s1 + $0x950] sm:$0xff]
  %v327 = vld [vmem:[%s1 + $0x958] sm:$0xff]
  %v328 = vld [vmem:[%s1 + $0x960] sm:$0xff]
  %v329 = vld [vmem:[%s1 + $0x968] sm:$0xff]
  %v330 = vld [vmem:[%s1 + $0x970] sm:$0xff]
  %v331 = vld [vmem:[%s1 + $0x978] sm:$0xff]
  %v332 = vld [vmem:[%s1 + $0x980] sm:$0xff]
  %v333 = vld [vmem:[%s1 + $0x988] sm:$0xff]
  %v334 = vld [vmem:[%s1 + $0x990] sm:$0xff]
  %v335 = vld [vmem:[%s1 + $0x998] sm:$0xff]
  %v336 = vld [vmem:[%s1 + $0x9a0] sm:$0xff]
  %v337 = vld [vmem:[%s1 + $0x9a8] sm:$0xff]
  %v338 = vld [vmem:[%s1 + $0x9b0] sm:$0xff]
  %v339 = vld [vmem:[%s1 + $0x9b8] sm:$0xff]
  %v340 = vld [vmem:[%s1 + $0x9c0] sm:$0xff]
  %v341 = vld [vmem:[%s1 + $0x9c8] sm:$0xff]
  %v342 = vld [vmem:[%s1 + $0x9d0] sm:$0xff]
  %v343 = vld [vmem:[%s1 + $0x9d8] sm:$0xff]
  %v344 = vld [vmem:[%s1 + $0x9e0] sm:$0xff]
  %v345 = vld [vmem:[%s1 + $0x9e8] sm:$0xff]
  %v346 = vld [vmem:[%s1 + $0x9f0] sm:$0xff]
  %v347 = vld [vmem:[%s1 + $0x9f8] sm:$0xff]
  %v348 = vld [vmem:[%s1 + $0xa00] sm:$0xff]
  %v349 = vld [vmem:[%s1 + $0xa08] sm:$0xff]
  %v350 = vld [vmem:[%s1 + $0xa10] sm:$0xff]
  %v351 = vld [vmem:[%s1 + $0xa18] sm:$0xff]
  %v352 = vld [vmem:[%s1 + $0xa20] sm:$0xff]
  %v353 = vld [vmem:[%s1 + $0xa28] sm:$0xff]
  %v354 = vld [vmem:[%s1 + $0xa30] sm:$0xff]
  %v355 = vld [vmem:[%s1 + $0xa38] sm:$0xff]
  %v356 = vld [vmem:[%s1 + $0xa40] sm:$0xff]
  %v357 = vld [vmem:[%s1 + $0xa48] sm:$0xff]
  %v358 = vld [vmem:[%s1 + $0xa50] sm:$0xff]
  %v359 = vld [vmem:[%s1 + $0xa58] sm:$0xff]
  %v360 = vld [vmem:[%s1 + $0xa60] sm:$0xff]
  %v361 = vld [vmem:[%s1 + $0xa68] sm:$0xff]
  %v362 = vld [vmem:[%s1 + $0xa70] sm:$0xff]
  %v363 = vld [vmem:[%s1 + $0xa78] sm:$0xff]
  %v364 = vld [vmem:[%s1 + $0xa80] sm:$0xff]
  %v365 = vld [vmem:[%s1 + $0xa88] sm:$0xff]
  %v366 = vld [vmem:[%s1 + $0xa90] sm:$0xff]
  %v367 = vld [vmem:[%s1 + $0xa98] sm:$0xff]
  %v368 = vld [vmem:[%s1 + $0xaa0] sm:$0xff]
  %v369 = vld [vmem:[%s1 + $0xaa8] sm:$0xff]
  %v370 = vld [vmem:[%s1 + $0xab0] sm:$0xff]
  %v371 = vld [vmem:[%s1 + $0xab8] sm:$0xff]
  %v372 = vld [vmem:[%s1 + $0xac0] sm:$0xff]
  %v373 = vld [vmem:[%s1 + $0xac8] sm:$0xff]
  %v374 = vld [vmem:[%s1 + $0xad0] sm:$0xff]
  %v375 = vld [vmem:[%s1 + $0xad8] sm:$0xff]
  %v376 = vld [vmem:[%s1 + $0xae0] sm:$0xff]
  %v377 = vld [vmem:[%s1 + $0xae8] sm:$0xff]
  %v378 = vld [vmem:[%s1 + $0xaf0] sm:$0xff]
  %v379 = vld [vmem:[%s1 + $0xaf8] sm:$0xff]
  %v380 = vld [vmem:[%s1 + $0xb00] sm:$0xff]
  %v381 = vld [vmem:[%s1 + $0xb08] sm:$0xff]
  %v382 = vld [vmem:[%s1 + $0xb10] sm:$0xff]
  %v383 = vld [vmem:[%s1 + $0xb18] sm:$0xff]
  %v384 = vld [vmem:[%s1 + $0xb20] sm:$0xff]
  %v385 = vld [vmem:[%s1 + $0xb28] sm:$0xff]
  %v386 = vld [vmem:[%s1 + $0xb30] sm:$0xff]
  %v387 = vld [vmem:[%s1 + $0xb38] sm:$0xff]
  %v388 = vld [vmem:[%s1 + $0xb40] sm:$0xff]
  %v389 = vld [vmem:[%s1 + $0xb48] sm:$0xff]
  %v390 = vld [vmem:[%s1 + $0xb50] sm:$0xff]
  %v391 = vld [vmem:[%s1 + $0xb58] sm:$0xff]
  %v392 = vld [vmem:[%s1 + $0xb60] sm:$0xff]
  %v393 = vld [vmem:[%s1 + $0xb68] sm:$0xff]
  %v394 = vld [vmem:[%s1 + $0xb70] sm:$0xff]
  %v395 = vld [vmem:[%s1 + $0xb78] sm:$0xff]
  %v396 = vld [vmem:[%s1 + $0xb80] sm:$0xff]
  %v397 = vld [vmem:[%s1 + $0xb88] sm:$0xff]
  %v398 = vld [vmem:[%s1 + $0xb90] sm:$0xff]
  %v399 = vld [vmem:[%s1 + $0xb98] sm:$0xff]
  %v400 = vld [vmem:[%s1 + $0xba0] sm:$0xff]
  %v401 = vld [vmem:[%s1 + $0xba8] sm:$0xff]
  %v402 = vld [vmem:[%s1 + $0xbb0] sm:$0xff]
  %v403 = vld [vmem:[%s1 + $0xbb8] sm:$0xff]
  %v404 = vld [vmem:[%s1 + $0xbc0] sm:$0xff]
  %v405 = vld [vmem:[%s1 + $0xbc8] sm:$0xff]
  %v406 = vld [vmem:[%s1 + $0xbd0] sm:$0xff]
  %v407 = vld [vmem:[%s1 + $0xbd8] sm:$0xff]
  %v408 = vld [vmem:[%s1 + $0xbe0] sm:$0xff]
  %v409 = vld [vmem:[%s1 + $0xbe8] sm:$0xff]
  %v410 = vld [vmem:[%s1 + $0xbf0] sm:$0xff]
  %v411 = vld [vmem:[%s1 + $0xbf8] sm:$0xff]
  %v412 = vld [vmem:[%s1 + $0xc00] sm:$0xff]
  %v413 = vld [vmem:[%s1 + $0xc08] sm:$0xff]
  %v414 = vld [vmem:[%s1 + $0xc10] sm:$0xff]
  %v415 = vld [vmem:[%s1 + $0xc18] sm:$0xff]
  %v416 = vld [vmem:[%s1 + $0xc20] sm:$0xff]
  %v417 = vld [vmem:[%s1 + $0xc28] sm:$0xff]
  %v418 = vld [vmem:[%s1 + $0xc30] sm:$0xff]
  %v419 = vld [vmem:[%s1 + $0xc38] sm:$0xff]
  %v420 = vld [vmem:[%s1 + $0xc40] sm:$0xff]
  %v421 = vld [vmem:[%s1 + $0xc48] sm:$0xff]
  %v422 = vld [vmem:[%s1 + $0xc50] sm:$0xff]
  %v423 = vld [vmem:[%s1 + $0xc58] sm:$0xff]
  %v424 = vld [vmem:[%s1 + $0xc60] sm:$0xff]
  %v425 = vld [vmem:[%s1 + $0xc68] sm:$0xff]
  %v426 = vld [vmem:[%s1 + $0xc70] sm:$0xff]
  %v427 = vld [vmem:[%s1 + $0xc78] sm:$0xff]
  %v428 = vld [vmem:[%s1 + $0xc80] sm:$0xff]
  %v429 = vld [vmem:[%s1 + $0xc88] sm:$0xff]
  %v430 = vld [vmem:[%s1 + $0xc90] sm:$0xff]
  %v431 = vld [vmem:[%s1 + $0xc98] sm:$0xff]
  %v432 = vld [vmem:[%s1 + $0xca0] sm:$0xff]
  %v433 = vld [vmem:[%s1 + $0xca8] sm:$0xff]
  %v434 = vld [vmem:[%s1 + $0xcb0] sm:$0xff]
  %v435 = vld [vmem:[%s1 + $0xcb8] sm:$0xff]
  %v436 = vld [vmem:[%s1 + $0xcc0] sm:$0xff]
  %v437 = vld [vmem:[%s1 + $0xcc8] sm:$0xff]
  %v438 = vld [vmem:[%s1 + $0xcd0] sm:$0xff]
  %v439 = vld [vmem:[%s1 + $0xcd8] sm:$0xff]
  %v440 = vld [vmem:[%s1 + $0xce0] sm:$0xff]
  %v441 = vld [vmem:[%s1 + $0xce8] sm:$0xff]
  %v442 = vld [vmem:[%s1 + $0xcf0] sm:$0xff]
  %v443 = vld [vmem:[%s1 + $0xcf8] sm:$0xff]
  %v444 = vld [vmem:[%s1 + $0xd00] sm:$0xff]
  %v445 = vld [vmem:[%s1 + $0xd08] sm:$0xff]
  %v446 = vld [vmem:[%s1 + $0xd10] sm:$0xff]
  %v447 = vld [vmem:[%s1 + $0xd18] sm:$0xff]
  %v448 = vld [vmem:[%s1 + $0xd20] sm:$0xff]
  %v449 = vld [vmem:[%s1 + $0xd28] sm:$0xff]
  %v450 = vld [vmem:[%s1 + $0xd30] sm:$0xff]
  %v451 = vld [vmem:[%s1 + $0xd38] sm:$0xff]
  %v452 = vld [vmem:[%s1 + $0xd40] sm:$0xff]
  %v453 = vld [vmem:[%s1 + $0xd48] sm:$0xff]
  %v454 = vld [vmem:[%s1 + $0xd50] sm:$0xff]
  %v455 = vld [vmem:[%s1 + $0xd58] sm:$0xff]
  %v456 = vld [vmem:[%s1 + $0xd60] sm:$0xff]
  %v457 = vld [vmem:[%s1 + $0xd68] sm:$0xff]
  %v458 = vld [vmem:[%s1 + $0xd70] sm:$0xff]
  %v459 = vld [vmem:[%s1 + $0xd78] sm:$0xff]
  %v460 = vld [vmem:[%s1 + $0xd80] sm:$0xff]
  %v461 = vld [vmem:[%s1 + $0xd88] sm:$0xff]
  %v462 = vld [vmem:[%s1 + $0xd90] sm:$0xff]
  %v463 = vld [vmem:[%s1 + $0xd98] sm:$0xff]
  %v464 = vld [vmem:[%s1 + $0xda0] sm:$0xff]
  %v465 = vld [vmem:[%s1 + $0xda8] sm:$0xff]
  %v466 = vld [vmem:[%s1 + $0xdb0] sm:$0xff]
  %v467 = vld [vmem:[%s1 + $0xdb8] sm:$0xff]
  %v468 = vld [vmem:[%s1 + $0xdc0] sm:$0xff]
  %v469 = vld [vmem:[%s1 + $0xdc8] sm:$0xff]
  %v470 = vld [vmem:[%s1 + $0xdd0] sm:$0xff]
  %v471 = vld [vmem:[%s1 + $0xdd8] sm:$0xff]
  %v472 = vld [vmem:[%s1 + $0xde0] sm:$0xff]
  %v473 = vld [vmem:[%s1 + $0xde8] sm:$0xff]
  %v474 = vld [vmem:[%s1 + $0xdf0] sm:$0xff]
  %v475 = vld [vmem:[%s1 + $0xdf8] sm:$0xff]
  %v476 = vld [vmem:[%s1 + $0xe00] sm:$0xff]
  %v477 = vld [vmem:[%s1 + $0xe08] sm:$0xff]
  %v478 = vld [vmem:[%s1 + $0xe10] sm:$0xff]
  %v479 = vld [vmem:[%s1 + $0xe18] sm:$0xff]
  %v480 = vld [vmem:[%s1 + $0xe20] sm:$0xff]
  %v481 = vld [vmem:[%s1 + $0xe28] sm:$0xff]
  %v482 = vld [vmem:[%s1 + $0xe30] sm:$0xff]
  %v483 = vld [vmem:[%s1 + $0xe38] sm:$0xff]
  %v484 = vld [vmem:[%s1 + $0xe40] sm:$0xff]
  %v485 = vld [vmem:[%s1 + $0xe48] sm:$0xff]
  %v486 = vld [vmem:[%s1 + $0xe50] sm:$0xff]
  %v487 = vld [vmem:[%s1 + $0xe58] sm:$0xff]
  %v488 = vld [vmem:[%s1 + $0xe60] sm:$0xff]
  %v489 = vld [vmem:[%s1 + $0xe68] sm:$0xff]
  %v490 = vld [vmem:[%s1 + $0xe70] sm:$0xff]
  %v491 = vld [vmem:[%s1 + $0xe78] sm:$0xff]
  %v492 = vld [vmem:[%s1 + $0xe80] sm:$0xff]
  %v493 = vld [vmem:[%s1 + $0xe88] sm:$0xff]
  %v494 = vld [vmem:[%s1 + $0xe90] sm:$0xff]
  %v495 = vld [vmem:[%s1 + $0xe98] sm:$0xff]
  %v496 = vld [vmem:[%s1 + $0xea0] sm:$0xff]
  %v497 = vld [vmem:[%s1 + $0xea8] sm:$0xff]
  %v498 = vld [vmem:[%s1 + $0xeb0] sm:$0xff]
  %v499 = vld [vmem:[%s1 + $0xeb8] sm:$0xff]
  %v500 = vld [vmem:[%s1 + $0xec0] sm:$0xff]
  %v501 = vld [vmem:[%s1 + $0xec8] sm:$0xff]
  %v502 = vld [vmem:[%s1 + $0xed0] sm:$0xff]
  %v503 = vld [vmem:[%s1 + $0xed8] sm:$0xff]
  %v504 = vld [vmem:[%s1 + $0xee0] sm:$0xff]
  %v505 = vld [vmem:[%s1 + $0xee8] sm:$0xff]
  %v506 = vld [vmem:[%s1 + $0xef0] sm:$0xff]
  %v507 = vld [vmem:[%s1 + $0xef8] sm:$0xff]
  %v508 = vld [vmem:[%s1 + $0xf00] sm:$0xff]
  %v509 = vld [vmem:[%s1 + $0xf08] sm:$0xff]
  %v510 = vld [vmem:[%s1 + $0xf10] sm:$0xff]
  %v511 = vld [vmem:[%s1 + $0xf18] sm:$0xff]
  %v512 = vld [vmem:[%s1 + $0xf20] sm:$0xff]
  %v513 = vld [vmem:[%s1 + $0xf28] sm:$0xff]
  %v514 = vld [vmem:[%s1 + $0xf30] sm:$0xff]
  %v515 = vld [vmem:[%s1 + $0xf38] sm:$0xff]
  %v516 = vld [vmem:[%s1 + $0xf40] sm:$0xff]
  %v517 = vld [vmem:[%s1 + $0xf48] sm:$0xff]
  %v518 = vld [vmem:[%s1 + $0xf50] sm:$0xff]
  %v519 = vld [vmem:[%s1 + $0xf58] sm:$0xff]
  %v520 = vld [vmem:[%s1 + $0xf60] sm:$0xff]
  %v521 = vld [vmem:[%s1 + $0xf68] sm:$0xff]
  %v522 = vld [vmem:[%s1 + $0xf70] sm:$0xff]
  %v523 = vld [vmem:[%s1 + $0xf78] sm:$0xff]
  %v524 = vld [vmem:[%s1 + $0xf80] sm:$0xff]
  %v525 = vld [vmem:[%s1 + $0xf88] sm:$0xff]
  %v526 = vld [vmem:[%s1 + $0xf90] sm:$0xff]
  %v527 = vld [vmem:[%s1 + $0xf98] sm:$0xff]
  %v528 = vld [vmem:[%s1 + $0xfa0] sm:$0xff]
  %v529 = vld [vmem:[%s1 + $0xfa8] sm:$0xff]
  %v530 = vld [vmem:[%s1 + $0xfb0] sm:$0xff]
  %v531 = vld [vmem:[%s1 + $0xfb8] sm:$0xff]
  %v532 = vld [vmem:[%s1 + $0xfc0] sm:$0xff]
  %v533 = vld [vmem:[%s1 + $0xfc8] sm:$0xff]
  %v534 = vld [vmem:[%s1 + $0xfd0] sm:$0xff]
  %v535 = vld [vmem:[%s1 + $0xfd8] sm:$0xff]
  %v536 = vld [vmem:[%s1 + $0xfe0] sm:$0xff]
  %v537 = vld [vmem:[%s1 + $0xfe8] sm:$0xff]
  %v538 = vld [vmem:[%s1 + $0xff0] sm:$0xff]
  %v539 = vld [vmem:[%s1 + $0xff8] sm:$0xff]
  %541 = vst [vmem:[#allocation1] ss:$9 sm:$0xff] %v24
  %v542 = vld [vmem:[#allocation1] sm:$0xff]
  %v543 = vld [vmem:[#allocation1 + $0x9] sm:$0xff]
  %v544 = vld [vmem:[#allocation1 + $0x12] sm:$0xff]
  %v545 = vld [vmem:[#allocation1 + $0x1b] sm:$0xff]
  %v546 = vld [vmem:[#allocation1 + $0x24] sm:$0xff]
  %v547 = vld [vmem:[#allocation1 + $0x2d] sm:$0xff]
  %v548 = vld [vmem:[#allocation1 + $0x36] sm:$0xff]
  %v549 = vld [vmem:[#allocation1 + $0x3f] sm:$0xff]
  %551 = vst [vmem:[#allocation1] ss:$9 sm:$0xff] %v25
  %v552 = vld [vmem:[#allocation1] sm:$0xff]
  %v553 = vld [vmem:[#allocation1 + $0x9] sm:$0xff]
  %v554 = vld [vmem:[#allocation1 + $0x12] sm:$0xff]
  %v555 = vld [vmem:[#allocation1 + $0x1b] sm:$0xff]
  %v556 = vld [vmem:[#allocation1 + $0x24] sm:$0xff]
  %v557 = vld [vmem:[#allocation1 + $0x2d] sm:$0xff]
  %v558 = vld [vmem:[#allocation1 + $0x36] sm:$0xff]
  %v559 = vld [vmem:[#allocation1 + $0x3f] sm:$0xff]
  %561 = vst [vmem:[#allocation1] ss:$9 sm:$0xff] %v26
  %v562 = vld [vmem:[#allocation1] sm:$0xff]
  %v563 = vld [vmem:[#allocation1 + $0x9] sm:$0xff]
  %v564 = vld [vmem:[#allocation1 + $0x12] sm:$0xff]
  %v565 = vld [vmem:[#allocation1 + $0x1b] sm:$0xff]
  %v566 = vld [vmem:[#allocation1 + $0x24] sm:$0xff]
  %v567 = vld [vmem:[#allocation1 + $0x2d] sm:$0xff]
  %v568 = vld [vmem:[#allocation1 + $0x36] sm:$0xff]
  %v569 = vld [vmem:[#allocation1 + $0x3f] sm:$0xff]
  %571 = vst [vmem:[#allocation1] ss:$9 sm:$0xff] %v27
  %v572 = vld [vmem:[#allocation1] sm:$0xff]
  %v573 = vld [vmem:[#allocation1 + $0x9] sm:$0xff]
  %v574 = vld [vmem:[#allocation1 + $0x12] sm:$0xff]
  %v575 = vld [vmem:[#allocation1 + $0x1b] sm:$0xff]
  %v576 = vld [vmem:[#allocation1 + $0x24] sm:$0xff]
  %v577 = vld [vmem:[#allocation1 + $0x2d] sm:$0xff]
  %v578 = vld [vmem:[#allocation1 + $0x36] sm:$0xff]
  %v579 = vld [vmem:[#allocation1 + $0x3f] sm:$0xff]
  %v1124 = vunpack.c.l.b16 %v28
  %v1125 = vunpack.c.h.b16 %v28
  %v1126 = vunpack.c.l.b16 %v29
  %v1127 = vunpack.c.h.b16 %v29
  %v1128 = vunpack.c.l.b16 %v30
  %v1129 = vunpack.c.h.b16 %v30
  %v1130 = vunpack.c.l.b16 %v31
  %v1131 = vunpack.c.h.b16 %v31
  %v1132 = vunpack.c.l.b16 %v32
  %v1133 = vunpack.c.h.b16 %v32
  %v1134 = vunpack.c.l.b16 %v33
  %v1135 = vunpack.c.h.b16 %v33
  %v1136 = vunpack.c.l.b16 %v34
  %v1137 = vunpack.c.h.b16 %v34
  %v1138 = vunpack.c.l.b16 %v35
  %v1139 = vunpack.c.h.b16 %v35
  %v1140 = vunpack.c.l.b16 %v36
  %v1141 = vunpack.c.h.b16 %v36
  %v1142 = vunpack.c.l.b16 %v37
  %v1143 = vunpack.c.h.b16 %v37
  %v1144 = vunpack.c.l.b16 %v38
  %v1145 = vunpack.c.h.b16 %v38
  %v1146 = vunpack.c.l.b16 %v39
  %v1147 = vunpack.c.h.b16 %v39
  %v1148 = vunpack.c.l.b16 %v40
  %v1149 = vunpack.c.h.b16 %v40
  %v1150 = vunpack.c.l.b16 %v41
  %v1151 = vunpack.c.h.b16 %v41
  %v1152 = vunpack.c.l.b16 %v42
  %v1153 = vunpack.c.h.b16 %v42
  %v1154 = vunpack.c.l.b16 %v43
  %v1155 = vunpack.c.h.b16 %v43
  %v1156 = vunpack.c.l.b16 %v44
  %v1157 = vunpack.c.h.b16 %v44
  %v1158 = vunpack.c.l.b16 %v45
  %v1159 = vunpack.c.h.b16 %v45
  %v1160 = vunpack.c.l.b16 %v46
  %v1161 = vunpack.c.h.b16 %v46
  %v1162 = vunpack.c.l.b16 %v47
  %v1163 = vunpack.c.h.b16 %v47
  %v1164 = vunpack.c.l.b16 %v48
  %v1165 = vunpack.c.h.b16 %v48
  %v1166 = vunpack.c.l.b16 %v49
  %v1167 = vunpack.c.h.b16 %v49
  %v1168 = vunpack.c.l.b16 %v50
  %v1169 = vunpack.c.h.b16 %v50
  %v1170 = vunpack.c.l.b16 %v51
  %v1171 = vunpack.c.h.b16 %v51
  %v1172 = vunpack.c.l.b16 %v52
  %v1173 = vunpack.c.h.b16 %v52
  %v1174 = vunpack.c.l.b16 %v53
  %v1175 = vunpack.c.h.b16 %v53
  %v1176 = vunpack.c.l.b16 %v54
  %v1177 = vunpack.c.h.b16 %v54
  %v1178 = vunpack.c.l.b16 %v55
  %v1179 = vunpack.c.h.b16 %v55
  %v1180 = vunpack.c.l.b16 %v56
  %v1181 = vunpack.c.h.b16 %v56
  %v1182 = vunpack.c.l.b16 %v57
  %v1183 = vunpack.c.h.b16 %v57
  %v1184 = vunpack.c.l.b16 %v58
  %v1185 = vunpack.c.h.b16 %v58
  %v1186 = vunpack.c.l.b16 %v59
  %v1187 = vunpack.c.h.b16 %v59
  %v1188 = vunpack.c.l.b16 %v60
  %v1189 = vunpack.c.h.b16 %v60
  %v1190 = vunpack.c.l.b16 %v61
  %v1191 = vunpack.c.h.b16 %v61
  %v1192 = vunpack.c.l.b16 %v62
  %v1193 = vunpack.c.h.b16 %v62
  %v1194 = vunpack.c.l.b16 %v63
  %v1195 = vunpack.c.h.b16 %v63
  %v1196 = vunpack.c.l.b16 %v64
  %v1197 = vunpack.c.h.b16 %v64
  %v1198 = vunpack.c.l.b16 %v65
  %v1199 = vunpack.c.h.b16 %v65
  %v1200 = vunpack.c.l.b16 %v66
  %v1201 = vunpack.c.h.b16 %v66
  %v1202 = vunpack.c.l.b16 %v67
  %v1203 = vunpack.c.h.b16 %v67
  %v1204 = vunpack.c.l.b16 %v68
  %v1205 = vunpack.c.h.b16 %v68
  %v1206 = vunpack.c.l.b16 %v69
  %v1207 = vunpack.c.h.b16 %v69
  %v1208 = vunpack.c.l.b16 %v70
  %v1209 = vunpack.c.h.b16 %v70
  %v1210 = vunpack.c.l.b16 %v71
  %v1211 = vunpack.c.h.b16 %v71
  %v1212 = vunpack.c.l.b16 %v72
  %v1213 = vunpack.c.h.b16 %v72
  %v1214 = vunpack.c.l.b16 %v73
  %v1215 = vunpack.c.h.b16 %v73
  %v1216 = vunpack.c.l.b16 %v74
  %v1217 = vunpack.c.h.b16 %v74
  %v1218 = vunpack.c.l.b16 %v75
  %v1219 = vunpack.c.h.b16 %v75
  %v1220 = vunpack.c.l.b16 %v76
  %v1221 = vunpack.c.h.b16 %v76
  %v1222 = vunpack.c.l.b16 %v77
  %v1223 = vunpack.c.h.b16 %v77
  %v1224 = vunpack.c.l.b16 %v78
  %v1225 = vunpack.c.h.b16 %v78
  %v1226 = vunpack.c.l.b16 %v79
  %v1227 = vunpack.c.h.b16 %v79
  %v1228 = vunpack.c.l.b16 %v80
  %v1229 = vunpack.c.h.b16 %v80
  %v1230 = vunpack.c.l.b16 %v81
  %v1231 = vunpack.c.h.b16 %v81
  %v1232 = vunpack.c.l.b16 %v82
  %v1233 = vunpack.c.h.b16 %v82
  %v1234 = vunpack.c.l.b16 %v83
  %v1235 = vunpack.c.h.b16 %v83
  %v1236 = vunpack.c.l.b16 %v84
  %v1237 = vunpack.c.h.b16 %v84
  %v1238 = vunpack.c.l.b16 %v85
  %v1239 = vunpack.c.h.b16 %v85
  %v1240 = vunpack.c.l.b16 %v86
  %v1241 = vunpack.c.h.b16 %v86
  %v1242 = vunpack.c.l.b16 %v87
  %v1243 = vunpack.c.h.b16 %v87
  %v1244 = vunpack.c.l.b16 %v88
  %v1245 = vunpack.c.h.b16 %v88
  %v1246 = vunpack.c.l.b16 %v89
  %v1247 = vunpack.c.h.b16 %v89
  %v1248 = vunpack.c.l.b16 %v90
  %v1249 = vunpack.c.h.b16 %v90
  %v1250 = vunpack.c.l.b16 %v91
  %v1251 = vunpack.c.h.b16 %v91
  %v1252 = vunpack.c.l.b16 %v92
  %v1253 = vunpack.c.h.b16 %v92
  %v1254 = vunpack.c.l.b16 %v93
  %v1255 = vunpack.c.h.b16 %v93
  %v1256 = vunpack.c.l.b16 %v94
  %v1257 = vunpack.c.h.b16 %v94
  %v1258 = vunpack.c.l.b16 %v95
  %v1259 = vunpack.c.h.b16 %v95
  %v1260 = vunpack.c.l.b16 %v96
  %v1261 = vunpack.c.h.b16 %v96
  %v1262 = vunpack.c.l.b16 %v97
  %v1263 = vunpack.c.h.b16 %v97
  %v1264 = vunpack.c.l.b16 %v98
  %v1265 = vunpack.c.h.b16 %v98
  %v1266 = vunpack.c.l.b16 %v99
  %v1267 = vunpack.c.h.b16 %v99
  %v1268 = vunpack.c.l.b16 %v100
  %v1269 = vunpack.c.h.b16 %v100
  %v1270 = vunpack.c.l.b16 %v101
  %v1271 = vunpack.c.h.b16 %v101
  %v1272 = vunpack.c.l.b16 %v102
  %v1273 = vunpack.c.h.b16 %v102
  %v1274 = vunpack.c.l.b16 %v103
  %v1275 = vunpack.c.h.b16 %v103
  %v1276 = vunpack.c.l.b16 %v104
  %v1277 = vunpack.c.h.b16 %v104
  %v1278 = vunpack.c.l.b16 %v105
  %v1279 = vunpack.c.h.b16 %v105
  %v1280 = vunpack.c.l.b16 %v106
  %v1281 = vunpack.c.h.b16 %v106
  %v1282 = vunpack.c.l.b16 %v107
  %v1283 = vunpack.c.h.b16 %v107
  %v1284 = vunpack.c.l.b16 %v108
  %v1285 = vunpack.c.h.b16 %v108
  %v1286 = vunpack.c.l.b16 %v109
  %v1287 = vunpack.c.h.b16 %v109
  %v1288 = vunpack.c.l.b16 %v110
  %v1289 = vunpack.c.h.b16 %v110
  %v1290 = vunpack.c.l.b16 %v111
  %v1291 = vunpack.c.h.b16 %v111
  %v1292 = vunpack.c.l.b16 %v112
  %v1293 = vunpack.c.h.b16 %v112
  %v1294 = vunpack.c.l.b16 %v113
  %v1295 = vunpack.c.h.b16 %v113
  %v1296 = vunpack.c.l.b16 %v114
  %v1297 = vunpack.c.h.b16 %v114
  %v1298 = vunpack.c.l.b16 %v115
  %v1299 = vunpack.c.h.b16 %v115
  %v1300 = vunpack.c.l.b16 %v116
  %v1301 = vunpack.c.h.b16 %v116
  %v1302 = vunpack.c.l.b16 %v117
  %v1303 = vunpack.c.h.b16 %v117
  %v1304 = vunpack.c.l.b16 %v118
  %v1305 = vunpack.c.h.b16 %v118
  %v1306 = vunpack.c.l.b16 %v119
  %v1307 = vunpack.c.h.b16 %v119
  %v1308 = vunpack.c.l.b16 %v120
  %v1309 = vunpack.c.h.b16 %v120
  %v1310 = vunpack.c.l.b16 %v121
  %v1311 = vunpack.c.h.b16 %v121
  %v1312 = vunpack.c.l.b16 %v122
  %v1313 = vunpack.c.h.b16 %v122
  %v1314 = vunpack.c.l.b16 %v123
  %v1315 = vunpack.c.h.b16 %v123
  %v1316 = vunpack.c.l.b16 %v124
  %v1317 = vunpack.c.h.b16 %v124
  %v1318 = vunpack.c.l.b16 %v125
  %v1319 = vunpack.c.h.b16 %v125
  %v1320 = vunpack.c.l.b16 %v126
  %v1321 = vunpack.c.h.b16 %v126
  %v1322 = vunpack.c.l.b16 %v127
  %v1323 = vunpack.c.h.b16 %v127
  %v1324 = vunpack.c.l.b16 %v128
  %v1325 = vunpack.c.h.b16 %v128
  %v1326 = vunpack.c.l.b16 %v129
  %v1327 = vunpack.c.h.b16 %v129
  %v1328 = vunpack.c.l.b16 %v130
  %v1329 = vunpack.c.h.b16 %v130
  %v1330 = vunpack.c.l.b16 %v131
  %v1331 = vunpack.c.h.b16 %v131
  %v1332 = vunpack.c.l.b16 %v132
  %v1333 = vunpack.c.h.b16 %v132
  %v1334 = vunpack.c.l.b16 %v133
  %v1335 = vunpack.c.h.b16 %v133
  %v1336 = vunpack.c.l.b16 %v134
  %v1337 = vunpack.c.h.b16 %v134
  %v1338 = vunpack.c.l.b16 %v135
  %v1339 = vunpack.c.h.b16 %v135
  %v1340 = vunpack.c.l.b16 %v136
  %v1341 = vunpack.c.h.b16 %v136
  %v1342 = vunpack.c.l.b16 %v137
  %v1343 = vunpack.c.h.b16 %v137
  %v1344 = vunpack.c.l.b16 %v138
  %v1345 = vunpack.c.h.b16 %v138
  %v1346 = vunpack.c.l.b16 %v139
  %v1347 = vunpack.c.h.b16 %v139
  %v1348 = vunpack.c.l.b16 %v140
  %v1349 = vunpack.c.h.b16 %v140
  %v1350 = vunpack.c.l.b16 %v141
  %v1351 = vunpack.c.h.b16 %v141
  %v1352 = vunpack.c.l.b16 %v142
  %v1353 = vunpack.c.h.b16 %v142
  %v1354 = vunpack.c.l.b16 %v143
  %v1355 = vunpack.c.h.b16 %v143
  %v1356 = vunpack.c.l.b16 %v144
  %v1357 = vunpack.c.h.b16 %v144
  %v1358 = vunpack.c.l.b16 %v145
  %v1359 = vunpack.c.h.b16 %v145
  %v1360 = vunpack.c.l.b16 %v146
  %v1361 = vunpack.c.h.b16 %v146
  %v1362 = vunpack.c.l.b16 %v147
  %v1363 = vunpack.c.h.b16 %v147
  %v1364 = vunpack.c.l.b16 %v148
  %v1365 = vunpack.c.h.b16 %v148
  %v1366 = vunpack.c.l.b16 %v149
  %v1367 = vunpack.c.h.b16 %v149
  %v1368 = vunpack.c.l.b16 %v150
  %v1369 = vunpack.c.h.b16 %v150
  %v1370 = vunpack.c.l.b16 %v151
  %v1371 = vunpack.c.h.b16 %v151
  %v1372 = vunpack.c.l.b16 %v152
  %v1373 = vunpack.c.h.b16 %v152
  %v1374 = vunpack.c.l.b16 %v153
  %v1375 = vunpack.c.h.b16 %v153
  %v1376 = vunpack.c.l.b16 %v154
  %v1377 = vunpack.c.h.b16 %v154
  %v1378 = vunpack.c.l.b16 %v155
  %v1379 = vunpack.c.h.b16 %v155
  %v1380 = vunpack.c.l.b16 %v156
  %v1381 = vunpack.c.h.b16 %v156
  %v1382 = vunpack.c.l.b16 %v157
  %v1383 = vunpack.c.h.b16 %v157
  %v1384 = vunpack.c.l.b16 %v158
  %v1385 = vunpack.c.h.b16 %v158
  %v1386 = vunpack.c.l.b16 %v159
  %v1387 = vunpack.c.h.b16 %v159
  %v1388 = vunpack.c.l.b16 %v160
  %v1389 = vunpack.c.h.b16 %v160
  %v1390 = vunpack.c.l.b16 %v161
  %v1391 = vunpack.c.h.b16 %v161
  %v1392 = vunpack.c.l.b16 %v162
  %v1393 = vunpack.c.h.b16 %v162
  %v1394 = vunpack.c.l.b16 %v163
  %v1395 = vunpack.c.h.b16 %v163
  %v1396 = vunpack.c.l.b16 %v164
  %v1397 = vunpack.c.h.b16 %v164
  %v1398 = vunpack.c.l.b16 %v165
  %v1399 = vunpack.c.h.b16 %v165
  %v1400 = vunpack.c.l.b16 %v166
  %v1401 = vunpack.c.h.b16 %v166
  %v1402 = vunpack.c.l.b16 %v167
  %v1403 = vunpack.c.h.b16 %v167
  %v1404 = vunpack.c.l.b16 %v168
  %v1405 = vunpack.c.h.b16 %v168
  %v1406 = vunpack.c.l.b16 %v169
  %v1407 = vunpack.c.h.b16 %v169
  %v1408 = vunpack.c.l.b16 %v170
  %v1409 = vunpack.c.h.b16 %v170
  %v1410 = vunpack.c.l.b16 %v171
  %v1411 = vunpack.c.h.b16 %v171
  %v1412 = vunpack.c.l.b16 %v172
  %v1413 = vunpack.c.h.b16 %v172
  %v1414 = vunpack.c.l.b16 %v173
  %v1415 = vunpack.c.h.b16 %v173
  %v1416 = vunpack.c.l.b16 %v174
  %v1417 = vunpack.c.h.b16 %v174
  %v1418 = vunpack.c.l.b16 %v175
  %v1419 = vunpack.c.h.b16 %v175
  %v1420 = vunpack.c.l.b16 %v176
  %v1421 = vunpack.c.h.b16 %v176
  %v1422 = vunpack.c.l.b16 %v177
  %v1423 = vunpack.c.h.b16 %v177
  %v1424 = vunpack.c.l.b16 %v178
  %v1425 = vunpack.c.h.b16 %v178
  %v1426 = vunpack.c.l.b16 %v179
  %v1427 = vunpack.c.h.b16 %v179
  %v1428 = vunpack.c.l.b16 %v180
  %v1429 = vunpack.c.h.b16 %v180
  %v1430 = vunpack.c.l.b16 %v181
  %v1431 = vunpack.c.h.b16 %v181
  %v1432 = vunpack.c.l.b16 %v182
  %v1433 = vunpack.c.h.b16 %v182
  %v1434 = vunpack.c.l.b16 %v183
  %v1435 = vunpack.c.h.b16 %v183
  %v1436 = vunpack.c.l.b16 %v184
  %v1437 = vunpack.c.h.b16 %v184
  %v1438 = vunpack.c.l.b16 %v185
  %v1439 = vunpack.c.h.b16 %v185
  %v1440 = vunpack.c.l.b16 %v186
  %v1441 = vunpack.c.h.b16 %v186
  %v1442 = vunpack.c.l.b16 %v187
  %v1443 = vunpack.c.h.b16 %v187
  %v1444 = vunpack.c.l.b16 %v188
  %v1445 = vunpack.c.h.b16 %v188
  %v1446 = vunpack.c.l.b16 %v189
  %v1447 = vunpack.c.h.b16 %v189
  %v1448 = vunpack.c.l.b16 %v190
  %v1449 = vunpack.c.h.b16 %v190
  %v1450 = vunpack.c.l.b16 %v191
  %v1451 = vunpack.c.h.b16 %v191
  %v1452 = vunpack.c.l.b16 %v192
  %v1453 = vunpack.c.h.b16 %v192
  %v1454 = vunpack.c.l.b16 %v193
  %v1455 = vunpack.c.h.b16 %v193
  %v1456 = vunpack.c.l.b16 %v194
  %v1457 = vunpack.c.h.b16 %v194
  %v1458 = vunpack.c.l.b16 %v195
  %v1459 = vunpack.c.h.b16 %v195
  %v1460 = vunpack.c.l.b16 %v196
  %v1461 = vunpack.c.h.b16 %v196
  %v1462 = vunpack.c.l.b16 %v197
  %v1463 = vunpack.c.h.b16 %v197
  %v1464 = vunpack.c.l.b16 %v198
  %v1465 = vunpack.c.h.b16 %v198
  %v1466 = vunpack.c.l.b16 %v199
  %v1467 = vunpack.c.h.b16 %v199
  %v1468 = vunpack.c.l.b16 %v200
  %v1469 = vunpack.c.h.b16 %v200
  %v1470 = vunpack.c.l.b16 %v201
  %v1471 = vunpack.c.h.b16 %v201
  %v1472 = vunpack.c.l.b16 %v202
  %v1473 = vunpack.c.h.b16 %v202
  %v1474 = vunpack.c.l.b16 %v203
  %v1475 = vunpack.c.h.b16 %v203
  %v1476 = vunpack.c.l.b16 %v204
  %v1477 = vunpack.c.h.b16 %v204
  %v1478 = vunpack.c.l.b16 %v205
  %v1479 = vunpack.c.h.b16 %v205
  %v1480 = vunpack.c.l.b16 %v206
  %v1481 = vunpack.c.h.b16 %v206
  %v1482 = vunpack.c.l.b16 %v207
  %v1483 = vunpack.c.h.b16 %v207
  %v1484 = vunpack.c.l.b16 %v208
  %v1485 = vunpack.c.h.b16 %v208
  %v1486 = vunpack.c.l.b16 %v209
  %v1487 = vunpack.c.h.b16 %v209
  %v1488 = vunpack.c.l.b16 %v210
  %v1489 = vunpack.c.h.b16 %v210
  %v1490 = vunpack.c.l.b16 %v211
  %v1491 = vunpack.c.h.b16 %v211
  %v1492 = vunpack.c.l.b16 %v212
  %v1493 = vunpack.c.h.b16 %v212
  %v1494 = vunpack.c.l.b16 %v213
  %v1495 = vunpack.c.h.b16 %v213
  %v1496 = vunpack.c.l.b16 %v214
  %v1497 = vunpack.c.h.b16 %v214
  %v1498 = vunpack.c.l.b16 %v215
  %v1499 = vunpack.c.h.b16 %v215
  %v1500 = vunpack.c.l.b16 %v216
  %v1501 = vunpack.c.h.b16 %v216
  %v1502 = vunpack.c.l.b16 %v217
  %v1503 = vunpack.c.h.b16 %v217
  %v1504 = vunpack.c.l.b16 %v218
  %v1505 = vunpack.c.h.b16 %v218
  %v1506 = vunpack.c.l.b16 %v219
  %v1507 = vunpack.c.h.b16 %v219
  %v1508 = vunpack.c.l.b16 %v220
  %v1509 = vunpack.c.h.b16 %v220
  %v1510 = vunpack.c.l.b16 %v221
  %v1511 = vunpack.c.h.b16 %v221
  %v1512 = vunpack.c.l.b16 %v222
  %v1513 = vunpack.c.h.b16 %v222
  %v1514 = vunpack.c.l.b16 %v223
  %v1515 = vunpack.c.h.b16 %v223
  %v1516 = vunpack.c.l.b16 %v224
  %v1517 = vunpack.c.h.b16 %v224
  %v1518 = vunpack.c.l.b16 %v225
  %v1519 = vunpack.c.h.b16 %v225
  %v1520 = vunpack.c.l.b16 %v226
  %v1521 = vunpack.c.h.b16 %v226
  %v1522 = vunpack.c.l.b16 %v227
  %v1523 = vunpack.c.h.b16 %v227
  %v1524 = vunpack.c.l.b16 %v228
  %v1525 = vunpack.c.h.b16 %v228
  %v1526 = vunpack.c.l.b16 %v229
  %v1527 = vunpack.c.h.b16 %v229
  %v1528 = vunpack.c.l.b16 %v230
  %v1529 = vunpack.c.h.b16 %v230
  %v1530 = vunpack.c.l.b16 %v231
  %v1531 = vunpack.c.h.b16 %v231
  %v1532 = vunpack.c.l.b16 %v232
  %v1533 = vunpack.c.h.b16 %v232
  %v1534 = vunpack.c.l.b16 %v233
  %v1535 = vunpack.c.h.b16 %v233
  %v1536 = vunpack.c.l.b16 %v234
  %v1537 = vunpack.c.h.b16 %v234
  %v1538 = vunpack.c.l.b16 %v235
  %v1539 = vunpack.c.h.b16 %v235
  %v1540 = vunpack.c.l.b16 %v236
  %v1541 = vunpack.c.h.b16 %v236
  %v1542 = vunpack.c.l.b16 %v237
  %v1543 = vunpack.c.h.b16 %v237
  %v1544 = vunpack.c.l.b16 %v238
  %v1545 = vunpack.c.h.b16 %v238
  %v1546 = vunpack.c.l.b16 %v239
  %v1547 = vunpack.c.h.b16 %v239
  %v1548 = vunpack.c.l.b16 %v240
  %v1549 = vunpack.c.h.b16 %v240
  %v1550 = vunpack.c.l.b16 %v241
  %v1551 = vunpack.c.h.b16 %v241
  %v1552 = vunpack.c.l.b16 %v242
  %v1553 = vunpack.c.h.b16 %v242
  %v1554 = vunpack.c.l.b16 %v243
  %v1555 = vunpack.c.h.b16 %v243
  %v1556 = vunpack.c.l.b16 %v244
  %v1557 = vunpack.c.h.b16 %v244
  %v1558 = vunpack.c.l.b16 %v245
  %v1559 = vunpack.c.h.b16 %v245
  %v1560 = vunpack.c.l.b16 %v246
  %v1561 = vunpack.c.h.b16 %v246
  %v1562 = vunpack.c.l.b16 %v247
  %v1563 = vunpack.c.h.b16 %v247
  %v1564 = vunpack.c.l.b16 %v248
  %v1565 = vunpack.c.h.b16 %v248
  %v1566 = vunpack.c.l.b16 %v249
  %v1567 = vunpack.c.h.b16 %v249
  %v1568 = vunpack.c.l.b16 %v250
  %v1569 = vunpack.c.h.b16 %v250
  %v1570 = vunpack.c.l.b16 %v251
  %v1571 = vunpack.c.h.b16 %v251
  %v1572 = vunpack.c.l.b16 %v252
  %v1573 = vunpack.c.h.b16 %v252
  %v1574 = vunpack.c.l.b16 %v253
  %v1575 = vunpack.c.h.b16 %v253
  %v1576 = vunpack.c.l.b16 %v254
  %v1577 = vunpack.c.h.b16 %v254
  %v1578 = vunpack.c.l.b16 %v255
  %v1579 = vunpack.c.h.b16 %v255
  %v1580 = vunpack.c.l.b16 %v256
  %v1581 = vunpack.c.h.b16 %v256
  %v1582 = vunpack.c.l.b16 %v257
  %v1583 = vunpack.c.h.b16 %v257
  %v1584 = vunpack.c.l.b16 %v258
  %v1585 = vunpack.c.h.b16 %v258
  %v1586 = vunpack.c.l.b16 %v259
  %v1587 = vunpack.c.h.b16 %v259
  %v1588 = vunpack.c.l.b16 %v260
  %v1589 = vunpack.c.h.b16 %v260
  %v1590 = vunpack.c.l.b16 %v261
  %v1591 = vunpack.c.h.b16 %v261
  %v1592 = vunpack.c.l.b16 %v262
  %v1593 = vunpack.c.h.b16 %v262
  %v1594 = vunpack.c.l.b16 %v263
  %v1595 = vunpack.c.h.b16 %v263
  %v1596 = vunpack.c.l.b16 %v264
  %v1597 = vunpack.c.h.b16 %v264
  %v1598 = vunpack.c.l.b16 %v265
  %v1599 = vunpack.c.h.b16 %v265
  %v1600 = vunpack.c.l.b16 %v266
  %v1601 = vunpack.c.h.b16 %v266
  %v1602 = vunpack.c.l.b16 %v267
  %v1603 = vunpack.c.h.b16 %v267
  %v1604 = vunpack.c.l.b16 %v268
  %v1605 = vunpack.c.h.b16 %v268
  %v1606 = vunpack.c.l.b16 %v269
  %v1607 = vunpack.c.h.b16 %v269
  %v1608 = vunpack.c.l.b16 %v270
  %v1609 = vunpack.c.h.b16 %v270
  %v1610 = vunpack.c.l.b16 %v271
  %v1611 = vunpack.c.h.b16 %v271
  %v1612 = vunpack.c.l.b16 %v272
  %v1613 = vunpack.c.h.b16 %v272
  %v1614 = vunpack.c.l.b16 %v273
  %v1615 = vunpack.c.h.b16 %v273
  %v1616 = vunpack.c.l.b16 %v274
  %v1617 = vunpack.c.h.b16 %v274
  %v1618 = vunpack.c.l.b16 %v275
  %v1619 = vunpack.c.h.b16 %v275
  %v1620 = vunpack.c.l.b16 %v276
  %v1621 = vunpack.c.h.b16 %v276
  %v1622 = vunpack.c.l.b16 %v277
  %v1623 = vunpack.c.h.b16 %v277
  %v1624 = vunpack.c.l.b16 %v278
  %v1625 = vunpack.c.h.b16 %v278
  %v1626 = vunpack.c.l.b16 %v279
  %v1627 = vunpack.c.h.b16 %v279
  %v1628 = vunpack.c.l.b16 %v280
  %v1629 = vunpack.c.h.b16 %v280
  %v1630 = vunpack.c.l.b16 %v281
  %v1631 = vunpack.c.h.b16 %v281
  %v1632 = vunpack.c.l.b16 %v282
  %v1633 = vunpack.c.h.b16 %v282
  %v1634 = vunpack.c.l.b16 %v283
  %v1635 = vunpack.c.h.b16 %v283
  %v1636 = vunpack.c.l.b16 %v284
  %v1637 = vunpack.c.h.b16 %v284
  %v1638 = vunpack.c.l.b16 %v285
  %v1639 = vunpack.c.h.b16 %v285
  %v1640 = vunpack.c.l.b16 %v286
  %v1641 = vunpack.c.h.b16 %v286
  %v1642 = vunpack.c.l.b16 %v287
  %v1643 = vunpack.c.h.b16 %v287
  %v1644 = vunpack.c.l.b16 %v288
  %v1645 = vunpack.c.h.b16 %v288
  %v1646 = vunpack.c.l.b16 %v289
  %v1647 = vunpack.c.h.b16 %v289
  %v1648 = vunpack.c.l.b16 %v290
  %v1649 = vunpack.c.h.b16 %v290
  %v1650 = vunpack.c.l.b16 %v291
  %v1651 = vunpack.c.h.b16 %v291
  %v1652 = vunpack.c.l.b16 %v292
  %v1653 = vunpack.c.h.b16 %v292
  %v1654 = vunpack.c.l.b16 %v293
  %v1655 = vunpack.c.h.b16 %v293
  %v1656 = vunpack.c.l.b16 %v294
  %v1657 = vunpack.c.h.b16 %v294
  %v1658 = vunpack.c.l.b16 %v295
  %v1659 = vunpack.c.h.b16 %v295
  %v1660 = vunpack.c.l.b16 %v296
  %v1661 = vunpack.c.h.b16 %v296
  %v1662 = vunpack.c.l.b16 %v297
  %v1663 = vunpack.c.h.b16 %v297
  %v1664 = vunpack.c.l.b16 %v298
  %v1665 = vunpack.c.h.b16 %v298
  %v1666 = vunpack.c.l.b16 %v299
  %v1667 = vunpack.c.h.b16 %v299
  %v1668 = vunpack.c.l.b16 %v300
  %v1669 = vunpack.c.h.b16 %v300
  %v1670 = vunpack.c.l.b16 %v301
  %v1671 = vunpack.c.h.b16 %v301
  %v1672 = vunpack.c.l.b16 %v302
  %v1673 = vunpack.c.h.b16 %v302
  %v1674 = vunpack.c.l.b16 %v303
  %v1675 = vunpack.c.h.b16 %v303
  %v1676 = vunpack.c.l.b16 %v304
  %v1677 = vunpack.c.h.b16 %v304
  %v1678 = vunpack.c.l.b16 %v305
  %v1679 = vunpack.c.h.b16 %v305
  %v1680 = vunpack.c.l.b16 %v306
  %v1681 = vunpack.c.h.b16 %v306
  %v1682 = vunpack.c.l.b16 %v307
  %v1683 = vunpack.c.h.b16 %v307
  %v1684 = vunpack.c.l.b16 %v308
  %v1685 = vunpack.c.h.b16 %v308
  %v1686 = vunpack.c.l.b16 %v309
  %v1687 = vunpack.c.h.b16 %v309
  %v1688 = vunpack.c.l.b16 %v310
  %v1689 = vunpack.c.h.b16 %v310
  %v1690 = vunpack.c.l.b16 %v311
  %v1691 = vunpack.c.h.b16 %v311
  %v1692 = vunpack.c.l.b16 %v312
  %v1693 = vunpack.c.h.b16 %v312
  %v1694 = vunpack.c.l.b16 %v313
  %v1695 = vunpack.c.h.b16 %v313
  %v1696 = vunpack.c.l.b16 %v314
  %v1697 = vunpack.c.h.b16 %v314
  %v1698 = vunpack.c.l.b16 %v315
  %v1699 = vunpack.c.h.b16 %v315
  %v1700 = vunpack.c.l.b16 %v316
  %v1701 = vunpack.c.h.b16 %v316
  %v1702 = vunpack.c.l.b16 %v317
  %v1703 = vunpack.c.h.b16 %v317
  %v1704 = vunpack.c.l.b16 %v318
  %v1705 = vunpack.c.h.b16 %v318
  %v1706 = vunpack.c.l.b16 %v319
  %v1707 = vunpack.c.h.b16 %v319
  %v1708 = vunpack.c.l.b16 %v320
  %v1709 = vunpack.c.h.b16 %v320
  %v1710 = vunpack.c.l.b16 %v321
  %v1711 = vunpack.c.h.b16 %v321
  %v1712 = vunpack.c.l.b16 %v322
  %v1713 = vunpack.c.h.b16 %v322
  %v1714 = vunpack.c.l.b16 %v323
  %v1715 = vunpack.c.h.b16 %v323
  %v1716 = vunpack.c.l.b16 %v324
  %v1717 = vunpack.c.h.b16 %v324
  %v1718 = vunpack.c.l.b16 %v325
  %v1719 = vunpack.c.h.b16 %v325
  %v1720 = vunpack.c.l.b16 %v326
  %v1721 = vunpack.c.h.b16 %v326
  %v1722 = vunpack.c.l.b16 %v327
  %v1723 = vunpack.c.h.b16 %v327
  %v1724 = vunpack.c.l.b16 %v328
  %v1725 = vunpack.c.h.b16 %v328
  %v1726 = vunpack.c.l.b16 %v329
  %v1727 = vunpack.c.h.b16 %v329
  %v1728 = vunpack.c.l.b16 %v330
  %v1729 = vunpack.c.h.b16 %v330
  %v1730 = vunpack.c.l.b16 %v331
  %v1731 = vunpack.c.h.b16 %v331
  %v1732 = vunpack.c.l.b16 %v332
  %v1733 = vunpack.c.h.b16 %v332
  %v1734 = vunpack.c.l.b16 %v333
  %v1735 = vunpack.c.h.b16 %v333
  %v1736 = vunpack.c.l.b16 %v334
  %v1737 = vunpack.c.h.b16 %v334
  %v1738 = vunpack.c.l.b16 %v335
  %v1739 = vunpack.c.h.b16 %v335
  %v1740 = vunpack.c.l.b16 %v336
  %v1741 = vunpack.c.h.b16 %v336
  %v1742 = vunpack.c.l.b16 %v337
  %v1743 = vunpack.c.h.b16 %v337
  %v1744 = vunpack.c.l.b16 %v338
  %v1745 = vunpack.c.h.b16 %v338
  %v1746 = vunpack.c.l.b16 %v339
  %v1747 = vunpack.c.h.b16 %v339
  %v1748 = vunpack.c.l.b16 %v340
  %v1749 = vunpack.c.h.b16 %v340
  %v1750 = vunpack.c.l.b16 %v341
  %v1751 = vunpack.c.h.b16 %v341
  %v1752 = vunpack.c.l.b16 %v342
  %v1753 = vunpack.c.h.b16 %v342
  %v1754 = vunpack.c.l.b16 %v343
  %v1755 = vunpack.c.h.b16 %v343
  %v1756 = vunpack.c.l.b16 %v344
  %v1757 = vunpack.c.h.b16 %v344
  %v1758 = vunpack.c.l.b16 %v345
  %v1759 = vunpack.c.h.b16 %v345
  %v1760 = vunpack.c.l.b16 %v346
  %v1761 = vunpack.c.h.b16 %v346
  %v1762 = vunpack.c.l.b16 %v347
  %v1763 = vunpack.c.h.b16 %v347
  %v1764 = vunpack.c.l.b16 %v348
  %v1765 = vunpack.c.h.b16 %v348
  %v1766 = vunpack.c.l.b16 %v349
  %v1767 = vunpack.c.h.b16 %v349
  %v1768 = vunpack.c.l.b16 %v350
  %v1769 = vunpack.c.h.b16 %v350
  %v1770 = vunpack.c.l.b16 %v351
  %v1771 = vunpack.c.h.b16 %v351
  %v1772 = vunpack.c.l.b16 %v352
  %v1773 = vunpack.c.h.b16 %v352
  %v1774 = vunpack.c.l.b16 %v353
  %v1775 = vunpack.c.h.b16 %v353
  %v1776 = vunpack.c.l.b16 %v354
  %v1777 = vunpack.c.h.b16 %v354
  %v1778 = vunpack.c.l.b16 %v355
  %v1779 = vunpack.c.h.b16 %v355
  %v1780 = vunpack.c.l.b16 %v356
  %v1781 = vunpack.c.h.b16 %v356
  %v1782 = vunpack.c.l.b16 %v357
  %v1783 = vunpack.c.h.b16 %v357
  %v1784 = vunpack.c.l.b16 %v358
  %v1785 = vunpack.c.h.b16 %v358
  %v1786 = vunpack.c.l.b16 %v359
  %v1787 = vunpack.c.h.b16 %v359
  %v1788 = vunpack.c.l.b16 %v360
  %v1789 = vunpack.c.h.b16 %v360
  %v1790 = vunpack.c.l.b16 %v361
  %v1791 = vunpack.c.h.b16 %v361
  %v1792 = vunpack.c.l.b16 %v362
  %v1793 = vunpack.c.h.b16 %v362
  %v1794 = vunpack.c.l.b16 %v363
  %v1795 = vunpack.c.h.b16 %v363
  %v1796 = vunpack.c.l.b16 %v364
  %v1797 = vunpack.c.h.b16 %v364
  %v1798 = vunpack.c.l.b16 %v365
  %v1799 = vunpack.c.h.b16 %v365
  %v1800 = vunpack.c.l.b16 %v366
  %v1801 = vunpack.c.h.b16 %v366
  %v1802 = vunpack.c.l.b16 %v367
  %v1803 = vunpack.c.h.b16 %v367
  %v1804 = vunpack.c.l.b16 %v368
  %v1805 = vunpack.c.h.b16 %v368
  %v1806 = vunpack.c.l.b16 %v369
  %v1807 = vunpack.c.h.b16 %v369
  %v1808 = vunpack.c.l.b16 %v370
  %v1809 = vunpack.c.h.b16 %v370
  %v1810 = vunpack.c.l.b16 %v371
  %v1811 = vunpack.c.h.b16 %v371
  %v1812 = vunpack.c.l.b16 %v372
  %v1813 = vunpack.c.h.b16 %v372
  %v1814 = vunpack.c.l.b16 %v373
  %v1815 = vunpack.c.h.b16 %v373
  %v1816 = vunpack.c.l.b16 %v374
  %v1817 = vunpack.c.h.b16 %v374
  %v1818 = vunpack.c.l.b16 %v375
  %v1819 = vunpack.c.h.b16 %v375
  %v1820 = vunpack.c.l.b16 %v376
  %v1821 = vunpack.c.h.b16 %v376
  %v1822 = vunpack.c.l.b16 %v377
  %v1823 = vunpack.c.h.b16 %v377
  %v1824 = vunpack.c.l.b16 %v378
  %v1825 = vunpack.c.h.b16 %v378
  %v1826 = vunpack.c.l.b16 %v379
  %v1827 = vunpack.c.h.b16 %v379
  %v1828 = vunpack.c.l.b16 %v380
  %v1829 = vunpack.c.h.b16 %v380
  %v1830 = vunpack.c.l.b16 %v381
  %v1831 = vunpack.c.h.b16 %v381
  %v1832 = vunpack.c.l.b16 %v382
  %v1833 = vunpack.c.h.b16 %v382
  %v1834 = vunpack.c.l.b16 %v383
  %v1835 = vunpack.c.h.b16 %v383
  %v1836 = vunpack.c.l.b16 %v384
  %v1837 = vunpack.c.h.b16 %v384
  %v1838 = vunpack.c.l.b16 %v385
  %v1839 = vunpack.c.h.b16 %v385
  %v1840 = vunpack.c.l.b16 %v386
  %v1841 = vunpack.c.h.b16 %v386
  %v1842 = vunpack.c.l.b16 %v387
  %v1843 = vunpack.c.h.b16 %v387
  %v1844 = vunpack.c.l.b16 %v388
  %v1845 = vunpack.c.h.b16 %v388
  %v1846 = vunpack.c.l.b16 %v389
  %v1847 = vunpack.c.h.b16 %v389
  %v1848 = vunpack.c.l.b16 %v390
  %v1849 = vunpack.c.h.b16 %v390
  %v1850 = vunpack.c.l.b16 %v391
  %v1851 = vunpack.c.h.b16 %v391
  %v1852 = vunpack.c.l.b16 %v392
  %v1853 = vunpack.c.h.b16 %v392
  %v1854 = vunpack.c.l.b16 %v393
  %v1855 = vunpack.c.h.b16 %v393
  %v1856 = vunpack.c.l.b16 %v394
  %v1857 = vunpack.c.h.b16 %v394
  %v1858 = vunpack.c.l.b16 %v395
  %v1859 = vunpack.c.h.b16 %v395
  %v1860 = vunpack.c.l.b16 %v396
  %v1861 = vunpack.c.h.b16 %v396
  %v1862 = vunpack.c.l.b16 %v397
  %v1863 = vunpack.c.h.b16 %v397
  %v1864 = vunpack.c.l.b16 %v398
  %v1865 = vunpack.c.h.b16 %v398
  %v1866 = vunpack.c.l.b16 %v399
  %v1867 = vunpack.c.h.b16 %v399
  %v1868 = vunpack.c.l.b16 %v400
  %v1869 = vunpack.c.h.b16 %v400
  %v1870 = vunpack.c.l.b16 %v401
  %v1871 = vunpack.c.h.b16 %v401
  %v1872 = vunpack.c.l.b16 %v402
  %v1873 = vunpack.c.h.b16 %v402
  %v1874 = vunpack.c.l.b16 %v403
  %v1875 = vunpack.c.h.b16 %v403
  %v1876 = vunpack.c.l.b16 %v404
  %v1877 = vunpack.c.h.b16 %v404
  %v1878 = vunpack.c.l.b16 %v405
  %v1879 = vunpack.c.h.b16 %v405
  %v1880 = vunpack.c.l.b16 %v406
  %v1881 = vunpack.c.h.b16 %v406
  %v1882 = vunpack.c.l.b16 %v407
  %v1883 = vunpack.c.h.b16 %v407
  %v1884 = vunpack.c.l.b16 %v408
  %v1885 = vunpack.c.h.b16 %v408
  %v1886 = vunpack.c.l.b16 %v409
  %v1887 = vunpack.c.h.b16 %v409
  %v1888 = vunpack.c.l.b16 %v410
  %v1889 = vunpack.c.h.b16 %v410
  %v1890 = vunpack.c.l.b16 %v411
  %v1891 = vunpack.c.h.b16 %v411
  %v1892 = vunpack.c.l.b16 %v412
  %v1893 = vunpack.c.h.b16 %v412
  %v1894 = vunpack.c.l.b16 %v413
  %v1895 = vunpack.c.h.b16 %v413
  %v1896 = vunpack.c.l.b16 %v414
  %v1897 = vunpack.c.h.b16 %v414
  %v1898 = vunpack.c.l.b16 %v415
  %v1899 = vunpack.c.h.b16 %v415
  %v1900 = vunpack.c.l.b16 %v416
  %v1901 = vunpack.c.h.b16 %v416
  %v1902 = vunpack.c.l.b16 %v417
  %v1903 = vunpack.c.h.b16 %v417
  %v1904 = vunpack.c.l.b16 %v418
  %v1905 = vunpack.c.h.b16 %v418
  %v1906 = vunpack.c.l.b16 %v419
  %v1907 = vunpack.c.h.b16 %v419
  %v1908 = vunpack.c.l.b16 %v420
  %v1909 = vunpack.c.h.b16 %v420
  %v1910 = vunpack.c.l.b16 %v421
  %v1911 = vunpack.c.h.b16 %v421
  %v1912 = vunpack.c.l.b16 %v422
  %v1913 = vunpack.c.h.b16 %v422
  %v1914 = vunpack.c.l.b16 %v423
  %v1915 = vunpack.c.h.b16 %v423
  %v1916 = vunpack.c.l.b16 %v424
  %v1917 = vunpack.c.h.b16 %v424
  %v1918 = vunpack.c.l.b16 %v425
  %v1919 = vunpack.c.h.b16 %v425
  %v1920 = vunpack.c.l.b16 %v426
  %v1921 = vunpack.c.h.b16 %v426
  %v1922 = vunpack.c.l.b16 %v427
  %v1923 = vunpack.c.h.b16 %v427
  %v1924 = vunpack.c.l.b16 %v428
  %v1925 = vunpack.c.h.b16 %v428
  %v1926 = vunpack.c.l.b16 %v429
  %v1927 = vunpack.c.h.b16 %v429
  %v1928 = vunpack.c.l.b16 %v430
  %v1929 = vunpack.c.h.b16 %v430
  %v1930 = vunpack.c.l.b16 %v431
  %v1931 = vunpack.c.h.b16 %v431
  %v1932 = vunpack.c.l.b16 %v432
  %v1933 = vunpack.c.h.b16 %v432
  %v1934 = vunpack.c.l.b16 %v433
  %v1935 = vunpack.c.h.b16 %v433
  %v1936 = vunpack.c.l.b16 %v434
  %v1937 = vunpack.c.h.b16 %v434
  %v1938 = vunpack.c.l.b16 %v435
  %v1939 = vunpack.c.h.b16 %v435
  %v1940 = vunpack.c.l.b16 %v436
  %v1941 = vunpack.c.h.b16 %v436
  %v1942 = vunpack.c.l.b16 %v437
  %v1943 = vunpack.c.h.b16 %v437
  %v1944 = vunpack.c.l.b16 %v438
  %v1945 = vunpack.c.h.b16 %v438
  %v1946 = vunpack.c.l.b16 %v439
  %v1947 = vunpack.c.h.b16 %v439
  %v1948 = vunpack.c.l.b16 %v440
  %v1949 = vunpack.c.h.b16 %v440
  %v1950 = vunpack.c.l.b16 %v441
  %v1951 = vunpack.c.h.b16 %v441
  %v1952 = vunpack.c.l.b16 %v442
  %v1953 = vunpack.c.h.b16 %v442
  %v1954 = vunpack.c.l.b16 %v443
  %v1955 = vunpack.c.h.b16 %v443
  %v1956 = vunpack.c.l.b16 %v444
  %v1957 = vunpack.c.h.b16 %v444
  %v1958 = vunpack.c.l.b16 %v445
  %v1959 = vunpack.c.h.b16 %v445
  %v1960 = vunpack.c.l.b16 %v446
  %v1961 = vunpack.c.h.b16 %v446
  %v1962 = vunpack.c.l.b16 %v447
  %v1963 = vunpack.c.h.b16 %v447
  %v1964 = vunpack.c.l.b16 %v448
  %v1965 = vunpack.c.h.b16 %v448
  %v1966 = vunpack.c.l.b16 %v449
  %v1967 = vunpack.c.h.b16 %v449
  %v1968 = vunpack.c.l.b16 %v450
  %v1969 = vunpack.c.h.b16 %v450
  %v1970 = vunpack.c.l.b16 %v451
  %v1971 = vunpack.c.h.b16 %v451
  %v1972 = vunpack.c.l.b16 %v452
  %v1973 = vunpack.c.h.b16 %v452
  %v1974 = vunpack.c.l.b16 %v453
  %v1975 = vunpack.c.h.b16 %v453
  %v1976 = vunpack.c.l.b16 %v454
  %v1977 = vunpack.c.h.b16 %v454
  %v1978 = vunpack.c.l.b16 %v455
  %v1979 = vunpack.c.h.b16 %v455
  %v1980 = vunpack.c.l.b16 %v456
  %v1981 = vunpack.c.h.b16 %v456
  %v1982 = vunpack.c.l.b16 %v457
  %v1983 = vunpack.c.h.b16 %v457
  %v1984 = vunpack.c.l.b16 %v458
  %v1985 = vunpack.c.h.b16 %v458
  %v1986 = vunpack.c.l.b16 %v459
  %v1987 = vunpack.c.h.b16 %v459
  %v1988 = vunpack.c.l.b16 %v460
  %v1989 = vunpack.c.h.b16 %v460
  %v1990 = vunpack.c.l.b16 %v461
  %v1991 = vunpack.c.h.b16 %v461
  %v1992 = vunpack.c.l.b16 %v462
  %v1993 = vunpack.c.h.b16 %v462
  %v1994 = vunpack.c.l.b16 %v463
  %v1995 = vunpack.c.h.b16 %v463
  %v1996 = vunpack.c.l.b16 %v464
  %v1997 = vunpack.c.h.b16 %v464
  %v1998 = vunpack.c.l.b16 %v465
  %v1999 = vunpack.c.h.b16 %v465
  %v2000 = vunpack.c.l.b16 %v466
  %v2001 = vunpack.c.h.b16 %v466
  %v2002 = vunpack.c.l.b16 %v467
  %v2003 = vunpack.c.h.b16 %v467
  %v2004 = vunpack.c.l.b16 %v468
  %v2005 = vunpack.c.h.b16 %v468
  %v2006 = vunpack.c.l.b16 %v469
  %v2007 = vunpack.c.h.b16 %v469
  %v2008 = vunpack.c.l.b16 %v470
  %v2009 = vunpack.c.h.b16 %v470
  %v2010 = vunpack.c.l.b16 %v471
  %v2011 = vunpack.c.h.b16 %v471
  %v2012 = vunpack.c.l.b16 %v472
  %v2013 = vunpack.c.h.b16 %v472
  %v2014 = vunpack.c.l.b16 %v473
  %v2015 = vunpack.c.h.b16 %v473
  %v2016 = vunpack.c.l.b16 %v474
  %v2017 = vunpack.c.h.b16 %v474
  %v2018 = vunpack.c.l.b16 %v475
  %v2019 = vunpack.c.h.b16 %v475
  %v2020 = vunpack.c.l.b16 %v476
  %v2021 = vunpack.c.h.b16 %v476
  %v2022 = vunpack.c.l.b16 %v477
  %v2023 = vunpack.c.h.b16 %v477
  %v2024 = vunpack.c.l.b16 %v478
  %v2025 = vunpack.c.h.b16 %v478
  %v2026 = vunpack.c.l.b16 %v479
  %v2027 = vunpack.c.h.b16 %v479
  %v2028 = vunpack.c.l.b16 %v480
  %v2029 = vunpack.c.h.b16 %v480
  %v2030 = vunpack.c.l.b16 %v481
  %v2031 = vunpack.c.h.b16 %v481
  %v2032 = vunpack.c.l.b16 %v482
  %v2033 = vunpack.c.h.b16 %v482
  %v2034 = vunpack.c.l.b16 %v483
  %v2035 = vunpack.c.h.b16 %v483
  %v2036 = vunpack.c.l.b16 %v484
  %v2037 = vunpack.c.h.b16 %v484
  %v2038 = vunpack.c.l.b16 %v485
  %v2039 = vunpack.c.h.b16 %v485
  %v2040 = vunpack.c.l.b16 %v486
  %v2041 = vunpack.c.h.b16 %v486
  %v2042 = vunpack.c.l.b16 %v487
  %v2043 = vunpack.c.h.b16 %v487
  %v2044 = vunpack.c.l.b16 %v488
  %v2045 = vunpack.c.h.b16 %v488
  %v2046 = vunpack.c.l.b16 %v489
  %v2047 = vunpack.c.h.b16 %v489
  %v2048 = vunpack.c.l.b16 %v490
  %v2049 = vunpack.c.h.b16 %v490
  %v2050 = vunpack.c.l.b16 %v491
  %v2051 = vunpack.c.h.b16 %v491
  %v2052 = vunpack.c.l.b16 %v492
  %v2053 = vunpack.c.h.b16 %v492
  %v2054 = vunpack.c.l.b16 %v493
  %v2055 = vunpack.c.h.b16 %v493
  %v2056 = vunpack.c.l.b16 %v494
  %v2057 = vunpack.c.h.b16 %v494
  %v2058 = vunpack.c.l.b16 %v495
  %v2059 = vunpack.c.h.b16 %v495
  %v2060 = vunpack.c.l.b16 %v496
  %v2061 = vunpack.c.h.b16 %v496
  %v2062 = vunpack.c.l.b16 %v497
  %v2063 = vunpack.c.h.b16 %v497
  %v2064 = vunpack.c.l.b16 %v498
  %v2065 = vunpack.c.h.b16 %v498
  %v2066 = vunpack.c.l.b16 %v499
  %v2067 = vunpack.c.h.b16 %v499
  %v2068 = vunpack.c.l.b16 %v500
  %v2069 = vunpack.c.h.b16 %v500
  %v2070 = vunpack.c.l.b16 %v501
  %v2071 = vunpack.c.h.b16 %v501
  %v2072 = vunpack.c.l.b16 %v502
  %v2073 = vunpack.c.h.b16 %v502
  %v2074 = vunpack.c.l.b16 %v503
  %v2075 = vunpack.c.h.b16 %v503
  %v2076 = vunpack.c.l.b16 %v504
  %v2077 = vunpack.c.h.b16 %v504
  %v2078 = vunpack.c.l.b16 %v505
  %v2079 = vunpack.c.h.b16 %v505
  %v2080 = vunpack.c.l.b16 %v506
  %v2081 = vunpack.c.h.b16 %v506
  %v2082 = vunpack.c.l.b16 %v507
  %v2083 = vunpack.c.h.b16 %v507
  %v2084 = vunpack.c.l.b16 %v508
  %v2085 = vunpack.c.h.b16 %v508
  %v2086 = vunpack.c.l.b16 %v509
  %v2087 = vunpack.c.h.b16 %v509
  %v2088 = vunpack.c.l.b16 %v510
  %v2089 = vunpack.c.h.b16 %v510
  %v2090 = vunpack.c.l.b16 %v511
  %v2091 = vunpack.c.h.b16 %v511
  %v2092 = vunpack.c.l.b16 %v512
  %v2093 = vunpack.c.h.b16 %v512
  %v2094 = vunpack.c.l.b16 %v513
  %v2095 = vunpack.c.h.b16 %v513
  %v2096 = vunpack.c.l.b16 %v514
  %v2097 = vunpack.c.h.b16 %v514
  %v2098 = vunpack.c.l.b16 %v515
  %v2099 = vunpack.c.h.b16 %v515
  %v2100 = vunpack.c.l.b16 %v516
  %v2101 = vunpack.c.h.b16 %v516
  %v2102 = vunpack.c.l.b16 %v517
  %v2103 = vunpack.c.h.b16 %v517
  %v2104 = vunpack.c.l.b16 %v518
  %v2105 = vunpack.c.h.b16 %v518
  %v2106 = vunpack.c.l.b16 %v519
  %v2107 = vunpack.c.h.b16 %v519
  %v2108 = vunpack.c.l.b16 %v520
  %v2109 = vunpack.c.h.b16 %v520
  %v2110 = vunpack.c.l.b16 %v521
  %v2111 = vunpack.c.h.b16 %v521
  %v2112 = vunpack.c.l.b16 %v522
  %v2113 = vunpack.c.h.b16 %v522
  %v2114 = vunpack.c.l.b16 %v523
  %v2115 = vunpack.c.h.b16 %v523
  %v2116 = vunpack.c.l.b16 %v524
  %v2117 = vunpack.c.h.b16 %v524
  %v2118 = vunpack.c.l.b16 %v525
  %v2119 = vunpack.c.h.b16 %v525
  %v2120 = vunpack.c.l.b16 %v526
  %v2121 = vunpack.c.h.b16 %v526
  %v2122 = vunpack.c.l.b16 %v527
  %v2123 = vunpack.c.h.b16 %v527
  %v2124 = vunpack.c.l.b16 %v528
  %v2125 = vunpack.c.h.b16 %v528
  %v2126 = vunpack.c.l.b16 %v529
  %v2127 = vunpack.c.h.b16 %v529
  %v2128 = vunpack.c.l.b16 %v530
  %v2129 = vunpack.c.h.b16 %v530
  %v2130 = vunpack.c.l.b16 %v531
  %v2131 = vunpack.c.h.b16 %v531
  %v2132 = vunpack.c.l.b16 %v532
  %v2133 = vunpack.c.h.b16 %v532
  %v2134 = vunpack.c.l.b16 %v533
  %v2135 = vunpack.c.h.b16 %v533
  %v2136 = vunpack.c.l.b16 %v534
  %v2137 = vunpack.c.h.b16 %v534
  %v2138 = vunpack.c.l.b16 %v535
  %v2139 = vunpack.c.h.b16 %v535
  %v2140 = vunpack.c.l.b16 %v536
  %v2141 = vunpack.c.h.b16 %v536
  %v2142 = vunpack.c.l.b16 %v537
  %v2143 = vunpack.c.h.b16 %v537
  %v2144 = vunpack.c.l.b16 %v538
  %v2145 = vunpack.c.h.b16 %v538
  %v2146 = vunpack.c.l.b16 %v539
  %v2147 = vunpack.c.h.b16 %v539
  %v2148 = vpack.c.b16 %v1126, %v1124
  %v2149 = vpack.c.b16 %v1127, %v1125
  %v2150 = vpack.c.b16 %v1130, %v1128
  %v2151 = vpack.c.b16 %v1131, %v1129
  %v2152 = vpack.c.b16 %v1134, %v1132
  %v2153 = vpack.c.b16 %v1135, %v1133
  %v2154 = vpack.c.b16 %v1138, %v1136
  %v2155 = vpack.c.b16 %v1139, %v1137
  %v2156 = vpack.c.b16 %v1142, %v1140
  %v2157 = vpack.c.b16 %v1143, %v1141
  %v2158 = vpack.c.b16 %v1146, %v1144
  %v2159 = vpack.c.b16 %v1147, %v1145
  %v2160 = vpack.c.b16 %v1150, %v1148
  %v2161 = vpack.c.b16 %v1151, %v1149
  %v2162 = vpack.c.b16 %v1154, %v1152
  %v2163 = vpack.c.b16 %v1155, %v1153
  %v2164 = vpack.c.b16 %v1158, %v1156
  %v2165 = vpack.c.b16 %v1159, %v1157
  %v2166 = vpack.c.b16 %v1162, %v1160
  %v2167 = vpack.c.b16 %v1163, %v1161
  %v2168 = vpack.c.b16 %v1166, %v1164
  %v2169 = vpack.c.b16 %v1167, %v1165
  %v2170 = vpack.c.b16 %v1170, %v1168
  %v2171 = vpack.c.b16 %v1171, %v1169
  %v2172 = vpack.c.b16 %v1174, %v1172
  %v2173 = vpack.c.b16 %v1175, %v1173
  %v2174 = vpack.c.b16 %v1178, %v1176
  %v2175 = vpack.c.b16 %v1179, %v1177
  %v2176 = vpack.c.b16 %v1182, %v1180
  %v2177 = vpack.c.b16 %v1183, %v1181
  %v2178 = vpack.c.b16 %v1186, %v1184
  %v2179 = vpack.c.b16 %v1187, %v1185
  %v2180 = vpack.c.b16 %v1190, %v1188
  %v2181 = vpack.c.b16 %v1191, %v1189
  %v2182 = vpack.c.b16 %v1194, %v1192
  %v2183 = vpack.c.b16 %v1195, %v1193
  %v2184 = vpack.c.b16 %v1198, %v1196
  %v2185 = vpack.c.b16 %v1199, %v1197
  %v2186 = vpack.c.b16 %v1202, %v1200
  %v2187 = vpack.c.b16 %v1203, %v1201
  %v2188 = vpack.c.b16 %v1206, %v1204
  %v2189 = vpack.c.b16 %v1207, %v1205
  %v2190 = vpack.c.b16 %v1210, %v1208
  %v2191 = vpack.c.b16 %v1211, %v1209
  %v2192 = vpack.c.b16 %v1214, %v1212
  %v2193 = vpack.c.b16 %v1215, %v1213
  %v2194 = vpack.c.b16 %v1218, %v1216
  %v2195 = vpack.c.b16 %v1219, %v1217
  %v2196 = vpack.c.b16 %v1222, %v1220
  %v2197 = vpack.c.b16 %v1223, %v1221
  %v2198 = vpack.c.b16 %v1226, %v1224
  %v2199 = vpack.c.b16 %v1227, %v1225
  %v2200 = vpack.c.b16 %v1230, %v1228
  %v2201 = vpack.c.b16 %v1231, %v1229
  %v2202 = vpack.c.b16 %v1234, %v1232
  %v2203 = vpack.c.b16 %v1235, %v1233
  %v2204 = vpack.c.b16 %v1238, %v1236
  %v2205 = vpack.c.b16 %v1239, %v1237
  %v2206 = vpack.c.b16 %v1242, %v1240
  %v2207 = vpack.c.b16 %v1243, %v1241
  %v2208 = vpack.c.b16 %v1246, %v1244
  %v2209 = vpack.c.b16 %v1247, %v1245
  %v2210 = vpack.c.b16 %v1250, %v1248
  %v2211 = vpack.c.b16 %v1251, %v1249
  %v2212 = vpack.c.b16 %v1254, %v1252
  %v2213 = vpack.c.b16 %v1255, %v1253
  %v2214 = vpack.c.b16 %v1258, %v1256
  %v2215 = vpack.c.b16 %v1259, %v1257
  %v2216 = vpack.c.b16 %v1262, %v1260
  %v2217 = vpack.c.b16 %v1263, %v1261
  %v2218 = vpack.c.b16 %v1266, %v1264
  %v2219 = vpack.c.b16 %v1267, %v1265
  %v2220 = vpack.c.b16 %v1270, %v1268
  %v2221 = vpack.c.b16 %v1271, %v1269
  %v2222 = vpack.c.b16 %v1274, %v1272
  %v2223 = vpack.c.b16 %v1275, %v1273
  %v2224 = vpack.c.b16 %v1278, %v1276
  %v2225 = vpack.c.b16 %v1279, %v1277
  %v2226 = vpack.c.b16 %v1282, %v1280
  %v2227 = vpack.c.b16 %v1283, %v1281
  %v2228 = vpack.c.b16 %v1286, %v1284
  %v2229 = vpack.c.b16 %v1287, %v1285
  %v2230 = vpack.c.b16 %v1290, %v1288
  %v2231 = vpack.c.b16 %v1291, %v1289
  %v2232 = vpack.c.b16 %v1294, %v1292
  %v2233 = vpack.c.b16 %v1295, %v1293
  %v2234 = vpack.c.b16 %v1298, %v1296
  %v2235 = vpack.c.b16 %v1299, %v1297
  %v2236 = vpack.c.b16 %v1302, %v1300
  %v2237 = vpack.c.b16 %v1303, %v1301
  %v2238 = vpack.c.b16 %v1306, %v1304
  %v2239 = vpack.c.b16 %v1307, %v1305
  %v2240 = vpack.c.b16 %v1310, %v1308
  %v2241 = vpack.c.b16 %v1311, %v1309
  %v2242 = vpack.c.b16 %v1314, %v1312
  %v2243 = vpack.c.b16 %v1315, %v1313
  %v2244 = vpack.c.b16 %v1318, %v1316
  %v2245 = vpack.c.b16 %v1319, %v1317
  %v2246 = vpack.c.b16 %v1322, %v1320
  %v2247 = vpack.c.b16 %v1323, %v1321
  %v2248 = vpack.c.b16 %v1326, %v1324
  %v2249 = vpack.c.b16 %v1327, %v1325
  %v2250 = vpack.c.b16 %v1330, %v1328
  %v2251 = vpack.c.b16 %v1331, %v1329
  %v2252 = vpack.c.b16 %v1334, %v1332
  %v2253 = vpack.c.b16 %v1335, %v1333
  %v2254 = vpack.c.b16 %v1338, %v1336
  %v2255 = vpack.c.b16 %v1339, %v1337
  %v2256 = vpack.c.b16 %v1342, %v1340
  %v2257 = vpack.c.b16 %v1343, %v1341
  %v2258 = vpack.c.b16 %v1346, %v1344
  %v2259 = vpack.c.b16 %v1347, %v1345
  %v2260 = vpack.c.b16 %v1350, %v1348
  %v2261 = vpack.c.b16 %v1351, %v1349
  %v2262 = vpack.c.b16 %v1354, %v1352
  %v2263 = vpack.c.b16 %v1355, %v1353
  %v2264 = vpack.c.b16 %v1358, %v1356
  %v2265 = vpack.c.b16 %v1359, %v1357
  %v2266 = vpack.c.b16 %v1362, %v1360
  %v2267 = vpack.c.b16 %v1363, %v1361
  %v2268 = vpack.c.b16 %v1366, %v1364
  %v2269 = vpack.c.b16 %v1367, %v1365
  %v2270 = vpack.c.b16 %v1370, %v1368
  %v2271 = vpack.c.b16 %v1371, %v1369
  %v2272 = vpack.c.b16 %v1374, %v1372
  %v2273 = vpack.c.b16 %v1375, %v1373
  %v2274 = vpack.c.b16 %v1378, %v1376
  %v2275 = vpack.c.b16 %v1379, %v1377
  %v2276 = vpack.c.b16 %v1382, %v1380
  %v2277 = vpack.c.b16 %v1383, %v1381
  %v2278 = vpack.c.b16 %v1386, %v1384
  %v2279 = vpack.c.b16 %v1387, %v1385
  %v2280 = vpack.c.b16 %v1390, %v1388
  %v2281 = vpack.c.b16 %v1391, %v1389
  %v2282 = vpack.c.b16 %v1394, %v1392
  %v2283 = vpack.c.b16 %v1395, %v1393
  %v2284 = vpack.c.b16 %v1398, %v1396
  %v2285 = vpack.c.b16 %v1399, %v1397
  %v2286 = vpack.c.b16 %v1402, %v1400
  %v2287 = vpack.c.b16 %v1403, %v1401
  %v2288 = vpack.c.b16 %v1406, %v1404
  %v2289 = vpack.c.b16 %v1407, %v1405
  %v2290 = vpack.c.b16 %v1410, %v1408
  %v2291 = vpack.c.b16 %v1411, %v1409
  %v2292 = vpack.c.b16 %v1414, %v1412
  %v2293 = vpack.c.b16 %v1415, %v1413
  %v2294 = vpack.c.b16 %v1418, %v1416
  %v2295 = vpack.c.b16 %v1419, %v1417
  %v2296 = vpack.c.b16 %v1422, %v1420
  %v2297 = vpack.c.b16 %v1423, %v1421
  %v2298 = vpack.c.b16 %v1426, %v1424
  %v2299 = vpack.c.b16 %v1427, %v1425
  %v2300 = vpack.c.b16 %v1430, %v1428
  %v2301 = vpack.c.b16 %v1431, %v1429
  %v2302 = vpack.c.b16 %v1434, %v1432
  %v2303 = vpack.c.b16 %v1435, %v1433
  %v2304 = vpack.c.b16 %v1438, %v1436
  %v2305 = vpack.c.b16 %v1439, %v1437
  %v2306 = vpack.c.b16 %v1442, %v1440
  %v2307 = vpack.c.b16 %v1443, %v1441
  %v2308 = vpack.c.b16 %v1446, %v1444
  %v2309 = vpack.c.b16 %v1447, %v1445
  %v2310 = vpack.c.b16 %v1450, %v1448
  %v2311 = vpack.c.b16 %v1451, %v1449
  %v2312 = vpack.c.b16 %v1454, %v1452
  %v2313 = vpack.c.b16 %v1455, %v1453
  %v2314 = vpack.c.b16 %v1458, %v1456
  %v2315 = vpack.c.b16 %v1459, %v1457
  %v2316 = vpack.c.b16 %v1462, %v1460
  %v2317 = vpack.c.b16 %v1463, %v1461
  %v2318 = vpack.c.b16 %v1466, %v1464
  %v2319 = vpack.c.b16 %v1467, %v1465
  %v2320 = vpack.c.b16 %v1470, %v1468
  %v2321 = vpack.c.b16 %v1471, %v1469
  %v2322 = vpack.c.b16 %v1474, %v1472
  %v2323 = vpack.c.b16 %v1475, %v1473
  %v2324 = vpack.c.b16 %v1478, %v1476
  %v2325 = vpack.c.b16 %v1479, %v1477
  %v2326 = vpack.c.b16 %v1482, %v1480
  %v2327 = vpack.c.b16 %v1483, %v1481
  %v2328 = vpack.c.b16 %v1486, %v1484
  %v2329 = vpack.c.b16 %v1487, %v1485
  %v2330 = vpack.c.b16 %v1490, %v1488
  %v2331 = vpack.c.b16 %v1491, %v1489
  %v2332 = vpack.c.b16 %v1494, %v1492
  %v2333 = vpack.c.b16 %v1495, %v1493
  %v2334 = vpack.c.b16 %v1498, %v1496
  %v2335 = vpack.c.b16 %v1499, %v1497
  %v2336 = vpack.c.b16 %v1502, %v1500
  %v2337 = vpack.c.b16 %v1503, %v1501
  %v2338 = vpack.c.b16 %v1506, %v1504
  %v2339 = vpack.c.b16 %v1507, %v1505
  %v2340 = vpack.c.b16 %v1510, %v1508
  %v2341 = vpack.c.b16 %v1511, %v1509
  %v2342 = vpack.c.b16 %v1514, %v1512
  %v2343 = vpack.c.b16 %v1515, %v1513
  %v2344 = vpack.c.b16 %v1518, %v1516
  %v2345 = vpack.c.b16 %v1519, %v1517
  %v2346 = vpack.c.b16 %v1522, %v1520
  %v2347 = vpack.c.b16 %v1523, %v1521
  %v2348 = vpack.c.b16 %v1526, %v1524
  %v2349 = vpack.c.b16 %v1527, %v1525
  %v2350 = vpack.c.b16 %v1530, %v1528
  %v2351 = vpack.c.b16 %v1531, %v1529
  %v2352 = vpack.c.b16 %v1534, %v1532
  %v2353 = vpack.c.b16 %v1535, %v1533
  %v2354 = vpack.c.b16 %v1538, %v1536
  %v2355 = vpack.c.b16 %v1539, %v1537
  %v2356 = vpack.c.b16 %v1542, %v1540
  %v2357 = vpack.c.b16 %v1543, %v1541
  %v2358 = vpack.c.b16 %v1546, %v1544
  %v2359 = vpack.c.b16 %v1547, %v1545
  %v2360 = vpack.c.b16 %v1550, %v1548
  %v2361 = vpack.c.b16 %v1551, %v1549
  %v2362 = vpack.c.b16 %v1554, %v1552
  %v2363 = vpack.c.b16 %v1555, %v1553
  %v2364 = vpack.c.b16 %v1558, %v1556
  %v2365 = vpack.c.b16 %v1559, %v1557
  %v2366 = vpack.c.b16 %v1562, %v1560
  %v2367 = vpack.c.b16 %v1563, %v1561
  %v2368 = vpack.c.b16 %v1566, %v1564
  %v2369 = vpack.c.b16 %v1567, %v1565
  %v2370 = vpack.c.b16 %v1570, %v1568
  %v2371 = vpack.c.b16 %v1571, %v1569
  %v2372 = vpack.c.b16 %v1574, %v1572
  %v2373 = vpack.c.b16 %v1575, %v1573
  %v2374 = vpack.c.b16 %v1578, %v1576
  %v2375 = vpack.c.b16 %v1579, %v1577
  %v2376 = vpack.c.b16 %v1582, %v1580
  %v2377 = vpack.c.b16 %v1583, %v1581
  %v2378 = vpack.c.b16 %v1586, %v1584
  %v2379 = vpack.c.b16 %v1587, %v1585
  %v2380 = vpack.c.b16 %v1590, %v1588
  %v2381 = vpack.c.b16 %v1591, %v1589
  %v2382 = vpack.c.b16 %v1594, %v1592
  %v2383 = vpack.c.b16 %v1595, %v1593
  %v2384 = vpack.c.b16 %v1598, %v1596
  %v2385 = vpack.c.b16 %v1599, %v1597
  %v2386 = vpack.c.b16 %v1602, %v1600
  %v2387 = vpack.c.b16 %v1603, %v1601
  %v2388 = vpack.c.b16 %v1606, %v1604
  %v2389 = vpack.c.b16 %v1607, %v1605
  %v2390 = vpack.c.b16 %v1610, %v1608
  %v2391 = vpack.c.b16 %v1611, %v1609
  %v2392 = vpack.c.b16 %v1614, %v1612
  %v2393 = vpack.c.b16 %v1615, %v1613
  %v2394 = vpack.c.b16 %v1618, %v1616
  %v2395 = vpack.c.b16 %v1619, %v1617
  %v2396 = vpack.c.b16 %v1622, %v1620
  %v2397 = vpack.c.b16 %v1623, %v1621
  %v2398 = vpack.c.b16 %v1626, %v1624
  %v2399 = vpack.c.b16 %v1627, %v1625
  %v2400 = vpack.c.b16 %v1630, %v1628
  %v2401 = vpack.c.b16 %v1631, %v1629
  %v2402 = vpack.c.b16 %v1634, %v1632
  %v2403 = vpack.c.b16 %v1635, %v1633
  %v2404 = vpack.c.b16 %v1638, %v1636
  %v2405 = vpack.c.b16 %v1639, %v1637
  %v2406 = vpack.c.b16 %v1642, %v1640
  %v2407 = vpack.c.b16 %v1643, %v1641
  %v2408 = vpack.c.b16 %v1646, %v1644
  %v2409 = vpack.c.b16 %v1647, %v1645
  %v2410 = vpack.c.b16 %v1650, %v1648
  %v2411 = vpack.c.b16 %v1651, %v1649
  %v2412 = vpack.c.b16 %v1654, %v1652
  %v2413 = vpack.c.b16 %v1655, %v1653
  %v2414 = vpack.c.b16 %v1658, %v1656
  %v2415 = vpack.c.b16 %v1659, %v1657
  %v2416 = vpack.c.b16 %v1662, %v1660
  %v2417 = vpack.c.b16 %v1663, %v1661
  %v2418 = vpack.c.b16 %v1666, %v1664
  %v2419 = vpack.c.b16 %v1667, %v1665
  %v2420 = vpack.c.b16 %v1670, %v1668
  %v2421 = vpack.c.b16 %v1671, %v1669
  %v2422 = vpack.c.b16 %v1674, %v1672
  %v2423 = vpack.c.b16 %v1675, %v1673
  %v2424 = vpack.c.b16 %v1678, %v1676
  %v2425 = vpack.c.b16 %v1679, %v1677
  %v2426 = vpack.c.b16 %v1682, %v1680
  %v2427 = vpack.c.b16 %v1683, %v1681
  %v2428 = vpack.c.b16 %v1686, %v1684
  %v2429 = vpack.c.b16 %v1687, %v1685
  %v2430 = vpack.c.b16 %v1690, %v1688
  %v2431 = vpack.c.b16 %v1691, %v1689
  %v2432 = vpack.c.b16 %v1694, %v1692
  %v2433 = vpack.c.b16 %v1695, %v1693
  %v2434 = vpack.c.b16 %v1698, %v1696
  %v2435 = vpack.c.b16 %v1699, %v1697
  %v2436 = vpack.c.b16 %v1702, %v1700
  %v2437 = vpack.c.b16 %v1703, %v1701
  %v2438 = vpack.c.b16 %v1706, %v1704
  %v2439 = vpack.c.b16 %v1707, %v1705
  %v2440 = vpack.c.b16 %v1710, %v1708
  %v2441 = vpack.c.b16 %v1711, %v1709
  %v2442 = vpack.c.b16 %v1714, %v1712
  %v2443 = vpack.c.b16 %v1715, %v1713
  %v2444 = vpack.c.b16 %v1718, %v1716
  %v2445 = vpack.c.b16 %v1719, %v1717
  %v2446 = vpack.c.b16 %v1722, %v1720
  %v2447 = vpack.c.b16 %v1723, %v1721
  %v2448 = vpack.c.b16 %v1726, %v1724
  %v2449 = vpack.c.b16 %v1727, %v1725
  %v2450 = vpack.c.b16 %v1730, %v1728
  %v2451 = vpack.c.b16 %v1731, %v1729
  %v2452 = vpack.c.b16 %v1734, %v1732
  %v2453 = vpack.c.b16 %v1735, %v1733
  %v2454 = vpack.c.b16 %v1738, %v1736
  %v2455 = vpack.c.b16 %v1739, %v1737
  %v2456 = vpack.c.b16 %v1742, %v1740
  %v2457 = vpack.c.b16 %v1743, %v1741
  %v2458 = vpack.c.b16 %v1746, %v1744
  %v2459 = vpack.c.b16 %v1747, %v1745
  %v2460 = vpack.c.b16 %v1750, %v1748
  %v2461 = vpack.c.b16 %v1751, %v1749
  %v2462 = vpack.c.b16 %v1754, %v1752
  %v2463 = vpack.c.b16 %v1755, %v1753
  %v2464 = vpack.c.b16 %v1758, %v1756
  %v2465 = vpack.c.b16 %v1759, %v1757
  %v2466 = vpack.c.b16 %v1762, %v1760
  %v2467 = vpack.c.b16 %v1763, %v1761
  %v2468 = vpack.c.b16 %v1766, %v1764
  %v2469 = vpack.c.b16 %v1767, %v1765
  %v2470 = vpack.c.b16 %v1770, %v1768
  %v2471 = vpack.c.b16 %v1771, %v1769
  %v2472 = vpack.c.b16 %v1774, %v1772
  %v2473 = vpack.c.b16 %v1775, %v1773
  %v2474 = vpack.c.b16 %v1778, %v1776
  %v2475 = vpack.c.b16 %v1779, %v1777
  %v2476 = vpack.c.b16 %v1782, %v1780
  %v2477 = vpack.c.b16 %v1783, %v1781
  %v2478 = vpack.c.b16 %v1786, %v1784
  %v2479 = vpack.c.b16 %v1787, %v1785
  %v2480 = vpack.c.b16 %v1790, %v1788
  %v2481 = vpack.c.b16 %v1791, %v1789
  %v2482 = vpack.c.b16 %v1794, %v1792
  %v2483 = vpack.c.b16 %v1795, %v1793
  %v2484 = vpack.c.b16 %v1798, %v1796
  %v2485 = vpack.c.b16 %v1799, %v1797
  %v2486 = vpack.c.b16 %v1802, %v1800
  %v2487 = vpack.c.b16 %v1803, %v1801
  %v2488 = vpack.c.b16 %v1806, %v1804
  %v2489 = vpack.c.b16 %v1807, %v1805
  %v2490 = vpack.c.b16 %v1810, %v1808
  %v2491 = vpack.c.b16 %v1811, %v1809
  %v2492 = vpack.c.b16 %v1814, %v1812
  %v2493 = vpack.c.b16 %v1815, %v1813
  %v2494 = vpack.c.b16 %v1818, %v1816
  %v2495 = vpack.c.b16 %v1819, %v1817
  %v2496 = vpack.c.b16 %v1822, %v1820
  %v2497 = vpack.c.b16 %v1823, %v1821
  %v2498 = vpack.c.b16 %v1826, %v1824
  %v2499 = vpack.c.b16 %v1827, %v1825
  %v2500 = vpack.c.b16 %v1830, %v1828
  %v2501 = vpack.c.b16 %v1831, %v1829
  %v2502 = vpack.c.b16 %v1834, %v1832
  %v2503 = vpack.c.b16 %v1835, %v1833
  %v2504 = vpack.c.b16 %v1838, %v1836
  %v2505 = vpack.c.b16 %v1839, %v1837
  %v2506 = vpack.c.b16 %v1842, %v1840
  %v2507 = vpack.c.b16 %v1843, %v1841
  %v2508 = vpack.c.b16 %v1846, %v1844
  %v2509 = vpack.c.b16 %v1847, %v1845
  %v2510 = vpack.c.b16 %v1850, %v1848
  %v2511 = vpack.c.b16 %v1851, %v1849
  %v2512 = vpack.c.b16 %v1854, %v1852
  %v2513 = vpack.c.b16 %v1855, %v1853
  %v2514 = vpack.c.b16 %v1858, %v1856
  %v2515 = vpack.c.b16 %v1859, %v1857
  %v2516 = vpack.c.b16 %v1862, %v1860
  %v2517 = vpack.c.b16 %v1863, %v1861
  %v2518 = vpack.c.b16 %v1866, %v1864
  %v2519 = vpack.c.b16 %v1867, %v1865
  %v2520 = vpack.c.b16 %v1870, %v1868
  %v2521 = vpack.c.b16 %v1871, %v1869
  %v2522 = vpack.c.b16 %v1874, %v1872
  %v2523 = vpack.c.b16 %v1875, %v1873
  %v2524 = vpack.c.b16 %v1878, %v1876
  %v2525 = vpack.c.b16 %v1879, %v1877
  %v2526 = vpack.c.b16 %v1882, %v1880
  %v2527 = vpack.c.b16 %v1883, %v1881
  %v2528 = vpack.c.b16 %v1886, %v1884
  %v2529 = vpack.c.b16 %v1887, %v1885
  %v2530 = vpack.c.b16 %v1890, %v1888
  %v2531 = vpack.c.b16 %v1891, %v1889
  %v2532 = vpack.c.b16 %v1894, %v1892
  %v2533 = vpack.c.b16 %v1895, %v1893
  %v2534 = vpack.c.b16 %v1898, %v1896
  %v2535 = vpack.c.b16 %v1899, %v1897
  %v2536 = vpack.c.b16 %v1902, %v1900
  %v2537 = vpack.c.b16 %v1903, %v1901
  %v2538 = vpack.c.b16 %v1906, %v1904
  %v2539 = vpack.c.b16 %v1907, %v1905
  %v2540 = vpack.c.b16 %v1910, %v1908
  %v2541 = vpack.c.b16 %v1911, %v1909
  %v2542 = vpack.c.b16 %v1914, %v1912
  %v2543 = vpack.c.b16 %v1915, %v1913
  %v2544 = vpack.c.b16 %v1918, %v1916
  %v2545 = vpack.c.b16 %v1919, %v1917
  %v2546 = vpack.c.b16 %v1922, %v1920
  %v2547 = vpack.c.b16 %v1923, %v1921
  %v2548 = vpack.c.b16 %v1926, %v1924
  %v2549 = vpack.c.b16 %v1927, %v1925
  %v2550 = vpack.c.b16 %v1930, %v1928
  %v2551 = vpack.c.b16 %v1931, %v1929
  %v2552 = vpack.c.b16 %v1934, %v1932
  %v2553 = vpack.c.b16 %v1935, %v1933
  %v2554 = vpack.c.b16 %v1938, %v1936
  %v2555 = vpack.c.b16 %v1939, %v1937
  %v2556 = vpack.c.b16 %v1942, %v1940
  %v2557 = vpack.c.b16 %v1943, %v1941
  %v2558 = vpack.c.b16 %v1946, %v1944
  %v2559 = vpack.c.b16 %v1947, %v1945
  %v2560 = vpack.c.b16 %v1950, %v1948
  %v2561 = vpack.c.b16 %v1951, %v1949
  %v2562 = vpack.c.b16 %v1954, %v1952
  %v2563 = vpack.c.b16 %v1955, %v1953
  %v2564 = vpack.c.b16 %v1958, %v1956
  %v2565 = vpack.c.b16 %v1959, %v1957
  %v2566 = vpack.c.b16 %v1962, %v1960
  %v2567 = vpack.c.b16 %v1963, %v1961
  %v2568 = vpack.c.b16 %v1966, %v1964
  %v2569 = vpack.c.b16 %v1967, %v1965
  %v2570 = vpack.c.b16 %v1970, %v1968
  %v2571 = vpack.c.b16 %v1971, %v1969
  %v2572 = vpack.c.b16 %v1974, %v1972
  %v2573 = vpack.c.b16 %v1975, %v1973
  %v2574 = vpack.c.b16 %v1978, %v1976
  %v2575 = vpack.c.b16 %v1979, %v1977
  %v2576 = vpack.c.b16 %v1982, %v1980
  %v2577 = vpack.c.b16 %v1983, %v1981
  %v2578 = vpack.c.b16 %v1986, %v1984
  %v2579 = vpack.c.b16 %v1987, %v1985
  %v2580 = vpack.c.b16 %v1990, %v1988
  %v2581 = vpack.c.b16 %v1991, %v1989
  %v2582 = vpack.c.b16 %v1994, %v1992
  %v2583 = vpack.c.b16 %v1995, %v1993
  %v2584 = vpack.c.b16 %v1998, %v1996
  %v2585 = vpack.c.b16 %v1999, %v1997
  %v2586 = vpack.c.b16 %v2002, %v2000
  %v2587 = vpack.c.b16 %v2003, %v2001
  %v2588 = vpack.c.b16 %v2006, %v2004
  %v2589 = vpack.c.b16 %v2007, %v2005
  %v2590 = vpack.c.b16 %v2010, %v2008
  %v2591 = vpack.c.b16 %v2011, %v2009
  %v2592 = vpack.c.b16 %v2014, %v2012
  %v2593 = vpack.c.b16 %v2015, %v2013
  %v2594 = vpack.c.b16 %v2018, %v2016
  %v2595 = vpack.c.b16 %v2019, %v2017
  %v2596 = vpack.c.b16 %v2022, %v2020
  %v2597 = vpack.c.b16 %v2023, %v2021
  %v2598 = vpack.c.b16 %v2026, %v2024
  %v2599 = vpack.c.b16 %v2027, %v2025
  %v2600 = vpack.c.b16 %v2030, %v2028
  %v2601 = vpack.c.b16 %v2031, %v2029
  %v2602 = vpack.c.b16 %v2034, %v2032
  %v2603 = vpack.c.b16 %v2035, %v2033
  %v2604 = vpack.c.b16 %v2038, %v2036
  %v2605 = vpack.c.b16 %v2039, %v2037
  %v2606 = vpack.c.b16 %v2042, %v2040
  %v2607 = vpack.c.b16 %v2043, %v2041
  %v2608 = vpack.c.b16 %v2046, %v2044
  %v2609 = vpack.c.b16 %v2047, %v2045
  %v2610 = vpack.c.b16 %v2050, %v2048
  %v2611 = vpack.c.b16 %v2051, %v2049
  %v2612 = vpack.c.b16 %v2054, %v2052
  %v2613 = vpack.c.b16 %v2055, %v2053
  %v2614 = vpack.c.b16 %v2058, %v2056
  %v2615 = vpack.c.b16 %v2059, %v2057
  %v2616 = vpack.c.b16 %v2062, %v2060
  %v2617 = vpack.c.b16 %v2063, %v2061
  %v2618 = vpack.c.b16 %v2066, %v2064
  %v2619 = vpack.c.b16 %v2067, %v2065
  %v2620 = vpack.c.b16 %v2070, %v2068
  %v2621 = vpack.c.b16 %v2071, %v2069
  %v2622 = vpack.c.b16 %v2074, %v2072
  %v2623 = vpack.c.b16 %v2075, %v2073
  %v2624 = vpack.c.b16 %v2078, %v2076
  %v2625 = vpack.c.b16 %v2079, %v2077
  %v2626 = vpack.c.b16 %v2082, %v2080
  %v2627 = vpack.c.b16 %v2083, %v2081
  %v2628 = vpack.c.b16 %v2086, %v2084
  %v2629 = vpack.c.b16 %v2087, %v2085
  %v2630 = vpack.c.b16 %v2090, %v2088
  %v2631 = vpack.c.b16 %v2091, %v2089
  %v2632 = vpack.c.b16 %v2094, %v2092
  %v2633 = vpack.c.b16 %v2095, %v2093
  %v2634 = vpack.c.b16 %v2098, %v2096
  %v2635 = vpack.c.b16 %v2099, %v2097
  %v2636 = vpack.c.b16 %v2102, %v2100
  %v2637 = vpack.c.b16 %v2103, %v2101
  %v2638 = vpack.c.b16 %v2106, %v2104
  %v2639 = vpack.c.b16 %v2107, %v2105
  %v2640 = vpack.c.b16 %v2110, %v2108
  %v2641 = vpack.c.b16 %v2111, %v2109
  %v2642 = vpack.c.b16 %v2114, %v2112
  %v2643 = vpack.c.b16 %v2115, %v2113
  %v2644 = vpack.c.b16 %v2118, %v2116
  %v2645 = vpack.c.b16 %v2119, %v2117
  %v2646 = vpack.c.b16 %v2122, %v2120
  %v2647 = vpack.c.b16 %v2123, %v2121
  %v2648 = vpack.c.b16 %v2126, %v2124
  %v2649 = vpack.c.b16 %v2127, %v2125
  %v2650 = vpack.c.b16 %v2130, %v2128
  %v2651 = vpack.c.b16 %v2131, %v2129
  %v2652 = vpack.c.b16 %v2134, %v2132
  %v2653 = vpack.c.b16 %v2135, %v2133
  %v2654 = vpack.c.b16 %v2138, %v2136
  %v2655 = vpack.c.b16 %v2139, %v2137
  %v2656 = vpack.c.b16 %v2142, %v2140
  %v2657 = vpack.c.b16 %v2143, %v2141
  %v2658 = vpack.c.b16 %v2146, %v2144
  %v2659 = vpack.c.b16 %v2147, %v2145
  %3172 = vmatpush.bf16.msra.mxu0 %v2162
  %3173 = vmatpush.bf16.msra.mxu0 %v2160
  %3174 = vmatpush.bf16.msra.mxu0 %v2158
  %3175 = vmatpush.bf16.msra.mxu0 %v2156
  %3176 = vmatpush.bf16.msra.mxu0 %v2154
  %3177 = vmatpush.bf16.msra.mxu0 %v2152
  %3178 = vmatpush.bf16.msra.mxu0 %v2150
  %3179 = vmatpush.bf16.msra.mxu0 %v2148
  %3180 = vmatmul.bf16.gmra.mxu0 %v542
  %v3181 = vpop.f32.mrf.mxu0
  %v3182 = vadd.f32 0.0, %v3181
  %v3183 = vpop.f32.mrf.mxu0
  %3184 = vdwg.mxu0
  %3185 = vmatpush.bf16.msra.mxu0 %v2178
  %3186 = vmatpush.bf16.msra.mxu0 %v2176
  %3187 = vmatpush.bf16.msra.mxu0 %v2174
  %3188 = vmatpush.bf16.msra.mxu0 %v2172
  %3189 = vmatpush.bf16.msra.mxu0 %v2170
  %3190 = vmatpush.bf16.msra.mxu0 %v2168
  %3191 = vmatpush.bf16.msra.mxu0 %v2166
  %3192 = vmatpush.bf16.msra.mxu0 %v2164
  %3193 = vmatmul.bf16.gmra.mxu0 %v543
  %v3194 = vpop.f32.mrf.mxu0
  %v3195 = vadd.f32 %v3182, %v3194
  %v3196 = vpop.f32.mrf.mxu0
  %3197 = vdwg.mxu0
  %3198 = vmatpush.bf16.msra.mxu0 %v2194
  %3199 = vmatpush.bf16.msra.mxu0 %v2192
  %3200 = vmatpush.bf16.msra.mxu0 %v2190
  %3201 = vmatpush.bf16.msra.mxu0 %v2188
  %3202 = vmatpush.bf16.msra.mxu0 %v2186
  %3203 = vmatpush.bf16.msra.mxu0 %v2184
  %3204 = vmatpush.bf16.msra.mxu0 %v2182
  %3205 = vmatpush.bf16.msra.mxu0 %v2180
  %3206 = vmatmul.bf16.gmra.mxu0 %v544
  %v3207 = vpop.f32.mrf.mxu0
  %v3208 = vadd.f32 %v3195, %v3207
  %v3209 = vpop.f32.mrf.mxu0
  %3210 = vdwg.mxu0
  %3211 = vmatpush.bf16.msra.mxu0 %v2210
  %3212 = vmatpush.bf16.msra.mxu0 %v2208
  %3213 = vmatpush.bf16.msra.mxu0 %v2206
  %3214 = vmatpush.bf16.msra.mxu0 %v2204
  %3215 = vmatpush.bf16.msra.mxu0 %v2202
  %3216 = vmatpush.bf16.msra.mxu0 %v2200
  %3217 = vmatpush.bf16.msra.mxu0 %v2198
  %3218 = vmatpush.bf16.msra.mxu0 %v2196
  %3219 = vmatmul.bf16.gmra.mxu0 %v545
  %v3220 = vpop.f32.mrf.mxu0
  %v3221 = vadd.f32 %v3208, %v3220
  %v3222 = vpop.f32.mrf.mxu0
  %3223 = vdwg.mxu0
  %3224 = vmatpush.bf16.msra.mxu0 %v2226
  %3225 = vmatpush.bf16.msra.mxu0 %v2224
  %3226 = vmatpush.bf16.msra.mxu0 %v2222
  %3227 = vmatpush.bf16.msra.mxu0 %v2220
  %3228 = vmatpush.bf16.msra.mxu0 %v2218
  %3229 = vmatpush.bf16.msra.mxu0 %v2216
  %3230 = vmatpush.bf16.msra.mxu0 %v2214
  %3231 = vmatpush.bf16.msra.mxu0 %v2212
  %3232 = vmatmul.bf16.gmra.mxu0 %v546
  %v3233 = vpop.f32.mrf.mxu0
  %v3234 = vadd.f32 %v3221, %v3233
  %v3235 = vpop.f32.mrf.mxu0
  %3236 = vdwg.mxu0
  %3237 = vmatpush.bf16.msra.mxu0 %v2242
  %3238 = vmatpush.bf16.msra.mxu0 %v2240
  %3239 = vmatpush.bf16.msra.mxu0 %v2238
  %3240 = vmatpush.bf16.msra.mxu0 %v2236
  %3241 = vmatpush.bf16.msra.mxu0 %v2234
  %3242 = vmatpush.bf16.msra.mxu0 %v2232
  %3243 = vmatpush.bf16.msra.mxu0 %v2230
  %3244 = vmatpush.bf16.msra.mxu0 %v2228
  %3245 = vmatmul.bf16.gmra.mxu0 %v547
  %v3246 = vpop.f32.mrf.mxu0
  %v3247 = vadd.f32 %v3234, %v3246
  %v3248 = vpop.f32.mrf.mxu0
  %3249 = vdwg.mxu0
  %3250 = vmatpush.bf16.msra.mxu0 %v2258
  %3251 = vmatpush.bf16.msra.mxu0 %v2256
  %3252 = vmatpush.bf16.msra.mxu0 %v2254
  %3253 = vmatpush.bf16.msra.mxu0 %v2252
  %3254 = vmatpush.bf16.msra.mxu0 %v2250
  %3255 = vmatpush.bf16.msra.mxu0 %v2248
  %3256 = vmatpush.bf16.msra.mxu0 %v2246
  %3257 = vmatpush.bf16.msra.mxu0 %v2244
  %3258 = vmatmul.bf16.gmra.mxu0 %v548
  %v3259 = vpop.f32.mrf.mxu0
  %v3260 = vadd.f32 %v3247, %v3259
  %v3261 = vpop.f32.mrf.mxu0
  %3262 = vdwg.mxu0
  %3263 = vmatpush.bf16.msra.mxu0 %v2274
  %3264 = vmatpush.bf16.msra.mxu0 %v2272
  %3265 = vmatpush.bf16.msra.mxu0 %v2270
  %3266 = vmatpush.bf16.msra.mxu0 %v2268
  %3267 = vmatpush.bf16.msra.mxu0 %v2266
  %3268 = vmatpush.bf16.msra.mxu0 %v2264
  %3269 = vmatpush.bf16.msra.mxu0 %v2262
  %3270 = vmatpush.bf16.msra.mxu0 %v2260
  %3271 = vmatmul.bf16.gmra.mxu0 %v549
  %v3272 = vpop.f32.mrf.mxu0
  %v3273 = vadd.f32 %v3260, %v3272
  %v3274 = vpop.f32.mrf.mxu0
  %3275 = vdwg.mxu0
  %3276 = vmatpush.bf16.msra.mxu0 %v2290
  %3277 = vmatpush.bf16.msra.mxu0 %v2288
  %3278 = vmatpush.bf16.msra.mxu0 %v2286
  %3279 = vmatpush.bf16.msra.mxu0 %v2284
  %3280 = vmatpush.bf16.msra.mxu0 %v2282
  %3281 = vmatpush.bf16.msra.mxu0 %v2280
  %3282 = vmatpush.bf16.msra.mxu0 %v2278
  %3283 = vmatpush.bf16.msra.mxu0 %v2276
  %3284 = vmatmul.bf16.gmra.mxu0 %v552
  %v3285 = vpop.f32.mrf.mxu0
  %v3286 = vadd.f32 %v3273, %v3285
  %v3287 = vpop.f32.mrf.mxu0
  %3288 = vdwg.mxu0
  %3289 = vmatpush.bf16.msra.mxu0 %v2306
  %3290 = vmatpush.bf16.msra.mxu0 %v2304
  %3291 = vmatpush.bf16.msra.mxu0 %v2302
  %3292 = vmatpush.bf16.msra.mxu0 %v2300
  %3293 = vmatpush.bf16.msra.mxu0 %v2298
  %3294 = vmatpush.bf16.msra.mxu0 %v2296
  %3295 = vmatpush.bf16.msra.mxu0 %v2294
  %3296 = vmatpush.bf16.msra.mxu0 %v2292
  %3297 = vmatmul.bf16.gmra.mxu0 %v553
  %v3298 = vpop.f32.mrf.mxu0
  %v3299 = vadd.f32 %v3286, %v3298
  %v3300 = vpop.f32.mrf.mxu0
  %3301 = vdwg.mxu0
  %3302 = vmatpush.bf16.msra.mxu0 %v2322
  %3303 = vmatpush.bf16.msra.mxu0 %v2320
  %3304 = vmatpush.bf16.msra.mxu0 %v2318
  %3305 = vmatpush.bf16.msra.mxu0 %v2316
  %3306 = vmatpush.bf16.msra.mxu0 %v2314
  %3307 = vmatpush.bf16.msra.mxu0 %v2312
  %3308 = vmatpush.bf16.msra.mxu0 %v2310
  %3309 = vmatpush.bf16.msra.mxu0 %v2308
  %3310 = vmatmul.bf16.gmra.mxu0 %v554
  %v3311 = vpop.f32.mrf.mxu0
  %v3312 = vadd.f32 %v3299, %v3311
  %v3313 = vpop.f32.mrf.mxu0
  %3314 = vdwg.mxu0
  %3315 = vmatpush.bf16.msra.mxu0 %v2338
  %3316 = vmatpush.bf16.msra.mxu0 %v2336
  %3317 = vmatpush.bf16.msra.mxu0 %v2334
  %3318 = vmatpush.bf16.msra.mxu0 %v2332
  %3319 = vmatpush.bf16.msra.mxu0 %v2330
  %3320 = vmatpush.bf16.msra.mxu0 %v2328
  %3321 = vmatpush.bf16.msra.mxu0 %v2326
  %3322 = vmatpush.bf16.msra.mxu0 %v2324
  %3323 = vmatmul.bf16.gmra.mxu0 %v555
  %v3324 = vpop.f32.mrf.mxu0
  %v3325 = vadd.f32 %v3312, %v3324
  %v3326 = vpop.f32.mrf.mxu0
  %3327 = vdwg.mxu0
  %3328 = vmatpush.bf16.msra.mxu0 %v2354
  %3329 = vmatpush.bf16.msra.mxu0 %v2352
  %3330 = vmatpush.bf16.msra.mxu0 %v2350
  %3331 = vmatpush.bf16.msra.mxu0 %v2348
  %3332 = vmatpush.bf16.msra.mxu0 %v2346
  %3333 = vmatpush.bf16.msra.mxu0 %v2344
  %3334 = vmatpush.bf16.msra.mxu0 %v2342
  %3335 = vmatpush.bf16.msra.mxu0 %v2340
  %3336 = vmatmul.bf16.gmra.mxu0 %v556
  %v3337 = vpop.f32.mrf.mxu0
  %v3338 = vadd.f32 %v3325, %v3337
  %v3339 = vpop.f32.mrf.mxu0
  %3340 = vdwg.mxu0
  %3341 = vmatpush.bf16.msra.mxu0 %v2370
  %3342 = vmatpush.bf16.msra.mxu0 %v2368
  %3343 = vmatpush.bf16.msra.mxu0 %v2366
  %3344 = vmatpush.bf16.msra.mxu0 %v2364
  %3345 = vmatpush.bf16.msra.mxu0 %v2362
  %3346 = vmatpush.bf16.msra.mxu0 %v2360
  %3347 = vmatpush.bf16.msra.mxu0 %v2358
  %3348 = vmatpush.bf16.msra.mxu0 %v2356
  %3349 = vmatmul.bf16.gmra.mxu0 %v557
  %v3350 = vpop.f32.mrf.mxu0
  %v3351 = vadd.f32 %v3338, %v3350
  %v3352 = vpop.f32.mrf.mxu0
  %3353 = vdwg.mxu0
  %3354 = vmatpush.bf16.msra.mxu0 %v2386
  %3355 = vmatpush.bf16.msra.mxu0 %v2384
  %3356 = vmatpush.bf16.msra.mxu0 %v2382
  %3357 = vmatpush.bf16.msra.mxu0 %v2380
  %3358 = vmatpush.bf16.msra.mxu0 %v2378
  %3359 = vmatpush.bf16.msra.mxu0 %v2376
  %3360 = vmatpush.bf16.msra.mxu0 %v2374
  %3361 = vmatpush.bf16.msra.mxu0 %v2372
  %3362 = vmatmul.bf16.gmra.mxu0 %v558
  %v3363 = vpop.f32.mrf.mxu0
  %v3364 = vadd.f32 %v3351, %v3363
  %v3365 = vpop.f32.mrf.mxu0
  %3366 = vdwg.mxu0
  %3367 = vmatpush.bf16.msra.mxu0 %v2402
  %3368 = vmatpush.bf16.msra.mxu0 %v2400
  %3369 = vmatpush.bf16.msra.mxu0 %v2398
  %3370 = vmatpush.bf16.msra.mxu0 %v2396
  %3371 = vmatpush.bf16.msra.mxu0 %v2394
  %3372 = vmatpush.bf16.msra.mxu0 %v2392
  %3373 = vmatpush.bf16.msra.mxu0 %v2390
  %3374 = vmatpush.bf16.msra.mxu0 %v2388
  %3375 = vmatmul.bf16.gmra.mxu0 %v559
  %v3376 = vpop.f32.mrf.mxu0
  %v3377 = vadd.f32 %v3364, %v3376
  %v3378 = vpop.f32.mrf.mxu0
  %3379 = vdwg.mxu0
  %3380 = vmatpush.bf16.msra.mxu0 %v2418
  %3381 = vmatpush.bf16.msra.mxu0 %v2416
  %3382 = vmatpush.bf16.msra.mxu0 %v2414
  %3383 = vmatpush.bf16.msra.mxu0 %v2412
  %3384 = vmatpush.bf16.msra.mxu0 %v2410
  %3385 = vmatpush.bf16.msra.mxu0 %v2408
  %3386 = vmatpush.bf16.msra.mxu0 %v2406
  %3387 = vmatpush.bf16.msra.mxu0 %v2404
  %3388 = vmatmul.bf16.gmra.mxu0 %v562
  %v3389 = vpop.f32.mrf.mxu0
  %v3390 = vadd.f32 %v3377, %v3389
  %v3391 = vpop.f32.mrf.mxu0
  %3392 = vdwg.mxu0
  %3393 = vmatpush.bf16.msra.mxu0 %v2434
  %3394 = vmatpush.bf16.msra.mxu0 %v2432
  %3395 = vmatpush.bf16.msra.mxu0 %v2430
  %3396 = vmatpush.bf16.msra.mxu0 %v2428
  %3397 = vmatpush.bf16.msra.mxu0 %v2426
  %3398 = vmatpush.bf16.msra.mxu0 %v2424
  %3399 = vmatpush.bf16.msra.mxu0 %v2422
  %3400 = vmatpush.bf16.msra.mxu0 %v2420
  %3401 = vmatmul.bf16.gmra.mxu0 %v563
  %v3402 = vpop.f32.mrf.mxu0
  %v3403 = vadd.f32 %v3390, %v3402
  %v3404 = vpop.f32.mrf.mxu0
  %3405 = vdwg.mxu0
  %3406 = vmatpush.bf16.msra.mxu0 %v2450
  %3407 = vmatpush.bf16.msra.mxu0 %v2448
  %3408 = vmatpush.bf16.msra.mxu0 %v2446
  %3409 = vmatpush.bf16.msra.mxu0 %v2444
  %3410 = vmatpush.bf16.msra.mxu0 %v2442
  %3411 = vmatpush.bf16.msra.mxu0 %v2440
  %3412 = vmatpush.bf16.msra.mxu0 %v2438
  %3413 = vmatpush.bf16.msra.mxu0 %v2436
  %3414 = vmatmul.bf16.gmra.mxu0 %v564
  %v3415 = vpop.f32.mrf.mxu0
  %v3416 = vadd.f32 %v3403, %v3415
  %v3417 = vpop.f32.mrf.mxu0
  %3418 = vdwg.mxu0
  %3419 = vmatpush.bf16.msra.mxu0 %v2466
  %3420 = vmatpush.bf16.msra.mxu0 %v2464
  %3421 = vmatpush.bf16.msra.mxu0 %v2462
  %3422 = vmatpush.bf16.msra.mxu0 %v2460
  %3423 = vmatpush.bf16.msra.mxu0 %v2458
  %3424 = vmatpush.bf16.msra.mxu0 %v2456
  %3425 = vmatpush.bf16.msra.mxu0 %v2454
  %3426 = vmatpush.bf16.msra.mxu0 %v2452
  %3427 = vmatmul.bf16.gmra.mxu0 %v565
  %v3428 = vpop.f32.mrf.mxu0
  %v3429 = vadd.f32 %v3416, %v3428
  %v3430 = vpop.f32.mrf.mxu0
  %3431 = vdwg.mxu0
  %3432 = vmatpush.bf16.msra.mxu0 %v2482
  %3433 = vmatpush.bf16.msra.mxu0 %v2480
  %3434 = vmatpush.bf16.msra.mxu0 %v2478
  %3435 = vmatpush.bf16.msra.mxu0 %v2476
  %3436 = vmatpush.bf16.msra.mxu0 %v2474
  %3437 = vmatpush.bf16.msra.mxu0 %v2472
  %3438 = vmatpush.bf16.msra.mxu0 %v2470
  %3439 = vmatpush.bf16.msra.mxu0 %v2468
  %3440 = vmatmul.bf16.gmra.mxu0 %v566
  %v3441 = vpop.f32.mrf.mxu0
  %v3442 = vadd.f32 %v3429, %v3441
  %v3443 = vpop.f32.mrf.mxu0
  %3444 = vdwg.mxu0
  %3445 = vmatpush.bf16.msra.mxu0 %v2498
  %3446 = vmatpush.bf16.msra.mxu0 %v2496
  %3447 = vmatpush.bf16.msra.mxu0 %v2494
  %3448 = vmatpush.bf16.msra.mxu0 %v2492
  %3449 = vmatpush.bf16.msra.mxu0 %v2490
  %3450 = vmatpush.bf16.msra.mxu0 %v2488
  %3451 = vmatpush.bf16.msra.mxu0 %v2486
  %3452 = vmatpush.bf16.msra.mxu0 %v2484
  %3453 = vmatmul.bf16.gmra.mxu0 %v567
  %v3454 = vpop.f32.mrf.mxu0
  %v3455 = vadd.f32 %v3442, %v3454
  %v3456 = vpop.f32.mrf.mxu0
  %3457 = vdwg.mxu0
  %3458 = vmatpush.bf16.msra.mxu0 %v2514
  %3459 = vmatpush.bf16.msra.mxu0 %v2512
  %3460 = vmatpush.bf16.msra.mxu0 %v2510
  %3461 = vmatpush.bf16.msra.mxu0 %v2508
  %3462 = vmatpush.bf16.msra.mxu0 %v2506
  %3463 = vmatpush.bf16.msra.mxu0 %v2504
  %3464 = vmatpush.bf16.msra.mxu0 %v2502
  %3465 = vmatpush.bf16.msra.mxu0 %v2500
  %3466 = vmatmul.bf16.gmra.mxu0 %v568
  %v3467 = vpop.f32.mrf.mxu0
  %v3468 = vadd.f32 %v3455, %v3467
  %v3469 = vpop.f32.mrf.mxu0
  %3470 = vdwg.mxu0
  %3471 = vmatpush.bf16.msra.mxu0 %v2530
  %3472 = vmatpush.bf16.msra.mxu0 %v2528
  %3473 = vmatpush.bf16.msra.mxu0 %v2526
  %3474 = vmatpush.bf16.msra.mxu0 %v2524
  %3475 = vmatpush.bf16.msra.mxu0 %v2522
  %3476 = vmatpush.bf16.msra.mxu0 %v2520
  %3477 = vmatpush.bf16.msra.mxu0 %v2518
  %3478 = vmatpush.bf16.msra.mxu0 %v2516
  %3479 = vmatmul.bf16.gmra.mxu0 %v569
  %v3480 = vpop.f32.mrf.mxu0
  %v3481 = vadd.f32 %v3468, %v3480
  %v3482 = vpop.f32.mrf.mxu0
  %3483 = vdwg.mxu0
  %3484 = vmatpush.bf16.msra.mxu0 %v2546
  %3485 = vmatpush.bf16.msra.mxu0 %v2544
  %3486 = vmatpush.bf16.msra.mxu0 %v2542
  %3487 = vmatpush.bf16.msra.mxu0 %v2540
  %3488 = vmatpush.bf16.msra.mxu0 %v2538
  %3489 = vmatpush.bf16.msra.mxu0 %v2536
  %3490 = vmatpush.bf16.msra.mxu0 %v2534
  %3491 = vmatpush.bf16.msra.mxu0 %v2532
  %3492 = vmatmul.bf16.gmra.mxu0 %v572
  %v3493 = vpop.f32.mrf.mxu0
  %v3494 = vadd.f32 %v3481, %v3493
  %v3495 = vpop.f32.mrf.mxu0
  %3496 = vdwg.mxu0
  %3497 = vmatpush.bf16.msra.mxu0 %v2562
  %3498 = vmatpush.bf16.msra.mxu0 %v2560
  %3499 = vmatpush.bf16.msra.mxu0 %v2558
  %3500 = vmatpush.bf16.msra.mxu0 %v2556
  %3501 = vmatpush.bf16.msra.mxu0 %v2554
  %3502 = vmatpush.bf16.msra.mxu0 %v2552
  %3503 = vmatpush.bf16.msra.mxu0 %v2550
  %3504 = vmatpush.bf16.msra.mxu0 %v2548
  %3505 = vmatmul.bf16.gmra.mxu0 %v573
  %v3506 = vpop.f32.mrf.mxu0
  %v3507 = vadd.f32 %v3494, %v3506
  %v3508 = vpop.f32.mrf.mxu0
  %3509 = vdwg.mxu0
  %3510 = vmatpush.bf16.msra.mxu0 %v2578
  %3511 = vmatpush.bf16.msra.mxu0 %v2576
  %3512 = vmatpush.bf16.msra.mxu0 %v2574
  %3513 = vmatpush.bf16.msra.mxu0 %v2572
  %3514 = vmatpush.bf16.msra.mxu0 %v2570
  %3515 = vmatpush.bf16.msra.mxu0 %v2568
  %3516 = vmatpush.bf16.msra.mxu0 %v2566
  %3517 = vmatpush.bf16.msra.mxu0 %v2564
  %3518 = vmatmul.bf16.gmra.mxu0 %v574
  %v3519 = vpop.f32.mrf.mxu0
  %v3520 = vadd.f32 %v3507, %v3519
  %v3521 = vpop.f32.mrf.mxu0
  %3522 = vdwg.mxu0
  %3523 = vmatpush.bf16.msra.mxu0 %v2594
  %3524 = vmatpush.bf16.msra.mxu0 %v2592
  %3525 = vmatpush.bf16.msra.mxu0 %v2590
  %3526 = vmatpush.bf16.msra.mxu0 %v2588
  %3527 = vmatpush.bf16.msra.mxu0 %v2586
  %3528 = vmatpush.bf16.msra.mxu0 %v2584
  %3529 = vmatpush.bf16.msra.mxu0 %v2582
  %3530 = vmatpush.bf16.msra.mxu0 %v2580
  %3531 = vmatmul.bf16.gmra.mxu0 %v575
  %v3532 = vpop.f32.mrf.mxu0
  %v3533 = vadd.f32 %v3520, %v3532
  %v3534 = vpop.f32.mrf.mxu0
  %3535 = vdwg.mxu0
  %3536 = vmatpush.bf16.msra.mxu0 %v2610
  %3537 = vmatpush.bf16.msra.mxu0 %v2608
  %3538 = vmatpush.bf16.msra.mxu0 %v2606
  %3539 = vmatpush.bf16.msra.mxu0 %v2604
  %3540 = vmatpush.bf16.msra.mxu0 %v2602
  %3541 = vmatpush.bf16.msra.mxu0 %v2600
  %3542 = vmatpush.bf16.msra.mxu0 %v2598
  %3543 = vmatpush.bf16.msra.mxu0 %v2596
  %3544 = vmatmul.bf16.gmra.mxu0 %v576
  %v3545 = vpop.f32.mrf.mxu0
  %v3546 = vadd.f32 %v3533, %v3545
  %v3547 = vpop.f32.mrf.mxu0
  %3548 = vdwg.mxu0
  %3549 = vmatpush.bf16.msra.mxu0 %v2626
  %3550 = vmatpush.bf16.msra.mxu0 %v2624
  %3551 = vmatpush.bf16.msra.mxu0 %v2622
  %3552 = vmatpush.bf16.msra.mxu0 %v2620
  %3553 = vmatpush.bf16.msra.mxu0 %v2618
  %3554 = vmatpush.bf16.msra.mxu0 %v2616
  %3555 = vmatpush.bf16.msra.mxu0 %v2614
  %3556 = vmatpush.bf16.msra.mxu0 %v2612
  %3557 = vmatmul.bf16.gmra.mxu0 %v577
  %v3558 = vpop.f32.mrf.mxu0
  %v3559 = vadd.f32 %v3546, %v3558
  %v3560 = vpop.f32.mrf.mxu0
  %3561 = vdwg.mxu0
  %3562 = vmatpush.bf16.msra.mxu0 %v2642
  %3563 = vmatpush.bf16.msra.mxu0 %v2640
  %3564 = vmatpush.bf16.msra.mxu0 %v2638
  %3565 = vmatpush.bf16.msra.mxu0 %v2636
  %3566 = vmatpush.bf16.msra.mxu0 %v2634
  %3567 = vmatpush.bf16.msra.mxu0 %v2632
  %3568 = vmatpush.bf16.msra.mxu0 %v2630
  %3569 = vmatpush.bf16.msra.mxu0 %v2628
  %3570 = vmatmul.bf16.gmra.mxu0 %v578
  %v3571 = vpop.f32.mrf.mxu0
  %v3572 = vadd.f32 %v3559, %v3571
  %v3573 = vpop.f32.mrf.mxu0
  %3574 = vdwg.mxu0
  %3575 = vmatpush.bf16.msra.mxu0 %v2658
  %3576 = vmatpush.bf16.msra.mxu0 %v2656
  %3577 = vmatpush.bf16.msra.mxu0 %v2654
  %3578 = vmatpush.bf16.msra.mxu0 %v2652
  %3579 = vmatpush.bf16.msra.mxu0 %v2650
  %3580 = vmatpush.bf16.msra.mxu0 %v2648
  %3581 = vmatpush.bf16.msra.mxu0 %v2646
  %3582 = vmatpush.bf16.msra.mxu0 %v2644
  %3583 = vmatmul.bf16.gmra.mxu0 %v579
  %v3584 = vpop.f32.mrf.mxu0
  %v3585 = vadd.f32 %v3572, %v3584
  %v3586 = vpop.f32.mrf.mxu0
  %3587 = vdwg.mxu0
  %3588 = vmatpush.bf16.msra.mxu0 %v2163
  %3589 = vmatpush.bf16.msra.mxu0 %v2161
  %3590 = vmatpush.bf16.msra.mxu0 %v2159
  %3591 = vmatpush.bf16.msra.mxu0 %v2157
  %3592 = vmatpush.bf16.msra.mxu0 %v2155
  %3593 = vmatpush.bf16.msra.mxu0 %v2153
  %3594 = vmatpush.bf16.msra.mxu0 %v2151
  %3595 = vmatpush.bf16.msra.mxu0 %v2149
  %3596 = vmatmul.bf16.gmra.mxu0 %v542
  %v3597 = vpop.f32.mrf.mxu0
  %v3598 = vadd.f32 0.0, %v3597
  %v3599 = vpop.f32.mrf.mxu0
  %3600 = vdwg.mxu0
  %3601 = vmatpush.bf16.msra.mxu0 %v2179
  %3602 = vmatpush.bf16.msra.mxu0 %v2177
  %3603 = vmatpush.bf16.msra.mxu0 %v2175
  %3604 = vmatpush.bf16.msra.mxu0 %v2173
  %3605 = vmatpush.bf16.msra.mxu0 %v2171
  %3606 = vmatpush.bf16.msra.mxu0 %v2169
  %3607 = vmatpush.bf16.msra.mxu0 %v2167
  %3608 = vmatpush.bf16.msra.mxu0 %v2165
  %3609 = vmatmul.bf16.gmra.mxu0 %v543
  %v3610 = vpop.f32.mrf.mxu0
  %v3611 = vadd.f32 %v3598, %v3610
  %v3612 = vpop.f32.mrf.mxu0
  %3613 = vdwg.mxu0
  %3614 = vmatpush.bf16.msra.mxu0 %v2195
  %3615 = vmatpush.bf16.msra.mxu0 %v2193
  %3616 = vmatpush.bf16.msra.mxu0 %v2191
  %3617 = vmatpush.bf16.msra.mxu0 %v2189
  %3618 = vmatpush.bf16.msra.mxu0 %v2187
  %3619 = vmatpush.bf16.msra.mxu0 %v2185
  %3620 = vmatpush.bf16.msra.mxu0 %v2183
  %3621 = vmatpush.bf16.msra.mxu0 %v2181
  %3622 = vmatmul.bf16.gmra.mxu0 %v544
  %v3623 = vpop.f32.mrf.mxu0
  %v3624 = vadd.f32 %v3611, %v3623
  %v3625 = vpop.f32.mrf.mxu0
  %3626 = vdwg.mxu0
  %3627 = vmatpush.bf16.msra.mxu0 %v2211
  %3628 = vmatpush.bf16.msra.mxu0 %v2209
  %3629 = vmatpush.bf16.msra.mxu0 %v2207
  %3630 = vmatpush.bf16.msra.mxu0 %v2205
  %3631 = vmatpush.bf16.msra.mxu0 %v2203
  %3632 = vmatpush.bf16.msra.mxu0 %v2201
  %3633 = vmatpush.bf16.msra.mxu0 %v2199
  %3634 = vmatpush.bf16.msra.mxu0 %v2197
  %3635 = vmatmul.bf16.gmra.mxu0 %v545
  %v3636 = vpop.f32.mrf.mxu0
  %v3637 = vadd.f32 %v3624, %v3636
  %v3638 = vpop.f32.mrf.mxu0
  %3639 = vdwg.mxu0
  %3640 = vmatpush.bf16.msra.mxu0 %v2227
  %3641 = vmatpush.bf16.msra.mxu0 %v2225
  %3642 = vmatpush.bf16.msra.mxu0 %v2223
  %3643 = vmatpush.bf16.msra.mxu0 %v2221
  %3644 = vmatpush.bf16.msra.mxu0 %v2219
  %3645 = vmatpush.bf16.msra.mxu0 %v2217
  %3646 = vmatpush.bf16.msra.mxu0 %v2215
  %3647 = vmatpush.bf16.msra.mxu0 %v2213
  %3648 = vmatmul.bf16.gmra.mxu0 %v546
  %v3649 = vpop.f32.mrf.mxu0
  %v3650 = vadd.f32 %v3637, %v3649
  %v3651 = vpop.f32.mrf.mxu0
  %3652 = vdwg.mxu0
  %3653 = vmatpush.bf16.msra.mxu0 %v2243
  %3654 = vmatpush.bf16.msra.mxu0 %v2241
  %3655 = vmatpush.bf16.msra.mxu0 %v2239
  %3656 = vmatpush.bf16.msra.mxu0 %v2237
  %3657 = vmatpush.bf16.msra.mxu0 %v2235
  %3658 = vmatpush.bf16.msra.mxu0 %v2233
  %3659 = vmatpush.bf16.msra.mxu0 %v2231
  %3660 = vmatpush.bf16.msra.mxu0 %v2229
  %3661 = vmatmul.bf16.gmra.mxu0 %v547
  %v3662 = vpop.f32.mrf.mxu0
  %v3663 = vadd.f32 %v3650, %v3662
  %v3664 = vpop.f32.mrf.mxu0
  %3665 = vdwg.mxu0
  %3666 = vmatpush.bf16.msra.mxu0 %v2259
  %3667 = vmatpush.bf16.msra.mxu0 %v2257
  %3668 = vmatpush.bf16.msra.mxu0 %v2255
  %3669 = vmatpush.bf16.msra.mxu0 %v2253
  %3670 = vmatpush.bf16.msra.mxu0 %v2251
  %3671 = vmatpush.bf16.msra.mxu0 %v2249
  %3672 = vmatpush.bf16.msra.mxu0 %v2247
  %3673 = vmatpush.bf16.msra.mxu0 %v2245
  %3674 = vmatmul.bf16.gmra.mxu0 %v548
  %v3675 = vpop.f32.mrf.mxu0
  %v3676 = vadd.f32 %v3663, %v3675
  %v3677 = vpop.f32.mrf.mxu0
  %3678 = vdwg.mxu0
  %3679 = vmatpush.bf16.msra.mxu0 %v2275
  %3680 = vmatpush.bf16.msra.mxu0 %v2273
  %3681 = vmatpush.bf16.msra.mxu0 %v2271
  %3682 = vmatpush.bf16.msra.mxu0 %v2269
  %3683 = vmatpush.bf16.msra.mxu0 %v2267
  %3684 = vmatpush.bf16.msra.mxu0 %v2265
  %3685 = vmatpush.bf16.msra.mxu0 %v2263
  %3686 = vmatpush.bf16.msra.mxu0 %v2261
  %3687 = vmatmul.bf16.gmra.mxu0 %v549
  %v3688 = vpop.f32.mrf.mxu0
  %v3689 = vadd.f32 %v3676, %v3688
  %v3690 = vpop.f32.mrf.mxu0
  %3691 = vdwg.mxu0
  %3692 = vmatpush.bf16.msra.mxu0 %v2291
  %3693 = vmatpush.bf16.msra.mxu0 %v2289
  %3694 = vmatpush.bf16.msra.mxu0 %v2287
  %3695 = vmatpush.bf16.msra.mxu0 %v2285
  %3696 = vmatpush.bf16.msra.mxu0 %v2283
  %3697 = vmatpush.bf16.msra.mxu0 %v2281
  %3698 = vmatpush.bf16.msra.mxu0 %v2279
  %3699 = vmatpush.bf16.msra.mxu0 %v2277
  %3700 = vmatmul.bf16.gmra.mxu0 %v552
  %v3701 = vpop.f32.mrf.mxu0
  %v3702 = vadd.f32 %v3689, %v3701
  %v3703 = vpop.f32.mrf.mxu0
  %3704 = vdwg.mxu0
  %3705 = vmatpush.bf16.msra.mxu0 %v2307
  %3706 = vmatpush.bf16.msra.mxu0 %v2305
  %3707 = vmatpush.bf16.msra.mxu0 %v2303
  %3708 = vmatpush.bf16.msra.mxu0 %v2301
  %3709 = vmatpush.bf16.msra.mxu0 %v2299
  %3710 = vmatpush.bf16.msra.mxu0 %v2297
  %3711 = vmatpush.bf16.msra.mxu0 %v2295
  %3712 = vmatpush.bf16.msra.mxu0 %v2293
  %3713 = vmatmul.bf16.gmra.mxu0 %v553
  %v3714 = vpop.f32.mrf.mxu0
  %v3715 = vadd.f32 %v3702, %v3714
  %v3716 = vpop.f32.mrf.mxu0
  %3717 = vdwg.mxu0
  %3718 = vmatpush.bf16.msra.mxu0 %v2323
  %3719 = vmatpush.bf16.msra.mxu0 %v2321
  %3720 = vmatpush.bf16.msra.mxu0 %v2319
  %3721 = vmatpush.bf16.msra.mxu0 %v2317
  %3722 = vmatpush.bf16.msra.mxu0 %v2315
  %3723 = vmatpush.bf16.msra.mxu0 %v2313
  %3724 = vmatpush.bf16.msra.mxu0 %v2311
  %3725 = vmatpush.bf16.msra.mxu0 %v2309
  %3726 = vmatmul.bf16.gmra.mxu0 %v554
  %v3727 = vpop.f32.mrf.mxu0
  %v3728 = vadd.f32 %v3715, %v3727
  %v3729 = vpop.f32.mrf.mxu0
  %3730 = vdwg.mxu0
  %3731 = vmatpush.bf16.msra.mxu0 %v2339
  %3732 = vmatpush.bf16.msra.mxu0 %v2337
  %3733 = vmatpush.bf16.msra.mxu0 %v2335
  %3734 = vmatpush.bf16.msra.mxu0 %v2333
  %3735 = vmatpush.bf16.msra.mxu0 %v2331
  %3736 = vmatpush.bf16.msra.mxu0 %v2329
  %3737 = vmatpush.bf16.msra.mxu0 %v2327
  %3738 = vmatpush.bf16.msra.mxu0 %v2325
  %3739 = vmatmul.bf16.gmra.mxu0 %v555
  %v3740 = vpop.f32.mrf.mxu0
  %v3741 = vadd.f32 %v3728, %v3740
  %v3742 = vpop.f32.mrf.mxu0
  %3743 = vdwg.mxu0
  %3744 = vmatpush.bf16.msra.mxu0 %v2355
  %3745 = vmatpush.bf16.msra.mxu0 %v2353
  %3746 = vmatpush.bf16.msra.mxu0 %v2351
  %3747 = vmatpush.bf16.msra.mxu0 %v2349
  %3748 = vmatpush.bf16.msra.mxu0 %v2347
  %3749 = vmatpush.bf16.msra.mxu0 %v2345
  %3750 = vmatpush.bf16.msra.mxu0 %v2343
  %3751 = vmatpush.bf16.msra.mxu0 %v2341
  %3752 = vmatmul.bf16.gmra.mxu0 %v556
  %v3753 = vpop.f32.mrf.mxu0
  %v3754 = vadd.f32 %v3741, %v3753
  %v3755 = vpop.f32.mrf.mxu0
  %3756 = vdwg.mxu0
  %3757 = vmatpush.bf16.msra.mxu0 %v2371
  %3758 = vmatpush.bf16.msra.mxu0 %v2369
  %3759 = vmatpush.bf16.msra.mxu0 %v2367
  %3760 = vmatpush.bf16.msra.mxu0 %v2365
  %3761 = vmatpush.bf16.msra.mxu0 %v2363
  %3762 = vmatpush.bf16.msra.mxu0 %v2361
  %3763 = vmatpush.bf16.msra.mxu0 %v2359
  %3764 = vmatpush.bf16.msra.mxu0 %v2357
  %3765 = vmatmul.bf16.gmra.mxu0 %v557
  %v3766 = vpop.f32.mrf.mxu0
  %v3767 = vadd.f32 %v3754, %v3766
  %v3768 = vpop.f32.mrf.mxu0
  %3769 = vdwg.mxu0
  %3770 = vmatpush.bf16.msra.mxu0 %v2387
  %3771 = vmatpush.bf16.msra.mxu0 %v2385
  %3772 = vmatpush.bf16.msra.mxu0 %v2383
  %3773 = vmatpush.bf16.msra.mxu0 %v2381
  %3774 = vmatpush.bf16.msra.mxu0 %v2379
  %3775 = vmatpush.bf16.msra.mxu0 %v2377
  %3776 = vmatpush.bf16.msra.mxu0 %v2375
  %3777 = vmatpush.bf16.msra.mxu0 %v2373
  %3778 = vmatmul.bf16.gmra.mxu0 %v558
  %v3779 = vpop.f32.mrf.mxu0
  %v3780 = vadd.f32 %v3767, %v3779
  %v3781 = vpop.f32.mrf.mxu0
  %3782 = vdwg.mxu0
  %3783 = vmatpush.bf16.msra.mxu0 %v2403
  %3784 = vmatpush.bf16.msra.mxu0 %v2401
  %3785 = vmatpush.bf16.msra.mxu0 %v2399
  %3786 = vmatpush.bf16.msra.mxu0 %v2397
  %3787 = vmatpush.bf16.msra.mxu0 %v2395
  %3788 = vmatpush.bf16.msra.mxu0 %v2393
  %3789 = vmatpush.bf16.msra.mxu0 %v2391
  %3790 = vmatpush.bf16.msra.mxu0 %v2389
  %3791 = vmatmul.bf16.gmra.mxu0 %v559
  %v3792 = vpop.f32.mrf.mxu0
  %v3793 = vadd.f32 %v3780, %v3792
  %v3794 = vpop.f32.mrf.mxu0
  %3795 = vdwg.mxu0
  %3796 = vmatpush.bf16.msra.mxu0 %v2419
  %3797 = vmatpush.bf16.msra.mxu0 %v2417
  %3798 = vmatpush.bf16.msra.mxu0 %v2415
  %3799 = vmatpush.bf16.msra.mxu0 %v2413
  %3800 = vmatpush.bf16.msra.mxu0 %v2411
  %3801 = vmatpush.bf16.msra.mxu0 %v2409
  %3802 = vmatpush.bf16.msra.mxu0 %v2407
  %3803 = vmatpush.bf16.msra.mxu0 %v2405
  %3804 = vmatmul.bf16.gmra.mxu0 %v562
  %v3805 = vpop.f32.mrf.mxu0
  %v3806 = vadd.f32 %v3793, %v3805
  %v3807 = vpop.f32.mrf.mxu0
  %3808 = vdwg.mxu0
  %3809 = vmatpush.bf16.msra.mxu0 %v2435
  %3810 = vmatpush.bf16.msra.mxu0 %v2433
  %3811 = vmatpush.bf16.msra.mxu0 %v2431
  %3812 = vmatpush.bf16.msra.mxu0 %v2429
  %3813 = vmatpush.bf16.msra.mxu0 %v2427
  %3814 = vmatpush.bf16.msra.mxu0 %v2425
  %3815 = vmatpush.bf16.msra.mxu0 %v2423
  %3816 = vmatpush.bf16.msra.mxu0 %v2421
  %3817 = vmatmul.bf16.gmra.mxu0 %v563
  %v3818 = vpop.f32.mrf.mxu0
  %v3819 = vadd.f32 %v3806, %v3818
  %v3820 = vpop.f32.mrf.mxu0
  %3821 = vdwg.mxu0
  %3822 = vmatpush.bf16.msra.mxu0 %v2451
  %3823 = vmatpush.bf16.msra.mxu0 %v2449
  %3824 = vmatpush.bf16.msra.mxu0 %v2447
  %3825 = vmatpush.bf16.msra.mxu0 %v2445
  %3826 = vmatpush.bf16.msra.mxu0 %v2443
  %3827 = vmatpush.bf16.msra.mxu0 %v2441
  %3828 = vmatpush.bf16.msra.mxu0 %v2439
  %3829 = vmatpush.bf16.msra.mxu0 %v2437
  %3830 = vmatmul.bf16.gmra.mxu0 %v564
  %v3831 = vpop.f32.mrf.mxu0
  %v3832 = vadd.f32 %v3819, %v3831
  %v3833 = vpop.f32.mrf.mxu0
  %3834 = vdwg.mxu0
  %3835 = vmatpush.bf16.msra.mxu0 %v2467
  %3836 = vmatpush.bf16.msra.mxu0 %v2465
  %3837 = vmatpush.bf16.msra.mxu0 %v2463
  %3838 = vmatpush.bf16.msra.mxu0 %v2461
  %3839 = vmatpush.bf16.msra.mxu0 %v2459
  %3840 = vmatpush.bf16.msra.mxu0 %v2457
  %3841 = vmatpush.bf16.msra.mxu0 %v2455
  %3842 = vmatpush.bf16.msra.mxu0 %v2453
  %3843 = vmatmul.bf16.gmra.mxu0 %v565
  %v3844 = vpop.f32.mrf.mxu0
  %v3845 = vadd.f32 %v3832, %v3844
  %v3846 = vpop.f32.mrf.mxu0
  %3847 = vdwg.mxu0
  %3848 = vmatpush.bf16.msra.mxu0 %v2483
  %3849 = vmatpush.bf16.msra.mxu0 %v2481
  %3850 = vmatpush.bf16.msra.mxu0 %v2479
  %3851 = vmatpush.bf16.msra.mxu0 %v2477
  %3852 = vmatpush.bf16.msra.mxu0 %v2475
  %3853 = vmatpush.bf16.msra.mxu0 %v2473
  %3854 = vmatpush.bf16.msra.mxu0 %v2471
  %3855 = vmatpush.bf16.msra.mxu0 %v2469
  %3856 = vmatmul.bf16.gmra.mxu0 %v566
  %v3857 = vpop.f32.mrf.mxu0
  %v3858 = vadd.f32 %v3845, %v3857
  %v3859 = vpop.f32.mrf.mxu0
  %3860 = vdwg.mxu0
  %3861 = vmatpush.bf16.msra.mxu0 %v2499
  %3862 = vmatpush.bf16.msra.mxu0 %v2497
  %3863 = vmatpush.bf16.msra.mxu0 %v2495
  %3864 = vmatpush.bf16.msra.mxu0 %v2493
  %3865 = vmatpush.bf16.msra.mxu0 %v2491
  %3866 = vmatpush.bf16.msra.mxu0 %v2489
  %3867 = vmatpush.bf16.msra.mxu0 %v2487
  %3868 = vmatpush.bf16.msra.mxu0 %v2485
  %3869 = vmatmul.bf16.gmra.mxu0 %v567
  %v3870 = vpop.f32.mrf.mxu0
  %v3871 = vadd.f32 %v3858, %v3870
  %v3872 = vpop.f32.mrf.mxu0
  %3873 = vdwg.mxu0
  %3874 = vmatpush.bf16.msra.mxu0 %v2515
  %3875 = vmatpush.bf16.msra.mxu0 %v2513
  %3876 = vmatpush.bf16.msra.mxu0 %v2511
  %3877 = vmatpush.bf16.msra.mxu0 %v2509
  %3878 = vmatpush.bf16.msra.mxu0 %v2507
  %3879 = vmatpush.bf16.msra.mxu0 %v2505
  %3880 = vmatpush.bf16.msra.mxu0 %v2503
  %3881 = vmatpush.bf16.msra.mxu0 %v2501
  %3882 = vmatmul.bf16.gmra.mxu0 %v568
  %v3883 = vpop.f32.mrf.mxu0
  %v3884 = vadd.f32 %v3871, %v3883
  %v3885 = vpop.f32.mrf.mxu0
  %3886 = vdwg.mxu0
  %3887 = vmatpush.bf16.msra.mxu0 %v2531
  %3888 = vmatpush.bf16.msra.mxu0 %v2529
  %3889 = vmatpush.bf16.msra.mxu0 %v2527
  %3890 = vmatpush.bf16.msra.mxu0 %v2525
  %3891 = vmatpush.bf16.msra.mxu0 %v2523
  %3892 = vmatpush.bf16.msra.mxu0 %v2521
  %3893 = vmatpush.bf16.msra.mxu0 %v2519
  %3894 = vmatpush.bf16.msra.mxu0 %v2517
  %3895 = vmatmul.bf16.gmra.mxu0 %v569
  %v3896 = vpop.f32.mrf.mxu0
  %v3897 = vadd.f32 %v3884, %v3896
  %v3898 = vpop.f32.mrf.mxu0
  %3899 = vdwg.mxu0
  %3900 = vmatpush.bf16.msra.mxu0 %v2547
  %3901 = vmatpush.bf16.msra.mxu0 %v2545
  %3902 = vmatpush.bf16.msra.mxu0 %v2543
  %3903 = vmatpush.bf16.msra.mxu0 %v2541
  %3904 = vmatpush.bf16.msra.mxu0 %v2539
  %3905 = vmatpush.bf16.msra.mxu0 %v2537
  %3906 = vmatpush.bf16.msra.mxu0 %v2535
  %3907 = vmatpush.bf16.msra.mxu0 %v2533
  %3908 = vmatmul.bf16.gmra.mxu0 %v572
  %v3909 = vpop.f32.mrf.mxu0
  %v3910 = vadd.f32 %v3897, %v3909
  %v3911 = vpop.f32.mrf.mxu0
  %3912 = vdwg.mxu0
  %3913 = vmatpush.bf16.msra.mxu0 %v2563
  %3914 = vmatpush.bf16.msra.mxu0 %v2561
  %3915 = vmatpush.bf16.msra.mxu0 %v2559
  %3916 = vmatpush.bf16.msra.mxu0 %v2557
  %3917 = vmatpush.bf16.msra.mxu0 %v2555
  %3918 = vmatpush.bf16.msra.mxu0 %v2553
  %3919 = vmatpush.bf16.msra.mxu0 %v2551
  %3920 = vmatpush.bf16.msra.mxu0 %v2549
  %3921 = vmatmul.bf16.gmra.mxu0 %v573
  %v3922 = vpop.f32.mrf.mxu0
  %v3923 = vadd.f32 %v3910, %v3922
  %v3924 = vpop.f32.mrf.mxu0
  %3925 = vdwg.mxu0
  %3926 = vmatpush.bf16.msra.mxu0 %v2579
  %3927 = vmatpush.bf16.msra.mxu0 %v2577
  %3928 = vmatpush.bf16.msra.mxu0 %v2575
  %3929 = vmatpush.bf16.msra.mxu0 %v2573
  %3930 = vmatpush.bf16.msra.mxu0 %v2571
  %3931 = vmatpush.bf16.msra.mxu0 %v2569
  %3932 = vmatpush.bf16.msra.mxu0 %v2567
  %3933 = vmatpush.bf16.msra.mxu0 %v2565
  %3934 = vmatmul.bf16.gmra.mxu0 %v574
  %v3935 = vpop.f32.mrf.mxu0
  %v3936 = vadd.f32 %v3923, %v3935
  %v3937 = vpop.f32.mrf.mxu0
  %3938 = vdwg.mxu0
  %3939 = vmatpush.bf16.msra.mxu0 %v2595
  %3940 = vmatpush.bf16.msra.mxu0 %v2593
  %3941 = vmatpush.bf16.msra.mxu0 %v2591
  %3942 = vmatpush.bf16.msra.mxu0 %v2589
  %3943 = vmatpush.bf16.msra.mxu0 %v2587
  %3944 = vmatpush.bf16.msra.mxu0 %v2585
  %3945 = vmatpush.bf16.msra.mxu0 %v2583
  %3946 = vmatpush.bf16.msra.mxu0 %v2581
  %3947 = vmatmul.bf16.gmra.mxu0 %v575
  %v3948 = vpop.f32.mrf.mxu0
  %v3949 = vadd.f32 %v3936, %v3948
  %v3950 = vpop.f32.mrf.mxu0
  %3951 = vdwg.mxu0
  %3952 = vmatpush.bf16.msra.mxu0 %v2611
  %3953 = vmatpush.bf16.msra.mxu0 %v2609
  %3954 = vmatpush.bf16.msra.mxu0 %v2607
  %3955 = vmatpush.bf16.msra.mxu0 %v2605
  %3956 = vmatpush.bf16.msra.mxu0 %v2603
  %3957 = vmatpush.bf16.msra.mxu0 %v2601
  %3958 = vmatpush.bf16.msra.mxu0 %v2599
  %3959 = vmatpush.bf16.msra.mxu0 %v2597
  %3960 = vmatmul.bf16.gmra.mxu0 %v576
  %v3961 = vpop.f32.mrf.mxu0
  %v3962 = vadd.f32 %v3949, %v3961
  %v3963 = vpop.f32.mrf.mxu0
  %3964 = vdwg.mxu0
  %3965 = vmatpush.bf16.msra.mxu0 %v2627
  %3966 = vmatpush.bf16.msra.mxu0 %v2625
  %3967 = vmatpush.bf16.msra.mxu0 %v2623
  %3968 = vmatpush.bf16.msra.mxu0 %v2621
  %3969 = vmatpush.bf16.msra.mxu0 %v2619
  %3970 = vmatpush.bf16.msra.mxu0 %v2617
  %3971 = vmatpush.bf16.msra.mxu0 %v2615
  %3972 = vmatpush.bf16.msra.mxu0 %v2613
  %3973 = vmatmul.bf16.gmra.mxu0 %v577
  %v3974 = vpop.f32.mrf.mxu0
  %v3975 = vadd.f32 %v3962, %v3974
  %v3976 = vpop.f32.mrf.mxu0
  %3977 = vdwg.mxu0
  %3978 = vmatpush.bf16.msra.mxu0 %v2643
  %3979 = vmatpush.bf16.msra.mxu0 %v2641
  %3980 = vmatpush.bf16.msra.mxu0 %v2639
  %3981 = vmatpush.bf16.msra.mxu0 %v2637
  %3982 = vmatpush.bf16.msra.mxu0 %v2635
  %3983 = vmatpush.bf16.msra.mxu0 %v2633
  %3984 = vmatpush.bf16.msra.mxu0 %v2631
  %3985 = vmatpush.bf16.msra.mxu0 %v2629
  %3986 = vmatmul.bf16.gmra.mxu0 %v578
  %v3987 = vpop.f32.mrf.mxu0
  %v3988 = vadd.f32 %v3975, %v3987
  %v3989 = vpop.f32.mrf.mxu0
  %3990 = vdwg.mxu0
  %3991 = vmatpush.bf16.msra.mxu0 %v2659
  %3992 = vmatpush.bf16.msra.mxu0 %v2657
  %3993 = vmatpush.bf16.msra.mxu0 %v2655
  %3994 = vmatpush.bf16.msra.mxu0 %v2653
  %3995 = vmatpush.bf16.msra.mxu0 %v2651
  %3996 = vmatpush.bf16.msra.mxu0 %v2649
  %3997 = vmatpush.bf16.msra.mxu0 %v2647
  %3998 = vmatpush.bf16.msra.mxu0 %v2645
  %3999 = vmatmul.bf16.gmra.mxu0 %v579
  %v4000 = vpop.f32.mrf.mxu0
  %v4001 = vadd.f32 %v3988, %v4000
  %v4002 = vpop.f32.mrf.mxu0
  %4003 = vdwg.mxu0
  %v4004 = vld [vmem:[%s2] ss:$2 sm:$0x3]
  %s4005 = scalar_lea.vmem %s2, 1
  %v4006 = vld [vmem:[%s4005] ss:$2 sm:$0x3]
  %vm4007 = vcmask 1041408
  %v4008 = vsel %vm4007, %v3585, 0.0
  %v4009 = vrot.slane %v4008, 4
  %v4010 = vadd.f32 %v4008, %v4009
  %v4011 = vrot.slane %v4010, 2
  %v4012 = vadd.f32 %v4010, %v4011
  %v4013 = vrot.slane %v4012, 1
  %v4014 = vadd.f32 %v4012, %v4013
  %v4015 = vsel %vm4007, %v4001, 0.0
  %v4016 = vrot.slane %v4015, 4
  %v4017 = vadd.f32 %v4015, %v4016
  %v4018 = vrot.slane %v4017, 2
  %v4019 = vadd.f32 %v4017, %v4018
  %v4020 = vrot.slane %v4019, 1
  %v4021 = vadd.f32 %v4019, %v4020
  %v4022 = vrcp.pop 2.0
  %v4023 = vmul.f32 2.0, %v4022
  %v4024 = vsub.f32 1.0, %v4023
  %v4025 = vmul.f32 %v4022, %v4024
  %v4026 = vadd.f32 %v4022, %v4025
  %vm4027 = vweird.f32 %v4022
  %v4028 = vsel %vm4027, %v4022, %v4026
  %v4029 = vmul.f32 %v4014, %v4028
  %v4030 = vmul.f32 %v4021, %v4028
  %v4031 = vsub.f32 %v3585, %v4029
  %v4032 = vsub.f32 %v4001, %v4030
  %v4033 = vmul.f32 %v4031, %v4031
  %v4034 = vmul.f32 %v4032, %v4032
  %v4035 = vsel %vm4007, %v4033, 0.0
  %v4036 = vrot.slane %v4035, 4
  %v4037 = vadd.f32 %v4035, %v4036
  %v4038 = vrot.slane %v4037, 2
  %v4039 = vadd.f32 %v4037, %v4038
  %v4040 = vrot.slane %v4039, 1
  %v4041 = vadd.f32 %v4039, %v4040
  %v4042 = vsel %vm4007, %v4034, 0.0
  %v4043 = vrot.slane %v4042, 4
  %v4044 = vadd.f32 %v4042, %v4043
  %v4045 = vrot.slane %v4044, 2
  %v4046 = vadd.f32 %v4044, %v4045
  %v4047 = vrot.slane %v4046, 1
  %v4048 = vadd.f32 %v4046, %v4047
  %v4049 = vmul.f32 %v4041, %v4028
  %v4050 = vmul.f32 %v4048, %v4028
  %v4051 = vadd.f32 %v4049, 1e-05
  %v4052 = vadd.f32 %v4050, 1e-05
  %v4053 = vrsqrt.pop %v4051
  %v4054 = vmul.f32 %v4053, %v4051
  %v4055 = vmul.f32 %v4054, %v4053
  %v4056 = vmul.f32 0.5, %v4055
  %v4057 = vsub.f32 1.5, %v4056
  %v4058 = vmul.f32 %v4053, %v4057
  %vm4059 = vweird.f32 %v4051
  %vm4060 = vweird.f32 %v4053
  %vm4061 = vmor %vm4059, %vm4060
  %v4062 = vsel %vm4061, %v4053, %v4058
  %v4063 = vrsqrt.pop %v4052
  %v4064 = vmul.f32 %v4063, %v4052
  %v4065 = vmul.f32 %v4064, %v4063
  %v4066 = vmul.f32 0.5, %v4065
  %v4067 = vsub.f32 1.5, %v4066
  %v4068 = vmul.f32 %v4063, %v4067
  %vm4069 = vweird.f32 %v4052
  %vm4070 = vweird.f32 %v4063
  %vm4071 = vmor %vm4069, %vm4070
  %v4072 = vsel %vm4071, %v4063, %v4068
  %v4073 = vmul.f32 %v4031, %v4062
  %v4074 = vmul.f32 %v4032, %v4072
  %v4076 = vperm.slane %v4004, 0
  %v4077 = vperm.slane %v4004, 1
  %v4080 = vmul.f32 %v4073, %v4076
  %v4081 = vmul.f32 %v4074, %v4077
  %v4083 = vperm.slane %v4006, 0
  %v4084 = vperm.slane %v4006, 1
  %v4087 = vadd.f32 %v4080, %v4083
  %v4088 = vadd.f32 %v4081, %v4084
  %v4089 = vmax.f32 %v4087, 0.0
  %v4090 = vmax.f32 %v4088, 0.0
  %v4091 = vld [vmem:[%s5 + $0x4] sm:$0x3f]
  %v4092 = vpack.c.bf16 %v4091, %v4091
  %v4093 = vpack.c.bf16 %v4089, %v4089
  %v4094 = vpack.c.bf16 %v4090, %v4090
  %v4095 = vld [vmem:[%s4] sm:$0xf]
  %v4096 = vld [vmem:[%s4 + $0x4] sm:$0xf]
  %v4097 = vld [vmem:[%s4 + $0x8] sm:$0xf]
  %v4098 = vld [vmem:[%s4 + $0xc] sm:$0xf]
  %v4099 = vld [vmem:[%s4 + $0x10] sm:$0xf]
  %v4100 = vld [vmem:[%s4 + $0x14] sm:$0xf]
  %v4101 = vld [vmem:[%s4 + $0x18] sm:$0xf]
  %v4102 = vld [vmem:[%s4 + $0x1c] sm:$0xf]
  %v4103 = vld [vmem:[%s4 + $0x20] sm:$0xf]
  %v4104 = vld [vmem:[%s4 + $0x24] sm:$0xf]
  %v4105 = vld [vmem:[%s4 + $0x28] sm:$0xf]
  %v4106 = vld [vmem:[%s4 + $0x2c] sm:$0xf]
  %v4107 = vld [vmem:[%s4 + $0x30] sm:$0xf]
  %v4108 = vld [vmem:[%s4 + $0x34] sm:$0xf]
  %v4109 = vld [vmem:[%s4 + $0x38] sm:$0xf]
  %v4110 = vld [vmem:[%s4 + $0x3c] sm:$0xf]
  %v4111 = vld [vmem:[%s4 + $0x40] sm:$0xf]
  %v4112 = vld [vmem:[%s4 + $0x44] sm:$0xf]
  %v4113 = vld [vmem:[%s4 + $0x48] sm:$0xf]
  %v4114 = vld [vmem:[%s4 + $0x4c] sm:$0xf]
  %v4115 = vld [vmem:[%s4 + $0x50] sm:$0xf]
  %v4116 = vld [vmem:[%s4 + $0x54] sm:$0xf]
  %v4117 = vld [vmem:[%s4 + $0x58] sm:$0xf]
  %v4118 = vld [vmem:[%s4 + $0x5c] sm:$0xf]
  %v4119 = vld [vmem:[%s4 + $0x60] sm:$0xf]
  %v4120 = vld [vmem:[%s4 + $0x64] sm:$0xf]
  %v4121 = vld [vmem:[%s4 + $0x68] sm:$0xf]
  %v4122 = vld [vmem:[%s4 + $0x6c] sm:$0xf]
  %v4123 = vld [vmem:[%s4 + $0x70] sm:$0xf]
  %v4124 = vld [vmem:[%s4 + $0x74] sm:$0xf]
  %v4125 = vld [vmem:[%s4 + $0x78] sm:$0xf]
  %v4126 = vld [vmem:[%s4 + $0x7c] sm:$0xf]
  %v4127 = vld [vmem:[%s3] sm:$0x3]
  %v4128 = vpack.c.bf16 %v4127, %v4127
  %vm4129 = vcmask 48128
  %v4131 = vsel %vm4129, %v4128, 0
  %vm4133 = vcmask 1042432
  %v4135 = vsel %vm4133, %v4092, 0
  %4137 = vmatpush.bf16.msra.mxu0 0
  %4138 = vmatpush.bf16.msra.mxu0 0
  %4139 = vmatpush.bf16.msra.mxu0 0
  %4140 = vmatpush.bf16.msra.mxu0 0
  %4141 = vmatpush.bf16.msra.mxu0 0
  %4142 = vmatpush.bf16.msra.mxu0 0
  %4143 = vmatpush.bf16.msra.mxu0 0
  %4144 = vmatpush.bf16.msra.mxu0 %v4135
  %4145 = vmatmul.bf16.gmra.mxu0 %v4131
  %v4146 = vpop.f32.mrf.mxu0
  %v4147 = vadd.f32 0.0, %v4146
  %v4148 = vpop.f32.mrf.mxu0
  %4149 = vdwg.mxu0
  %v4182 = vunpack.c.l.b16 %v4095
  %v4183 = vunpack.c.l.b16 %v4096
  %v4184 = vunpack.c.l.b16 %v4097
  %v4185 = vunpack.c.l.b16 %v4098
  %v4186 = vunpack.c.l.b16 %v4099
  %v4187 = vunpack.c.l.b16 %v4100
  %v4188 = vunpack.c.l.b16 %v4101
  %v4189 = vunpack.c.l.b16 %v4102
  %v4190 = vunpack.c.l.b16 %v4103
  %v4191 = vunpack.c.l.b16 %v4104
  %v4192 = vunpack.c.l.b16 %v4105
  %v4193 = vunpack.c.l.b16 %v4106
  %v4194 = vunpack.c.l.b16 %v4107
  %v4195 = vunpack.c.l.b16 %v4108
  %v4196 = vunpack.c.l.b16 %v4109
  %v4197 = vunpack.c.l.b16 %v4110
  %v4198 = vunpack.c.l.b16 %v4111
  %v4199 = vunpack.c.l.b16 %v4112
  %v4200 = vunpack.c.l.b16 %v4113
  %v4201 = vunpack.c.l.b16 %v4114
  %v4202 = vunpack.c.l.b16 %v4115
  %v4203 = vunpack.c.l.b16 %v4116
  %v4204 = vunpack.c.l.b16 %v4117
  %v4205 = vunpack.c.l.b16 %v4118
  %v4206 = vunpack.c.l.b16 %v4119
  %v4207 = vunpack.c.l.b16 %v4120
  %v4208 = vunpack.c.l.b16 %v4121
  %v4209 = vunpack.c.l.b16 %v4122
  %v4210 = vunpack.c.l.b16 %v4123
  %v4211 = vunpack.c.l.b16 %v4124
  %v4212 = vunpack.c.l.b16 %v4125
  %v4213 = vunpack.c.l.b16 %v4126
  %v4214 = vpack.c.b16 %v4183, %v4182
  %v4215 = vpack.c.b16 %v4185, %v4184
  %v4216 = vpack.c.b16 %v4187, %v4186
  %v4217 = vpack.c.b16 %v4189, %v4188
  %v4218 = vpack.c.b16 %v4191, %v4190
  %v4219 = vpack.c.b16 %v4193, %v4192
  %v4220 = vpack.c.b16 %v4195, %v4194
  %v4221 = vpack.c.b16 %v4197, %v4196
  %v4222 = vpack.c.b16 %v4199, %v4198
  %v4223 = vpack.c.b16 %v4201, %v4200
  %v4224 = vpack.c.b16 %v4203, %v4202
  %v4225 = vpack.c.b16 %v4205, %v4204
  %v4226 = vpack.c.b16 %v4207, %v4206
  %v4227 = vpack.c.b16 %v4209, %v4208
  %v4228 = vpack.c.b16 %v4211, %v4210
  %v4229 = vpack.c.b16 %v4213, %v4212
  %4246 = vmatpush.bf16.msra.mxu0 %v4221
  %4247 = vmatpush.bf16.msra.mxu0 %v4220
  %4248 = vmatpush.bf16.msra.mxu0 %v4219
  %4249 = vmatpush.bf16.msra.mxu0 %v4218
  %4250 = vmatpush.bf16.msra.mxu0 %v4217
  %4251 = vmatpush.bf16.msra.mxu0 %v4216
  %4252 = vmatpush.bf16.msra.mxu0 %v4215
  %4253 = vmatpush.bf16.msra.mxu0 %v4214
  %4254 = vmatmul.bf16.gmra.mxu0 %v4093
  %v4255 = vpop.f32.mrf.mxu0
  %v4256 = vadd.f32 %v4147, %v4255
  %v4257 = vpop.f32.mrf.mxu0
  %4258 = vdwg.mxu0
  %4259 = vmatpush.bf16.msra.mxu0 %v4229
  %4260 = vmatpush.bf16.msra.mxu0 %v4228
  %4261 = vmatpush.bf16.msra.mxu0 %v4227
  %4262 = vmatpush.bf16.msra.mxu0 %v4226
  %4263 = vmatpush.bf16.msra.mxu0 %v4225
  %4264 = vmatpush.bf16.msra.mxu0 %v4224
  %4265 = vmatpush.bf16.msra.mxu0 %v4223
  %4266 = vmatpush.bf16.msra.mxu0 %v4222
  %4267 = vmatmul.bf16.gmra.mxu0 %v4094
  %v4268 = vpop.f32.mrf.mxu0
  %v4269 = vadd.f32 %v4256, %v4268
  %v4270 = vpop.f32.mrf.mxu0
  %4271 = vdwg.mxu0
  %v4272 = vld [vmem:[%s5] sm:$0x1]
  %v4273 = vld [vmem:[%s5 + $0x1] sm:$0x1]
  %vm4274 = vcmask 254976
  %v4275 = vsel %vm4274, %v4269, 0.0
  %v4276 = vrot.slane %v4275, 4
  %v4277 = vadd.f32 %v4275, %v4276
  %v4278 = vrot.slane %v4277, 2
  %v4279 = vadd.f32 %v4277, %v4278
  %v4280 = vrot.slane %v4279, 1
  %v4281 = vadd.f32 %v4279, %v4280
  %v4282 = vmul.f32 %v4281, %v4028
  %v4283 = vsub.f32 %v4269, %v4282
  %v4284 = vmul.f32 %v4283, %v4283
  %v4285 = vsel %vm4274, %v4284, 0.0
  %v4286 = vrot.slane %v4285, 4
  %v4287 = vadd.f32 %v4285, %v4286
  %v4288 = vrot.slane %v4287, 2
  %v4289 = vadd.f32 %v4287, %v4288
  %v4290 = vrot.slane %v4289, 1
  %v4291 = vadd.f32 %v4289, %v4290
  %v4292 = vmul.f32 %v4291, %v4028
  %v4293 = vadd.f32 %v4292, 1e-05
  %v4294 = vrsqrt.pop %v4293
  %v4295 = vmul.f32 %v4294, %v4293
  %v4296 = vmul.f32 %v4295, %v4294
  %v4297 = vmul.f32 0.5, %v4296
  %v4298 = vsub.f32 1.5, %v4297
  %v4299 = vmul.f32 %v4294, %v4298
  %vm4300 = vweird.f32 %v4293
  %vm4301 = vweird.f32 %v4294
  %vm4302 = vmor %vm4300, %vm4301
  %v4303 = vsel %vm4302, %v4294, %v4299
  %v4304 = vmul.f32 %v4283, %v4303
  %v4305 = vperm.slane %v4272, 0
  %v4306 = vmul.f32 %v4304, %v4305
  %v4307 = vperm.slane %v4273, 0
  %v4308 = vadd.f32 %v4306, %v4307
  %v4309 = vmax.f32 %v4308, 0.0
  %v4310 = vld [vmem:[%s5 + $0x2] sm:$0x1]
  %v4311 = vperm.slane %v4310, 0
  %v4312 = vmul.f32 %v4309, %v4311
  %v4313 = vsel %vm4274, %v4312, 0.0
  %4314 = vadd.xlane.f32.xlu0 %v4313
  %v4315 = vpop.xlane.xlu0 %4314
  %v4316 = vld [vmem:[%s5 + $0x3] sm:$0x1]
  %v4317 = vperm.slane %v4316, 0
  %v4318 = vadd.f32 %v4315, %v4317
  %vm4319 = vcmask 1024
  %4320 = vst.msk [vmem:[%s6] sm:$0x3] %vm4319, %v4318
  // Predicated region
  $region26: #{critic_forward.13} parent=0 // pred_check
    _
  $region27: #{critic_forward.13} parent=0 // pred_check_branch
    %4322 = sbr.rel (0) target = $region29
  $region28: #{critic_forward.13} parent=0 // pred_region
    _
  $region29: #{critic_forward.13} parent=0 // pred_fallthru
    _
  // Predicated region
  $region30: #{critic_forward.13} parent=0 // pred_check
    _
  $region31: #{critic_forward.13} parent=0 // pred_check_branch
    %4324 = sbr.rel (0) target = $region33
  $region32: #{critic_forward.13} parent=0 // pred_region
    _
  $region33: #{critic_forward.13} parent=0 // pred_fallthru
    _

</llo_original>
